<compile_context>
chip_gen: v5e
topology: v5e:2x2
jax: 0.10.0
libtpu: 0.0.40
codegen_flags: <defaults>
</compile_context>

<pallas_src>
import jax
import jax.numpy as jnp
import numpy as np
from jax.experimental import pallas as pl
from jax.experimental.pallas import tpu as pltpu


_NORM_EPS = 1e-12  # guards 0/0 -> NaN in the L2 norms; negligible otherwise


def _round_up(v, m):
    return (v + m - 1) // m * m


def _model_kernel(x_ref, wconv_ref, bconv_ref, wfc_ref, bfc_ref,
                  bn1s_ref, bn1b_ref, gf_ref, lf_ref, af_ref):
    # x_ref block: (Bt, C, H*W) -- native NCHW layout, spatial positions on lanes.
    Bt, C, HW = x_ref.shape
    H = lf_ref.shape[1]
    W = HW // H

    bconv = bconv_ref[...]                                   # (1, E)

    # ---- local path + global accumulation, one spatial row (h) at a time ----
    # Each slab read is only (Bt, C, W); the W-mean is a cheap lane reduce that
    # also performs the NCHW -> channels-on-lanes layout change implicitly, so
    # no wrapper transpose / full-block XLU transpose is needed and live values
    # stay small (bounded vreg pressure).
    gf_sum = jnp.zeros((Bt, C), jnp.float32)
    for h in range(H):                                       # static, unrolled
        xh = x_ref[:, :, pl.ds(h * W, W)]                    # (Bt, C, W)
        lm_h = jnp.sum(xh, axis=-1) * (1.0 / W)              # (Bt, C) W-mean
        gf_sum = gf_sum + lm_h
        # 1x1 conv (bias + BN2d folded into the weights) on the MXU.
        y = jnp.dot(lm_h, wconv_ref[...],
                    preferred_element_type=jnp.float32)      # (Bt, E)
        y = y + bconv
        y = y * jax.lax.rsqrt(jnp.sum(y * y, axis=-1, keepdims=True) + _NORM_EPS)
        lf_ref[:, h, :] = y                                  # lane-dense store

    # ---- global path: mean over H of the W-means == global average pool ----
    gf = gf_sum * (1.0 / H)                                  # (Bt, C)
    # TODO(synk): F.dropout(p=0.2) treated as identity (inference behaviour).
    gf = gf * bn1s_ref[...] + bn1b_ref[...]                  # eval BatchNorm1d (folded)
    gf = gf * jax.lax.rsqrt(jnp.sum(gf * gf, axis=-1, keepdims=True) + _NORM_EPS)
    gf_ref[...] = gf

    # ---- arc path: Linear + ReLU + L2-norm on the normalized global feature ----
    a = jnp.dot(gf, wfc_ref[...], preferred_element_type=jnp.float32)   # (Bt, E)
    a = jnp.maximum(a + bfc_ref[...], 0.0)
    a = a * jax.lax.rsqrt(jnp.sum(a * a, axis=-1, keepdims=True) + _NORM_EPS)
    af_ref[...] = a


def model_forward(x_nchw, params, *, block_batch=None):
    """x_nchw: (B, C, H, W) float32 backbone feature map (PyTorch NCHW layout).

    The kernel consumes the NCHW feature map directly; the only wrapper-side
    shape op is a metadata-only reshape to (B, C, H*W), so the feature map
    crosses HBM exactly once (no transpose, no padding copy).
    """
    B, C, H, W = x_nchw.shape
    E = params["arc_fc_w"].shape[0]                          # embed_dim
    HW = H * W
    x3 = x_nchw.reshape(B, C, HW)                            # view, no data movement

    # Fold BN running stats (eval mode) into scale/shift once at trace time.
    eps = 1e-5
    bn1_scale = params["bn1_gamma"] / jnp.sqrt(params["bn1_var"] + eps)
    bn1_shift = params["bn1_beta"] - params["bn1_mean"] * bn1_scale
    bn2_scale = params["bn2_gamma"] / jnp.sqrt(params["bn2_var"] + eps)
    bn2_shift = params["bn2_beta"] - params["bn2_mean"] * bn2_scale

    # Fold conv bias + BN2d directly into the 1x1-conv weights.
    wconv = params["conv_w"].reshape(E, C).T * bn2_scale[None, :]        # (C, E)
    bconv = (params["conv_b"] * bn2_scale + bn2_shift).reshape(1, E)     # (1, E)
    wfc = params["arc_fc_w"].T                                           # (C, E)
    bfc = params["arc_fc_b"].reshape(1, E)                               # (1, E)

    # ---- pick the batch tile Bt -------------------------------------------
    # Target ~8 MiB per x buffer (double-buffered ~16 MiB) to amortize the
    # ~0.35 us per-grid-step overhead; prefer >=2 blocks so the "parallel"
    # axis can engage both TensorCores on v7x.  Bt must be a multiple of 8
    # (sublane constraint of the 2-D outputs) unless it covers the whole batch.
    x_bytes_per_sample = _round_up(C, 8) * _round_up(HW, 128) * 4
    if block_batch is None:
        block_batch = max(1, (8 * 1024 * 1024) // x_bytes_per_sample)
        if B > 8:
            block_batch = min(block_batch, max(8, pl.cdiv(B, 2)))
    Bt = max(1, min(block_batch, B))
    if Bt < B and Bt % 8 != 0:
        Bt = min(_round_up(Bt, 8), B)
    num_blocks = pl.cdiv(B, Bt)      # ragged last block handled by Pallas masking

    vmem_limit = min(60 * 1024 * 1024,
                     2 * Bt * x_bytes_per_sample + 24 * 1024 * 1024)

    gf, lf, af = pl.pallas_call(
        _model_kernel,
        out_shape=(
            jax.ShapeDtypeStruct((B, C), jnp.float32),
            jax.ShapeDtypeStruct((B, H, E), jnp.float32),
            jax.ShapeDtypeStruct((B, E), jnp.float32),
        ),
        grid_spec=pltpu.PrefetchScalarGridSpec(
            num_scalar_prefetch=0,
            grid=(num_blocks,),
            in_specs=[
                pl.BlockSpec((Bt, C, HW), lambda b: (b, 0, 0)),    # x (NCHW view)
                pl.BlockSpec((C, E), lambda b: (0, 0)),            # conv w (folded)
                pl.BlockSpec((1, E), lambda b: (0, 0)),            # conv b (folded)
                pl.BlockSpec((C, E), lambda b: (0, 0)),            # arc fc w
                pl.BlockSpec((1, E), lambda b: (0, 0)),            # arc fc b
                pl.BlockSpec((1, C), lambda b: (0, 0)),            # bn1 scale
                pl.BlockSpec((1, C), lambda b: (0, 0)),            # bn1 shift
            ],
            out_specs=[
                pl.BlockSpec((Bt, C), lambda b: (b, 0)),           # global_feat
                pl.BlockSpec((Bt, H, E), lambda b: (b, 0, 0)),     # local_feat
                pl.BlockSpec((Bt, E), lambda b: (b, 0)),           # arc_feats
            ],
        ),
        compiler_params=pltpu.CompilerParams(
            dimension_semantics=("parallel",),
            vmem_limit_bytes=vmem_limit),
    )(x3, wconv, bconv, wfc, bfc,
      bn1_scale.reshape(1, C), bn1_shift.reshape(1, C))
    return gf, lf, af


def reference_forward(x_nchw, params):
    """Pure-JAX reference mirroring the PyTorch forward (eval-mode BN, no dropout)."""
    eps = 1e-5
    B, C, H, W = x_nchw.shape
    E = params["arc_fc_w"].shape[0]

    def l2n(v, axis):
        return v / jnp.linalg.norm(v, axis=axis, keepdims=True)

    gf = jnp.mean(x_nchw, axis=(2, 3))                                   # (B, C)
    gf = (gf - params["bn1_mean"]) / jnp.sqrt(params["bn1_var"] + eps) \
         * params["bn1_gamma"] + params["bn1_beta"]
    gf = l2n(gf, 1)

    lm = jnp.mean(x_nchw, axis=3)                                        # (B, C, H)
    wconv = params["conv_w"].reshape(E, C)
    lf = jnp.einsum("ec,bch->beh", wconv, lm) + params["conv_b"][None, :, None]
    lf = (lf - params["bn2_mean"][None, :, None]) \
         / jnp.sqrt(params["bn2_var"] + eps)[None, :, None] \
         * params["bn2_gamma"][None, :, None] + params["bn2_beta"][None, :, None]
    lf = jnp.transpose(lf, (0, 2, 1))                                    # (B, H, E)
    lf = l2n(lf, -1)

    af = jnp.maximum(gf @ params["arc_fc_w"].T + params["arc_fc_b"], 0.0)
    af = l2n(af, 1)
    return gf, lf, af


if __name__ == "__main__":
    # Small shapes consistent with the module (backbone_dim -> C, embed_dim -> E)
    B, C, H, W, E = 2, 256, 8, 8, 128

    key = jax.random.PRNGKey(0)
    ks = jax.random.split(key, 13)
    x = jax.random.normal(ks[0], (B, C, H, W), jnp.float32)

    params = {
        "arc_fc_w": jax.random.normal(ks[1], (E, C), jnp.float32) * 0.02,
        "arc_fc_b": jax.random.normal(ks[2], (E,), jnp.float32) * 0.01,
        "conv_w":   jax.random.normal(ks[3], (E, C, 1, 1), jnp.float32) * 0.02,
        "conv_b":   jax.random.normal(ks[4], (E,), jnp.float32) * 0.01,
        "bn1_gamma": 1.0 + 0.1 * jax.random.normal(ks[5], (C,), jnp.float32),
        "bn1_beta":  0.1 * jax.random.normal(ks[6], (C,), jnp.float32),
        "bn1_mean":  0.1 * jax.random.normal(ks[7], (C,), jnp.float32),
        "bn1_var":   1.0 + 0.1 * jax.nn.softplus(jax.random.normal(ks[8], (C,), jnp.float32)),
        "bn2_gamma": 1.0 + 0.1 * jax.random.normal(ks[9], (E,), jnp.float32),
        "bn2_beta":  0.1 * jax.random.normal(ks[10], (E,), jnp.float32),
        "bn2_mean":  0.1 * jax.random.normal(ks[11], (E,), jnp.float32),
        "bn2_var":   jnp.ones((E,), jnp.float32),
    }

    gf, lf, af = jax.block_until_ready(model_forward(x, params))
    gf_r, lf_r, af_r = reference_forward(x, params)
    np.testing.assert_allclose(np.asarray(gf), np.asarray(gf_r), rtol=1e-4, atol=1e-5)
    np.testing.assert_allclose(np.asarray(lf), np.asarray(lf_r), rtol=1e-4, atol=1e-5)
    np.testing.assert_allclose(np.asarray(af), np.asarray(af_r), rtol=1e-4, atol=1e-5)

    # Ragged, multi-block batch: exercises the cdiv grid (no jnp.pad copy),
    # >=2 "parallel" blocks (both TensorCores on v7x) and the masked last block.
    B2 = 12
    x2 = jax.random.normal(ks[12], (B2, C, H, W), jnp.float32)
    gf2, lf2, af2 = jax.block_until_ready(model_forward(x2, params))
    gf2_r, lf2_r, af2_r = reference_forward(x2, params)
    np.testing.assert_allclose(np.asarray(gf2), np.asarray(gf2_r), rtol=1e-4, atol=1e-5)
    np.testing.assert_allclose(np.asarray(lf2), np.asarray(lf2_r), rtol=1e-4, atol=1e-5)
    np.testing.assert_allclose(np.asarray(af2), np.asarray(af2_r), rtol=1e-4, atol=1e-5)

    print("KERNEL_OK")
</pallas_src>

<mosaic_0001>
module attributes {stable_mosaic.version = 11 : i64} {
  func.func @_model_kernel(%arg0: i32, %arg1: memref<2x256x64xf32, #tpu.memory_space<vmem>>, %arg2: memref<256x128xf32, #tpu.memory_space<vmem>>, %arg3: memref<1x128xf32, #tpu.memory_space<vmem>>, %arg4: memref<256x128xf32, #tpu.memory_space<vmem>>, %arg5: memref<1x128xf32, #tpu.memory_space<vmem>>, %arg6: memref<1x256xf32, #tpu.memory_space<vmem>>, %arg7: memref<1x256xf32, #tpu.memory_space<vmem>>, %arg8: memref<2x256xf32, #tpu.memory_space<vmem>>, %arg9: memref<2x8x128xf32, #tpu.memory_space<vmem>>, %arg10: memref<2x128xf32, #tpu.memory_space<vmem>>) attributes {dimension_semantics = [#tpu.dimension_semantics<parallel>], iteration_bounds = array<i64: 1>, scalar_prefetch = 0 : i64, scratch_operands = 0 : i64, tpu.core_type = #tpu.core_type<tc>, window_params = [{transform_indices = @transform_0, window_bounds = array<i64: 2, 256, 64>}, {pipeline_mode = #tpu.pipeline_mode<synchronous>, transform_indices = @transform_1, window_bounds = array<i64: 256, 128>}, {pipeline_mode = #tpu.pipeline_mode<synchronous>, transform_indices = @transform_2, window_bounds = array<i64: 1, 128>}, {pipeline_mode = #tpu.pipeline_mode<synchronous>, transform_indices = @transform_3, window_bounds = array<i64: 256, 128>}, {pipeline_mode = #tpu.pipeline_mode<synchronous>, transform_indices = @transform_4, window_bounds = array<i64: 1, 128>}, {pipeline_mode = #tpu.pipeline_mode<synchronous>, transform_indices = @transform_5, window_bounds = array<i64: 1, 256>}, {pipeline_mode = #tpu.pipeline_mode<synchronous>, transform_indices = @transform_6, window_bounds = array<i64: 1, 256>}, {transform_indices = @transform_7, window_bounds = array<i64: 2, 256>}, {transform_indices = @transform_8, window_bounds = array<i64: 2, 8, 128>}, {transform_indices = @transform_9, window_bounds = array<i64: 2, 128>}]} {
    %c0 = arith.constant 0 : index
    %c0_0 = arith.constant 0 : index
    %0 = vector.load %arg3[%c0, %c0_0] : memref<1x128xf32, #tpu.memory_space<vmem>>, vector<1x128xf32>
    %cst = arith.constant 0.000000e+00 : f32
    %1 = vector.broadcast %cst : f32 to vector<2x256xf32>
    %c0_1 = arith.constant 0 : index
    %c0_2 = arith.constant 0 : index
    %c0_3 = arith.constant 0 : index
    %2 = vector.load %arg1[%c0_1, %c0_2, %c0_3] : memref<2x256x64xf32, #tpu.memory_space<vmem>>, vector<2x256x8xf32>
    %cst_4 = arith.constant dense<0.000000e+00> : vector<2x256xf32>
    %3 = vector.multi_reduction <add>, %2, %cst_4 [2] : vector<2x256x8xf32> to vector<2x256xf32>
    %cst_5 = arith.constant 1.250000e-01 : f32
    %4 = vector.broadcast %cst_5 : f32 to vector<2x256xf32>
    %5 = arith.mulf %3, %4 : vector<2x256xf32>
    %6 = arith.addf %1, %5 : vector<2x256xf32>
    %c0_6 = arith.constant 0 : index
    %c0_7 = arith.constant 0 : index
    %7 = vector.load %arg2[%c0_6, %c0_7] : memref<256x128xf32, #tpu.memory_space<vmem>>, vector<256x128xf32>
    %cst_8 = arith.constant dense<0.000000e+00> : vector<2x128xf32>
    %8 = tpu.matmul %5, %7, %cst_8 {dimension_numbers = #tpu.dot_dimension_numbers<[1], [0], [0], [1], [0, 0, 1, 1], [], []>} : vector<2x256xf32>, vector<256x128xf32>, vector<2x128xf32> -> vector<2x128xf32>
    %9 = vector.broadcast %0 : vector<1x128xf32> to vector<2x128xf32>
    %10 = arith.addf %8, %9 : vector<2x128xf32>
    %11 = arith.mulf %10, %10 : vector<2x128xf32>
    %cst_9 = arith.constant dense<0.000000e+00> : vector<2xf32>
    %12 = vector.multi_reduction <add>, %11, %cst_9 [1] : vector<2x128xf32> to vector<2xf32>
    %13 = vector.shape_cast %12 : vector<2xf32> to vector<2x1xf32>
    %cst_10 = arith.constant 9.99999996E-13 : f32
    %14 = vector.broadcast %cst_10 : f32 to vector<2x1xf32>
    %15 = arith.addf %13, %14 : vector<2x1xf32>
    %16 = math.rsqrt %15 : vector<2x1xf32>
    %17 = vector.broadcast %16 : vector<2x1xf32> to vector<2x128xf32>
    %18 = arith.mulf %10, %17 : vector<2x128xf32>
    %c0_11 = arith.constant 0 : index
    %c0_12 = arith.constant 0 : index
    %c0_13 = arith.constant 0 : index
    %19 = vector.load %arg9[%c0_11, %c0_12, %c0_13] : memref<2x8x128xf32, #tpu.memory_space<vmem>>, vector<2x1x128xf32>
    %20 = vector.shape_cast %19 : vector<2x1x128xf32> to vector<2x128xf32>
    %21 = vector.shape_cast %18 : vector<2x128xf32> to vector<2x1x128xf32>
    tpu.vector_store %arg9[%c0_11, %c0_12, %c0_13], %21 {strides = array<i32>} : memref<2x8x128xf32, #tpu.memory_space<vmem>>, vector<2x1x128xf32>,
    %c0_14 = arith.constant 0 : index
    %c0_15 = arith.constant 0 : index
    %c8 = arith.constant 8 : index
    %22 = vector.load %arg1[%c0_14, %c0_15, %c8] : memref<2x256x64xf32, #tpu.memory_space<vmem>>, vector<2x256x8xf32>
    %cst_16 = arith.constant dense<0.000000e+00> : vector<2x256xf32>
    %23 = vector.multi_reduction <add>, %22, %cst_16 [2] : vector<2x256x8xf32> to vector<2x256xf32>
    %cst_17 = arith.constant 1.250000e-01 : f32
    %24 = vector.broadcast %cst_17 : f32 to vector<2x256xf32>
    %25 = arith.mulf %23, %24 : vector<2x256xf32>
    %26 = arith.addf %6, %25 : vector<2x256xf32>
    %c0_18 = arith.constant 0 : index
    %c0_19 = arith.constant 0 : index
    %27 = vector.load %arg2[%c0_18, %c0_19] : memref<256x128xf32, #tpu.memory_space<vmem>>, vector<256x128xf32>
    %cst_20 = arith.constant dense<0.000000e+00> : vector<2x128xf32>
    %28 = tpu.matmul %25, %27, %cst_20 {dimension_numbers = #tpu.dot_dimension_numbers<[1], [0], [0], [1], [0, 0, 1, 1], [], []>} : vector<2x256xf32>, vector<256x128xf32>, vector<2x128xf32> -> vector<2x128xf32>
    %29 = vector.broadcast %0 : vector<1x128xf32> to vector<2x128xf32>
    %30 = arith.addf %28, %29 : vector<2x128xf32>
    %31 = arith.mulf %30, %30 : vector<2x128xf32>
    %cst_21 = arith.constant dense<0.000000e+00> : vector<2xf32>
    %32 = vector.multi_reduction <add>, %31, %cst_21 [1] : vector<2x128xf32> to vector<2xf32>
    %33 = vector.shape_cast %32 : vector<2xf32> to vector<2x1xf32>
    %cst_22 = arith.constant 9.99999996E-13 : f32
    %34 = vector.broadcast %cst_22 : f32 to vector<2x1xf32>
    %35 = arith.addf %33, %34 : vector<2x1xf32>
    %36 = math.rsqrt %35 : vector<2x1xf32>
    %37 = vector.broadcast %36 : vector<2x1xf32> to vector<2x128xf32>
    %38 = arith.mulf %30, %37 : vector<2x128xf32>
    %c0_23 = arith.constant 0 : index
    %c1 = arith.constant 1 : index
    %c0_24 = arith.constant 0 : index
    %39 = vector.load %arg9[%c0_23, %c1, %c0_24] : memref<2x8x128xf32, #tpu.memory_space<vmem>>, vector<2x1x128xf32>
    %40 = vector.shape_cast %39 : vector<2x1x128xf32> to vector<2x128xf32>
    %41 = vector.shape_cast %38 : vector<2x128xf32> to vector<2x1x128xf32>
    tpu.vector_store %arg9[%c0_23, %c1, %c0_24], %41 {strides = array<i32>} : memref<2x8x128xf32, #tpu.memory_space<vmem>>, vector<2x1x128xf32>,
    %c0_25 = arith.constant 0 : index
    %c0_26 = arith.constant 0 : index
    %c16 = arith.constant 16 : index
    %42 = vector.load %arg1[%c0_25, %c0_26, %c16] : memref<2x256x64xf32, #tpu.memory_space<vmem>>, vector<2x256x8xf32>
    %cst_27 = arith.constant dense<0.000000e+00> : vector<2x256xf32>
    %43 = vector.multi_reduction <add>, %42, %cst_27 [2] : vector<2x256x8xf32> to vector<2x256xf32>
    %cst_28 = arith.constant 1.250000e-01 : f32
    %44 = vector.broadcast %cst_28 : f32 to vector<2x256xf32>
    %45 = arith.mulf %43, %44 : vector<2x256xf32>
    %46 = arith.addf %26, %45 : vector<2x256xf32>
    %c0_29 = arith.constant 0 : index
    %c0_30 = arith.constant 0 : index
    %47 = vector.load %arg2[%c0_29, %c0_30] : memref<256x128xf32, #tpu.memory_space<vmem>>, vector<256x128xf32>
    %cst_31 = arith.constant dense<0.000000e+00> : vector<2x128xf32>
    %48 = tpu.matmul %45, %47, %cst_31 {dimension_numbers = #tpu.dot_dimension_numbers<[1], [0], [0], [1], [0, 0, 1, 1], [], []>} : vector<2x256xf32>, vector<256x128xf32>, vector<2x128xf32> -> vector<2x128xf32>
    %49 = vector.broadcast %0 : vector<1x128xf32> to vector<2x128xf32>
    %50 = arith.addf %48, %49 : vector<2x128xf32>
    %51 = arith.mulf %50, %50 : vector<2x128xf32>
    %cst_32 = arith.constant dense<0.000000e+00> : vector<2xf32>
    %52 = vector.multi_reduction <add>, %51, %cst_32 [1] : vector<2x128xf32> to vector<2xf32>
    %53 = vector.shape_cast %52 : vector<2xf32> to vector<2x1xf32>
    %cst_33 = arith.constant 9.99999996E-13 : f32
    %54 = vector.broadcast %cst_33 : f32 to vector<2x1xf32>
    %55 = arith.addf %53, %54 : vector<2x1xf32>
    %56 = math.rsqrt %55 : vector<2x1xf32>
    %57 = vector.broadcast %56 : vector<2x1xf32> to vector<2x128xf32>
    %58 = arith.mulf %50, %57 : vector<2x128xf32>
    %c0_34 = arith.constant 0 : index
    %c2 = arith.constant 2 : index
    %c0_35 = arith.constant 0 : index
    %59 = vector.load %arg9[%c0_34, %c2, %c0_35] : memref<2x8x128xf32, #tpu.memory_space<vmem>>, vector<2x1x128xf32>
    %60 = vector.shape_cast %59 : vector<2x1x128xf32> to vector<2x128xf32>
    %61 = vector.shape_cast %58 : vector<2x128xf32> to vector<2x1x128xf32>
    tpu.vector_store %arg9[%c0_34, %c2, %c0_35], %61 {strides = array<i32>} : memref<2x8x128xf32, #tpu.memory_space<vmem>>, vector<2x1x128xf32>,
    %c0_36 = arith.constant 0 : index
    %c0_37 = arith.constant 0 : index
    %c24 = arith.constant 24 : index
    %62 = vector.load %arg1[%c0_36, %c0_37, %c24] : memref<2x256x64xf32, #tpu.memory_space<vmem>>, vector<2x256x8xf32>
    %cst_38 = arith.constant dense<0.000000e+00> : vector<2x256xf32>
    %63 = vector.multi_reduction <add>, %62, %cst_38 [2] : vector<2x256x8xf32> to vector<2x256xf32>
    %cst_39 = arith.constant 1.250000e-01 : f32
    %64 = vector.broadcast %cst_39 : f32 to vector<2x256xf32>
    %65 = arith.mulf %63, %64 : vector<2x256xf32>
    %66 = arith.addf %46, %65 : vector<2x256xf32>
    %c0_40 = arith.constant 0 : index
    %c0_41 = arith.constant 0 : index
    %67 = vector.load %arg2[%c0_40, %c0_41] : memref<256x128xf32, #tpu.memory_space<vmem>>, vector<256x128xf32>
    %cst_42 = arith.constant dense<0.000000e+00> : vector<2x128xf32>
    %68 = tpu.matmul %65, %67, %cst_42 {dimension_numbers = #tpu.dot_dimension_numbers<[1], [0], [0], [1], [0, 0, 1, 1], [], []>} : vector<2x256xf32>, vector<256x128xf32>, vector<2x128xf32> -> vector<2x128xf32>
    %69 = vector.broadcast %0 : vector<1x128xf32> to vector<2x128xf32>
    %70 = arith.addf %68, %69 : vector<2x128xf32>
    %71 = arith.mulf %70, %70 : vector<2x128xf32>
    %cst_43 = arith.constant dense<0.000000e+00> : vector<2xf32>
    %72 = vector.multi_reduction <add>, %71, %cst_43 [1] : vector<2x128xf32> to vector<2xf32>
    %73 = vector.shape_cast %72 : vector<2xf32> to vector<2x1xf32>
    %cst_44 = arith.constant 9.99999996E-13 : f32
    %74 = vector.broadcast %cst_44 : f32 to vector<2x1xf32>
    %75 = arith.addf %73, %74 : vector<2x1xf32>
    %76 = math.rsqrt %75 : vector<2x1xf32>
    %77 = vector.broadcast %76 : vector<2x1xf32> to vector<2x128xf32>
    %78 = arith.mulf %70, %77 : vector<2x128xf32>
    %c0_45 = arith.constant 0 : index
    %c3 = arith.constant 3 : index
    %c0_46 = arith.constant 0 : index
    %79 = vector.load %arg9[%c0_45, %c3, %c0_46] : memref<2x8x128xf32, #tpu.memory_space<vmem>>, vector<2x1x128xf32>
    %80 = vector.shape_cast %79 : vector<2x1x128xf32> to vector<2x128xf32>
    %81 = vector.shape_cast %78 : vector<2x128xf32> to vector<2x1x128xf32>
    tpu.vector_store %arg9[%c0_45, %c3, %c0_46], %81 {strides = array<i32>} : memref<2x8x128xf32, #tpu.memory_space<vmem>>, vector<2x1x128xf32>,
    %c0_47 = arith.constant 0 : index
    %c0_48 = arith.constant 0 : index
    %c32 = arith.constant 32 : index
    %82 = vector.load %arg1[%c0_47, %c0_48, %c32] : memref<2x256x64xf32, #tpu.memory_space<vmem>>, vector<2x256x8xf32>
    %cst_49 = arith.constant dense<0.000000e+00> : vector<2x256xf32>
    %83 = vector.multi_reduction <add>, %82, %cst_49 [2] : vector<2x256x8xf32> to vector<2x256xf32>
    %cst_50 = arith.constant 1.250000e-01 : f32
    %84 = vector.broadcast %cst_50 : f32 to vector<2x256xf32>
    %85 = arith.mulf %83, %84 : vector<2x256xf32>
    %86 = arith.addf %66, %85 : vector<2x256xf32>
    %c0_51 = arith.constant 0 : index
    %c0_52 = arith.constant 0 : index
    %87 = vector.load %arg2[%c0_51, %c0_52] : memref<256x128xf32, #tpu.memory_space<vmem>>, vector<256x128xf32>
    %cst_53 = arith.constant dense<0.000000e+00> : vector<2x128xf32>
    %88 = tpu.matmul %85, %87, %cst_53 {dimension_numbers = #tpu.dot_dimension_numbers<[1], [0], [0], [1], [0, 0, 1, 1], [], []>} : vector<2x256xf32>, vector<256x128xf32>, vector<2x128xf32> -> vector<2x128xf32>
    %89 = vector.broadcast %0 : vector<1x128xf32> to vector<2x128xf32>
    %90 = arith.addf %88, %89 : vector<2x128xf32>
    %91 = arith.mulf %90, %90 : vector<2x128xf32>
    %cst_54 = arith.constant dense<0.000000e+00> : vector<2xf32>
    %92 = vector.multi_reduction <add>, %91, %cst_54 [1] : vector<2x128xf32> to vector<2xf32>
    %93 = vector.shape_cast %92 : vector<2xf32> to vector<2x1xf32>
    %cst_55 = arith.constant 9.99999996E-13 : f32
    %94 = vector.broadcast %cst_55 : f32 to vector<2x1xf32>
    %95 = arith.addf %93, %94 : vector<2x1xf32>
    %96 = math.rsqrt %95 : vector<2x1xf32>
    %97 = vector.broadcast %96 : vector<2x1xf32> to vector<2x128xf32>
    %98 = arith.mulf %90, %97 : vector<2x128xf32>
    %c0_56 = arith.constant 0 : index
    %c4 = arith.constant 4 : index
    %c0_57 = arith.constant 0 : index
    %99 = vector.load %arg9[%c0_56, %c4, %c0_57] : memref<2x8x128xf32, #tpu.memory_space<vmem>>, vector<2x1x128xf32>
    %100 = vector.shape_cast %99 : vector<2x1x128xf32> to vector<2x128xf32>
    %101 = vector.shape_cast %98 : vector<2x128xf32> to vector<2x1x128xf32>
    tpu.vector_store %arg9[%c0_56, %c4, %c0_57], %101 {strides = array<i32>} : memref<2x8x128xf32, #tpu.memory_space<vmem>>, vector<2x1x128xf32>,
    %c0_58 = arith.constant 0 : index
    %c0_59 = arith.constant 0 : index
    %c40 = arith.constant 40 : index
    %102 = vector.load %arg1[%c0_58, %c0_59, %c40] : memref<2x256x64xf32, #tpu.memory_space<vmem>>, vector<2x256x8xf32>
    %cst_60 = arith.constant dense<0.000000e+00> : vector<2x256xf32>
    %103 = vector.multi_reduction <add>, %102, %cst_60 [2] : vector<2x256x8xf32> to vector<2x256xf32>
    %cst_61 = arith.constant 1.250000e-01 : f32
    %104 = vector.broadcast %cst_61 : f32 to vector<2x256xf32>
    %105 = arith.mulf %103, %104 : vector<2x256xf32>
    %106 = arith.addf %86, %105 : vector<2x256xf32>
    %c0_62 = arith.constant 0 : index
    %c0_63 = arith.constant 0 : index
    %107 = vector.load %arg2[%c0_62, %c0_63] : memref<256x128xf32, #tpu.memory_space<vmem>>, vector<256x128xf32>
    %cst_64 = arith.constant dense<0.000000e+00> : vector<2x128xf32>
    %108 = tpu.matmul %105, %107, %cst_64 {dimension_numbers = #tpu.dot_dimension_numbers<[1], [0], [0], [1], [0, 0, 1, 1], [], []>} : vector<2x256xf32>, vector<256x128xf32>, vector<2x128xf32> -> vector<2x128xf32>
    %109 = vector.broadcast %0 : vector<1x128xf32> to vector<2x128xf32>
    %110 = arith.addf %108, %109 : vector<2x128xf32>
    %111 = arith.mulf %110, %110 : vector<2x128xf32>
    %cst_65 = arith.constant dense<0.000000e+00> : vector<2xf32>
    %112 = vector.multi_reduction <add>, %111, %cst_65 [1] : vector<2x128xf32> to vector<2xf32>
    %113 = vector.shape_cast %112 : vector<2xf32> to vector<2x1xf32>
    %cst_66 = arith.constant 9.99999996E-13 : f32
    %114 = vector.broadcast %cst_66 : f32 to vector<2x1xf32>
    %115 = arith.addf %113, %114 : vector<2x1xf32>
    %116 = math.rsqrt %115 : vector<2x1xf32>
    %117 = vector.broadcast %116 : vector<2x1xf32> to vector<2x128xf32>
    %118 = arith.mulf %110, %117 : vector<2x128xf32>
    %c0_67 = arith.constant 0 : index
    %c5 = arith.constant 5 : index
    %c0_68 = arith.constant 0 : index
    %119 = vector.load %arg9[%c0_67, %c5, %c0_68] : memref<2x8x128xf32, #tpu.memory_space<vmem>>, vector<2x1x128xf32>
    %120 = vector.shape_cast %119 : vector<2x1x128xf32> to vector<2x128xf32>
    %121 = vector.shape_cast %118 : vector<2x128xf32> to vector<2x1x128xf32>
    tpu.vector_store %arg9[%c0_67, %c5, %c0_68], %121 {strides = array<i32>} : memref<2x8x128xf32, #tpu.memory_space<vmem>>, vector<2x1x128xf32>,
    %c0_69 = arith.constant 0 : index
    %c0_70 = arith.constant 0 : index
    %c48 = arith.constant 48 : index
    %122 = vector.load %arg1[%c0_69, %c0_70, %c48] : memref<2x256x64xf32, #tpu.memory_space<vmem>>, vector<2x256x8xf32>
    %cst_71 = arith.constant dense<0.000000e+00> : vector<2x256xf32>
    %123 = vector.multi_reduction <add>, %122, %cst_71 [2] : vector<2x256x8xf32> to vector<2x256xf32>
    %cst_72 = arith.constant 1.250000e-01 : f32
    %124 = vector.broadcast %cst_72 : f32 to vector<2x256xf32>
    %125 = arith.mulf %123, %124 : vector<2x256xf32>
    %126 = arith.addf %106, %125 : vector<2x256xf32>
    %c0_73 = arith.constant 0 : index
    %c0_74 = arith.constant 0 : index
    %127 = vector.load %arg2[%c0_73, %c0_74] : memref<256x128xf32, #tpu.memory_space<vmem>>, vector<256x128xf32>
    %cst_75 = arith.constant dense<0.000000e+00> : vector<2x128xf32>
    %128 = tpu.matmul %125, %127, %cst_75 {dimension_numbers = #tpu.dot_dimension_numbers<[1], [0], [0], [1], [0, 0, 1, 1], [], []>} : vector<2x256xf32>, vector<256x128xf32>, vector<2x128xf32> -> vector<2x128xf32>
    %129 = vector.broadcast %0 : vector<1x128xf32> to vector<2x128xf32>
    %130 = arith.addf %128, %129 : vector<2x128xf32>
    %131 = arith.mulf %130, %130 : vector<2x128xf32>
    %cst_76 = arith.constant dense<0.000000e+00> : vector<2xf32>
    %132 = vector.multi_reduction <add>, %131, %cst_76 [1] : vector<2x128xf32> to vector<2xf32>
    %133 = vector.shape_cast %132 : vector<2xf32> to vector<2x1xf32>
    %cst_77 = arith.constant 9.99999996E-13 : f32
    %134 = vector.broadcast %cst_77 : f32 to vector<2x1xf32>
    %135 = arith.addf %133, %134 : vector<2x1xf32>
    %136 = math.rsqrt %135 : vector<2x1xf32>
    %137 = vector.broadcast %136 : vector<2x1xf32> to vector<2x128xf32>
    %138 = arith.mulf %130, %137 : vector<2x128xf32>
    %c0_78 = arith.constant 0 : index
    %c6 = arith.constant 6 : index
    %c0_79 = arith.constant 0 : index
    %139 = vector.load %arg9[%c0_78, %c6, %c0_79] : memref<2x8x128xf32, #tpu.memory_space<vmem>>, vector<2x1x128xf32>
    %140 = vector.shape_cast %139 : vector<2x1x128xf32> to vector<2x128xf32>
    %141 = vector.shape_cast %138 : vector<2x128xf32> to vector<2x1x128xf32>
    tpu.vector_store %arg9[%c0_78, %c6, %c0_79], %141 {strides = array<i32>} : memref<2x8x128xf32, #tpu.memory_space<vmem>>, vector<2x1x128xf32>,
    %c0_80 = arith.constant 0 : index
    %c0_81 = arith.constant 0 : index
    %c56 = arith.constant 56 : index
    %142 = vector.load %arg1[%c0_80, %c0_81, %c56] : memref<2x256x64xf32, #tpu.memory_space<vmem>>, vector<2x256x8xf32>
    %cst_82 = arith.constant dense<0.000000e+00> : vector<2x256xf32>
    %143 = vector.multi_reduction <add>, %142, %cst_82 [2] : vector<2x256x8xf32> to vector<2x256xf32>
    %cst_83 = arith.constant 1.250000e-01 : f32
    %144 = vector.broadcast %cst_83 : f32 to vector<2x256xf32>
    %145 = arith.mulf %143, %144 : vector<2x256xf32>
    %146 = arith.addf %126, %145 : vector<2x256xf32>
    %c0_84 = arith.constant 0 : index
    %c0_85 = arith.constant 0 : index
    %147 = vector.load %arg2[%c0_84, %c0_85] : memref<256x128xf32, #tpu.memory_space<vmem>>, vector<256x128xf32>
    %cst_86 = arith.constant dense<0.000000e+00> : vector<2x128xf32>
    %148 = tpu.matmul %145, %147, %cst_86 {dimension_numbers = #tpu.dot_dimension_numbers<[1], [0], [0], [1], [0, 0, 1, 1], [], []>} : vector<2x256xf32>, vector<256x128xf32>, vector<2x128xf32> -> vector<2x128xf32>
    %149 = vector.broadcast %0 : vector<1x128xf32> to vector<2x128xf32>
    %150 = arith.addf %148, %149 : vector<2x128xf32>
    %151 = arith.mulf %150, %150 : vector<2x128xf32>
    %cst_87 = arith.constant dense<0.000000e+00> : vector<2xf32>
    %152 = vector.multi_reduction <add>, %151, %cst_87 [1] : vector<2x128xf32> to vector<2xf32>
    %153 = vector.shape_cast %152 : vector<2xf32> to vector<2x1xf32>
    %cst_88 = arith.constant 9.99999996E-13 : f32
    %154 = vector.broadcast %cst_88 : f32 to vector<2x1xf32>
    %155 = arith.addf %153, %154 : vector<2x1xf32>
    %156 = math.rsqrt %155 : vector<2x1xf32>
    %157 = vector.broadcast %156 : vector<2x1xf32> to vector<2x128xf32>
    %158 = arith.mulf %150, %157 : vector<2x128xf32>
    %c0_89 = arith.constant 0 : index
    %c7 = arith.constant 7 : index
    %c0_90 = arith.constant 0 : index
    %159 = vector.load %arg9[%c0_89, %c7, %c0_90] : memref<2x8x128xf32, #tpu.memory_space<vmem>>, vector<2x1x128xf32>
    %160 = vector.shape_cast %159 : vector<2x1x128xf32> to vector<2x128xf32>
    %161 = vector.shape_cast %158 : vector<2x128xf32> to vector<2x1x128xf32>
    tpu.vector_store %arg9[%c0_89, %c7, %c0_90], %161 {strides = array<i32>} : memref<2x8x128xf32, #tpu.memory_space<vmem>>, vector<2x1x128xf32>,
    %cst_91 = arith.constant 1.250000e-01 : f32
    %162 = vector.broadcast %cst_91 : f32 to vector<2x256xf32>
    %163 = arith.mulf %146, %162 : vector<2x256xf32>
    %c0_92 = arith.constant 0 : index
    %c0_93 = arith.constant 0 : index
    %164 = vector.load %arg6[%c0_92, %c0_93] : memref<1x256xf32, #tpu.memory_space<vmem>>, vector<1x256xf32>
    %165 = vector.broadcast %164 : vector<1x256xf32> to vector<2x256xf32>
    %166 = arith.mulf %163, %165 : vector<2x256xf32>
    %c0_94 = arith.constant 0 : index
    %c0_95 = arith.constant 0 : index
    %167 = vector.load %arg7[%c0_94, %c0_95] : memref<1x256xf32, #tpu.memory_space<vmem>>, vector<1x256xf32>
    %168 = vector.broadcast %167 : vector<1x256xf32> to vector<2x256xf32>
    %169 = arith.addf %166, %168 : vector<2x256xf32>
    %170 = arith.mulf %169, %169 : vector<2x256xf32>
    %cst_96 = arith.constant dense<0.000000e+00> : vector<2xf32>
    %171 = vector.multi_reduction <add>, %170, %cst_96 [1] : vector<2x256xf32> to vector<2xf32>
    %172 = vector.shape_cast %171 : vector<2xf32> to vector<2x1xf32>
    %cst_97 = arith.constant 9.99999996E-13 : f32
    %173 = vector.broadcast %cst_97 : f32 to vector<2x1xf32>
    %174 = arith.addf %172, %173 : vector<2x1xf32>
    %175 = math.rsqrt %174 : vector<2x1xf32>
    %176 = vector.broadcast %175 : vector<2x1xf32> to vector<2x256xf32>
    %177 = arith.mulf %169, %176 : vector<2x256xf32>
    %c0_98 = arith.constant 0 : index
    %c0_99 = arith.constant 0 : index
    %178 = vector.load %arg8[%c0_98, %c0_99] : memref<2x256xf32, #tpu.memory_space<vmem>>, vector<2x256xf32>
    tpu.vector_store %arg8[%c0_98, %c0_99], %177 {strides = array<i32>} : memref<2x256xf32, #tpu.memory_space<vmem>>, vector<2x256xf32>,
    %c0_100 = arith.constant 0 : index
    %c0_101 = arith.constant 0 : index
    %179 = vector.load %arg4[%c0_100, %c0_101] : memref<256x128xf32, #tpu.memory_space<vmem>>, vector<256x128xf32>
    %cst_102 = arith.constant dense<0.000000e+00> : vector<2x128xf32>
    %180 = tpu.matmul %177, %179, %cst_102 {dimension_numbers = #tpu.dot_dimension_numbers<[1], [0], [0], [1], [0, 0, 1, 1], [], []>} : vector<2x256xf32>, vector<256x128xf32>, vector<2x128xf32> -> vector<2x128xf32>
    %c0_103 = arith.constant 0 : index
    %c0_104 = arith.constant 0 : index
    %181 = vector.load %arg5[%c0_103, %c0_104] : memref<1x128xf32, #tpu.memory_space<vmem>>, vector<1x128xf32>
    %182 = vector.broadcast %181 : vector<1x128xf32> to vector<2x128xf32>
    %183 = arith.addf %180, %182 : vector<2x128xf32>
    %cst_105 = arith.constant 0.000000e+00 : f32
    %184 = vector.broadcast %cst_105 : f32 to vector<2x128xf32>
    %185 = arith.maximumf %183, %184 : vector<2x128xf32>
    %186 = arith.mulf %185, %185 : vector<2x128xf32>
    %cst_106 = arith.constant dense<0.000000e+00> : vector<2xf32>
    %187 = vector.multi_reduction <add>, %186, %cst_106 [1] : vector<2x128xf32> to vector<2xf32>
    %188 = vector.shape_cast %187 : vector<2xf32> to vector<2x1xf32>
    %cst_107 = arith.constant 9.99999996E-13 : f32
    %189 = vector.broadcast %cst_107 : f32 to vector<2x1xf32>
    %190 = arith.addf %188, %189 : vector<2x1xf32>
    %191 = math.rsqrt %190 : vector<2x1xf32>
    %192 = vector.broadcast %191 : vector<2x1xf32> to vector<2x128xf32>
    %193 = arith.mulf %185, %192 : vector<2x128xf32>
    %c0_108 = arith.constant 0 : index
    %c0_109 = arith.constant 0 : index
    %194 = vector.load %arg10[%c0_108, %c0_109] : memref<2x128xf32, #tpu.memory_space<vmem>>, vector<2x128xf32>
    tpu.vector_store %arg10[%c0_108, %c0_109], %193 {strides = array<i32>} : memref<2x128xf32, #tpu.memory_space<vmem>>, vector<2x128xf32>,
    return
  }
  func.func @transform_0(%arg0: i32) -> (i32, i32, i32) {
    %c0_i32 = arith.constant 0 : i32
    %c0_i32_0 = arith.constant 0 : i32
    %c0_i32_1 = arith.constant 0 : i32
    return %arg0, %c0_i32, %c0_i32_0 : i32, i32, i32
  }
  func.func @transform_1(%arg0: i32) -> (i32, i32) {
    %c0_i32 = arith.constant 0 : i32
    %c0_i32_0 = arith.constant 0 : i32
    %c0_i32_1 = arith.constant 0 : i32
    return %c0_i32, %c0_i32_0 : i32, i32
  }
  func.func @transform_2(%arg0: i32) -> (i32, i32) {
    %c0_i32 = arith.constant 0 : i32
    %c0_i32_0 = arith.constant 0 : i32
    %c0_i32_1 = arith.constant 0 : i32
    return %c0_i32, %c0_i32_0 : i32, i32
  }
  func.func @transform_3(%arg0: i32) -> (i32, i32) {
    %c0_i32 = arith.constant 0 : i32
    %c0_i32_0 = arith.constant 0 : i32
    %c0_i32_1 = arith.constant 0 : i32
    return %c0_i32, %c0_i32_0 : i32, i32
  }
  func.func @transform_4(%arg0: i32) -> (i32, i32) {
    %c0_i32 = arith.constant 0 : i32
    %c0_i32_0 = arith.constant 0 : i32
    %c0_i32_1 = arith.constant 0 : i32
    return %c0_i32, %c0_i32_0 : i32, i32
  }
  func.func @transform_5(%arg0: i32) -> (i32, i32) {
    %c0_i32 = arith.constant 0 : i32
    %c0_i32_0 = arith.constant 0 : i32
    %c0_i32_1 = arith.constant 0 : i32
    return %c0_i32, %c0_i32_0 : i32, i32
  }
  func.func @transform_6(%arg0: i32) -> (i32, i32) {
    %c0_i32 = arith.constant 0 : i32
    %c0_i32_0 = arith.constant 0 : i32
    %c0_i32_1 = arith.constant 0 : i32
    return %c0_i32, %c0_i32_0 : i32, i32
  }
  func.func @transform_7(%arg0: i32) -> (i32, i32) {
    %c0_i32 = arith.constant 0 : i32
    %c0_i32_0 = arith.constant 0 : i32
    return %arg0, %c0_i32 : i32, i32
  }
  func.func @transform_8(%arg0: i32) -> (i32, i32, i32) {
    %c0_i32 = arith.constant 0 : i32
    %c0_i32_0 = arith.constant 0 : i32
    %c0_i32_1 = arith.constant 0 : i32
    return %arg0, %c0_i32, %c0_i32_0 : i32, i32, i32
  }
  func.func @transform_9(%arg0: i32) -> (i32, i32) {
    %c0_i32 = arith.constant 0 : i32
    %c0_i32_0 = arith.constant 0 : i32
    return %arg0, %c0_i32 : i32, i32
  }
}

</mosaic_0001>

<llo_original>
// kernel: tpu_custom_call.1
$region0: #{tpu_custom_call.1}
  #allocation0 [shape = 'u32[]', space=smem, size = 0x4, offset = 0x4, fixed_abs, tag = 'smem constant byte address 0x4 - core index']
  #allocation1 [shape = 'u32[72,128]{1,0:T(1,128)}', space=vmem, size = 0x9000, scoped, tag = 'internal scratch']
  %s0 = inlined_call_operand.vmem [shape: f32[2,256,64], index: 0, kind: input, shape index: {}]
  %s1 = inlined_call_operand.vmem [shape: f32[256,128], index: 1, kind: input, shape index: {}]
  %s2 = inlined_call_operand.vmem [shape: f32[1,128], index: 2, kind: input, shape index: {}]
  %s3 = inlined_call_operand.vmem [shape: f32[256,128], index: 3, kind: input, shape index: {}]
  %s4 = inlined_call_operand.vmem [shape: f32[1,128], index: 4, kind: input, shape index: {}]
  %s5 = inlined_call_operand.vmem [shape: f32[1,256], index: 5, kind: input, shape index: {}]
  %s6 = inlined_call_operand.vmem [shape: f32[1,256], index: 6, kind: input, shape index: {}]
  %s7 = inlined_call_operand.hbm [shape: f32[2,256], index: 7, kind: output, shape index: {0}]
  %s8 = inlined_call_operand.hbm [shape: f32[2,8,128], index: 8, kind: output, shape index: {1}]
  %s9 = inlined_call_operand.hbm [shape: f32[2,128], index: 9, kind: output, shape index: {2}]
  %10 = xla_tuple %s7, %s8, %s9
  %s11 = sld [smem:[#allocation0]]
  $region54: #{tpu_custom_call.1} parent=0
    _
  %s13 = ssub.s32 1, %s11
  %s14 = scalar_select 0, %s13, %s11
  $region1: #{tpu_custom_call.1} parent=0
    #allocation2 [shape = 'u8[2048]{0}', space=vmem, size = 0x800, scoped, tag = 'output window, operand 0, single buffered']
    #allocation3 [shape = 's32[1]{0}', space=sflag, size = 0x4, scoped, tag = 'scoped memory for tpu_custom_call.1']
    #allocation4 [shape = 'u8[8192]{0}', space=vmem, size = 0x2000, scoped, tag = 'output window, operand 1, single buffered']
    #allocation5 [shape = 's32[1]{0}', space=sflag, size = 0x4, scoped, tag = 'scoped memory for tpu_custom_call.1']
    #allocation6 [shape = 'u8[1024]{0}', space=vmem, size = 0x400, scoped, tag = 'output window, operand 2, single buffered']
    %15 = vsyncpa [#allocation3], 0
    %16 = vsyncpa [#allocation5], 0
    // Predicated region
    $region2: #{tpu_custom_call.1} parent=1 // pred_check
      _
    $region3: #{tpu_custom_call.1} parent=1 // pred_check_branch
      %18 = sbr.rel (0) target = $region5
    $region4: #{tpu_custom_call.1} parent=1 // pred_region
      _
    $region5: #{tpu_custom_call.1} parent=1 // pred_fallthru
      _
    // Predicated region
    $region6: #{tpu_custom_call.1} parent=1 // pred_check
      _
    $region7: #{tpu_custom_call.1} parent=1 // pred_check_branch
      %20 = sbr.rel (0) target = $region9
    $region8: #{tpu_custom_call.1} parent=1 // pred_region
      _
    $region9: #{tpu_custom_call.1} parent=1 // pred_fallthru
      _
    // Predicated region
    $region10: #{tpu_custom_call.1} parent=1 // pred_check
      _
    $region11: #{tpu_custom_call.1} parent=1 // pred_check_branch
      %22 = sbr.rel (0) target = $region13
    $region12: #{tpu_custom_call.1} parent=1 // pred_region
      _
    $region13: #{tpu_custom_call.1} parent=1 // pred_fallthru
      _
    // Predicated region
    $region14: #{tpu_custom_call.1} parent=1 // pred_check
      _
    $region15: #{tpu_custom_call.1} parent=1 // pred_check_branch
      %24 = sbr.rel (0) target = $region17
    $region16: #{tpu_custom_call.1} parent=1 // pred_region
      _
    $region17: #{tpu_custom_call.1} parent=1 // pred_fallthru
      _
    // Predicated region
    $region18: #{tpu_custom_call.1} parent=1 // pred_check
      _
    $region19: #{tpu_custom_call.1} parent=1 // pred_check_branch
      %26 = sbr.rel (0) target = $region21
    $region20: #{tpu_custom_call.1} parent=1 // pred_region
      _
    $region21: #{tpu_custom_call.1} parent=1 // pred_fallthru
      _
    // Predicated region
    $region22: #{tpu_custom_call.1} parent=1 // pred_check
      _
    $region23: #{tpu_custom_call.1} parent=1 // pred_check_branch
      %28 = sbr.rel (0) target = $region25
    $region24: #{tpu_custom_call.1} parent=1 // pred_region
      _
    $region25: #{tpu_custom_call.1} parent=1 // pred_fallthru
      _
    // Predicated region
    $region26: #{tpu_custom_call.1} parent=1 // pred_check
      _
    $region27: #{tpu_custom_call.1} parent=1 // pred_check_branch
      %30 = sbr.rel (0) target = $region29
    $region28: #{tpu_custom_call.1} parent=1 // pred_region
      _
    $region29: #{tpu_custom_call.1} parent=1 // pred_fallthru
      _
    %v31 = vld [vmem:[%s2] sm:$0x1]
    %v32 = vld [vmem:[%s0] sm:$0xff]
    %v33 = vld [vmem:[%s0 + $0x8] sm:$0xff]
    %v34 = vld [vmem:[%s0 + $0x10] sm:$0xff]
    %v35 = vld [vmem:[%s0 + $0x18] sm:$0xff]
    %v36 = vld [vmem:[%s0 + $0x20] sm:$0xff]
    %v37 = vld [vmem:[%s0 + $0x28] sm:$0xff]
    %v38 = vld [vmem:[%s0 + $0x30] sm:$0xff]
    %v39 = vld [vmem:[%s0 + $0x38] sm:$0xff]
    %v40 = vld [vmem:[%s0 + $0x40] sm:$0xff]
    %v41 = vld [vmem:[%s0 + $0x48] sm:$0xff]
    %v42 = vld [vmem:[%s0 + $0x50] sm:$0xff]
    %v43 = vld [vmem:[%s0 + $0x58] sm:$0xff]
    %v44 = vld [vmem:[%s0 + $0x60] sm:$0xff]
    %v45 = vld [vmem:[%s0 + $0x68] sm:$0xff]
    %v46 = vld [vmem:[%s0 + $0x70] sm:$0xff]
    %v47 = vld [vmem:[%s0 + $0x78] sm:$0xff]
    %v48 = vld [vmem:[%s0 + $0x80] sm:$0xff]
    %v49 = vld [vmem:[%s0 + $0x88] sm:$0xff]
    %v50 = vld [vmem:[%s0 + $0x90] sm:$0xff]
    %v51 = vld [vmem:[%s0 + $0x98] sm:$0xff]
    %v52 = vld [vmem:[%s0 + $0xa0] sm:$0xff]
    %v53 = vld [vmem:[%s0 + $0xa8] sm:$0xff]
    %v54 = vld [vmem:[%s0 + $0xb0] sm:$0xff]
    %v55 = vld [vmem:[%s0 + $0xb8] sm:$0xff]
    %v56 = vld [vmem:[%s0 + $0xc0] sm:$0xff]
    %v57 = vld [vmem:[%s0 + $0xc8] sm:$0xff]
    %v58 = vld [vmem:[%s0 + $0xd0] sm:$0xff]
    %v59 = vld [vmem:[%s0 + $0xd8] sm:$0xff]
    %v60 = vld [vmem:[%s0 + $0xe0] sm:$0xff]
    %v61 = vld [vmem:[%s0 + $0xe8] sm:$0xff]
    %v62 = vld [vmem:[%s0 + $0xf0] sm:$0xff]
    %v63 = vld [vmem:[%s0 + $0xf8] sm:$0xff]
    %v64 = vld [vmem:[%s0 + $0x100] sm:$0xff]
    %v65 = vld [vmem:[%s0 + $0x108] sm:$0xff]
    %v66 = vld [vmem:[%s0 + $0x110] sm:$0xff]
    %v67 = vld [vmem:[%s0 + $0x118] sm:$0xff]
    %v68 = vld [vmem:[%s0 + $0x120] sm:$0xff]
    %v69 = vld [vmem:[%s0 + $0x128] sm:$0xff]
    %v70 = vld [vmem:[%s0 + $0x130] sm:$0xff]
    %v71 = vld [vmem:[%s0 + $0x138] sm:$0xff]
    %v72 = vld [vmem:[%s0 + $0x140] sm:$0xff]
    %v73 = vld [vmem:[%s0 + $0x148] sm:$0xff]
    %v74 = vld [vmem:[%s0 + $0x150] sm:$0xff]
    %v75 = vld [vmem:[%s0 + $0x158] sm:$0xff]
    %v76 = vld [vmem:[%s0 + $0x160] sm:$0xff]
    %v77 = vld [vmem:[%s0 + $0x168] sm:$0xff]
    %v78 = vld [vmem:[%s0 + $0x170] sm:$0xff]
    %v79 = vld [vmem:[%s0 + $0x178] sm:$0xff]
    %v80 = vld [vmem:[%s0 + $0x180] sm:$0xff]
    %v81 = vld [vmem:[%s0 + $0x188] sm:$0xff]
    %v82 = vld [vmem:[%s0 + $0x190] sm:$0xff]
    %v83 = vld [vmem:[%s0 + $0x198] sm:$0xff]
    %v84 = vld [vmem:[%s0 + $0x1a0] sm:$0xff]
    %v85 = vld [vmem:[%s0 + $0x1a8] sm:$0xff]
    %v86 = vld [vmem:[%s0 + $0x1b0] sm:$0xff]
    %v87 = vld [vmem:[%s0 + $0x1b8] sm:$0xff]
    %v88 = vld [vmem:[%s0 + $0x1c0] sm:$0xff]
    %v89 = vld [vmem:[%s0 + $0x1c8] sm:$0xff]
    %v90 = vld [vmem:[%s0 + $0x1d0] sm:$0xff]
    %v91 = vld [vmem:[%s0 + $0x1d8] sm:$0xff]
    %v92 = vld [vmem:[%s0 + $0x1e0] sm:$0xff]
    %v93 = vld [vmem:[%s0 + $0x1e8] sm:$0xff]
    %v94 = vld [vmem:[%s0 + $0x1f0] sm:$0xff]
    %v95 = vld [vmem:[%s0 + $0x1f8] sm:$0xff]
    %vm96 = vcmask 64512
    %v97 = vsel %vm96, %v32, 0.0
    %98 = vadd.xlane.f32.xlu0 %v97
    %v99 = vpop.xlane.xlu0 %98
    %v100 = vsel %vm96, %v33, 0.0
    %101 = vadd.xlane.f32.xlu0 %v100
    %v102 = vpop.xlane.xlu0 %101
    %v103 = vsel %vm96, %v34, 0.0
    %104 = vadd.xlane.f32.xlu0 %v103
    %v105 = vpop.xlane.xlu0 %104
    %v106 = vsel %vm96, %v35, 0.0
    %107 = vadd.xlane.f32.xlu0 %v106
    %v108 = vpop.xlane.xlu0 %107
    %v109 = vsel %vm96, %v36, 0.0
    %110 = vadd.xlane.f32.xlu0 %v109
    %v111 = vpop.xlane.xlu0 %110
    %v112 = vsel %vm96, %v37, 0.0
    %113 = vadd.xlane.f32.xlu0 %v112
    %v114 = vpop.xlane.xlu0 %113
    %v115 = vsel %vm96, %v38, 0.0
    %116 = vadd.xlane.f32.xlu0 %v115
    %v117 = vpop.xlane.xlu0 %116
    %v118 = vsel %vm96, %v39, 0.0
    %119 = vadd.xlane.f32.xlu0 %v118
    %v120 = vpop.xlane.xlu0 %119
    %v121 = vsel %vm96, %v40, 0.0
    %122 = vadd.xlane.f32.xlu0 %v121
    %v123 = vpop.xlane.xlu0 %122
    %v124 = vsel %vm96, %v41, 0.0
    %125 = vadd.xlane.f32.xlu0 %v124
    %v126 = vpop.xlane.xlu0 %125
    %v127 = vsel %vm96, %v42, 0.0
    %128 = vadd.xlane.f32.xlu0 %v127
    %v129 = vpop.xlane.xlu0 %128
    %v130 = vsel %vm96, %v43, 0.0
    %131 = vadd.xlane.f32.xlu0 %v130
    %v132 = vpop.xlane.xlu0 %131
    %v133 = vsel %vm96, %v44, 0.0
    %134 = vadd.xlane.f32.xlu0 %v133
    %v135 = vpop.xlane.xlu0 %134
    %v136 = vsel %vm96, %v45, 0.0
    %137 = vadd.xlane.f32.xlu0 %v136
    %v138 = vpop.xlane.xlu0 %137
    %v139 = vsel %vm96, %v46, 0.0
    %140 = vadd.xlane.f32.xlu0 %v139
    %v141 = vpop.xlane.xlu0 %140
    %v142 = vsel %vm96, %v47, 0.0
    %143 = vadd.xlane.f32.xlu0 %v142
    %v144 = vpop.xlane.xlu0 %143
    %v145 = vsel %vm96, %v48, 0.0
    %146 = vadd.xlane.f32.xlu0 %v145
    %v147 = vpop.xlane.xlu0 %146
    %v148 = vsel %vm96, %v49, 0.0
    %149 = vadd.xlane.f32.xlu0 %v148
    %v150 = vpop.xlane.xlu0 %149
    %v151 = vsel %vm96, %v50, 0.0
    %152 = vadd.xlane.f32.xlu0 %v151
    %v153 = vpop.xlane.xlu0 %152
    %v154 = vsel %vm96, %v51, 0.0
    %155 = vadd.xlane.f32.xlu0 %v154
    %v156 = vpop.xlane.xlu0 %155
    %v157 = vsel %vm96, %v52, 0.0
    %158 = vadd.xlane.f32.xlu0 %v157
    %v159 = vpop.xlane.xlu0 %158
    %v160 = vsel %vm96, %v53, 0.0
    %161 = vadd.xlane.f32.xlu0 %v160
    %v162 = vpop.xlane.xlu0 %161
    %v163 = vsel %vm96, %v54, 0.0
    %164 = vadd.xlane.f32.xlu0 %v163
    %v165 = vpop.xlane.xlu0 %164
    %v166 = vsel %vm96, %v55, 0.0
    %167 = vadd.xlane.f32.xlu0 %v166
    %v168 = vpop.xlane.xlu0 %167
    %v169 = vsel %vm96, %v56, 0.0
    %170 = vadd.xlane.f32.xlu0 %v169
    %v171 = vpop.xlane.xlu0 %170
    %v172 = vsel %vm96, %v57, 0.0
    %173 = vadd.xlane.f32.xlu0 %v172
    %v174 = vpop.xlane.xlu0 %173
    %v175 = vsel %vm96, %v58, 0.0
    %176 = vadd.xlane.f32.xlu0 %v175
    %v177 = vpop.xlane.xlu0 %176
    %v178 = vsel %vm96, %v59, 0.0
    %179 = vadd.xlane.f32.xlu0 %v178
    %v180 = vpop.xlane.xlu0 %179
    %v181 = vsel %vm96, %v60, 0.0
    %182 = vadd.xlane.f32.xlu0 %v181
    %v183 = vpop.xlane.xlu0 %182
    %v184 = vsel %vm96, %v61, 0.0
    %185 = vadd.xlane.f32.xlu0 %v184
    %v186 = vpop.xlane.xlu0 %185
    %v187 = vsel %vm96, %v62, 0.0
    %188 = vadd.xlane.f32.xlu0 %v187
    %v189 = vpop.xlane.xlu0 %188
    %v190 = vsel %vm96, %v63, 0.0
    %191 = vadd.xlane.f32.xlu0 %v190
    %v192 = vpop.xlane.xlu0 %191
    %v193 = vsel %vm96, %v64, 0.0
    %194 = vadd.xlane.f32.xlu0 %v193
    %v195 = vpop.xlane.xlu0 %194
    %v196 = vsel %vm96, %v65, 0.0
    %197 = vadd.xlane.f32.xlu0 %v196
    %v198 = vpop.xlane.xlu0 %197
    %v199 = vsel %vm96, %v66, 0.0
    %200 = vadd.xlane.f32.xlu0 %v199
    %v201 = vpop.xlane.xlu0 %200
    %v202 = vsel %vm96, %v67, 0.0
    %203 = vadd.xlane.f32.xlu0 %v202
    %v204 = vpop.xlane.xlu0 %203
    %v205 = vsel %vm96, %v68, 0.0
    %206 = vadd.xlane.f32.xlu0 %v205
    %v207 = vpop.xlane.xlu0 %206
    %v208 = vsel %vm96, %v69, 0.0
    %209 = vadd.xlane.f32.xlu0 %v208
    %v210 = vpop.xlane.xlu0 %209
    %v211 = vsel %vm96, %v70, 0.0
    %212 = vadd.xlane.f32.xlu0 %v211
    %v213 = vpop.xlane.xlu0 %212
    %v214 = vsel %vm96, %v71, 0.0
    %215 = vadd.xlane.f32.xlu0 %v214
    %v216 = vpop.xlane.xlu0 %215
    %v217 = vsel %vm96, %v72, 0.0
    %218 = vadd.xlane.f32.xlu0 %v217
    %v219 = vpop.xlane.xlu0 %218
    %v220 = vsel %vm96, %v73, 0.0
    %221 = vadd.xlane.f32.xlu0 %v220
    %v222 = vpop.xlane.xlu0 %221
    %v223 = vsel %vm96, %v74, 0.0
    %224 = vadd.xlane.f32.xlu0 %v223
    %v225 = vpop.xlane.xlu0 %224
    %v226 = vsel %vm96, %v75, 0.0
    %227 = vadd.xlane.f32.xlu0 %v226
    %v228 = vpop.xlane.xlu0 %227
    %v229 = vsel %vm96, %v76, 0.0
    %230 = vadd.xlane.f32.xlu0 %v229
    %v231 = vpop.xlane.xlu0 %230
    %v232 = vsel %vm96, %v77, 0.0
    %233 = vadd.xlane.f32.xlu0 %v232
    %v234 = vpop.xlane.xlu0 %233
    %v235 = vsel %vm96, %v78, 0.0
    %236 = vadd.xlane.f32.xlu0 %v235
    %v237 = vpop.xlane.xlu0 %236
    %v238 = vsel %vm96, %v79, 0.0
    %239 = vadd.xlane.f32.xlu0 %v238
    %v240 = vpop.xlane.xlu0 %239
    %v241 = vsel %vm96, %v80, 0.0
    %242 = vadd.xlane.f32.xlu0 %v241
    %v243 = vpop.xlane.xlu0 %242
    %v244 = vsel %vm96, %v81, 0.0
    %245 = vadd.xlane.f32.xlu0 %v244
    %v246 = vpop.xlane.xlu0 %245
    %v247 = vsel %vm96, %v82, 0.0
    %248 = vadd.xlane.f32.xlu0 %v247
    %v249 = vpop.xlane.xlu0 %248
    %v250 = vsel %vm96, %v83, 0.0
    %251 = vadd.xlane.f32.xlu0 %v250
    %v252 = vpop.xlane.xlu0 %251
    %v253 = vsel %vm96, %v84, 0.0
    %254 = vadd.xlane.f32.xlu0 %v253
    %v255 = vpop.xlane.xlu0 %254
    %v256 = vsel %vm96, %v85, 0.0
    %257 = vadd.xlane.f32.xlu0 %v256
    %v258 = vpop.xlane.xlu0 %257
    %v259 = vsel %vm96, %v86, 0.0
    %260 = vadd.xlane.f32.xlu0 %v259
    %v261 = vpop.xlane.xlu0 %260
    %v262 = vsel %vm96, %v87, 0.0
    %263 = vadd.xlane.f32.xlu0 %v262
    %v264 = vpop.xlane.xlu0 %263
    %v265 = vsel %vm96, %v88, 0.0
    %266 = vadd.xlane.f32.xlu0 %v265
    %v267 = vpop.xlane.xlu0 %266
    %v268 = vsel %vm96, %v89, 0.0
    %269 = vadd.xlane.f32.xlu0 %v268
    %v270 = vpop.xlane.xlu0 %269
    %v271 = vsel %vm96, %v90, 0.0
    %272 = vadd.xlane.f32.xlu0 %v271
    %v273 = vpop.xlane.xlu0 %272
    %v274 = vsel %vm96, %v91, 0.0
    %275 = vadd.xlane.f32.xlu0 %v274
    %v276 = vpop.xlane.xlu0 %275
    %v277 = vsel %vm96, %v92, 0.0
    %278 = vadd.xlane.f32.xlu0 %v277
    %v279 = vpop.xlane.xlu0 %278
    %v280 = vsel %vm96, %v93, 0.0
    %281 = vadd.xlane.f32.xlu0 %v280
    %v282 = vpop.xlane.xlu0 %281
    %v283 = vsel %vm96, %v94, 0.0
    %284 = vadd.xlane.f32.xlu0 %v283
    %v285 = vpop.xlane.xlu0 %284
    %v286 = vsel %vm96, %v95, 0.0
    %287 = vadd.xlane.f32.xlu0 %v286
    %v288 = vpop.xlane.xlu0 %287
    %v289 = vmul.f32 %v99, 0.125
    %v290 = vmul.f32 %v102, 0.125
    %v291 = vmul.f32 %v105, 0.125
    %v292 = vmul.f32 %v108, 0.125
    %v293 = vmul.f32 %v111, 0.125
    %v294 = vmul.f32 %v114, 0.125
    %v295 = vmul.f32 %v117, 0.125
    %v296 = vmul.f32 %v120, 0.125
    %v297 = vmul.f32 %v123, 0.125
    %v298 = vmul.f32 %v126, 0.125
    %v299 = vmul.f32 %v129, 0.125
    %v300 = vmul.f32 %v132, 0.125
    %v301 = vmul.f32 %v135, 0.125
    %v302 = vmul.f32 %v138, 0.125
    %v303 = vmul.f32 %v141, 0.125
    %v304 = vmul.f32 %v144, 0.125
    %v305 = vmul.f32 %v147, 0.125
    %v306 = vmul.f32 %v150, 0.125
    %v307 = vmul.f32 %v153, 0.125
    %v308 = vmul.f32 %v156, 0.125
    %v309 = vmul.f32 %v159, 0.125
    %v310 = vmul.f32 %v162, 0.125
    %v311 = vmul.f32 %v165, 0.125
    %v312 = vmul.f32 %v168, 0.125
    %v313 = vmul.f32 %v171, 0.125
    %v314 = vmul.f32 %v174, 0.125
    %v315 = vmul.f32 %v177, 0.125
    %v316 = vmul.f32 %v180, 0.125
    %v317 = vmul.f32 %v183, 0.125
    %v318 = vmul.f32 %v186, 0.125
    %v319 = vmul.f32 %v189, 0.125
    %v320 = vmul.f32 %v192, 0.125
    %v321 = vmul.f32 %v195, 0.125
    %v322 = vmul.f32 %v198, 0.125
    %v323 = vmul.f32 %v201, 0.125
    %v324 = vmul.f32 %v204, 0.125
    %v325 = vmul.f32 %v207, 0.125
    %v326 = vmul.f32 %v210, 0.125
    %v327 = vmul.f32 %v213, 0.125
    %v328 = vmul.f32 %v216, 0.125
    %v329 = vmul.f32 %v219, 0.125
    %v330 = vmul.f32 %v222, 0.125
    %v331 = vmul.f32 %v225, 0.125
    %v332 = vmul.f32 %v228, 0.125
    %v333 = vmul.f32 %v231, 0.125
    %v334 = vmul.f32 %v234, 0.125
    %v335 = vmul.f32 %v237, 0.125
    %v336 = vmul.f32 %v240, 0.125
    %v337 = vmul.f32 %v243, 0.125
    %v338 = vmul.f32 %v246, 0.125
    %v339 = vmul.f32 %v249, 0.125
    %v340 = vmul.f32 %v252, 0.125
    %v341 = vmul.f32 %v255, 0.125
    %v342 = vmul.f32 %v258, 0.125
    %v343 = vmul.f32 %v261, 0.125
    %v344 = vmul.f32 %v264, 0.125
    %v345 = vmul.f32 %v267, 0.125
    %v346 = vmul.f32 %v270, 0.125
    %v347 = vmul.f32 %v273, 0.125
    %v348 = vmul.f32 %v276, 0.125
    %v349 = vmul.f32 %v279, 0.125
    %v350 = vmul.f32 %v282, 0.125
    %v351 = vmul.f32 %v285, 0.125
    %v352 = vmul.f32 %v288, 0.125
    %v353 = vadd.f32 %v289, 0.0
    %v354 = vadd.f32 %v290, 0.0
    %v355 = vadd.f32 %v291, 0.0
    %v356 = vadd.f32 %v292, 0.0
    %v357 = vadd.f32 %v293, 0.0
    %v358 = vadd.f32 %v294, 0.0
    %v359 = vadd.f32 %v295, 0.0
    %v360 = vadd.f32 %v296, 0.0
    %v361 = vadd.f32 %v297, 0.0
    %v362 = vadd.f32 %v298, 0.0
    %v363 = vadd.f32 %v299, 0.0
    %v364 = vadd.f32 %v300, 0.0
    %v365 = vadd.f32 %v301, 0.0
    %v366 = vadd.f32 %v302, 0.0
    %v367 = vadd.f32 %v303, 0.0
    %v368 = vadd.f32 %v304, 0.0
    %v369 = vadd.f32 %v305, 0.0
    %v370 = vadd.f32 %v306, 0.0
    %v371 = vadd.f32 %v307, 0.0
    %v372 = vadd.f32 %v308, 0.0
    %v373 = vadd.f32 %v309, 0.0
    %v374 = vadd.f32 %v310, 0.0
    %v375 = vadd.f32 %v311, 0.0
    %v376 = vadd.f32 %v312, 0.0
    %v377 = vadd.f32 %v313, 0.0
    %v378 = vadd.f32 %v314, 0.0
    %v379 = vadd.f32 %v315, 0.0
    %v380 = vadd.f32 %v316, 0.0
    %v381 = vadd.f32 %v317, 0.0
    %v382 = vadd.f32 %v318, 0.0
    %v383 = vadd.f32 %v319, 0.0
    %v384 = vadd.f32 %v320, 0.0
    %v385 = vadd.f32 %v321, 0.0
    %v386 = vadd.f32 %v322, 0.0
    %v387 = vadd.f32 %v323, 0.0
    %v388 = vadd.f32 %v324, 0.0
    %v389 = vadd.f32 %v325, 0.0
    %v390 = vadd.f32 %v326, 0.0
    %v391 = vadd.f32 %v327, 0.0
    %v392 = vadd.f32 %v328, 0.0
    %v393 = vadd.f32 %v329, 0.0
    %v394 = vadd.f32 %v330, 0.0
    %v395 = vadd.f32 %v331, 0.0
    %v396 = vadd.f32 %v332, 0.0
    %v397 = vadd.f32 %v333, 0.0
    %v398 = vadd.f32 %v334, 0.0
    %v399 = vadd.f32 %v335, 0.0
    %v400 = vadd.f32 %v336, 0.0
    %v401 = vadd.f32 %v337, 0.0
    %v402 = vadd.f32 %v338, 0.0
    %v403 = vadd.f32 %v339, 0.0
    %v404 = vadd.f32 %v340, 0.0
    %v405 = vadd.f32 %v341, 0.0
    %v406 = vadd.f32 %v342, 0.0
    %v407 = vadd.f32 %v343, 0.0
    %v408 = vadd.f32 %v344, 0.0
    %v409 = vadd.f32 %v345, 0.0
    %v410 = vadd.f32 %v346, 0.0
    %v411 = vadd.f32 %v347, 0.0
    %v412 = vadd.f32 %v348, 0.0
    %v413 = vadd.f32 %v349, 0.0
    %v414 = vadd.f32 %v350, 0.0
    %v415 = vadd.f32 %v351, 0.0
    %v416 = vadd.f32 %v352, 0.0
    %v417 = vld [vmem:[%s1] sm:$0xff]
    %v418 = vld [vmem:[%s1 + $0x8] sm:$0xff]
    %v419 = vld [vmem:[%s1 + $0x10] sm:$0xff]
    %v420 = vld [vmem:[%s1 + $0x18] sm:$0xff]
    %v421 = vld [vmem:[%s1 + $0x20] sm:$0xff]
    %v422 = vld [vmem:[%s1 + $0x28] sm:$0xff]
    %v423 = vld [vmem:[%s1 + $0x30] sm:$0xff]
    %v424 = vld [vmem:[%s1 + $0x38] sm:$0xff]
    %v425 = vld [vmem:[%s1 + $0x40] sm:$0xff]
    %v426 = vld [vmem:[%s1 + $0x48] sm:$0xff]
    %v427 = vld [vmem:[%s1 + $0x50] sm:$0xff]
    %v428 = vld [vmem:[%s1 + $0x58] sm:$0xff]
    %v429 = vld [vmem:[%s1 + $0x60] sm:$0xff]
    %v430 = vld [vmem:[%s1 + $0x68] sm:$0xff]
    %v431 = vld [vmem:[%s1 + $0x70] sm:$0xff]
    %v432 = vld [vmem:[%s1 + $0x78] sm:$0xff]
    %v433 = vld [vmem:[%s1 + $0x80] sm:$0xff]
    %v434 = vld [vmem:[%s1 + $0x88] sm:$0xff]
    %v435 = vld [vmem:[%s1 + $0x90] sm:$0xff]
    %v436 = vld [vmem:[%s1 + $0x98] sm:$0xff]
    %v437 = vld [vmem:[%s1 + $0xa0] sm:$0xff]
    %v438 = vld [vmem:[%s1 + $0xa8] sm:$0xff]
    %v439 = vld [vmem:[%s1 + $0xb0] sm:$0xff]
    %v440 = vld [vmem:[%s1 + $0xb8] sm:$0xff]
    %v441 = vld [vmem:[%s1 + $0xc0] sm:$0xff]
    %v442 = vld [vmem:[%s1 + $0xc8] sm:$0xff]
    %v443 = vld [vmem:[%s1 + $0xd0] sm:$0xff]
    %v444 = vld [vmem:[%s1 + $0xd8] sm:$0xff]
    %v445 = vld [vmem:[%s1 + $0xe0] sm:$0xff]
    %v446 = vld [vmem:[%s1 + $0xe8] sm:$0xff]
    %v447 = vld [vmem:[%s1 + $0xf0] sm:$0xff]
    %v448 = vld [vmem:[%s1 + $0xf8] sm:$0xff]
    %v450 = vperm.slane %v31, 0
    %v516 = vlaneseq
    %v517 = vand.u32 %v516, 127
    %v518 = vperm.slane %v289, %v517
    %v519 = vadd.s32 %v517, 4294967288
    %v520 = vperm.slane %v290, %v519
    %vm521 = vcmask 130112
    %v522 = vsel %vm521, %v520, %v518
    %v523 = vadd.s32 %v517, 4294967280
    %v524 = vperm.slane %v291, %v523
    %vm525 = vcmask 195712
    %v526 = vsel %vm525, %v524, %v522
    %v527 = vadd.s32 %v517, 4294967272
    %v528 = vperm.slane %v292, %v527
    %vm529 = vcmask 261312
    %v530 = vsel %vm529, %v528, %v526
    %v531 = vadd.s32 %v517, 4294967264
    %v532 = vperm.slane %v293, %v531
    %vm533 = vcmask 326912
    %v534 = vsel %vm533, %v532, %v530
    %v535 = vadd.s32 %v517, 4294967256
    %v536 = vperm.slane %v294, %v535
    %vm537 = vcmask 392512
    %v538 = vsel %vm537, %v536, %v534
    %v539 = vadd.s32 %v517, 4294967248
    %v540 = vperm.slane %v295, %v539
    %vm541 = vcmask 458112
    %v542 = vsel %vm541, %v540, %v538
    %v543 = vadd.s32 %v517, 4294967240
    %v544 = vperm.slane %v296, %v543
    %vm545 = vcmask 523712
    %v546 = vsel %vm545, %v544, %v542
    %v547 = vadd.s32 %v517, 4294967232
    %v548 = vperm.slane %v297, %v547
    %vm549 = vcmask 589312
    %v550 = vsel %vm549, %v548, %v546
    %v551 = vadd.s32 %v517, 4294967224
    %v552 = vperm.slane %v298, %v551
    %vm553 = vcmask 654912
    %v554 = vsel %vm553, %v552, %v550
    %v555 = vadd.s32 %v517, 4294967216
    %v556 = vperm.slane %v299, %v555
    %vm557 = vcmask 720512
    %v558 = vsel %vm557, %v556, %v554
    %v559 = vadd.s32 %v517, 4294967208
    %v560 = vperm.slane %v300, %v559
    %vm561 = vcmask 786112
    %v562 = vsel %vm561, %v560, %v558
    %v563 = vadd.s32 %v517, 4294967200
    %v564 = vperm.slane %v301, %v563
    %vm565 = vcmask 851712
    %v566 = vsel %vm565, %v564, %v562
    %v567 = vadd.s32 %v517, 4294967192
    %v568 = vperm.slane %v302, %v567
    %vm569 = vcmask 917312
    %v570 = vsel %vm569, %v568, %v566
    %v571 = vadd.s32 %v517, 4294967184
    %v572 = vperm.slane %v303, %v571
    %vm573 = vcmask 982912
    %v574 = vsel %vm573, %v572, %v570
    %v575 = vadd.s32 %v517, 4294967176
    %v576 = vperm.slane %v304, %v575
    %vm577 = vcmask 1048512
    %v578 = vsel %vm577, %v576, %v574
    %v579 = vperm.slane %v305, %v517
    %v580 = vperm.slane %v306, %v519
    %v581 = vsel %vm521, %v580, %v579
    %v582 = vperm.slane %v307, %v523
    %v583 = vsel %vm525, %v582, %v581
    %v584 = vperm.slane %v308, %v527
    %v585 = vsel %vm529, %v584, %v583
    %v586 = vperm.slane %v309, %v531
    %v587 = vsel %vm533, %v586, %v585
    %v588 = vperm.slane %v310, %v535
    %v589 = vsel %vm537, %v588, %v587
    %v590 = vperm.slane %v311, %v539
    %v591 = vsel %vm541, %v590, %v589
    %v592 = vperm.slane %v312, %v543
    %v593 = vsel %vm545, %v592, %v591
    %v594 = vperm.slane %v313, %v547
    %v595 = vsel %vm549, %v594, %v593
    %v596 = vperm.slane %v314, %v551
    %v597 = vsel %vm553, %v596, %v595
    %v598 = vperm.slane %v315, %v555
    %v599 = vsel %vm557, %v598, %v597
    %v600 = vperm.slane %v316, %v559
    %v601 = vsel %vm561, %v600, %v599
    %v602 = vperm.slane %v317, %v563
    %v603 = vsel %vm565, %v602, %v601
    %v604 = vperm.slane %v318, %v567
    %v605 = vsel %vm569, %v604, %v603
    %v606 = vperm.slane %v319, %v571
    %v607 = vsel %vm573, %v606, %v605
    %v608 = vperm.slane %v320, %v575
    %v609 = vsel %vm577, %v608, %v607
    %v610 = vperm.slane %v321, %v517
    %v611 = vperm.slane %v322, %v519
    %v612 = vsel %vm521, %v611, %v610
    %v613 = vperm.slane %v323, %v523
    %v614 = vsel %vm525, %v613, %v612
    %v615 = vperm.slane %v324, %v527
    %v616 = vsel %vm529, %v615, %v614
    %v617 = vperm.slane %v325, %v531
    %v618 = vsel %vm533, %v617, %v616
    %v619 = vperm.slane %v326, %v535
    %v620 = vsel %vm537, %v619, %v618
    %v621 = vperm.slane %v327, %v539
    %v622 = vsel %vm541, %v621, %v620
    %v623 = vperm.slane %v328, %v543
    %v624 = vsel %vm545, %v623, %v622
    %v625 = vperm.slane %v329, %v547
    %v626 = vsel %vm549, %v625, %v624
    %v627 = vperm.slane %v330, %v551
    %v628 = vsel %vm553, %v627, %v626
    %v629 = vperm.slane %v331, %v555
    %v630 = vsel %vm557, %v629, %v628
    %v631 = vperm.slane %v332, %v559
    %v632 = vsel %vm561, %v631, %v630
    %v633 = vperm.slane %v333, %v563
    %v634 = vsel %vm565, %v633, %v632
    %v635 = vperm.slane %v334, %v567
    %v636 = vsel %vm569, %v635, %v634
    %v637 = vperm.slane %v335, %v571
    %v638 = vsel %vm573, %v637, %v636
    %v639 = vperm.slane %v336, %v575
    %v640 = vsel %vm577, %v639, %v638
    %v641 = vperm.slane %v337, %v517
    %v642 = vperm.slane %v338, %v519
    %v643 = vsel %vm521, %v642, %v641
    %v644 = vperm.slane %v339, %v523
    %v645 = vsel %vm525, %v644, %v643
    %v646 = vperm.slane %v340, %v527
    %v647 = vsel %vm529, %v646, %v645
    %v648 = vperm.slane %v341, %v531
    %v649 = vsel %vm533, %v648, %v647
    %v650 = vperm.slane %v342, %v535
    %v651 = vsel %vm537, %v650, %v649
    %v652 = vperm.slane %v343, %v539
    %v653 = vsel %vm541, %v652, %v651
    %v654 = vperm.slane %v344, %v543
    %v655 = vsel %vm545, %v654, %v653
    %v656 = vperm.slane %v345, %v547
    %v657 = vsel %vm549, %v656, %v655
    %v658 = vperm.slane %v346, %v551
    %v659 = vsel %vm553, %v658, %v657
    %v660 = vperm.slane %v347, %v555
    %v661 = vsel %vm557, %v660, %v659
    %v662 = vperm.slane %v348, %v559
    %v663 = vsel %vm561, %v662, %v661
    %v664 = vperm.slane %v349, %v563
    %v665 = vsel %vm565, %v664, %v663
    %v666 = vperm.slane %v350, %v567
    %v667 = vsel %vm569, %v666, %v665
    %v668 = vperm.slane %v351, %v571
    %v669 = vsel %vm573, %v668, %v667
    %v670 = vperm.slane %v352, %v575
    %v671 = vsel %vm577, %v670, %v669
    %vm672 = vcmask 1041409
    %v673 = vsel %vm672, %v640, %v578
    %v674 = vsel %vm672, %v671, %v609
    %677 = vmatpush.msra.mxu0 %v432
    %678 = vmatpush.msra.mxu0 %v431
    %679 = vmatpush.msra.mxu0 %v430
    %680 = vmatpush.msra.mxu0 %v429
    %681 = vmatpush.msra.mxu0 %v428
    %682 = vmatpush.msra.mxu0 %v427
    %683 = vmatpush.msra.mxu0 %v426
    %684 = vmatpush.msra.mxu0 %v425
    %685 = vmatpush.msra.mxu0 %v424
    %686 = vmatpush.msra.mxu0 %v423
    %687 = vmatpush.msra.mxu0 %v422
    %688 = vmatpush.msra.mxu0 %v421
    %689 = vmatpush.msra.mxu0 %v420
    %690 = vmatpush.msra.mxu0 %v419
    %691 = vmatpush.msra.mxu0 %v418
    %692 = vmatpush.msra.mxu0 %v417
    %693 = vmatmul.f32.gmra.mxu0 %v673
    %v694 = vpop.f32.mrf.mxu0
    %v695 = vadd.f32 %v450, %v694
    %696 = vdwg.mxu0
    %697 = vmatpush.msra.mxu0 %v448
    %698 = vmatpush.msra.mxu0 %v447
    %699 = vmatpush.msra.mxu0 %v446
    %700 = vmatpush.msra.mxu0 %v445
    %701 = vmatpush.msra.mxu0 %v444
    %702 = vmatpush.msra.mxu0 %v443
    %703 = vmatpush.msra.mxu0 %v442
    %704 = vmatpush.msra.mxu0 %v441
    %705 = vmatpush.msra.mxu0 %v440
    %706 = vmatpush.msra.mxu0 %v439
    %707 = vmatpush.msra.mxu0 %v438
    %708 = vmatpush.msra.mxu0 %v437
    %709 = vmatpush.msra.mxu0 %v436
    %710 = vmatpush.msra.mxu0 %v435
    %711 = vmatpush.msra.mxu0 %v434
    %712 = vmatpush.msra.mxu0 %v433
    %713 = vmatmul.f32.gmra.mxu0 %v674
    %v714 = vpop.f32.mrf.mxu0
    %v715 = vadd.f32 %v695, %v714
    %716 = vdwg.mxu0
    %v717 = vmul.f32 %v715, %v715
    %vm718 = vcmask 1041408
    %v719 = vsel %vm718, %v717, 0.0
    %720 = vadd.xlane.f32.xlu0 %v719
    %v721 = vpop.xlane.xlu0 %720
    %v722 = vadd.f32 %v721, 1e-12
    %v723 = vrsqrt.pop %v722
    %v724 = vmul.f32 %v723, %v722
    %v725 = vmul.f32 %v724, %v723
    %v726 = vmul.f32 0.5, %v725
    %v727 = vsub.f32 1.5, %v726
    %v728 = vmul.f32 %v723, %v727
    %vm729 = vweird.f32 %v722
    %vm730 = vweird.f32 %v723
    %vm731 = vmor %vm729, %vm730
    %v732 = vsel %vm731, %v723, %v728
    %v733 = vmul.f32 %v715, %v732
    %v735 = vrot.slane %v733, 1
    %737 = vst [vmem:[#allocation4] sm:$0x1] %v733
    %738 = vst [vmem:[#allocation4 + $0x8] sm:$0x1] %v735
    %v739 = vld [vmem:[%s0] sm:$0xff]
    %v740 = vld [vmem:[%s0 + $0x8] sm:$0xff]
    %v741 = vld [vmem:[%s0 + $0x10] sm:$0xff]
    %v742 = vld [vmem:[%s0 + $0x18] sm:$0xff]
    %v743 = vld [vmem:[%s0 + $0x20] sm:$0xff]
    %v744 = vld [vmem:[%s0 + $0x28] sm:$0xff]
    %v745 = vld [vmem:[%s0 + $0x30] sm:$0xff]
    %v746 = vld [vmem:[%s0 + $0x38] sm:$0xff]
    %v747 = vld [vmem:[%s0 + $0x40] sm:$0xff]
    %v748 = vld [vmem:[%s0 + $0x48] sm:$0xff]
    %v749 = vld [vmem:[%s0 + $0x50] sm:$0xff]
    %v750 = vld [vmem:[%s0 + $0x58] sm:$0xff]
    %v751 = vld [vmem:[%s0 + $0x60] sm:$0xff]
    %v752 = vld [vmem:[%s0 + $0x68] sm:$0xff]
    %v753 = vld [vmem:[%s0 + $0x70] sm:$0xff]
    %v754 = vld [vmem:[%s0 + $0x78] sm:$0xff]
    %v755 = vld [vmem:[%s0 + $0x80] sm:$0xff]
    %v756 = vld [vmem:[%s0 + $0x88] sm:$0xff]
    %v757 = vld [vmem:[%s0 + $0x90] sm:$0xff]
    %v758 = vld [vmem:[%s0 + $0x98] sm:$0xff]
    %v759 = vld [vmem:[%s0 + $0xa0] sm:$0xff]
    %v760 = vld [vmem:[%s0 + $0xa8] sm:$0xff]
    %v761 = vld [vmem:[%s0 + $0xb0] sm:$0xff]
    %v762 = vld [vmem:[%s0 + $0xb8] sm:$0xff]
    %v763 = vld [vmem:[%s0 + $0xc0] sm:$0xff]
    %v764 = vld [vmem:[%s0 + $0xc8] sm:$0xff]
    %v765 = vld [vmem:[%s0 + $0xd0] sm:$0xff]
    %v766 = vld [vmem:[%s0 + $0xd8] sm:$0xff]
    %v767 = vld [vmem:[%s0 + $0xe0] sm:$0xff]
    %v768 = vld [vmem:[%s0 + $0xe8] sm:$0xff]
    %v769 = vld [vmem:[%s0 + $0xf0] sm:$0xff]
    %v770 = vld [vmem:[%s0 + $0xf8] sm:$0xff]
    %v771 = vld [vmem:[%s0 + $0x100] sm:$0xff]
    %v772 = vld [vmem:[%s0 + $0x108] sm:$0xff]
    %v773 = vld [vmem:[%s0 + $0x110] sm:$0xff]
    %v774 = vld [vmem:[%s0 + $0x118] sm:$0xff]
    %v775 = vld [vmem:[%s0 + $0x120] sm:$0xff]
    %v776 = vld [vmem:[%s0 + $0x128] sm:$0xff]
    %v777 = vld [vmem:[%s0 + $0x130] sm:$0xff]
    %v778 = vld [vmem:[%s0 + $0x138] sm:$0xff]
    %v779 = vld [vmem:[%s0 + $0x140] sm:$0xff]
    %v780 = vld [vmem:[%s0 + $0x148] sm:$0xff]
    %v781 = vld [vmem:[%s0 + $0x150] sm:$0xff]
    %v782 = vld [vmem:[%s0 + $0x158] sm:$0xff]
    %v783 = vld [vmem:[%s0 + $0x160] sm:$0xff]
    %v784 = vld [vmem:[%s0 + $0x168] sm:$0xff]
    %v785 = vld [vmem:[%s0 + $0x170] sm:$0xff]
    %v786 = vld [vmem:[%s0 + $0x178] sm:$0xff]
    %v787 = vld [vmem:[%s0 + $0x180] sm:$0xff]
    %v788 = vld [vmem:[%s0 + $0x188] sm:$0xff]
    %v789 = vld [vmem:[%s0 + $0x190] sm:$0xff]
    %v790 = vld [vmem:[%s0 + $0x198] sm:$0xff]
    %v791 = vld [vmem:[%s0 + $0x1a0] sm:$0xff]
    %v792 = vld [vmem:[%s0 + $0x1a8] sm:$0xff]
    %v793 = vld [vmem:[%s0 + $0x1b0] sm:$0xff]
    %v794 = vld [vmem:[%s0 + $0x1b8] sm:$0xff]
    %v795 = vld [vmem:[%s0 + $0x1c0] sm:$0xff]
    %v796 = vld [vmem:[%s0 + $0x1c8] sm:$0xff]
    %v797 = vld [vmem:[%s0 + $0x1d0] sm:$0xff]
    %v798 = vld [vmem:[%s0 + $0x1d8] sm:$0xff]
    %v799 = vld [vmem:[%s0 + $0x1e0] sm:$0xff]
    %v800 = vld [vmem:[%s0 + $0x1e8] sm:$0xff]
    %v801 = vld [vmem:[%s0 + $0x1f0] sm:$0xff]
    %v802 = vld [vmem:[%s0 + $0x1f8] sm:$0xff]
    %867 = vrot.lane.b32.xlu0 %v739, 120
    %v868 = vpop.permute.xlu0 %867
    %869 = vrot.lane.b32.xlu0 %v740, 120
    %v870 = vpop.permute.xlu0 %869
    %871 = vrot.lane.b32.xlu0 %v741, 120
    %v872 = vpop.permute.xlu0 %871
    %873 = vrot.lane.b32.xlu0 %v742, 120
    %v874 = vpop.permute.xlu0 %873
    %875 = vrot.lane.b32.xlu0 %v743, 120
    %v876 = vpop.permute.xlu0 %875
    %877 = vrot.lane.b32.xlu0 %v744, 120
    %v878 = vpop.permute.xlu0 %877
    %879 = vrot.lane.b32.xlu0 %v745, 120
    %v880 = vpop.permute.xlu0 %879
    %881 = vrot.lane.b32.xlu0 %v746, 120
    %v882 = vpop.permute.xlu0 %881
    %883 = vrot.lane.b32.xlu0 %v747, 120
    %v884 = vpop.permute.xlu0 %883
    %885 = vrot.lane.b32.xlu0 %v748, 120
    %v886 = vpop.permute.xlu0 %885
    %887 = vrot.lane.b32.xlu0 %v749, 120
    %v888 = vpop.permute.xlu0 %887
    %889 = vrot.lane.b32.xlu0 %v750, 120
    %v890 = vpop.permute.xlu0 %889
    %891 = vrot.lane.b32.xlu0 %v751, 120
    %v892 = vpop.permute.xlu0 %891
    %893 = vrot.lane.b32.xlu0 %v752, 120
    %v894 = vpop.permute.xlu0 %893
    %895 = vrot.lane.b32.xlu0 %v753, 120
    %v896 = vpop.permute.xlu0 %895
    %897 = vrot.lane.b32.xlu0 %v754, 120
    %v898 = vpop.permute.xlu0 %897
    %899 = vrot.lane.b32.xlu0 %v755, 120
    %v900 = vpop.permute.xlu0 %899
    %901 = vrot.lane.b32.xlu0 %v756, 120
    %v902 = vpop.permute.xlu0 %901
    %903 = vrot.lane.b32.xlu0 %v757, 120
    %v904 = vpop.permute.xlu0 %903
    %905 = vrot.lane.b32.xlu0 %v758, 120
    %v906 = vpop.permute.xlu0 %905
    %907 = vrot.lane.b32.xlu0 %v759, 120
    %v908 = vpop.permute.xlu0 %907
    %909 = vrot.lane.b32.xlu0 %v760, 120
    %v910 = vpop.permute.xlu0 %909
    %911 = vrot.lane.b32.xlu0 %v761, 120
    %v912 = vpop.permute.xlu0 %911
    %913 = vrot.lane.b32.xlu0 %v762, 120
    %v914 = vpop.permute.xlu0 %913
    %915 = vrot.lane.b32.xlu0 %v763, 120
    %v916 = vpop.permute.xlu0 %915
    %917 = vrot.lane.b32.xlu0 %v764, 120
    %v918 = vpop.permute.xlu0 %917
    %919 = vrot.lane.b32.xlu0 %v765, 120
    %v920 = vpop.permute.xlu0 %919
    %921 = vrot.lane.b32.xlu0 %v766, 120
    %v922 = vpop.permute.xlu0 %921
    %923 = vrot.lane.b32.xlu0 %v767, 120
    %v924 = vpop.permute.xlu0 %923
    %925 = vrot.lane.b32.xlu0 %v768, 120
    %v926 = vpop.permute.xlu0 %925
    %927 = vrot.lane.b32.xlu0 %v769, 120
    %v928 = vpop.permute.xlu0 %927
    %929 = vrot.lane.b32.xlu0 %v770, 120
    %v930 = vpop.permute.xlu0 %929
    %931 = vrot.lane.b32.xlu0 %v771, 120
    %v932 = vpop.permute.xlu0 %931
    %933 = vrot.lane.b32.xlu0 %v772, 120
    %v934 = vpop.permute.xlu0 %933
    %935 = vrot.lane.b32.xlu0 %v773, 120
    %v936 = vpop.permute.xlu0 %935
    %937 = vrot.lane.b32.xlu0 %v774, 120
    %v938 = vpop.permute.xlu0 %937
    %939 = vrot.lane.b32.xlu0 %v775, 120
    %v940 = vpop.permute.xlu0 %939
    %941 = vrot.lane.b32.xlu0 %v776, 120
    %v942 = vpop.permute.xlu0 %941
    %943 = vrot.lane.b32.xlu0 %v777, 120
    %v944 = vpop.permute.xlu0 %943
    %945 = vrot.lane.b32.xlu0 %v778, 120
    %v946 = vpop.permute.xlu0 %945
    %947 = vrot.lane.b32.xlu0 %v779, 120
    %v948 = vpop.permute.xlu0 %947
    %949 = vrot.lane.b32.xlu0 %v780, 120
    %v950 = vpop.permute.xlu0 %949
    %951 = vrot.lane.b32.xlu0 %v781, 120
    %v952 = vpop.permute.xlu0 %951
    %953 = vrot.lane.b32.xlu0 %v782, 120
    %v954 = vpop.permute.xlu0 %953
    %955 = vrot.lane.b32.xlu0 %v783, 120
    %v956 = vpop.permute.xlu0 %955
    %957 = vrot.lane.b32.xlu0 %v784, 120
    %v958 = vpop.permute.xlu0 %957
    %959 = vrot.lane.b32.xlu0 %v785, 120
    %v960 = vpop.permute.xlu0 %959
    %961 = vrot.lane.b32.xlu0 %v786, 120
    %v962 = vpop.permute.xlu0 %961
    %963 = vrot.lane.b32.xlu0 %v787, 120
    %v964 = vpop.permute.xlu0 %963
    %965 = vrot.lane.b32.xlu0 %v788, 120
    %v966 = vpop.permute.xlu0 %965
    %967 = vrot.lane.b32.xlu0 %v789, 120
    %v968 = vpop.permute.xlu0 %967
    %969 = vrot.lane.b32.xlu0 %v790, 120
    %v970 = vpop.permute.xlu0 %969
    %971 = vrot.lane.b32.xlu0 %v791, 120
    %v972 = vpop.permute.xlu0 %971
    %973 = vrot.lane.b32.xlu0 %v792, 120
    %v974 = vpop.permute.xlu0 %973
    %975 = vrot.lane.b32.xlu0 %v793, 120
    %v976 = vpop.permute.xlu0 %975
    %977 = vrot.lane.b32.xlu0 %v794, 120
    %v978 = vpop.permute.xlu0 %977
    %979 = vrot.lane.b32.xlu0 %v795, 120
    %v980 = vpop.permute.xlu0 %979
    %981 = vrot.lane.b32.xlu0 %v796, 120
    %v982 = vpop.permute.xlu0 %981
    %983 = vrot.lane.b32.xlu0 %v797, 120
    %v984 = vpop.permute.xlu0 %983
    %985 = vrot.lane.b32.xlu0 %v798, 120
    %v986 = vpop.permute.xlu0 %985
    %987 = vrot.lane.b32.xlu0 %v799, 120
    %v988 = vpop.permute.xlu0 %987
    %989 = vrot.lane.b32.xlu0 %v800, 120
    %v990 = vpop.permute.xlu0 %989
    %991 = vrot.lane.b32.xlu0 %v801, 120
    %v992 = vpop.permute.xlu0 %991
    %993 = vrot.lane.b32.xlu0 %v802, 120
    %v994 = vpop.permute.xlu0 %993
    %v1059 = vsel %vm96, %v868, 0.0
    %1060 = vadd.xlane.f32.xlu0 %v1059
    %v1061 = vpop.xlane.xlu0 %1060
    %v1062 = vsel %vm96, %v870, 0.0
    %1063 = vadd.xlane.f32.xlu0 %v1062
    %v1064 = vpop.xlane.xlu0 %1063
    %v1065 = vsel %vm96, %v872, 0.0
    %1066 = vadd.xlane.f32.xlu0 %v1065
    %v1067 = vpop.xlane.xlu0 %1066
    %v1068 = vsel %vm96, %v874, 0.0
    %1069 = vadd.xlane.f32.xlu0 %v1068
    %v1070 = vpop.xlane.xlu0 %1069
    %v1071 = vsel %vm96, %v876, 0.0
    %1072 = vadd.xlane.f32.xlu0 %v1071
    %v1073 = vpop.xlane.xlu0 %1072
    %v1074 = vsel %vm96, %v878, 0.0
    %1075 = vadd.xlane.f32.xlu0 %v1074
    %v1076 = vpop.xlane.xlu0 %1075
    %v1077 = vsel %vm96, %v880, 0.0
    %1078 = vadd.xlane.f32.xlu0 %v1077
    %v1079 = vpop.xlane.xlu0 %1078
    %v1080 = vsel %vm96, %v882, 0.0
    %1081 = vadd.xlane.f32.xlu0 %v1080
    %v1082 = vpop.xlane.xlu0 %1081
    %v1083 = vsel %vm96, %v884, 0.0
    %1084 = vadd.xlane.f32.xlu0 %v1083
    %v1085 = vpop.xlane.xlu0 %1084
    %v1086 = vsel %vm96, %v886, 0.0
    %1087 = vadd.xlane.f32.xlu0 %v1086
    %v1088 = vpop.xlane.xlu0 %1087
    %v1089 = vsel %vm96, %v888, 0.0
    %1090 = vadd.xlane.f32.xlu0 %v1089
    %v1091 = vpop.xlane.xlu0 %1090
    %v1092 = vsel %vm96, %v890, 0.0
    %1093 = vadd.xlane.f32.xlu0 %v1092
    %v1094 = vpop.xlane.xlu0 %1093
    %v1095 = vsel %vm96, %v892, 0.0
    %1096 = vadd.xlane.f32.xlu0 %v1095
    %v1097 = vpop.xlane.xlu0 %1096
    %v1098 = vsel %vm96, %v894, 0.0
    %1099 = vadd.xlane.f32.xlu0 %v1098
    %v1100 = vpop.xlane.xlu0 %1099
    %v1101 = vsel %vm96, %v896, 0.0
    %1102 = vadd.xlane.f32.xlu0 %v1101
    %v1103 = vpop.xlane.xlu0 %1102
    %v1104 = vsel %vm96, %v898, 0.0
    %1105 = vadd.xlane.f32.xlu0 %v1104
    %v1106 = vpop.xlane.xlu0 %1105
    %v1107 = vsel %vm96, %v900, 0.0
    %1108 = vadd.xlane.f32.xlu0 %v1107
    %v1109 = vpop.xlane.xlu0 %1108
    %v1110 = vsel %vm96, %v902, 0.0
    %1111 = vadd.xlane.f32.xlu0 %v1110
    %v1112 = vpop.xlane.xlu0 %1111
    %v1113 = vsel %vm96, %v904, 0.0
    %1114 = vadd.xlane.f32.xlu0 %v1113
    %v1115 = vpop.xlane.xlu0 %1114
    %v1116 = vsel %vm96, %v906, 0.0
    %1117 = vadd.xlane.f32.xlu0 %v1116
    %v1118 = vpop.xlane.xlu0 %1117
    %v1119 = vsel %vm96, %v908, 0.0
    %1120 = vadd.xlane.f32.xlu0 %v1119
    %v1121 = vpop.xlane.xlu0 %1120
    %v1122 = vsel %vm96, %v910, 0.0
    %1123 = vadd.xlane.f32.xlu0 %v1122
    %v1124 = vpop.xlane.xlu0 %1123
    %v1125 = vsel %vm96, %v912, 0.0
    %1126 = vadd.xlane.f32.xlu0 %v1125
    %v1127 = vpop.xlane.xlu0 %1126
    %v1128 = vsel %vm96, %v914, 0.0
    %1129 = vadd.xlane.f32.xlu0 %v1128
    %v1130 = vpop.xlane.xlu0 %1129
    %v1131 = vsel %vm96, %v916, 0.0
    %1132 = vadd.xlane.f32.xlu0 %v1131
    %v1133 = vpop.xlane.xlu0 %1132
    %v1134 = vsel %vm96, %v918, 0.0
    %1135 = vadd.xlane.f32.xlu0 %v1134
    %v1136 = vpop.xlane.xlu0 %1135
    %v1137 = vsel %vm96, %v920, 0.0
    %1138 = vadd.xlane.f32.xlu0 %v1137
    %v1139 = vpop.xlane.xlu0 %1138
    %v1140 = vsel %vm96, %v922, 0.0
    %1141 = vadd.xlane.f32.xlu0 %v1140
    %v1142 = vpop.xlane.xlu0 %1141
    %v1143 = vsel %vm96, %v924, 0.0
    %1144 = vadd.xlane.f32.xlu0 %v1143
    %v1145 = vpop.xlane.xlu0 %1144
    %v1146 = vsel %vm96, %v926, 0.0
    %1147 = vadd.xlane.f32.xlu0 %v1146
    %v1148 = vpop.xlane.xlu0 %1147
    %v1149 = vsel %vm96, %v928, 0.0
    %1150 = vadd.xlane.f32.xlu0 %v1149
    %v1151 = vpop.xlane.xlu0 %1150
    %v1152 = vsel %vm96, %v930, 0.0
    %1153 = vadd.xlane.f32.xlu0 %v1152
    %v1154 = vpop.xlane.xlu0 %1153
    %v1155 = vsel %vm96, %v932, 0.0
    %1156 = vadd.xlane.f32.xlu0 %v1155
    %v1157 = vpop.xlane.xlu0 %1156
    %v1158 = vsel %vm96, %v934, 0.0
    %1159 = vadd.xlane.f32.xlu0 %v1158
    %v1160 = vpop.xlane.xlu0 %1159
    %v1161 = vsel %vm96, %v936, 0.0
    %1162 = vadd.xlane.f32.xlu0 %v1161
    %v1163 = vpop.xlane.xlu0 %1162
    %v1164 = vsel %vm96, %v938, 0.0
    %1165 = vadd.xlane.f32.xlu0 %v1164
    %v1166 = vpop.xlane.xlu0 %1165
    %v1167 = vsel %vm96, %v940, 0.0
    %1168 = vadd.xlane.f32.xlu0 %v1167
    %v1169 = vpop.xlane.xlu0 %1168
    %v1170 = vsel %vm96, %v942, 0.0
    %1171 = vadd.xlane.f32.xlu0 %v1170
    %v1172 = vpop.xlane.xlu0 %1171
    %v1173 = vsel %vm96, %v944, 0.0
    %1174 = vadd.xlane.f32.xlu0 %v1173
    %v1175 = vpop.xlane.xlu0 %1174
    %v1176 = vsel %vm96, %v946, 0.0
    %1177 = vadd.xlane.f32.xlu0 %v1176
    %v1178 = vpop.xlane.xlu0 %1177
    %v1179 = vsel %vm96, %v948, 0.0
    %1180 = vadd.xlane.f32.xlu0 %v1179
    %v1181 = vpop.xlane.xlu0 %1180
    %v1182 = vsel %vm96, %v950, 0.0
    %1183 = vadd.xlane.f32.xlu0 %v1182
    %v1184 = vpop.xlane.xlu0 %1183
    %v1185 = vsel %vm96, %v952, 0.0
    %1186 = vadd.xlane.f32.xlu0 %v1185
    %v1187 = vpop.xlane.xlu0 %1186
    %v1188 = vsel %vm96, %v954, 0.0
    %1189 = vadd.xlane.f32.xlu0 %v1188
    %v1190 = vpop.xlane.xlu0 %1189
    %v1191 = vsel %vm96, %v956, 0.0
    %1192 = vadd.xlane.f32.xlu0 %v1191
    %v1193 = vpop.xlane.xlu0 %1192
    %v1194 = vsel %vm96, %v958, 0.0
    %1195 = vadd.xlane.f32.xlu0 %v1194
    %v1196 = vpop.xlane.xlu0 %1195
    %v1197 = vsel %vm96, %v960, 0.0
    %1198 = vadd.xlane.f32.xlu0 %v1197
    %v1199 = vpop.xlane.xlu0 %1198
    %v1200 = vsel %vm96, %v962, 0.0
    %1201 = vadd.xlane.f32.xlu0 %v1200
    %v1202 = vpop.xlane.xlu0 %1201
    %v1203 = vsel %vm96, %v964, 0.0
    %1204 = vadd.xlane.f32.xlu0 %v1203
    %v1205 = vpop.xlane.xlu0 %1204
    %v1206 = vsel %vm96, %v966, 0.0
    %1207 = vadd.xlane.f32.xlu0 %v1206
    %v1208 = vpop.xlane.xlu0 %1207
    %v1209 = vsel %vm96, %v968, 0.0
    %1210 = vadd.xlane.f32.xlu0 %v1209
    %v1211 = vpop.xlane.xlu0 %1210
    %v1212 = vsel %vm96, %v970, 0.0
    %1213 = vadd.xlane.f32.xlu0 %v1212
    %v1214 = vpop.xlane.xlu0 %1213
    %v1215 = vsel %vm96, %v972, 0.0
    %1216 = vadd.xlane.f32.xlu0 %v1215
    %v1217 = vpop.xlane.xlu0 %1216
    %v1218 = vsel %vm96, %v974, 0.0
    %1219 = vadd.xlane.f32.xlu0 %v1218
    %v1220 = vpop.xlane.xlu0 %1219
    %v1221 = vsel %vm96, %v976, 0.0
    %1222 = vadd.xlane.f32.xlu0 %v1221
    %v1223 = vpop.xlane.xlu0 %1222
    %v1224 = vsel %vm96, %v978, 0.0
    %1225 = vadd.xlane.f32.xlu0 %v1224
    %v1226 = vpop.xlane.xlu0 %1225
    %v1227 = vsel %vm96, %v980, 0.0
    %1228 = vadd.xlane.f32.xlu0 %v1227
    %v1229 = vpop.xlane.xlu0 %1228
    %v1230 = vsel %vm96, %v982, 0.0
    %1231 = vadd.xlane.f32.xlu0 %v1230
    %v1232 = vpop.xlane.xlu0 %1231
    %v1233 = vsel %vm96, %v984, 0.0
    %1234 = vadd.xlane.f32.xlu0 %v1233
    %v1235 = vpop.xlane.xlu0 %1234
    %v1236 = vsel %vm96, %v986, 0.0
    %1237 = vadd.xlane.f32.xlu0 %v1236
    %v1238 = vpop.xlane.xlu0 %1237
    %v1239 = vsel %vm96, %v988, 0.0
    %1240 = vadd.xlane.f32.xlu0 %v1239
    %v1241 = vpop.xlane.xlu0 %1240
    %v1242 = vsel %vm96, %v990, 0.0
    %1243 = vadd.xlane.f32.xlu0 %v1242
    %v1244 = vpop.xlane.xlu0 %1243
    %v1245 = vsel %vm96, %v992, 0.0
    %1246 = vadd.xlane.f32.xlu0 %v1245
    %v1247 = vpop.xlane.xlu0 %1246
    %v1248 = vsel %vm96, %v994, 0.0
    %1249 = vadd.xlane.f32.xlu0 %v1248
    %v1250 = vpop.xlane.xlu0 %1249
    %v1251 = vmul.f32 %v1061, 0.125
    %v1252 = vmul.f32 %v1064, 0.125
    %v1253 = vmul.f32 %v1067, 0.125
    %v1254 = vmul.f32 %v1070, 0.125
    %v1255 = vmul.f32 %v1073, 0.125
    %v1256 = vmul.f32 %v1076, 0.125
    %v1257 = vmul.f32 %v1079, 0.125
    %v1258 = vmul.f32 %v1082, 0.125
    %v1259 = vmul.f32 %v1085, 0.125
    %v1260 = vmul.f32 %v1088, 0.125
    %v1261 = vmul.f32 %v1091, 0.125
    %v1262 = vmul.f32 %v1094, 0.125
    %v1263 = vmul.f32 %v1097, 0.125
    %v1264 = vmul.f32 %v1100, 0.125
    %v1265 = vmul.f32 %v1103, 0.125
    %v1266 = vmul.f32 %v1106, 0.125
    %v1267 = vmul.f32 %v1109, 0.125
    %v1268 = vmul.f32 %v1112, 0.125
    %v1269 = vmul.f32 %v1115, 0.125
    %v1270 = vmul.f32 %v1118, 0.125
    %v1271 = vmul.f32 %v1121, 0.125
    %v1272 = vmul.f32 %v1124, 0.125
    %v1273 = vmul.f32 %v1127, 0.125
    %v1274 = vmul.f32 %v1130, 0.125
    %v1275 = vmul.f32 %v1133, 0.125
    %v1276 = vmul.f32 %v1136, 0.125
    %v1277 = vmul.f32 %v1139, 0.125
    %v1278 = vmul.f32 %v1142, 0.125
    %v1279 = vmul.f32 %v1145, 0.125
    %v1280 = vmul.f32 %v1148, 0.125
    %v1281 = vmul.f32 %v1151, 0.125
    %v1282 = vmul.f32 %v1154, 0.125
    %v1283 = vmul.f32 %v1157, 0.125
    %v1284 = vmul.f32 %v1160, 0.125
    %v1285 = vmul.f32 %v1163, 0.125
    %v1286 = vmul.f32 %v1166, 0.125
    %v1287 = vmul.f32 %v1169, 0.125
    %v1288 = vmul.f32 %v1172, 0.125
    %v1289 = vmul.f32 %v1175, 0.125
    %v1290 = vmul.f32 %v1178, 0.125
    %v1291 = vmul.f32 %v1181, 0.125
    %v1292 = vmul.f32 %v1184, 0.125
    %v1293 = vmul.f32 %v1187, 0.125
    %v1294 = vmul.f32 %v1190, 0.125
    %v1295 = vmul.f32 %v1193, 0.125
    %v1296 = vmul.f32 %v1196, 0.125
    %v1297 = vmul.f32 %v1199, 0.125
    %v1298 = vmul.f32 %v1202, 0.125
    %v1299 = vmul.f32 %v1205, 0.125
    %v1300 = vmul.f32 %v1208, 0.125
    %v1301 = vmul.f32 %v1211, 0.125
    %v1302 = vmul.f32 %v1214, 0.125
    %v1303 = vmul.f32 %v1217, 0.125
    %v1304 = vmul.f32 %v1220, 0.125
    %v1305 = vmul.f32 %v1223, 0.125
    %v1306 = vmul.f32 %v1226, 0.125
    %v1307 = vmul.f32 %v1229, 0.125
    %v1308 = vmul.f32 %v1232, 0.125
    %v1309 = vmul.f32 %v1235, 0.125
    %v1310 = vmul.f32 %v1238, 0.125
    %v1311 = vmul.f32 %v1241, 0.125
    %v1312 = vmul.f32 %v1244, 0.125
    %v1313 = vmul.f32 %v1247, 0.125
    %v1314 = vmul.f32 %v1250, 0.125
    %v1315 = vadd.f32 %v353, %v1251
    %v1316 = vadd.f32 %v354, %v1252
    %v1317 = vadd.f32 %v355, %v1253
    %v1318 = vadd.f32 %v356, %v1254
    %v1319 = vadd.f32 %v357, %v1255
    %v1320 = vadd.f32 %v358, %v1256
    %v1321 = vadd.f32 %v359, %v1257
    %v1322 = vadd.f32 %v360, %v1258
    %v1323 = vadd.f32 %v361, %v1259
    %v1324 = vadd.f32 %v362, %v1260
    %v1325 = vadd.f32 %v363, %v1261
    %v1326 = vadd.f32 %v364, %v1262
    %v1327 = vadd.f32 %v365, %v1263
    %v1328 = vadd.f32 %v366, %v1264
    %v1329 = vadd.f32 %v367, %v1265
    %v1330 = vadd.f32 %v368, %v1266
    %v1331 = vadd.f32 %v369, %v1267
    %v1332 = vadd.f32 %v370, %v1268
    %v1333 = vadd.f32 %v371, %v1269
    %v1334 = vadd.f32 %v372, %v1270
    %v1335 = vadd.f32 %v373, %v1271
    %v1336 = vadd.f32 %v374, %v1272
    %v1337 = vadd.f32 %v375, %v1273
    %v1338 = vadd.f32 %v376, %v1274
    %v1339 = vadd.f32 %v377, %v1275
    %v1340 = vadd.f32 %v378, %v1276
    %v1341 = vadd.f32 %v379, %v1277
    %v1342 = vadd.f32 %v380, %v1278
    %v1343 = vadd.f32 %v381, %v1279
    %v1344 = vadd.f32 %v382, %v1280
    %v1345 = vadd.f32 %v383, %v1281
    %v1346 = vadd.f32 %v384, %v1282
    %v1347 = vadd.f32 %v385, %v1283
    %v1348 = vadd.f32 %v386, %v1284
    %v1349 = vadd.f32 %v387, %v1285
    %v1350 = vadd.f32 %v388, %v1286
    %v1351 = vadd.f32 %v389, %v1287
    %v1352 = vadd.f32 %v390, %v1288
    %v1353 = vadd.f32 %v391, %v1289
    %v1354 = vadd.f32 %v392, %v1290
    %v1355 = vadd.f32 %v393, %v1291
    %v1356 = vadd.f32 %v394, %v1292
    %v1357 = vadd.f32 %v395, %v1293
    %v1358 = vadd.f32 %v396, %v1294
    %v1359 = vadd.f32 %v397, %v1295
    %v1360 = vadd.f32 %v398, %v1296
    %v1361 = vadd.f32 %v399, %v1297
    %v1362 = vadd.f32 %v400, %v1298
    %v1363 = vadd.f32 %v401, %v1299
    %v1364 = vadd.f32 %v402, %v1300
    %v1365 = vadd.f32 %v403, %v1301
    %v1366 = vadd.f32 %v404, %v1302
    %v1367 = vadd.f32 %v405, %v1303
    %v1368 = vadd.f32 %v406, %v1304
    %v1369 = vadd.f32 %v407, %v1305
    %v1370 = vadd.f32 %v408, %v1306
    %v1371 = vadd.f32 %v409, %v1307
    %v1372 = vadd.f32 %v410, %v1308
    %v1373 = vadd.f32 %v411, %v1309
    %v1374 = vadd.f32 %v412, %v1310
    %v1375 = vadd.f32 %v413, %v1311
    %v1376 = vadd.f32 %v414, %v1312
    %v1377 = vadd.f32 %v415, %v1313
    %v1378 = vadd.f32 %v416, %v1314
    %v1379 = vld [vmem:[%s1] sm:$0xff]
    %v1380 = vld [vmem:[%s1 + $0x8] sm:$0xff]
    %v1381 = vld [vmem:[%s1 + $0x10] sm:$0xff]
    %v1382 = vld [vmem:[%s1 + $0x18] sm:$0xff]
    %v1383 = vld [vmem:[%s1 + $0x20] sm:$0xff]
    %v1384 = vld [vmem:[%s1 + $0x28] sm:$0xff]
    %v1385 = vld [vmem:[%s1 + $0x30] sm:$0xff]
    %v1386 = vld [vmem:[%s1 + $0x38] sm:$0xff]
    %v1387 = vld [vmem:[%s1 + $0x40] sm:$0xff]
    %v1388 = vld [vmem:[%s1 + $0x48] sm:$0xff]
    %v1389 = vld [vmem:[%s1 + $0x50] sm:$0xff]
    %v1390 = vld [vmem:[%s1 + $0x58] sm:$0xff]
    %v1391 = vld [vmem:[%s1 + $0x60] sm:$0xff]
    %v1392 = vld [vmem:[%s1 + $0x68] sm:$0xff]
    %v1393 = vld [vmem:[%s1 + $0x70] sm:$0xff]
    %v1394 = vld [vmem:[%s1 + $0x78] sm:$0xff]
    %v1395 = vld [vmem:[%s1 + $0x80] sm:$0xff]
    %v1396 = vld [vmem:[%s1 + $0x88] sm:$0xff]
    %v1397 = vld [vmem:[%s1 + $0x90] sm:$0xff]
    %v1398 = vld [vmem:[%s1 + $0x98] sm:$0xff]
    %v1399 = vld [vmem:[%s1 + $0xa0] sm:$0xff]
    %v1400 = vld [vmem:[%s1 + $0xa8] sm:$0xff]
    %v1401 = vld [vmem:[%s1 + $0xb0] sm:$0xff]
    %v1402 = vld [vmem:[%s1 + $0xb8] sm:$0xff]
    %v1403 = vld [vmem:[%s1 + $0xc0] sm:$0xff]
    %v1404 = vld [vmem:[%s1 + $0xc8] sm:$0xff]
    %v1405 = vld [vmem:[%s1 + $0xd0] sm:$0xff]
    %v1406 = vld [vmem:[%s1 + $0xd8] sm:$0xff]
    %v1407 = vld [vmem:[%s1 + $0xe0] sm:$0xff]
    %v1408 = vld [vmem:[%s1 + $0xe8] sm:$0xff]
    %v1409 = vld [vmem:[%s1 + $0xf0] sm:$0xff]
    %v1410 = vld [vmem:[%s1 + $0xf8] sm:$0xff]
    %v1475 = vperm.slane %v1251, %v517
    %v1476 = vperm.slane %v1252, %v519
    %v1477 = vsel %vm521, %v1476, %v1475
    %v1478 = vperm.slane %v1253, %v523
    %v1479 = vsel %vm525, %v1478, %v1477
    %v1480 = vperm.slane %v1254, %v527
    %v1481 = vsel %vm529, %v1480, %v1479
    %v1482 = vperm.slane %v1255, %v531
    %v1483 = vsel %vm533, %v1482, %v1481
    %v1484 = vperm.slane %v1256, %v535
    %v1485 = vsel %vm537, %v1484, %v1483
    %v1486 = vperm.slane %v1257, %v539
    %v1487 = vsel %vm541, %v1486, %v1485
    %v1488 = vperm.slane %v1258, %v543
    %v1489 = vsel %vm545, %v1488, %v1487
    %v1490 = vperm.slane %v1259, %v547
    %v1491 = vsel %vm549, %v1490, %v1489
    %v1492 = vperm.slane %v1260, %v551
    %v1493 = vsel %vm553, %v1492, %v1491
    %v1494 = vperm.slane %v1261, %v555
    %v1495 = vsel %vm557, %v1494, %v1493
    %v1496 = vperm.slane %v1262, %v559
    %v1497 = vsel %vm561, %v1496, %v1495
    %v1498 = vperm.slane %v1263, %v563
    %v1499 = vsel %vm565, %v1498, %v1497
    %v1500 = vperm.slane %v1264, %v567
    %v1501 = vsel %vm569, %v1500, %v1499
    %v1502 = vperm.slane %v1265, %v571
    %v1503 = vsel %vm573, %v1502, %v1501
    %v1504 = vperm.slane %v1266, %v575
    %v1505 = vsel %vm577, %v1504, %v1503
    %v1506 = vperm.slane %v1267, %v517
    %v1507 = vperm.slane %v1268, %v519
    %v1508 = vsel %vm521, %v1507, %v1506
    %v1509 = vperm.slane %v1269, %v523
    %v1510 = vsel %vm525, %v1509, %v1508
    %v1511 = vperm.slane %v1270, %v527
    %v1512 = vsel %vm529, %v1511, %v1510
    %v1513 = vperm.slane %v1271, %v531
    %v1514 = vsel %vm533, %v1513, %v1512
    %v1515 = vperm.slane %v1272, %v535
    %v1516 = vsel %vm537, %v1515, %v1514
    %v1517 = vperm.slane %v1273, %v539
    %v1518 = vsel %vm541, %v1517, %v1516
    %v1519 = vperm.slane %v1274, %v543
    %v1520 = vsel %vm545, %v1519, %v1518
    %v1521 = vperm.slane %v1275, %v547
    %v1522 = vsel %vm549, %v1521, %v1520
    %v1523 = vperm.slane %v1276, %v551
    %v1524 = vsel %vm553, %v1523, %v1522
    %v1525 = vperm.slane %v1277, %v555
    %v1526 = vsel %vm557, %v1525, %v1524
    %v1527 = vperm.slane %v1278, %v559
    %v1528 = vsel %vm561, %v1527, %v1526
    %v1529 = vperm.slane %v1279, %v563
    %v1530 = vsel %vm565, %v1529, %v1528
    %v1531 = vperm.slane %v1280, %v567
    %v1532 = vsel %vm569, %v1531, %v1530
    %v1533 = vperm.slane %v1281, %v571
    %v1534 = vsel %vm573, %v1533, %v1532
    %v1535 = vperm.slane %v1282, %v575
    %v1536 = vsel %vm577, %v1535, %v1534
    %v1537 = vperm.slane %v1283, %v517
    %v1538 = vperm.slane %v1284, %v519
    %v1539 = vsel %vm521, %v1538, %v1537
    %v1540 = vperm.slane %v1285, %v523
    %v1541 = vsel %vm525, %v1540, %v1539
    %v1542 = vperm.slane %v1286, %v527
    %v1543 = vsel %vm529, %v1542, %v1541
    %v1544 = vperm.slane %v1287, %v531
    %v1545 = vsel %vm533, %v1544, %v1543
    %v1546 = vperm.slane %v1288, %v535
    %v1547 = vsel %vm537, %v1546, %v1545
    %v1548 = vperm.slane %v1289, %v539
    %v1549 = vsel %vm541, %v1548, %v1547
    %v1550 = vperm.slane %v1290, %v543
    %v1551 = vsel %vm545, %v1550, %v1549
    %v1552 = vperm.slane %v1291, %v547
    %v1553 = vsel %vm549, %v1552, %v1551
    %v1554 = vperm.slane %v1292, %v551
    %v1555 = vsel %vm553, %v1554, %v1553
    %v1556 = vperm.slane %v1293, %v555
    %v1557 = vsel %vm557, %v1556, %v1555
    %v1558 = vperm.slane %v1294, %v559
    %v1559 = vsel %vm561, %v1558, %v1557
    %v1560 = vperm.slane %v1295, %v563
    %v1561 = vsel %vm565, %v1560, %v1559
    %v1562 = vperm.slane %v1296, %v567
    %v1563 = vsel %vm569, %v1562, %v1561
    %v1564 = vperm.slane %v1297, %v571
    %v1565 = vsel %vm573, %v1564, %v1563
    %v1566 = vperm.slane %v1298, %v575
    %v1567 = vsel %vm577, %v1566, %v1565
    %v1568 = vperm.slane %v1299, %v517
    %v1569 = vperm.slane %v1300, %v519
    %v1570 = vsel %vm521, %v1569, %v1568
    %v1571 = vperm.slane %v1301, %v523
    %v1572 = vsel %vm525, %v1571, %v1570
    %v1573 = vperm.slane %v1302, %v527
    %v1574 = vsel %vm529, %v1573, %v1572
    %v1575 = vperm.slane %v1303, %v531
    %v1576 = vsel %vm533, %v1575, %v1574
    %v1577 = vperm.slane %v1304, %v535
    %v1578 = vsel %vm537, %v1577, %v1576
    %v1579 = vperm.slane %v1305, %v539
    %v1580 = vsel %vm541, %v1579, %v1578
    %v1581 = vperm.slane %v1306, %v543
    %v1582 = vsel %vm545, %v1581, %v1580
    %v1583 = vperm.slane %v1307, %v547
    %v1584 = vsel %vm549, %v1583, %v1582
    %v1585 = vperm.slane %v1308, %v551
    %v1586 = vsel %vm553, %v1585, %v1584
    %v1587 = vperm.slane %v1309, %v555
    %v1588 = vsel %vm557, %v1587, %v1586
    %v1589 = vperm.slane %v1310, %v559
    %v1590 = vsel %vm561, %v1589, %v1588
    %v1591 = vperm.slane %v1311, %v563
    %v1592 = vsel %vm565, %v1591, %v1590
    %v1593 = vperm.slane %v1312, %v567
    %v1594 = vsel %vm569, %v1593, %v1592
    %v1595 = vperm.slane %v1313, %v571
    %v1596 = vsel %vm573, %v1595, %v1594
    %v1597 = vperm.slane %v1314, %v575
    %v1598 = vsel %vm577, %v1597, %v1596
    %v1599 = vsel %vm672, %v1567, %v1505
    %v1600 = vsel %vm672, %v1598, %v1536
    %1603 = vmatpush.msra.mxu0 %v1394
    %1604 = vmatpush.msra.mxu0 %v1393
    %1605 = vmatpush.msra.mxu0 %v1392
    %1606 = vmatpush.msra.mxu0 %v1391
    %1607 = vmatpush.msra.mxu0 %v1390
    %1608 = vmatpush.msra.mxu0 %v1389
    %1609 = vmatpush.msra.mxu0 %v1388
    %1610 = vmatpush.msra.mxu0 %v1387
    %1611 = vmatpush.msra.mxu0 %v1386
    %1612 = vmatpush.msra.mxu0 %v1385
    %1613 = vmatpush.msra.mxu0 %v1384
    %1614 = vmatpush.msra.mxu0 %v1383
    %1615 = vmatpush.msra.mxu0 %v1382
    %1616 = vmatpush.msra.mxu0 %v1381
    %1617 = vmatpush.msra.mxu0 %v1380
    %1618 = vmatpush.msra.mxu0 %v1379
    %1619 = vmatmul.f32.gmra.mxu0 %v1599
    %v1620 = vpop.f32.mrf.mxu0
    %v1621 = vadd.f32 %v450, %v1620
    %1622 = vdwg.mxu0
    %1623 = vmatpush.msra.mxu0 %v1410
    %1624 = vmatpush.msra.mxu0 %v1409
    %1625 = vmatpush.msra.mxu0 %v1408
    %1626 = vmatpush.msra.mxu0 %v1407
    %1627 = vmatpush.msra.mxu0 %v1406
    %1628 = vmatpush.msra.mxu0 %v1405
    %1629 = vmatpush.msra.mxu0 %v1404
    %1630 = vmatpush.msra.mxu0 %v1403
    %1631 = vmatpush.msra.mxu0 %v1402
    %1632 = vmatpush.msra.mxu0 %v1401
    %1633 = vmatpush.msra.mxu0 %v1400
    %1634 = vmatpush.msra.mxu0 %v1399
    %1635 = vmatpush.msra.mxu0 %v1398
    %1636 = vmatpush.msra.mxu0 %v1397
    %1637 = vmatpush.msra.mxu0 %v1396
    %1638 = vmatpush.msra.mxu0 %v1395
    %1639 = vmatmul.f32.gmra.mxu0 %v1600
    %v1640 = vpop.f32.mrf.mxu0
    %v1641 = vadd.f32 %v1621, %v1640
    %1642 = vdwg.mxu0
    %v1643 = vmul.f32 %v1641, %v1641
    %v1644 = vsel %vm718, %v1643, 0.0
    %1645 = vadd.xlane.f32.xlu0 %v1644
    %v1646 = vpop.xlane.xlu0 %1645
    %v1647 = vadd.f32 %v1646, 1e-12
    %v1648 = vrsqrt.pop %v1647
    %v1649 = vmul.f32 %v1648, %v1647
    %v1650 = vmul.f32 %v1649, %v1648
    %v1651 = vmul.f32 0.5, %v1650
    %v1652 = vsub.f32 1.5, %v1651
    %v1653 = vmul.f32 %v1648, %v1652
    %vm1654 = vweird.f32 %v1647
    %vm1655 = vweird.f32 %v1648
    %vm1656 = vmor %vm1654, %vm1655
    %v1657 = vsel %vm1656, %v1648, %v1653
    %v1658 = vmul.f32 %v1641, %v1657
    %v1660 = vrot.slane %v1658, 1
    %1662 = vst [vmem:[#allocation4 + $0x1] sm:$0x1] %v1658
    %1663 = vst [vmem:[#allocation4 + $0x9] sm:$0x1] %v1660
    %v1664 = vld [vmem:[%s0] sm:$0xff]
    %v1665 = vld [vmem:[%s0 + $0x8] sm:$0xff]
    %v1666 = vld [vmem:[%s0 + $0x10] sm:$0xff]
    %v1667 = vld [vmem:[%s0 + $0x18] sm:$0xff]
    %v1668 = vld [vmem:[%s0 + $0x20] sm:$0xff]
    %v1669 = vld [vmem:[%s0 + $0x28] sm:$0xff]
    %v1670 = vld [vmem:[%s0 + $0x30] sm:$0xff]
    %v1671 = vld [vmem:[%s0 + $0x38] sm:$0xff]
    %v1672 = vld [vmem:[%s0 + $0x40] sm:$0xff]
    %v1673 = vld [vmem:[%s0 + $0x48] sm:$0xff]
    %v1674 = vld [vmem:[%s0 + $0x50] sm:$0xff]
    %v1675 = vld [vmem:[%s0 + $0x58] sm:$0xff]
    %v1676 = vld [vmem:[%s0 + $0x60] sm:$0xff]
    %v1677 = vld [vmem:[%s0 + $0x68] sm:$0xff]
    %v1678 = vld [vmem:[%s0 + $0x70] sm:$0xff]
    %v1679 = vld [vmem:[%s0 + $0x78] sm:$0xff]
    %v1680 = vld [vmem:[%s0 + $0x80] sm:$0xff]
    %v1681 = vld [vmem:[%s0 + $0x88] sm:$0xff]
    %v1682 = vld [vmem:[%s0 + $0x90] sm:$0xff]
    %v1683 = vld [vmem:[%s0 + $0x98] sm:$0xff]
    %v1684 = vld [vmem:[%s0 + $0xa0] sm:$0xff]
    %v1685 = vld [vmem:[%s0 + $0xa8] sm:$0xff]
    %v1686 = vld [vmem:[%s0 + $0xb0] sm:$0xff]
    %v1687 = vld [vmem:[%s0 + $0xb8] sm:$0xff]
    %v1688 = vld [vmem:[%s0 + $0xc0] sm:$0xff]
    %v1689 = vld [vmem:[%s0 + $0xc8] sm:$0xff]
    %v1690 = vld [vmem:[%s0 + $0xd0] sm:$0xff]
    %v1691 = vld [vmem:[%s0 + $0xd8] sm:$0xff]
    %v1692 = vld [vmem:[%s0 + $0xe0] sm:$0xff]
    %v1693 = vld [vmem:[%s0 + $0xe8] sm:$0xff]
    %v1694 = vld [vmem:[%s0 + $0xf0] sm:$0xff]
    %v1695 = vld [vmem:[%s0 + $0xf8] sm:$0xff]
    %v1696 = vld [vmem:[%s0 + $0x100] sm:$0xff]
    %v1697 = vld [vmem:[%s0 + $0x108] sm:$0xff]
    %v1698 = vld [vmem:[%s0 + $0x110] sm:$0xff]
    %v1699 = vld [vmem:[%s0 + $0x118] sm:$0xff]
    %v1700 = vld [vmem:[%s0 + $0x120] sm:$0xff]
    %v1701 = vld [vmem:[%s0 + $0x128] sm:$0xff]
    %v1702 = vld [vmem:[%s0 + $0x130] sm:$0xff]
    %v1703 = vld [vmem:[%s0 + $0x138] sm:$0xff]
    %v1704 = vld [vmem:[%s0 + $0x140] sm:$0xff]
    %v1705 = vld [vmem:[%s0 + $0x148] sm:$0xff]
    %v1706 = vld [vmem:[%s0 + $0x150] sm:$0xff]
    %v1707 = vld [vmem:[%s0 + $0x158] sm:$0xff]
    %v1708 = vld [vmem:[%s0 + $0x160] sm:$0xff]
    %v1709 = vld [vmem:[%s0 + $0x168] sm:$0xff]
    %v1710 = vld [vmem:[%s0 + $0x170] sm:$0xff]
    %v1711 = vld [vmem:[%s0 + $0x178] sm:$0xff]
    %v1712 = vld [vmem:[%s0 + $0x180] sm:$0xff]
    %v1713 = vld [vmem:[%s0 + $0x188] sm:$0xff]
    %v1714 = vld [vmem:[%s0 + $0x190] sm:$0xff]
    %v1715 = vld [vmem:[%s0 + $0x198] sm:$0xff]
    %v1716 = vld [vmem:[%s0 + $0x1a0] sm:$0xff]
    %v1717 = vld [vmem:[%s0 + $0x1a8] sm:$0xff]
    %v1718 = vld [vmem:[%s0 + $0x1b0] sm:$0xff]
    %v1719 = vld [vmem:[%s0 + $0x1b8] sm:$0xff]
    %v1720 = vld [vmem:[%s0 + $0x1c0] sm:$0xff]
    %v1721 = vld [vmem:[%s0 + $0x1c8] sm:$0xff]
    %v1722 = vld [vmem:[%s0 + $0x1d0] sm:$0xff]
    %v1723 = vld [vmem:[%s0 + $0x1d8] sm:$0xff]
    %v1724 = vld [vmem:[%s0 + $0x1e0] sm:$0xff]
    %v1725 = vld [vmem:[%s0 + $0x1e8] sm:$0xff]
    %v1726 = vld [vmem:[%s0 + $0x1f0] sm:$0xff]
    %v1727 = vld [vmem:[%s0 + $0x1f8] sm:$0xff]
    %1792 = vrot.lane.b32.xlu0 %v1664, 112
    %v1793 = vpop.permute.xlu0 %1792
    %1794 = vrot.lane.b32.xlu0 %v1665, 112
    %v1795 = vpop.permute.xlu0 %1794
    %1796 = vrot.lane.b32.xlu0 %v1666, 112
    %v1797 = vpop.permute.xlu0 %1796
    %1798 = vrot.lane.b32.xlu0 %v1667, 112
    %v1799 = vpop.permute.xlu0 %1798
    %1800 = vrot.lane.b32.xlu0 %v1668, 112
    %v1801 = vpop.permute.xlu0 %1800
    %1802 = vrot.lane.b32.xlu0 %v1669, 112
    %v1803 = vpop.permute.xlu0 %1802
    %1804 = vrot.lane.b32.xlu0 %v1670, 112
    %v1805 = vpop.permute.xlu0 %1804
    %1806 = vrot.lane.b32.xlu0 %v1671, 112
    %v1807 = vpop.permute.xlu0 %1806
    %1808 = vrot.lane.b32.xlu0 %v1672, 112
    %v1809 = vpop.permute.xlu0 %1808
    %1810 = vrot.lane.b32.xlu0 %v1673, 112
    %v1811 = vpop.permute.xlu0 %1810
    %1812 = vrot.lane.b32.xlu0 %v1674, 112
    %v1813 = vpop.permute.xlu0 %1812
    %1814 = vrot.lane.b32.xlu0 %v1675, 112
    %v1815 = vpop.permute.xlu0 %1814
    %1816 = vrot.lane.b32.xlu0 %v1676, 112
    %v1817 = vpop.permute.xlu0 %1816
    %1818 = vrot.lane.b32.xlu0 %v1677, 112
    %v1819 = vpop.permute.xlu0 %1818
    %1820 = vrot.lane.b32.xlu0 %v1678, 112
    %v1821 = vpop.permute.xlu0 %1820
    %1822 = vrot.lane.b32.xlu0 %v1679, 112
    %v1823 = vpop.permute.xlu0 %1822
    %1824 = vrot.lane.b32.xlu0 %v1680, 112
    %v1825 = vpop.permute.xlu0 %1824
    %1826 = vrot.lane.b32.xlu0 %v1681, 112
    %v1827 = vpop.permute.xlu0 %1826
    %1828 = vrot.lane.b32.xlu0 %v1682, 112
    %v1829 = vpop.permute.xlu0 %1828
    %1830 = vrot.lane.b32.xlu0 %v1683, 112
    %v1831 = vpop.permute.xlu0 %1830
    %1832 = vrot.lane.b32.xlu0 %v1684, 112
    %v1833 = vpop.permute.xlu0 %1832
    %1834 = vrot.lane.b32.xlu0 %v1685, 112
    %v1835 = vpop.permute.xlu0 %1834
    %1836 = vrot.lane.b32.xlu0 %v1686, 112
    %v1837 = vpop.permute.xlu0 %1836
    %1838 = vrot.lane.b32.xlu0 %v1687, 112
    %v1839 = vpop.permute.xlu0 %1838
    %1840 = vrot.lane.b32.xlu0 %v1688, 112
    %v1841 = vpop.permute.xlu0 %1840
    %1842 = vrot.lane.b32.xlu0 %v1689, 112
    %v1843 = vpop.permute.xlu0 %1842
    %1844 = vrot.lane.b32.xlu0 %v1690, 112
    %v1845 = vpop.permute.xlu0 %1844
    %1846 = vrot.lane.b32.xlu0 %v1691, 112
    %v1847 = vpop.permute.xlu0 %1846
    %1848 = vrot.lane.b32.xlu0 %v1692, 112
    %v1849 = vpop.permute.xlu0 %1848
    %1850 = vrot.lane.b32.xlu0 %v1693, 112
    %v1851 = vpop.permute.xlu0 %1850
    %1852 = vrot.lane.b32.xlu0 %v1694, 112
    %v1853 = vpop.permute.xlu0 %1852
    %1854 = vrot.lane.b32.xlu0 %v1695, 112
    %v1855 = vpop.permute.xlu0 %1854
    %1856 = vrot.lane.b32.xlu0 %v1696, 112
    %v1857 = vpop.permute.xlu0 %1856
    %1858 = vrot.lane.b32.xlu0 %v1697, 112
    %v1859 = vpop.permute.xlu0 %1858
    %1860 = vrot.lane.b32.xlu0 %v1698, 112
    %v1861 = vpop.permute.xlu0 %1860
    %1862 = vrot.lane.b32.xlu0 %v1699, 112
    %v1863 = vpop.permute.xlu0 %1862
    %1864 = vrot.lane.b32.xlu0 %v1700, 112
    %v1865 = vpop.permute.xlu0 %1864
    %1866 = vrot.lane.b32.xlu0 %v1701, 112
    %v1867 = vpop.permute.xlu0 %1866
    %1868 = vrot.lane.b32.xlu0 %v1702, 112
    %v1869 = vpop.permute.xlu0 %1868
    %1870 = vrot.lane.b32.xlu0 %v1703, 112
    %v1871 = vpop.permute.xlu0 %1870
    %1872 = vrot.lane.b32.xlu0 %v1704, 112
    %v1873 = vpop.permute.xlu0 %1872
    %1874 = vrot.lane.b32.xlu0 %v1705, 112
    %v1875 = vpop.permute.xlu0 %1874
    %1876 = vrot.lane.b32.xlu0 %v1706, 112
    %v1877 = vpop.permute.xlu0 %1876
    %1878 = vrot.lane.b32.xlu0 %v1707, 112
    %v1879 = vpop.permute.xlu0 %1878
    %1880 = vrot.lane.b32.xlu0 %v1708, 112
    %v1881 = vpop.permute.xlu0 %1880
    %1882 = vrot.lane.b32.xlu0 %v1709, 112
    %v1883 = vpop.permute.xlu0 %1882
    %1884 = vrot.lane.b32.xlu0 %v1710, 112
    %v1885 = vpop.permute.xlu0 %1884
    %1886 = vrot.lane.b32.xlu0 %v1711, 112
    %v1887 = vpop.permute.xlu0 %1886
    %1888 = vrot.lane.b32.xlu0 %v1712, 112
    %v1889 = vpop.permute.xlu0 %1888
    %1890 = vrot.lane.b32.xlu0 %v1713, 112
    %v1891 = vpop.permute.xlu0 %1890
    %1892 = vrot.lane.b32.xlu0 %v1714, 112
    %v1893 = vpop.permute.xlu0 %1892
    %1894 = vrot.lane.b32.xlu0 %v1715, 112
    %v1895 = vpop.permute.xlu0 %1894
    %1896 = vrot.lane.b32.xlu0 %v1716, 112
    %v1897 = vpop.permute.xlu0 %1896
    %1898 = vrot.lane.b32.xlu0 %v1717, 112
    %v1899 = vpop.permute.xlu0 %1898
    %1900 = vrot.lane.b32.xlu0 %v1718, 112
    %v1901 = vpop.permute.xlu0 %1900
    %1902 = vrot.lane.b32.xlu0 %v1719, 112
    %v1903 = vpop.permute.xlu0 %1902
    %1904 = vrot.lane.b32.xlu0 %v1720, 112
    %v1905 = vpop.permute.xlu0 %1904
    %1906 = vrot.lane.b32.xlu0 %v1721, 112
    %v1907 = vpop.permute.xlu0 %1906
    %1908 = vrot.lane.b32.xlu0 %v1722, 112
    %v1909 = vpop.permute.xlu0 %1908
    %1910 = vrot.lane.b32.xlu0 %v1723, 112
    %v1911 = vpop.permute.xlu0 %1910
    %1912 = vrot.lane.b32.xlu0 %v1724, 112
    %v1913 = vpop.permute.xlu0 %1912
    %1914 = vrot.lane.b32.xlu0 %v1725, 112
    %v1915 = vpop.permute.xlu0 %1914
    %1916 = vrot.lane.b32.xlu0 %v1726, 112
    %v1917 = vpop.permute.xlu0 %1916
    %1918 = vrot.lane.b32.xlu0 %v1727, 112
    %v1919 = vpop.permute.xlu0 %1918
    %v1984 = vsel %vm96, %v1793, 0.0
    %1985 = vadd.xlane.f32.xlu0 %v1984
    %v1986 = vpop.xlane.xlu0 %1985
    %v1987 = vsel %vm96, %v1795, 0.0
    %1988 = vadd.xlane.f32.xlu0 %v1987
    %v1989 = vpop.xlane.xlu0 %1988
    %v1990 = vsel %vm96, %v1797, 0.0
    %1991 = vadd.xlane.f32.xlu0 %v1990
    %v1992 = vpop.xlane.xlu0 %1991
    %v1993 = vsel %vm96, %v1799, 0.0
    %1994 = vadd.xlane.f32.xlu0 %v1993
    %v1995 = vpop.xlane.xlu0 %1994
    %v1996 = vsel %vm96, %v1801, 0.0
    %1997 = vadd.xlane.f32.xlu0 %v1996
    %v1998 = vpop.xlane.xlu0 %1997
    %v1999 = vsel %vm96, %v1803, 0.0
    %2000 = vadd.xlane.f32.xlu0 %v1999
    %v2001 = vpop.xlane.xlu0 %2000
    %v2002 = vsel %vm96, %v1805, 0.0
    %2003 = vadd.xlane.f32.xlu0 %v2002
    %v2004 = vpop.xlane.xlu0 %2003
    %v2005 = vsel %vm96, %v1807, 0.0
    %2006 = vadd.xlane.f32.xlu0 %v2005
    %v2007 = vpop.xlane.xlu0 %2006
    %v2008 = vsel %vm96, %v1809, 0.0
    %2009 = vadd.xlane.f32.xlu0 %v2008
    %v2010 = vpop.xlane.xlu0 %2009
    %v2011 = vsel %vm96, %v1811, 0.0
    %2012 = vadd.xlane.f32.xlu0 %v2011
    %v2013 = vpop.xlane.xlu0 %2012
    %v2014 = vsel %vm96, %v1813, 0.0
    %2015 = vadd.xlane.f32.xlu0 %v2014
    %v2016 = vpop.xlane.xlu0 %2015
    %v2017 = vsel %vm96, %v1815, 0.0
    %2018 = vadd.xlane.f32.xlu0 %v2017
    %v2019 = vpop.xlane.xlu0 %2018
    %v2020 = vsel %vm96, %v1817, 0.0
    %2021 = vadd.xlane.f32.xlu0 %v2020
    %v2022 = vpop.xlane.xlu0 %2021
    %v2023 = vsel %vm96, %v1819, 0.0
    %2024 = vadd.xlane.f32.xlu0 %v2023
    %v2025 = vpop.xlane.xlu0 %2024
    %v2026 = vsel %vm96, %v1821, 0.0
    %2027 = vadd.xlane.f32.xlu0 %v2026
    %v2028 = vpop.xlane.xlu0 %2027
    %v2029 = vsel %vm96, %v1823, 0.0
    %2030 = vadd.xlane.f32.xlu0 %v2029
    %v2031 = vpop.xlane.xlu0 %2030
    %v2032 = vsel %vm96, %v1825, 0.0
    %2033 = vadd.xlane.f32.xlu0 %v2032
    %v2034 = vpop.xlane.xlu0 %2033
    %v2035 = vsel %vm96, %v1827, 0.0
    %2036 = vadd.xlane.f32.xlu0 %v2035
    %v2037 = vpop.xlane.xlu0 %2036
    %v2038 = vsel %vm96, %v1829, 0.0
    %2039 = vadd.xlane.f32.xlu0 %v2038
    %v2040 = vpop.xlane.xlu0 %2039
    %v2041 = vsel %vm96, %v1831, 0.0
    %2042 = vadd.xlane.f32.xlu0 %v2041
    %v2043 = vpop.xlane.xlu0 %2042
    %v2044 = vsel %vm96, %v1833, 0.0
    %2045 = vadd.xlane.f32.xlu0 %v2044
    %v2046 = vpop.xlane.xlu0 %2045
    %v2047 = vsel %vm96, %v1835, 0.0
    %2048 = vadd.xlane.f32.xlu0 %v2047
    %v2049 = vpop.xlane.xlu0 %2048
    %v2050 = vsel %vm96, %v1837, 0.0
    %2051 = vadd.xlane.f32.xlu0 %v2050
    %v2052 = vpop.xlane.xlu0 %2051
    %v2053 = vsel %vm96, %v1839, 0.0
    %2054 = vadd.xlane.f32.xlu0 %v2053
    %v2055 = vpop.xlane.xlu0 %2054
    %v2056 = vsel %vm96, %v1841, 0.0
    %2057 = vadd.xlane.f32.xlu0 %v2056
    %v2058 = vpop.xlane.xlu0 %2057
    %v2059 = vsel %vm96, %v1843, 0.0
    %2060 = vadd.xlane.f32.xlu0 %v2059
    %v2061 = vpop.xlane.xlu0 %2060
    %v2062 = vsel %vm96, %v1845, 0.0
    %2063 = vadd.xlane.f32.xlu0 %v2062
    %v2064 = vpop.xlane.xlu0 %2063
    %v2065 = vsel %vm96, %v1847, 0.0
    %2066 = vadd.xlane.f32.xlu0 %v2065
    %v2067 = vpop.xlane.xlu0 %2066
    %v2068 = vsel %vm96, %v1849, 0.0
    %2069 = vadd.xlane.f32.xlu0 %v2068
    %v2070 = vpop.xlane.xlu0 %2069
    %v2071 = vsel %vm96, %v1851, 0.0
    %2072 = vadd.xlane.f32.xlu0 %v2071
    %v2073 = vpop.xlane.xlu0 %2072
    %v2074 = vsel %vm96, %v1853, 0.0
    %2075 = vadd.xlane.f32.xlu0 %v2074
    %v2076 = vpop.xlane.xlu0 %2075
    %v2077 = vsel %vm96, %v1855, 0.0
    %2078 = vadd.xlane.f32.xlu0 %v2077
    %v2079 = vpop.xlane.xlu0 %2078
    %v2080 = vsel %vm96, %v1857, 0.0
    %2081 = vadd.xlane.f32.xlu0 %v2080
    %v2082 = vpop.xlane.xlu0 %2081
    %v2083 = vsel %vm96, %v1859, 0.0
    %2084 = vadd.xlane.f32.xlu0 %v2083
    %v2085 = vpop.xlane.xlu0 %2084
    %v2086 = vsel %vm96, %v1861, 0.0
    %2087 = vadd.xlane.f32.xlu0 %v2086
    %v2088 = vpop.xlane.xlu0 %2087
    %v2089 = vsel %vm96, %v1863, 0.0
    %2090 = vadd.xlane.f32.xlu0 %v2089
    %v2091 = vpop.xlane.xlu0 %2090
    %v2092 = vsel %vm96, %v1865, 0.0
    %2093 = vadd.xlane.f32.xlu0 %v2092
    %v2094 = vpop.xlane.xlu0 %2093
    %v2095 = vsel %vm96, %v1867, 0.0
    %2096 = vadd.xlane.f32.xlu0 %v2095
    %v2097 = vpop.xlane.xlu0 %2096
    %v2098 = vsel %vm96, %v1869, 0.0
    %2099 = vadd.xlane.f32.xlu0 %v2098
    %v2100 = vpop.xlane.xlu0 %2099
    %v2101 = vsel %vm96, %v1871, 0.0
    %2102 = vadd.xlane.f32.xlu0 %v2101
    %v2103 = vpop.xlane.xlu0 %2102
    %v2104 = vsel %vm96, %v1873, 0.0
    %2105 = vadd.xlane.f32.xlu0 %v2104
    %v2106 = vpop.xlane.xlu0 %2105
    %v2107 = vsel %vm96, %v1875, 0.0
    %2108 = vadd.xlane.f32.xlu0 %v2107
    %v2109 = vpop.xlane.xlu0 %2108
    %v2110 = vsel %vm96, %v1877, 0.0
    %2111 = vadd.xlane.f32.xlu0 %v2110
    %v2112 = vpop.xlane.xlu0 %2111
    %v2113 = vsel %vm96, %v1879, 0.0
    %2114 = vadd.xlane.f32.xlu0 %v2113
    %v2115 = vpop.xlane.xlu0 %2114
    %v2116 = vsel %vm96, %v1881, 0.0
    %2117 = vadd.xlane.f32.xlu0 %v2116
    %v2118 = vpop.xlane.xlu0 %2117
    %v2119 = vsel %vm96, %v1883, 0.0
    %2120 = vadd.xlane.f32.xlu0 %v2119
    %v2121 = vpop.xlane.xlu0 %2120
    %v2122 = vsel %vm96, %v1885, 0.0
    %2123 = vadd.xlane.f32.xlu0 %v2122
    %v2124 = vpop.xlane.xlu0 %2123
    %v2125 = vsel %vm96, %v1887, 0.0
    %2126 = vadd.xlane.f32.xlu0 %v2125
    %v2127 = vpop.xlane.xlu0 %2126
    %v2128 = vsel %vm96, %v1889, 0.0
    %2129 = vadd.xlane.f32.xlu0 %v2128
    %v2130 = vpop.xlane.xlu0 %2129
    %v2131 = vsel %vm96, %v1891, 0.0
    %2132 = vadd.xlane.f32.xlu0 %v2131
    %v2133 = vpop.xlane.xlu0 %2132
    %v2134 = vsel %vm96, %v1893, 0.0
    %2135 = vadd.xlane.f32.xlu0 %v2134
    %v2136 = vpop.xlane.xlu0 %2135
    %v2137 = vsel %vm96, %v1895, 0.0
    %2138 = vadd.xlane.f32.xlu0 %v2137
    %v2139 = vpop.xlane.xlu0 %2138
    %v2140 = vsel %vm96, %v1897, 0.0
    %2141 = vadd.xlane.f32.xlu0 %v2140
    %v2142 = vpop.xlane.xlu0 %2141
    %v2143 = vsel %vm96, %v1899, 0.0
    %2144 = vadd.xlane.f32.xlu0 %v2143
    %v2145 = vpop.xlane.xlu0 %2144
    %v2146 = vsel %vm96, %v1901, 0.0
    %2147 = vadd.xlane.f32.xlu0 %v2146
    %v2148 = vpop.xlane.xlu0 %2147
    %v2149 = vsel %vm96, %v1903, 0.0
    %2150 = vadd.xlane.f32.xlu0 %v2149
    %v2151 = vpop.xlane.xlu0 %2150
    %v2152 = vsel %vm96, %v1905, 0.0
    %2153 = vadd.xlane.f32.xlu0 %v2152
    %v2154 = vpop.xlane.xlu0 %2153
    %v2155 = vsel %vm96, %v1907, 0.0
    %2156 = vadd.xlane.f32.xlu0 %v2155
    %v2157 = vpop.xlane.xlu0 %2156
    %v2158 = vsel %vm96, %v1909, 0.0
    %2159 = vadd.xlane.f32.xlu0 %v2158
    %v2160 = vpop.xlane.xlu0 %2159
    %v2161 = vsel %vm96, %v1911, 0.0
    %2162 = vadd.xlane.f32.xlu0 %v2161
    %v2163 = vpop.xlane.xlu0 %2162
    %v2164 = vsel %vm96, %v1913, 0.0
    %2165 = vadd.xlane.f32.xlu0 %v2164
    %v2166 = vpop.xlane.xlu0 %2165
    %v2167 = vsel %vm96, %v1915, 0.0
    %2168 = vadd.xlane.f32.xlu0 %v2167
    %v2169 = vpop.xlane.xlu0 %2168
    %v2170 = vsel %vm96, %v1917, 0.0
    %2171 = vadd.xlane.f32.xlu0 %v2170
    %v2172 = vpop.xlane.xlu0 %2171
    %v2173 = vsel %vm96, %v1919, 0.0
    %2174 = vadd.xlane.f32.xlu0 %v2173
    %v2175 = vpop.xlane.xlu0 %2174
    %v2176 = vmul.f32 %v1986, 0.125
    %v2177 = vmul.f32 %v1989, 0.125
    %v2178 = vmul.f32 %v1992, 0.125
    %v2179 = vmul.f32 %v1995, 0.125
    %v2180 = vmul.f32 %v1998, 0.125
    %v2181 = vmul.f32 %v2001, 0.125
    %v2182 = vmul.f32 %v2004, 0.125
    %v2183 = vmul.f32 %v2007, 0.125
    %v2184 = vmul.f32 %v2010, 0.125
    %v2185 = vmul.f32 %v2013, 0.125
    %v2186 = vmul.f32 %v2016, 0.125
    %v2187 = vmul.f32 %v2019, 0.125
    %v2188 = vmul.f32 %v2022, 0.125
    %v2189 = vmul.f32 %v2025, 0.125
    %v2190 = vmul.f32 %v2028, 0.125
    %v2191 = vmul.f32 %v2031, 0.125
    %v2192 = vmul.f32 %v2034, 0.125
    %v2193 = vmul.f32 %v2037, 0.125
    %v2194 = vmul.f32 %v2040, 0.125
    %v2195 = vmul.f32 %v2043, 0.125
    %v2196 = vmul.f32 %v2046, 0.125
    %v2197 = vmul.f32 %v2049, 0.125
    %v2198 = vmul.f32 %v2052, 0.125
    %v2199 = vmul.f32 %v2055, 0.125
    %v2200 = vmul.f32 %v2058, 0.125
    %v2201 = vmul.f32 %v2061, 0.125
    %v2202 = vmul.f32 %v2064, 0.125
    %v2203 = vmul.f32 %v2067, 0.125
    %v2204 = vmul.f32 %v2070, 0.125
    %v2205 = vmul.f32 %v2073, 0.125
    %v2206 = vmul.f32 %v2076, 0.125
    %v2207 = vmul.f32 %v2079, 0.125
    %v2208 = vmul.f32 %v2082, 0.125
    %v2209 = vmul.f32 %v2085, 0.125
    %v2210 = vmul.f32 %v2088, 0.125
    %v2211 = vmul.f32 %v2091, 0.125
    %v2212 = vmul.f32 %v2094, 0.125
    %v2213 = vmul.f32 %v2097, 0.125
    %v2214 = vmul.f32 %v2100, 0.125
    %v2215 = vmul.f32 %v2103, 0.125
    %v2216 = vmul.f32 %v2106, 0.125
    %v2217 = vmul.f32 %v2109, 0.125
    %v2218 = vmul.f32 %v2112, 0.125
    %v2219 = vmul.f32 %v2115, 0.125
    %v2220 = vmul.f32 %v2118, 0.125
    %v2221 = vmul.f32 %v2121, 0.125
    %v2222 = vmul.f32 %v2124, 0.125
    %v2223 = vmul.f32 %v2127, 0.125
    %v2224 = vmul.f32 %v2130, 0.125
    %v2225 = vmul.f32 %v2133, 0.125
    %v2226 = vmul.f32 %v2136, 0.125
    %v2227 = vmul.f32 %v2139, 0.125
    %v2228 = vmul.f32 %v2142, 0.125
    %v2229 = vmul.f32 %v2145, 0.125
    %v2230 = vmul.f32 %v2148, 0.125
    %v2231 = vmul.f32 %v2151, 0.125
    %v2232 = vmul.f32 %v2154, 0.125
    %v2233 = vmul.f32 %v2157, 0.125
    %v2234 = vmul.f32 %v2160, 0.125
    %v2235 = vmul.f32 %v2163, 0.125
    %v2236 = vmul.f32 %v2166, 0.125
    %v2237 = vmul.f32 %v2169, 0.125
    %v2238 = vmul.f32 %v2172, 0.125
    %v2239 = vmul.f32 %v2175, 0.125
    %v2240 = vadd.f32 %v1315, %v2176
    %v2241 = vadd.f32 %v1316, %v2177
    %v2242 = vadd.f32 %v1317, %v2178
    %v2243 = vadd.f32 %v1318, %v2179
    %v2244 = vadd.f32 %v1319, %v2180
    %v2245 = vadd.f32 %v1320, %v2181
    %v2246 = vadd.f32 %v1321, %v2182
    %v2247 = vadd.f32 %v1322, %v2183
    %v2248 = vadd.f32 %v1323, %v2184
    %v2249 = vadd.f32 %v1324, %v2185
    %v2250 = vadd.f32 %v1325, %v2186
    %v2251 = vadd.f32 %v1326, %v2187
    %v2252 = vadd.f32 %v1327, %v2188
    %v2253 = vadd.f32 %v1328, %v2189
    %v2254 = vadd.f32 %v1329, %v2190
    %v2255 = vadd.f32 %v1330, %v2191
    %v2256 = vadd.f32 %v1331, %v2192
    %v2257 = vadd.f32 %v1332, %v2193
    %v2258 = vadd.f32 %v1333, %v2194
    %v2259 = vadd.f32 %v1334, %v2195
    %v2260 = vadd.f32 %v1335, %v2196
    %v2261 = vadd.f32 %v1336, %v2197
    %v2262 = vadd.f32 %v1337, %v2198
    %v2263 = vadd.f32 %v1338, %v2199
    %v2264 = vadd.f32 %v1339, %v2200
    %v2265 = vadd.f32 %v1340, %v2201
    %v2266 = vadd.f32 %v1341, %v2202
    %v2267 = vadd.f32 %v1342, %v2203
    %v2268 = vadd.f32 %v1343, %v2204
    %v2269 = vadd.f32 %v1344, %v2205
    %v2270 = vadd.f32 %v1345, %v2206
    %v2271 = vadd.f32 %v1346, %v2207
    %v2272 = vadd.f32 %v1347, %v2208
    %v2273 = vadd.f32 %v1348, %v2209
    %v2274 = vadd.f32 %v1349, %v2210
    %v2275 = vadd.f32 %v1350, %v2211
    %v2276 = vadd.f32 %v1351, %v2212
    %v2277 = vadd.f32 %v1352, %v2213
    %v2278 = vadd.f32 %v1353, %v2214
    %v2279 = vadd.f32 %v1354, %v2215
    %v2280 = vadd.f32 %v1355, %v2216
    %v2281 = vadd.f32 %v1356, %v2217
    %v2282 = vadd.f32 %v1357, %v2218
    %v2283 = vadd.f32 %v1358, %v2219
    %v2284 = vadd.f32 %v1359, %v2220
    %v2285 = vadd.f32 %v1360, %v2221
    %v2286 = vadd.f32 %v1361, %v2222
    %v2287 = vadd.f32 %v1362, %v2223
    %v2288 = vadd.f32 %v1363, %v2224
    %v2289 = vadd.f32 %v1364, %v2225
    %v2290 = vadd.f32 %v1365, %v2226
    %v2291 = vadd.f32 %v1366, %v2227
    %v2292 = vadd.f32 %v1367, %v2228
    %v2293 = vadd.f32 %v1368, %v2229
    %v2294 = vadd.f32 %v1369, %v2230
    %v2295 = vadd.f32 %v1370, %v2231
    %v2296 = vadd.f32 %v1371, %v2232
    %v2297 = vadd.f32 %v1372, %v2233
    %v2298 = vadd.f32 %v1373, %v2234
    %v2299 = vadd.f32 %v1374, %v2235
    %v2300 = vadd.f32 %v1375, %v2236
    %v2301 = vadd.f32 %v1376, %v2237
    %v2302 = vadd.f32 %v1377, %v2238
    %v2303 = vadd.f32 %v1378, %v2239
    %v2304 = vld [vmem:[%s1] sm:$0xff]
    %v2305 = vld [vmem:[%s1 + $0x8] sm:$0xff]
    %v2306 = vld [vmem:[%s1 + $0x10] sm:$0xff]
    %v2307 = vld [vmem:[%s1 + $0x18] sm:$0xff]
    %v2308 = vld [vmem:[%s1 + $0x20] sm:$0xff]
    %v2309 = vld [vmem:[%s1 + $0x28] sm:$0xff]
    %v2310 = vld [vmem:[%s1 + $0x30] sm:$0xff]
    %v2311 = vld [vmem:[%s1 + $0x38] sm:$0xff]
    %v2312 = vld [vmem:[%s1 + $0x40] sm:$0xff]
    %v2313 = vld [vmem:[%s1 + $0x48] sm:$0xff]
    %v2314 = vld [vmem:[%s1 + $0x50] sm:$0xff]
    %v2315 = vld [vmem:[%s1 + $0x58] sm:$0xff]
    %v2316 = vld [vmem:[%s1 + $0x60] sm:$0xff]
    %v2317 = vld [vmem:[%s1 + $0x68] sm:$0xff]
    %v2318 = vld [vmem:[%s1 + $0x70] sm:$0xff]
    %v2319 = vld [vmem:[%s1 + $0x78] sm:$0xff]
    %v2320 = vld [vmem:[%s1 + $0x80] sm:$0xff]
    %v2321 = vld [vmem:[%s1 + $0x88] sm:$0xff]
    %v2322 = vld [vmem:[%s1 + $0x90] sm:$0xff]
    %v2323 = vld [vmem:[%s1 + $0x98] sm:$0xff]
    %v2324 = vld [vmem:[%s1 + $0xa0] sm:$0xff]
    %v2325 = vld [vmem:[%s1 + $0xa8] sm:$0xff]
    %v2326 = vld [vmem:[%s1 + $0xb0] sm:$0xff]
    %v2327 = vld [vmem:[%s1 + $0xb8] sm:$0xff]
    %v2328 = vld [vmem:[%s1 + $0xc0] sm:$0xff]
    %v2329 = vld [vmem:[%s1 + $0xc8] sm:$0xff]
    %v2330 = vld [vmem:[%s1 + $0xd0] sm:$0xff]
    %v2331 = vld [vmem:[%s1 + $0xd8] sm:$0xff]
    %v2332 = vld [vmem:[%s1 + $0xe0] sm:$0xff]
    %v2333 = vld [vmem:[%s1 + $0xe8] sm:$0xff]
    %v2334 = vld [vmem:[%s1 + $0xf0] sm:$0xff]
    %v2335 = vld [vmem:[%s1 + $0xf8] sm:$0xff]
    %v2400 = vperm.slane %v2176, %v517
    %v2401 = vperm.slane %v2177, %v519
    %v2402 = vsel %vm521, %v2401, %v2400
    %v2403 = vperm.slane %v2178, %v523
    %v2404 = vsel %vm525, %v2403, %v2402
    %v2405 = vperm.slane %v2179, %v527
    %v2406 = vsel %vm529, %v2405, %v2404
    %v2407 = vperm.slane %v2180, %v531
    %v2408 = vsel %vm533, %v2407, %v2406
    %v2409 = vperm.slane %v2181, %v535
    %v2410 = vsel %vm537, %v2409, %v2408
    %v2411 = vperm.slane %v2182, %v539
    %v2412 = vsel %vm541, %v2411, %v2410
    %v2413 = vperm.slane %v2183, %v543
    %v2414 = vsel %vm545, %v2413, %v2412
    %v2415 = vperm.slane %v2184, %v547
    %v2416 = vsel %vm549, %v2415, %v2414
    %v2417 = vperm.slane %v2185, %v551
    %v2418 = vsel %vm553, %v2417, %v2416
    %v2419 = vperm.slane %v2186, %v555
    %v2420 = vsel %vm557, %v2419, %v2418
    %v2421 = vperm.slane %v2187, %v559
    %v2422 = vsel %vm561, %v2421, %v2420
    %v2423 = vperm.slane %v2188, %v563
    %v2424 = vsel %vm565, %v2423, %v2422
    %v2425 = vperm.slane %v2189, %v567
    %v2426 = vsel %vm569, %v2425, %v2424
    %v2427 = vperm.slane %v2190, %v571
    %v2428 = vsel %vm573, %v2427, %v2426
    %v2429 = vperm.slane %v2191, %v575
    %v2430 = vsel %vm577, %v2429, %v2428
    %v2431 = vperm.slane %v2192, %v517
    %v2432 = vperm.slane %v2193, %v519
    %v2433 = vsel %vm521, %v2432, %v2431
    %v2434 = vperm.slane %v2194, %v523
    %v2435 = vsel %vm525, %v2434, %v2433
    %v2436 = vperm.slane %v2195, %v527
    %v2437 = vsel %vm529, %v2436, %v2435
    %v2438 = vperm.slane %v2196, %v531
    %v2439 = vsel %vm533, %v2438, %v2437
    %v2440 = vperm.slane %v2197, %v535
    %v2441 = vsel %vm537, %v2440, %v2439
    %v2442 = vperm.slane %v2198, %v539
    %v2443 = vsel %vm541, %v2442, %v2441
    %v2444 = vperm.slane %v2199, %v543
    %v2445 = vsel %vm545, %v2444, %v2443
    %v2446 = vperm.slane %v2200, %v547
    %v2447 = vsel %vm549, %v2446, %v2445
    %v2448 = vperm.slane %v2201, %v551
    %v2449 = vsel %vm553, %v2448, %v2447
    %v2450 = vperm.slane %v2202, %v555
    %v2451 = vsel %vm557, %v2450, %v2449
    %v2452 = vperm.slane %v2203, %v559
    %v2453 = vsel %vm561, %v2452, %v2451
    %v2454 = vperm.slane %v2204, %v563
    %v2455 = vsel %vm565, %v2454, %v2453
    %v2456 = vperm.slane %v2205, %v567
    %v2457 = vsel %vm569, %v2456, %v2455
    %v2458 = vperm.slane %v2206, %v571
    %v2459 = vsel %vm573, %v2458, %v2457
    %v2460 = vperm.slane %v2207, %v575
    %v2461 = vsel %vm577, %v2460, %v2459
    %v2462 = vperm.slane %v2208, %v517
    %v2463 = vperm.slane %v2209, %v519
    %v2464 = vsel %vm521, %v2463, %v2462
    %v2465 = vperm.slane %v2210, %v523
    %v2466 = vsel %vm525, %v2465, %v2464
    %v2467 = vperm.slane %v2211, %v527
    %v2468 = vsel %vm529, %v2467, %v2466
    %v2469 = vperm.slane %v2212, %v531
    %v2470 = vsel %vm533, %v2469, %v2468
    %v2471 = vperm.slane %v2213, %v535
    %v2472 = vsel %vm537, %v2471, %v2470
    %v2473 = vperm.slane %v2214, %v539
    %v2474 = vsel %vm541, %v2473, %v2472
    %v2475 = vperm.slane %v2215, %v543
    %v2476 = vsel %vm545, %v2475, %v2474
    %v2477 = vperm.slane %v2216, %v547
    %v2478 = vsel %vm549, %v2477, %v2476
    %v2479 = vperm.slane %v2217, %v551
    %v2480 = vsel %vm553, %v2479, %v2478
    %v2481 = vperm.slane %v2218, %v555
    %v2482 = vsel %vm557, %v2481, %v2480
    %v2483 = vperm.slane %v2219, %v559
    %v2484 = vsel %vm561, %v2483, %v2482
    %v2485 = vperm.slane %v2220, %v563
    %v2486 = vsel %vm565, %v2485, %v2484
    %v2487 = vperm.slane %v2221, %v567
    %v2488 = vsel %vm569, %v2487, %v2486
    %v2489 = vperm.slane %v2222, %v571
    %v2490 = vsel %vm573, %v2489, %v2488
    %v2491 = vperm.slane %v2223, %v575
    %v2492 = vsel %vm577, %v2491, %v2490
    %v2493 = vperm.slane %v2224, %v517
    %v2494 = vperm.slane %v2225, %v519
    %v2495 = vsel %vm521, %v2494, %v2493
    %v2496 = vperm.slane %v2226, %v523
    %v2497 = vsel %vm525, %v2496, %v2495
    %v2498 = vperm.slane %v2227, %v527
    %v2499 = vsel %vm529, %v2498, %v2497
    %v2500 = vperm.slane %v2228, %v531
    %v2501 = vsel %vm533, %v2500, %v2499
    %v2502 = vperm.slane %v2229, %v535
    %v2503 = vsel %vm537, %v2502, %v2501
    %v2504 = vperm.slane %v2230, %v539
    %v2505 = vsel %vm541, %v2504, %v2503
    %v2506 = vperm.slane %v2231, %v543
    %v2507 = vsel %vm545, %v2506, %v2505
    %v2508 = vperm.slane %v2232, %v547
    %v2509 = vsel %vm549, %v2508, %v2507
    %v2510 = vperm.slane %v2233, %v551
    %v2511 = vsel %vm553, %v2510, %v2509
    %v2512 = vperm.slane %v2234, %v555
    %v2513 = vsel %vm557, %v2512, %v2511
    %v2514 = vperm.slane %v2235, %v559
    %v2515 = vsel %vm561, %v2514, %v2513
    %v2516 = vperm.slane %v2236, %v563
    %v2517 = vsel %vm565, %v2516, %v2515
    %v2518 = vperm.slane %v2237, %v567
    %v2519 = vsel %vm569, %v2518, %v2517
    %v2520 = vperm.slane %v2238, %v571
    %v2521 = vsel %vm573, %v2520, %v2519
    %v2522 = vperm.slane %v2239, %v575
    %v2523 = vsel %vm577, %v2522, %v2521
    %v2524 = vsel %vm672, %v2492, %v2430
    %v2525 = vsel %vm672, %v2523, %v2461
    %2528 = vmatpush.msra.mxu0 %v2319
    %2529 = vmatpush.msra.mxu0 %v2318
    %2530 = vmatpush.msra.mxu0 %v2317
    %2531 = vmatpush.msra.mxu0 %v2316
    %2532 = vmatpush.msra.mxu0 %v2315
    %2533 = vmatpush.msra.mxu0 %v2314
    %2534 = vmatpush.msra.mxu0 %v2313
    %2535 = vmatpush.msra.mxu0 %v2312
    %2536 = vmatpush.msra.mxu0 %v2311
    %2537 = vmatpush.msra.mxu0 %v2310
    %2538 = vmatpush.msra.mxu0 %v2309
    %2539 = vmatpush.msra.mxu0 %v2308
    %2540 = vmatpush.msra.mxu0 %v2307
    %2541 = vmatpush.msra.mxu0 %v2306
    %2542 = vmatpush.msra.mxu0 %v2305
    %2543 = vmatpush.msra.mxu0 %v2304
    %2544 = vmatmul.f32.gmra.mxu0 %v2524
    %v2545 = vpop.f32.mrf.mxu0
    %v2546 = vadd.f32 %v450, %v2545
    %2547 = vdwg.mxu0
    %2548 = vmatpush.msra.mxu0 %v2335
    %2549 = vmatpush.msra.mxu0 %v2334
    %2550 = vmatpush.msra.mxu0 %v2333
    %2551 = vmatpush.msra.mxu0 %v2332
    %2552 = vmatpush.msra.mxu0 %v2331
    %2553 = vmatpush.msra.mxu0 %v2330
    %2554 = vmatpush.msra.mxu0 %v2329
    %2555 = vmatpush.msra.mxu0 %v2328
    %2556 = vmatpush.msra.mxu0 %v2327
    %2557 = vmatpush.msra.mxu0 %v2326
    %2558 = vmatpush.msra.mxu0 %v2325
    %2559 = vmatpush.msra.mxu0 %v2324
    %2560 = vmatpush.msra.mxu0 %v2323
    %2561 = vmatpush.msra.mxu0 %v2322
    %2562 = vmatpush.msra.mxu0 %v2321
    %2563 = vmatpush.msra.mxu0 %v2320
    %2564 = vmatmul.f32.gmra.mxu0 %v2525
    %v2565 = vpop.f32.mrf.mxu0
    %v2566 = vadd.f32 %v2546, %v2565
    %2567 = vdwg.mxu0
    %v2568 = vmul.f32 %v2566, %v2566
    %v2569 = vsel %vm718, %v2568, 0.0
    %2570 = vadd.xlane.f32.xlu0 %v2569
    %v2571 = vpop.xlane.xlu0 %2570
    %v2572 = vadd.f32 %v2571, 1e-12
    %v2573 = vrsqrt.pop %v2572
    %v2574 = vmul.f32 %v2573, %v2572
    %v2575 = vmul.f32 %v2574, %v2573
    %v2576 = vmul.f32 0.5, %v2575
    %v2577 = vsub.f32 1.5, %v2576
    %v2578 = vmul.f32 %v2573, %v2577
    %vm2579 = vweird.f32 %v2572
    %vm2580 = vweird.f32 %v2573
    %vm2581 = vmor %vm2579, %vm2580
    %v2582 = vsel %vm2581, %v2573, %v2578
    %v2583 = vmul.f32 %v2566, %v2582
    %v2585 = vrot.slane %v2583, 1
    %2587 = vst [vmem:[#allocation4 + $0x2] sm:$0x1] %v2583
    %2588 = vst [vmem:[#allocation4 + $0xa] sm:$0x1] %v2585
    %v2589 = vld [vmem:[%s0] sm:$0xff]
    %v2590 = vld [vmem:[%s0 + $0x8] sm:$0xff]
    %v2591 = vld [vmem:[%s0 + $0x10] sm:$0xff]
    %v2592 = vld [vmem:[%s0 + $0x18] sm:$0xff]
    %v2593 = vld [vmem:[%s0 + $0x20] sm:$0xff]
    %v2594 = vld [vmem:[%s0 + $0x28] sm:$0xff]
    %v2595 = vld [vmem:[%s0 + $0x30] sm:$0xff]
    %v2596 = vld [vmem:[%s0 + $0x38] sm:$0xff]
    %v2597 = vld [vmem:[%s0 + $0x40] sm:$0xff]
    %v2598 = vld [vmem:[%s0 + $0x48] sm:$0xff]
    %v2599 = vld [vmem:[%s0 + $0x50] sm:$0xff]
    %v2600 = vld [vmem:[%s0 + $0x58] sm:$0xff]
    %v2601 = vld [vmem:[%s0 + $0x60] sm:$0xff]
    %v2602 = vld [vmem:[%s0 + $0x68] sm:$0xff]
    %v2603 = vld [vmem:[%s0 + $0x70] sm:$0xff]
    %v2604 = vld [vmem:[%s0 + $0x78] sm:$0xff]
    %v2605 = vld [vmem:[%s0 + $0x80] sm:$0xff]
    %v2606 = vld [vmem:[%s0 + $0x88] sm:$0xff]
    %v2607 = vld [vmem:[%s0 + $0x90] sm:$0xff]
    %v2608 = vld [vmem:[%s0 + $0x98] sm:$0xff]
    %v2609 = vld [vmem:[%s0 + $0xa0] sm:$0xff]
    %v2610 = vld [vmem:[%s0 + $0xa8] sm:$0xff]
    %v2611 = vld [vmem:[%s0 + $0xb0] sm:$0xff]
    %v2612 = vld [vmem:[%s0 + $0xb8] sm:$0xff]
    %v2613 = vld [vmem:[%s0 + $0xc0] sm:$0xff]
    %v2614 = vld [vmem:[%s0 + $0xc8] sm:$0xff]
    %v2615 = vld [vmem:[%s0 + $0xd0] sm:$0xff]
    %v2616 = vld [vmem:[%s0 + $0xd8] sm:$0xff]
    %v2617 = vld [vmem:[%s0 + $0xe0] sm:$0xff]
    %v2618 = vld [vmem:[%s0 + $0xe8] sm:$0xff]
    %v2619 = vld [vmem:[%s0 + $0xf0] sm:$0xff]
    %v2620 = vld [vmem:[%s0 + $0xf8] sm:$0xff]
    %v2621 = vld [vmem:[%s0 + $0x100] sm:$0xff]
    %v2622 = vld [vmem:[%s0 + $0x108] sm:$0xff]
    %v2623 = vld [vmem:[%s0 + $0x110] sm:$0xff]
    %v2624 = vld [vmem:[%s0 + $0x118] sm:$0xff]
    %v2625 = vld [vmem:[%s0 + $0x120] sm:$0xff]
    %v2626 = vld [vmem:[%s0 + $0x128] sm:$0xff]
    %v2627 = vld [vmem:[%s0 + $0x130] sm:$0xff]
    %v2628 = vld [vmem:[%s0 + $0x138] sm:$0xff]
    %v2629 = vld [vmem:[%s0 + $0x140] sm:$0xff]
    %v2630 = vld [vmem:[%s0 + $0x148] sm:$0xff]
    %v2631 = vld [vmem:[%s0 + $0x150] sm:$0xff]
    %v2632 = vld [vmem:[%s0 + $0x158] sm:$0xff]
    %v2633 = vld [vmem:[%s0 + $0x160] sm:$0xff]
    %v2634 = vld [vmem:[%s0 + $0x168] sm:$0xff]
    %v2635 = vld [vmem:[%s0 + $0x170] sm:$0xff]
    %v2636 = vld [vmem:[%s0 + $0x178] sm:$0xff]
    %v2637 = vld [vmem:[%s0 + $0x180] sm:$0xff]
    %v2638 = vld [vmem:[%s0 + $0x188] sm:$0xff]
    %v2639 = vld [vmem:[%s0 + $0x190] sm:$0xff]
    %v2640 = vld [vmem:[%s0 + $0x198] sm:$0xff]
    %v2641 = vld [vmem:[%s0 + $0x1a0] sm:$0xff]
    %v2642 = vld [vmem:[%s0 + $0x1a8] sm:$0xff]
    %v2643 = vld [vmem:[%s0 + $0x1b0] sm:$0xff]
    %v2644 = vld [vmem:[%s0 + $0x1b8] sm:$0xff]
    %v2645 = vld [vmem:[%s0 + $0x1c0] sm:$0xff]
    %v2646 = vld [vmem:[%s0 + $0x1c8] sm:$0xff]
    %v2647 = vld [vmem:[%s0 + $0x1d0] sm:$0xff]
    %v2648 = vld [vmem:[%s0 + $0x1d8] sm:$0xff]
    %v2649 = vld [vmem:[%s0 + $0x1e0] sm:$0xff]
    %v2650 = vld [vmem:[%s0 + $0x1e8] sm:$0xff]
    %v2651 = vld [vmem:[%s0 + $0x1f0] sm:$0xff]
    %v2652 = vld [vmem:[%s0 + $0x1f8] sm:$0xff]
    %2717 = vrot.lane.b32.xlu0 %v2589, 104
    %v2718 = vpop.permute.xlu0 %2717
    %2719 = vrot.lane.b32.xlu0 %v2590, 104
    %v2720 = vpop.permute.xlu0 %2719
    %2721 = vrot.lane.b32.xlu0 %v2591, 104
    %v2722 = vpop.permute.xlu0 %2721
    %2723 = vrot.lane.b32.xlu0 %v2592, 104
    %v2724 = vpop.permute.xlu0 %2723
    %2725 = vrot.lane.b32.xlu0 %v2593, 104
    %v2726 = vpop.permute.xlu0 %2725
    %2727 = vrot.lane.b32.xlu0 %v2594, 104
    %v2728 = vpop.permute.xlu0 %2727
    %2729 = vrot.lane.b32.xlu0 %v2595, 104
    %v2730 = vpop.permute.xlu0 %2729
    %2731 = vrot.lane.b32.xlu0 %v2596, 104
    %v2732 = vpop.permute.xlu0 %2731
    %2733 = vrot.lane.b32.xlu0 %v2597, 104
    %v2734 = vpop.permute.xlu0 %2733
    %2735 = vrot.lane.b32.xlu0 %v2598, 104
    %v2736 = vpop.permute.xlu0 %2735
    %2737 = vrot.lane.b32.xlu0 %v2599, 104
    %v2738 = vpop.permute.xlu0 %2737
    %2739 = vrot.lane.b32.xlu0 %v2600, 104
    %v2740 = vpop.permute.xlu0 %2739
    %2741 = vrot.lane.b32.xlu0 %v2601, 104
    %v2742 = vpop.permute.xlu0 %2741
    %2743 = vrot.lane.b32.xlu0 %v2602, 104
    %v2744 = vpop.permute.xlu0 %2743
    %2745 = vrot.lane.b32.xlu0 %v2603, 104
    %v2746 = vpop.permute.xlu0 %2745
    %2747 = vrot.lane.b32.xlu0 %v2604, 104
    %v2748 = vpop.permute.xlu0 %2747
    %2749 = vrot.lane.b32.xlu0 %v2605, 104
    %v2750 = vpop.permute.xlu0 %2749
    %2751 = vrot.lane.b32.xlu0 %v2606, 104
    %v2752 = vpop.permute.xlu0 %2751
    %2753 = vrot.lane.b32.xlu0 %v2607, 104
    %v2754 = vpop.permute.xlu0 %2753
    %2755 = vrot.lane.b32.xlu0 %v2608, 104
    %v2756 = vpop.permute.xlu0 %2755
    %2757 = vrot.lane.b32.xlu0 %v2609, 104
    %v2758 = vpop.permute.xlu0 %2757
    %2759 = vrot.lane.b32.xlu0 %v2610, 104
    %v2760 = vpop.permute.xlu0 %2759
    %2761 = vrot.lane.b32.xlu0 %v2611, 104
    %v2762 = vpop.permute.xlu0 %2761
    %2763 = vrot.lane.b32.xlu0 %v2612, 104
    %v2764 = vpop.permute.xlu0 %2763
    %2765 = vrot.lane.b32.xlu0 %v2613, 104
    %v2766 = vpop.permute.xlu0 %2765
    %2767 = vrot.lane.b32.xlu0 %v2614, 104
    %v2768 = vpop.permute.xlu0 %2767
    %2769 = vrot.lane.b32.xlu0 %v2615, 104
    %v2770 = vpop.permute.xlu0 %2769
    %2771 = vrot.lane.b32.xlu0 %v2616, 104
    %v2772 = vpop.permute.xlu0 %2771
    %2773 = vrot.lane.b32.xlu0 %v2617, 104
    %v2774 = vpop.permute.xlu0 %2773
    %2775 = vrot.lane.b32.xlu0 %v2618, 104
    %v2776 = vpop.permute.xlu0 %2775
    %2777 = vrot.lane.b32.xlu0 %v2619, 104
    %v2778 = vpop.permute.xlu0 %2777
    %2779 = vrot.lane.b32.xlu0 %v2620, 104
    %v2780 = vpop.permute.xlu0 %2779
    %2781 = vrot.lane.b32.xlu0 %v2621, 104
    %v2782 = vpop.permute.xlu0 %2781
    %2783 = vrot.lane.b32.xlu0 %v2622, 104
    %v2784 = vpop.permute.xlu0 %2783
    %2785 = vrot.lane.b32.xlu0 %v2623, 104
    %v2786 = vpop.permute.xlu0 %2785
    %2787 = vrot.lane.b32.xlu0 %v2624, 104
    %v2788 = vpop.permute.xlu0 %2787
    %2789 = vrot.lane.b32.xlu0 %v2625, 104
    %v2790 = vpop.permute.xlu0 %2789
    %2791 = vrot.lane.b32.xlu0 %v2626, 104
    %v2792 = vpop.permute.xlu0 %2791
    %2793 = vrot.lane.b32.xlu0 %v2627, 104
    %v2794 = vpop.permute.xlu0 %2793
    %2795 = vrot.lane.b32.xlu0 %v2628, 104
    %v2796 = vpop.permute.xlu0 %2795
    %2797 = vrot.lane.b32.xlu0 %v2629, 104
    %v2798 = vpop.permute.xlu0 %2797
    %2799 = vrot.lane.b32.xlu0 %v2630, 104
    %v2800 = vpop.permute.xlu0 %2799
    %2801 = vrot.lane.b32.xlu0 %v2631, 104
    %v2802 = vpop.permute.xlu0 %2801
    %2803 = vrot.lane.b32.xlu0 %v2632, 104
    %v2804 = vpop.permute.xlu0 %2803
    %2805 = vrot.lane.b32.xlu0 %v2633, 104
    %v2806 = vpop.permute.xlu0 %2805
    %2807 = vrot.lane.b32.xlu0 %v2634, 104
    %v2808 = vpop.permute.xlu0 %2807
    %2809 = vrot.lane.b32.xlu0 %v2635, 104
    %v2810 = vpop.permute.xlu0 %2809
    %2811 = vrot.lane.b32.xlu0 %v2636, 104
    %v2812 = vpop.permute.xlu0 %2811
    %2813 = vrot.lane.b32.xlu0 %v2637, 104
    %v2814 = vpop.permute.xlu0 %2813
    %2815 = vrot.lane.b32.xlu0 %v2638, 104
    %v2816 = vpop.permute.xlu0 %2815
    %2817 = vrot.lane.b32.xlu0 %v2639, 104
    %v2818 = vpop.permute.xlu0 %2817
    %2819 = vrot.lane.b32.xlu0 %v2640, 104
    %v2820 = vpop.permute.xlu0 %2819
    %2821 = vrot.lane.b32.xlu0 %v2641, 104
    %v2822 = vpop.permute.xlu0 %2821
    %2823 = vrot.lane.b32.xlu0 %v2642, 104
    %v2824 = vpop.permute.xlu0 %2823
    %2825 = vrot.lane.b32.xlu0 %v2643, 104
    %v2826 = vpop.permute.xlu0 %2825
    %2827 = vrot.lane.b32.xlu0 %v2644, 104
    %v2828 = vpop.permute.xlu0 %2827
    %2829 = vrot.lane.b32.xlu0 %v2645, 104
    %v2830 = vpop.permute.xlu0 %2829
    %2831 = vrot.lane.b32.xlu0 %v2646, 104
    %v2832 = vpop.permute.xlu0 %2831
    %2833 = vrot.lane.b32.xlu0 %v2647, 104
    %v2834 = vpop.permute.xlu0 %2833
    %2835 = vrot.lane.b32.xlu0 %v2648, 104
    %v2836 = vpop.permute.xlu0 %2835
    %2837 = vrot.lane.b32.xlu0 %v2649, 104
    %v2838 = vpop.permute.xlu0 %2837
    %2839 = vrot.lane.b32.xlu0 %v2650, 104
    %v2840 = vpop.permute.xlu0 %2839
    %2841 = vrot.lane.b32.xlu0 %v2651, 104
    %v2842 = vpop.permute.xlu0 %2841
    %2843 = vrot.lane.b32.xlu0 %v2652, 104
    %v2844 = vpop.permute.xlu0 %2843
    %v2909 = vsel %vm96, %v2718, 0.0
    %2910 = vadd.xlane.f32.xlu0 %v2909
    %v2911 = vpop.xlane.xlu0 %2910
    %v2912 = vsel %vm96, %v2720, 0.0
    %2913 = vadd.xlane.f32.xlu0 %v2912
    %v2914 = vpop.xlane.xlu0 %2913
    %v2915 = vsel %vm96, %v2722, 0.0
    %2916 = vadd.xlane.f32.xlu0 %v2915
    %v2917 = vpop.xlane.xlu0 %2916
    %v2918 = vsel %vm96, %v2724, 0.0
    %2919 = vadd.xlane.f32.xlu0 %v2918
    %v2920 = vpop.xlane.xlu0 %2919
    %v2921 = vsel %vm96, %v2726, 0.0
    %2922 = vadd.xlane.f32.xlu0 %v2921
    %v2923 = vpop.xlane.xlu0 %2922
    %v2924 = vsel %vm96, %v2728, 0.0
    %2925 = vadd.xlane.f32.xlu0 %v2924
    %v2926 = vpop.xlane.xlu0 %2925
    %v2927 = vsel %vm96, %v2730, 0.0
    %2928 = vadd.xlane.f32.xlu0 %v2927
    %v2929 = vpop.xlane.xlu0 %2928
    %v2930 = vsel %vm96, %v2732, 0.0
    %2931 = vadd.xlane.f32.xlu0 %v2930
    %v2932 = vpop.xlane.xlu0 %2931
    %v2933 = vsel %vm96, %v2734, 0.0
    %2934 = vadd.xlane.f32.xlu0 %v2933
    %v2935 = vpop.xlane.xlu0 %2934
    %v2936 = vsel %vm96, %v2736, 0.0
    %2937 = vadd.xlane.f32.xlu0 %v2936
    %v2938 = vpop.xlane.xlu0 %2937
    %v2939 = vsel %vm96, %v2738, 0.0
    %2940 = vadd.xlane.f32.xlu0 %v2939
    %v2941 = vpop.xlane.xlu0 %2940
    %v2942 = vsel %vm96, %v2740, 0.0
    %2943 = vadd.xlane.f32.xlu0 %v2942
    %v2944 = vpop.xlane.xlu0 %2943
    %v2945 = vsel %vm96, %v2742, 0.0
    %2946 = vadd.xlane.f32.xlu0 %v2945
    %v2947 = vpop.xlane.xlu0 %2946
    %v2948 = vsel %vm96, %v2744, 0.0
    %2949 = vadd.xlane.f32.xlu0 %v2948
    %v2950 = vpop.xlane.xlu0 %2949
    %v2951 = vsel %vm96, %v2746, 0.0
    %2952 = vadd.xlane.f32.xlu0 %v2951
    %v2953 = vpop.xlane.xlu0 %2952
    %v2954 = vsel %vm96, %v2748, 0.0
    %2955 = vadd.xlane.f32.xlu0 %v2954
    %v2956 = vpop.xlane.xlu0 %2955
    %v2957 = vsel %vm96, %v2750, 0.0
    %2958 = vadd.xlane.f32.xlu0 %v2957
    %v2959 = vpop.xlane.xlu0 %2958
    %v2960 = vsel %vm96, %v2752, 0.0
    %2961 = vadd.xlane.f32.xlu0 %v2960
    %v2962 = vpop.xlane.xlu0 %2961
    %v2963 = vsel %vm96, %v2754, 0.0
    %2964 = vadd.xlane.f32.xlu0 %v2963
    %v2965 = vpop.xlane.xlu0 %2964
    %v2966 = vsel %vm96, %v2756, 0.0
    %2967 = vadd.xlane.f32.xlu0 %v2966
    %v2968 = vpop.xlane.xlu0 %2967
    %v2969 = vsel %vm96, %v2758, 0.0
    %2970 = vadd.xlane.f32.xlu0 %v2969
    %v2971 = vpop.xlane.xlu0 %2970
    %v2972 = vsel %vm96, %v2760, 0.0
    %2973 = vadd.xlane.f32.xlu0 %v2972
    %v2974 = vpop.xlane.xlu0 %2973
    %v2975 = vsel %vm96, %v2762, 0.0
    %2976 = vadd.xlane.f32.xlu0 %v2975
    %v2977 = vpop.xlane.xlu0 %2976
    %v2978 = vsel %vm96, %v2764, 0.0
    %2979 = vadd.xlane.f32.xlu0 %v2978
    %v2980 = vpop.xlane.xlu0 %2979
    %v2981 = vsel %vm96, %v2766, 0.0
    %2982 = vadd.xlane.f32.xlu0 %v2981
    %v2983 = vpop.xlane.xlu0 %2982
    %v2984 = vsel %vm96, %v2768, 0.0
    %2985 = vadd.xlane.f32.xlu0 %v2984
    %v2986 = vpop.xlane.xlu0 %2985
    %v2987 = vsel %vm96, %v2770, 0.0
    %2988 = vadd.xlane.f32.xlu0 %v2987
    %v2989 = vpop.xlane.xlu0 %2988
    %v2990 = vsel %vm96, %v2772, 0.0
    %2991 = vadd.xlane.f32.xlu0 %v2990
    %v2992 = vpop.xlane.xlu0 %2991
    %v2993 = vsel %vm96, %v2774, 0.0
    %2994 = vadd.xlane.f32.xlu0 %v2993
    %v2995 = vpop.xlane.xlu0 %2994
    %v2996 = vsel %vm96, %v2776, 0.0
    %2997 = vadd.xlane.f32.xlu0 %v2996
    %v2998 = vpop.xlane.xlu0 %2997
    %v2999 = vsel %vm96, %v2778, 0.0
    %3000 = vadd.xlane.f32.xlu0 %v2999
    %v3001 = vpop.xlane.xlu0 %3000
    %v3002 = vsel %vm96, %v2780, 0.0
    %3003 = vadd.xlane.f32.xlu0 %v3002
    %v3004 = vpop.xlane.xlu0 %3003
    %v3005 = vsel %vm96, %v2782, 0.0
    %3006 = vadd.xlane.f32.xlu0 %v3005
    %v3007 = vpop.xlane.xlu0 %3006
    %v3008 = vsel %vm96, %v2784, 0.0
    %3009 = vadd.xlane.f32.xlu0 %v3008
    %v3010 = vpop.xlane.xlu0 %3009
    %v3011 = vsel %vm96, %v2786, 0.0
    %3012 = vadd.xlane.f32.xlu0 %v3011
    %v3013 = vpop.xlane.xlu0 %3012
    %v3014 = vsel %vm96, %v2788, 0.0
    %3015 = vadd.xlane.f32.xlu0 %v3014
    %v3016 = vpop.xlane.xlu0 %3015
    %v3017 = vsel %vm96, %v2790, 0.0
    %3018 = vadd.xlane.f32.xlu0 %v3017
    %v3019 = vpop.xlane.xlu0 %3018
    %v3020 = vsel %vm96, %v2792, 0.0
    %3021 = vadd.xlane.f32.xlu0 %v3020
    %v3022 = vpop.xlane.xlu0 %3021
    %v3023 = vsel %vm96, %v2794, 0.0
    %3024 = vadd.xlane.f32.xlu0 %v3023
    %v3025 = vpop.xlane.xlu0 %3024
    %v3026 = vsel %vm96, %v2796, 0.0
    %3027 = vadd.xlane.f32.xlu0 %v3026
    %v3028 = vpop.xlane.xlu0 %3027
    %v3029 = vsel %vm96, %v2798, 0.0
    %3030 = vadd.xlane.f32.xlu0 %v3029
    %v3031 = vpop.xlane.xlu0 %3030
    %v3032 = vsel %vm96, %v2800, 0.0
    %3033 = vadd.xlane.f32.xlu0 %v3032
    %v3034 = vpop.xlane.xlu0 %3033
    %v3035 = vsel %vm96, %v2802, 0.0
    %3036 = vadd.xlane.f32.xlu0 %v3035
    %v3037 = vpop.xlane.xlu0 %3036
    %v3038 = vsel %vm96, %v2804, 0.0
    %3039 = vadd.xlane.f32.xlu0 %v3038
    %v3040 = vpop.xlane.xlu0 %3039
    %v3041 = vsel %vm96, %v2806, 0.0
    %3042 = vadd.xlane.f32.xlu0 %v3041
    %v3043 = vpop.xlane.xlu0 %3042
    %v3044 = vsel %vm96, %v2808, 0.0
    %3045 = vadd.xlane.f32.xlu0 %v3044
    %v3046 = vpop.xlane.xlu0 %3045
    %v3047 = vsel %vm96, %v2810, 0.0
    %3048 = vadd.xlane.f32.xlu0 %v3047
    %v3049 = vpop.xlane.xlu0 %3048
    %v3050 = vsel %vm96, %v2812, 0.0
    %3051 = vadd.xlane.f32.xlu0 %v3050
    %v3052 = vpop.xlane.xlu0 %3051
    %v3053 = vsel %vm96, %v2814, 0.0
    %3054 = vadd.xlane.f32.xlu0 %v3053
    %v3055 = vpop.xlane.xlu0 %3054
    %v3056 = vsel %vm96, %v2816, 0.0
    %3057 = vadd.xlane.f32.xlu0 %v3056
    %v3058 = vpop.xlane.xlu0 %3057
    %v3059 = vsel %vm96, %v2818, 0.0
    %3060 = vadd.xlane.f32.xlu0 %v3059
    %v3061 = vpop.xlane.xlu0 %3060
    %v3062 = vsel %vm96, %v2820, 0.0
    %3063 = vadd.xlane.f32.xlu0 %v3062
    %v3064 = vpop.xlane.xlu0 %3063
    %v3065 = vsel %vm96, %v2822, 0.0
    %3066 = vadd.xlane.f32.xlu0 %v3065
    %v3067 = vpop.xlane.xlu0 %3066
    %v3068 = vsel %vm96, %v2824, 0.0
    %3069 = vadd.xlane.f32.xlu0 %v3068
    %v3070 = vpop.xlane.xlu0 %3069
    %v3071 = vsel %vm96, %v2826, 0.0
    %3072 = vadd.xlane.f32.xlu0 %v3071
    %v3073 = vpop.xlane.xlu0 %3072
    %v3074 = vsel %vm96, %v2828, 0.0
    %3075 = vadd.xlane.f32.xlu0 %v3074
    %v3076 = vpop.xlane.xlu0 %3075
    %v3077 = vsel %vm96, %v2830, 0.0
    %3078 = vadd.xlane.f32.xlu0 %v3077
    %v3079 = vpop.xlane.xlu0 %3078
    %v3080 = vsel %vm96, %v2832, 0.0
    %3081 = vadd.xlane.f32.xlu0 %v3080
    %v3082 = vpop.xlane.xlu0 %3081
    %v3083 = vsel %vm96, %v2834, 0.0
    %3084 = vadd.xlane.f32.xlu0 %v3083
    %v3085 = vpop.xlane.xlu0 %3084
    %v3086 = vsel %vm96, %v2836, 0.0
    %3087 = vadd.xlane.f32.xlu0 %v3086
    %v3088 = vpop.xlane.xlu0 %3087
    %v3089 = vsel %vm96, %v2838, 0.0
    %3090 = vadd.xlane.f32.xlu0 %v3089
    %v3091 = vpop.xlane.xlu0 %3090
    %v3092 = vsel %vm96, %v2840, 0.0
    %3093 = vadd.xlane.f32.xlu0 %v3092
    %v3094 = vpop.xlane.xlu0 %3093
    %v3095 = vsel %vm96, %v2842, 0.0
    %3096 = vadd.xlane.f32.xlu0 %v3095
    %v3097 = vpop.xlane.xlu0 %3096
    %v3098 = vsel %vm96, %v2844, 0.0
    %3099 = vadd.xlane.f32.xlu0 %v3098
    %v3100 = vpop.xlane.xlu0 %3099
    %v3101 = vmul.f32 %v2911, 0.125
    %v3102 = vmul.f32 %v2914, 0.125
    %v3103 = vmul.f32 %v2917, 0.125
    %v3104 = vmul.f32 %v2920, 0.125
    %v3105 = vmul.f32 %v2923, 0.125
    %v3106 = vmul.f32 %v2926, 0.125
    %v3107 = vmul.f32 %v2929, 0.125
    %v3108 = vmul.f32 %v2932, 0.125
    %v3109 = vmul.f32 %v2935, 0.125
    %v3110 = vmul.f32 %v2938, 0.125
    %v3111 = vmul.f32 %v2941, 0.125
    %v3112 = vmul.f32 %v2944, 0.125
    %v3113 = vmul.f32 %v2947, 0.125
    %v3114 = vmul.f32 %v2950, 0.125
    %v3115 = vmul.f32 %v2953, 0.125
    %v3116 = vmul.f32 %v2956, 0.125
    %v3117 = vmul.f32 %v2959, 0.125
    %v3118 = vmul.f32 %v2962, 0.125
    %v3119 = vmul.f32 %v2965, 0.125
    %v3120 = vmul.f32 %v2968, 0.125
    %v3121 = vmul.f32 %v2971, 0.125
    %v3122 = vmul.f32 %v2974, 0.125
    %v3123 = vmul.f32 %v2977, 0.125
    %v3124 = vmul.f32 %v2980, 0.125
    %v3125 = vmul.f32 %v2983, 0.125
    %v3126 = vmul.f32 %v2986, 0.125
    %v3127 = vmul.f32 %v2989, 0.125
    %v3128 = vmul.f32 %v2992, 0.125
    %v3129 = vmul.f32 %v2995, 0.125
    %v3130 = vmul.f32 %v2998, 0.125
    %v3131 = vmul.f32 %v3001, 0.125
    %v3132 = vmul.f32 %v3004, 0.125
    %v3133 = vmul.f32 %v3007, 0.125
    %v3134 = vmul.f32 %v3010, 0.125
    %v3135 = vmul.f32 %v3013, 0.125
    %v3136 = vmul.f32 %v3016, 0.125
    %v3137 = vmul.f32 %v3019, 0.125
    %v3138 = vmul.f32 %v3022, 0.125
    %v3139 = vmul.f32 %v3025, 0.125
    %v3140 = vmul.f32 %v3028, 0.125
    %v3141 = vmul.f32 %v3031, 0.125
    %v3142 = vmul.f32 %v3034, 0.125
    %v3143 = vmul.f32 %v3037, 0.125
    %v3144 = vmul.f32 %v3040, 0.125
    %v3145 = vmul.f32 %v3043, 0.125
    %v3146 = vmul.f32 %v3046, 0.125
    %v3147 = vmul.f32 %v3049, 0.125
    %v3148 = vmul.f32 %v3052, 0.125
    %v3149 = vmul.f32 %v3055, 0.125
    %v3150 = vmul.f32 %v3058, 0.125
    %v3151 = vmul.f32 %v3061, 0.125
    %v3152 = vmul.f32 %v3064, 0.125
    %v3153 = vmul.f32 %v3067, 0.125
    %v3154 = vmul.f32 %v3070, 0.125
    %v3155 = vmul.f32 %v3073, 0.125
    %v3156 = vmul.f32 %v3076, 0.125
    %v3157 = vmul.f32 %v3079, 0.125
    %v3158 = vmul.f32 %v3082, 0.125
    %v3159 = vmul.f32 %v3085, 0.125
    %v3160 = vmul.f32 %v3088, 0.125
    %v3161 = vmul.f32 %v3091, 0.125
    %v3162 = vmul.f32 %v3094, 0.125
    %v3163 = vmul.f32 %v3097, 0.125
    %v3164 = vmul.f32 %v3100, 0.125
    %v3165 = vadd.f32 %v2240, %v3101
    %v3166 = vadd.f32 %v2241, %v3102
    %v3167 = vadd.f32 %v2242, %v3103
    %v3168 = vadd.f32 %v2243, %v3104
    %v3169 = vadd.f32 %v2244, %v3105
    %v3170 = vadd.f32 %v2245, %v3106
    %v3171 = vadd.f32 %v2246, %v3107
    %v3172 = vadd.f32 %v2247, %v3108
    %v3173 = vadd.f32 %v2248, %v3109
    %v3174 = vadd.f32 %v2249, %v3110
    %v3175 = vadd.f32 %v2250, %v3111
    %v3176 = vadd.f32 %v2251, %v3112
    %v3177 = vadd.f32 %v2252, %v3113
    %v3178 = vadd.f32 %v2253, %v3114
    %v3179 = vadd.f32 %v2254, %v3115
    %v3180 = vadd.f32 %v2255, %v3116
    %v3181 = vadd.f32 %v2256, %v3117
    %v3182 = vadd.f32 %v2257, %v3118
    %v3183 = vadd.f32 %v2258, %v3119
    %v3184 = vadd.f32 %v2259, %v3120
    %v3185 = vadd.f32 %v2260, %v3121
    %v3186 = vadd.f32 %v2261, %v3122
    %v3187 = vadd.f32 %v2262, %v3123
    %v3188 = vadd.f32 %v2263, %v3124
    %v3189 = vadd.f32 %v2264, %v3125
    %v3190 = vadd.f32 %v2265, %v3126
    %v3191 = vadd.f32 %v2266, %v3127
    %v3192 = vadd.f32 %v2267, %v3128
    %v3193 = vadd.f32 %v2268, %v3129
    %v3194 = vadd.f32 %v2269, %v3130
    %v3195 = vadd.f32 %v2270, %v3131
    %v3196 = vadd.f32 %v2271, %v3132
    %v3197 = vadd.f32 %v2272, %v3133
    %v3198 = vadd.f32 %v2273, %v3134
    %v3199 = vadd.f32 %v2274, %v3135
    %v3200 = vadd.f32 %v2275, %v3136
    %v3201 = vadd.f32 %v2276, %v3137
    %v3202 = vadd.f32 %v2277, %v3138
    %v3203 = vadd.f32 %v2278, %v3139
    %v3204 = vadd.f32 %v2279, %v3140
    %v3205 = vadd.f32 %v2280, %v3141
    %v3206 = vadd.f32 %v2281, %v3142
    %v3207 = vadd.f32 %v2282, %v3143
    %v3208 = vadd.f32 %v2283, %v3144
    %v3209 = vadd.f32 %v2284, %v3145
    %v3210 = vadd.f32 %v2285, %v3146
    %v3211 = vadd.f32 %v2286, %v3147
    %v3212 = vadd.f32 %v2287, %v3148
    %v3213 = vadd.f32 %v2288, %v3149
    %v3214 = vadd.f32 %v2289, %v3150
    %v3215 = vadd.f32 %v2290, %v3151
    %v3216 = vadd.f32 %v2291, %v3152
    %v3217 = vadd.f32 %v2292, %v3153
    %v3218 = vadd.f32 %v2293, %v3154
    %v3219 = vadd.f32 %v2294, %v3155
    %v3220 = vadd.f32 %v2295, %v3156
    %v3221 = vadd.f32 %v2296, %v3157
    %v3222 = vadd.f32 %v2297, %v3158
    %v3223 = vadd.f32 %v2298, %v3159
    %v3224 = vadd.f32 %v2299, %v3160
    %v3225 = vadd.f32 %v2300, %v3161
    %v3226 = vadd.f32 %v2301, %v3162
    %v3227 = vadd.f32 %v2302, %v3163
    %v3228 = vadd.f32 %v2303, %v3164
    %v3229 = vld [vmem:[%s1] sm:$0xff]
    %v3230 = vld [vmem:[%s1 + $0x8] sm:$0xff]
    %v3231 = vld [vmem:[%s1 + $0x10] sm:$0xff]
    %v3232 = vld [vmem:[%s1 + $0x18] sm:$0xff]
    %v3233 = vld [vmem:[%s1 + $0x20] sm:$0xff]
    %v3234 = vld [vmem:[%s1 + $0x28] sm:$0xff]
    %v3235 = vld [vmem:[%s1 + $0x30] sm:$0xff]
    %v3236 = vld [vmem:[%s1 + $0x38] sm:$0xff]
    %v3237 = vld [vmem:[%s1 + $0x40] sm:$0xff]
    %v3238 = vld [vmem:[%s1 + $0x48] sm:$0xff]
    %v3239 = vld [vmem:[%s1 + $0x50] sm:$0xff]
    %v3240 = vld [vmem:[%s1 + $0x58] sm:$0xff]
    %v3241 = vld [vmem:[%s1 + $0x60] sm:$0xff]
    %v3242 = vld [vmem:[%s1 + $0x68] sm:$0xff]
    %v3243 = vld [vmem:[%s1 + $0x70] sm:$0xff]
    %v3244 = vld [vmem:[%s1 + $0x78] sm:$0xff]
    %v3245 = vld [vmem:[%s1 + $0x80] sm:$0xff]
    %v3246 = vld [vmem:[%s1 + $0x88] sm:$0xff]
    %v3247 = vld [vmem:[%s1 + $0x90] sm:$0xff]
    %v3248 = vld [vmem:[%s1 + $0x98] sm:$0xff]
    %v3249 = vld [vmem:[%s1 + $0xa0] sm:$0xff]
    %v3250 = vld [vmem:[%s1 + $0xa8] sm:$0xff]
    %v3251 = vld [vmem:[%s1 + $0xb0] sm:$0xff]
    %v3252 = vld [vmem:[%s1 + $0xb8] sm:$0xff]
    %v3253 = vld [vmem:[%s1 + $0xc0] sm:$0xff]
    %v3254 = vld [vmem:[%s1 + $0xc8] sm:$0xff]
    %v3255 = vld [vmem:[%s1 + $0xd0] sm:$0xff]
    %v3256 = vld [vmem:[%s1 + $0xd8] sm:$0xff]
    %v3257 = vld [vmem:[%s1 + $0xe0] sm:$0xff]
    %v3258 = vld [vmem:[%s1 + $0xe8] sm:$0xff]
    %v3259 = vld [vmem:[%s1 + $0xf0] sm:$0xff]
    %v3260 = vld [vmem:[%s1 + $0xf8] sm:$0xff]
    %v3325 = vperm.slane %v3101, %v517
    %v3326 = vperm.slane %v3102, %v519
    %v3327 = vsel %vm521, %v3326, %v3325
    %v3328 = vperm.slane %v3103, %v523
    %v3329 = vsel %vm525, %v3328, %v3327
    %v3330 = vperm.slane %v3104, %v527
    %v3331 = vsel %vm529, %v3330, %v3329
    %v3332 = vperm.slane %v3105, %v531
    %v3333 = vsel %vm533, %v3332, %v3331
    %v3334 = vperm.slane %v3106, %v535
    %v3335 = vsel %vm537, %v3334, %v3333
    %v3336 = vperm.slane %v3107, %v539
    %v3337 = vsel %vm541, %v3336, %v3335
    %v3338 = vperm.slane %v3108, %v543
    %v3339 = vsel %vm545, %v3338, %v3337
    %v3340 = vperm.slane %v3109, %v547
    %v3341 = vsel %vm549, %v3340, %v3339
    %v3342 = vperm.slane %v3110, %v551
    %v3343 = vsel %vm553, %v3342, %v3341
    %v3344 = vperm.slane %v3111, %v555
    %v3345 = vsel %vm557, %v3344, %v3343
    %v3346 = vperm.slane %v3112, %v559
    %v3347 = vsel %vm561, %v3346, %v3345
    %v3348 = vperm.slane %v3113, %v563
    %v3349 = vsel %vm565, %v3348, %v3347
    %v3350 = vperm.slane %v3114, %v567
    %v3351 = vsel %vm569, %v3350, %v3349
    %v3352 = vperm.slane %v3115, %v571
    %v3353 = vsel %vm573, %v3352, %v3351
    %v3354 = vperm.slane %v3116, %v575
    %v3355 = vsel %vm577, %v3354, %v3353
    %v3356 = vperm.slane %v3117, %v517
    %v3357 = vperm.slane %v3118, %v519
    %v3358 = vsel %vm521, %v3357, %v3356
    %v3359 = vperm.slane %v3119, %v523
    %v3360 = vsel %vm525, %v3359, %v3358
    %v3361 = vperm.slane %v3120, %v527
    %v3362 = vsel %vm529, %v3361, %v3360
    %v3363 = vperm.slane %v3121, %v531
    %v3364 = vsel %vm533, %v3363, %v3362
    %v3365 = vperm.slane %v3122, %v535
    %v3366 = vsel %vm537, %v3365, %v3364
    %v3367 = vperm.slane %v3123, %v539
    %v3368 = vsel %vm541, %v3367, %v3366
    %v3369 = vperm.slane %v3124, %v543
    %v3370 = vsel %vm545, %v3369, %v3368
    %v3371 = vperm.slane %v3125, %v547
    %v3372 = vsel %vm549, %v3371, %v3370
    %v3373 = vperm.slane %v3126, %v551
    %v3374 = vsel %vm553, %v3373, %v3372
    %v3375 = vperm.slane %v3127, %v555
    %v3376 = vsel %vm557, %v3375, %v3374
    %v3377 = vperm.slane %v3128, %v559
    %v3378 = vsel %vm561, %v3377, %v3376
    %v3379 = vperm.slane %v3129, %v563
    %v3380 = vsel %vm565, %v3379, %v3378
    %v3381 = vperm.slane %v3130, %v567
    %v3382 = vsel %vm569, %v3381, %v3380
    %v3383 = vperm.slane %v3131, %v571
    %v3384 = vsel %vm573, %v3383, %v3382
    %v3385 = vperm.slane %v3132, %v575
    %v3386 = vsel %vm577, %v3385, %v3384
    %v3387 = vperm.slane %v3133, %v517
    %v3388 = vperm.slane %v3134, %v519
    %v3389 = vsel %vm521, %v3388, %v3387
    %v3390 = vperm.slane %v3135, %v523
    %v3391 = vsel %vm525, %v3390, %v3389
    %v3392 = vperm.slane %v3136, %v527
    %v3393 = vsel %vm529, %v3392, %v3391
    %v3394 = vperm.slane %v3137, %v531
    %v3395 = vsel %vm533, %v3394, %v3393
    %v3396 = vperm.slane %v3138, %v535
    %v3397 = vsel %vm537, %v3396, %v3395
    %v3398 = vperm.slane %v3139, %v539
    %v3399 = vsel %vm541, %v3398, %v3397
    %v3400 = vperm.slane %v3140, %v543
    %v3401 = vsel %vm545, %v3400, %v3399
    %v3402 = vperm.slane %v3141, %v547
    %v3403 = vsel %vm549, %v3402, %v3401
    %v3404 = vperm.slane %v3142, %v551
    %v3405 = vsel %vm553, %v3404, %v3403
    %v3406 = vperm.slane %v3143, %v555
    %v3407 = vsel %vm557, %v3406, %v3405
    %v3408 = vperm.slane %v3144, %v559
    %v3409 = vsel %vm561, %v3408, %v3407
    %v3410 = vperm.slane %v3145, %v563
    %v3411 = vsel %vm565, %v3410, %v3409
    %v3412 = vperm.slane %v3146, %v567
    %v3413 = vsel %vm569, %v3412, %v3411
    %v3414 = vperm.slane %v3147, %v571
    %v3415 = vsel %vm573, %v3414, %v3413
    %v3416 = vperm.slane %v3148, %v575
    %v3417 = vsel %vm577, %v3416, %v3415
    %v3418 = vperm.slane %v3149, %v517
    %v3419 = vperm.slane %v3150, %v519
    %v3420 = vsel %vm521, %v3419, %v3418
    %v3421 = vperm.slane %v3151, %v523
    %v3422 = vsel %vm525, %v3421, %v3420
    %v3423 = vperm.slane %v3152, %v527
    %v3424 = vsel %vm529, %v3423, %v3422
    %v3425 = vperm.slane %v3153, %v531
    %v3426 = vsel %vm533, %v3425, %v3424
    %v3427 = vperm.slane %v3154, %v535
    %v3428 = vsel %vm537, %v3427, %v3426
    %v3429 = vperm.slane %v3155, %v539
    %v3430 = vsel %vm541, %v3429, %v3428
    %v3431 = vperm.slane %v3156, %v543
    %v3432 = vsel %vm545, %v3431, %v3430
    %v3433 = vperm.slane %v3157, %v547
    %v3434 = vsel %vm549, %v3433, %v3432
    %v3435 = vperm.slane %v3158, %v551
    %v3436 = vsel %vm553, %v3435, %v3434
    %v3437 = vperm.slane %v3159, %v555
    %v3438 = vsel %vm557, %v3437, %v3436
    %v3439 = vperm.slane %v3160, %v559
    %v3440 = vsel %vm561, %v3439, %v3438
    %v3441 = vperm.slane %v3161, %v563
    %v3442 = vsel %vm565, %v3441, %v3440
    %v3443 = vperm.slane %v3162, %v567
    %v3444 = vsel %vm569, %v3443, %v3442
    %v3445 = vperm.slane %v3163, %v571
    %v3446 = vsel %vm573, %v3445, %v3444
    %v3447 = vperm.slane %v3164, %v575
    %v3448 = vsel %vm577, %v3447, %v3446
    %v3449 = vsel %vm672, %v3417, %v3355
    %v3450 = vsel %vm672, %v3448, %v3386
    %3453 = vmatpush.msra.mxu0 %v3244
    %3454 = vmatpush.msra.mxu0 %v3243
    %3455 = vmatpush.msra.mxu0 %v3242
    %3456 = vmatpush.msra.mxu0 %v3241
    %3457 = vmatpush.msra.mxu0 %v3240
    %3458 = vmatpush.msra.mxu0 %v3239
    %3459 = vmatpush.msra.mxu0 %v3238
    %3460 = vmatpush.msra.mxu0 %v3237
    %3461 = vmatpush.msra.mxu0 %v3236
    %3462 = vmatpush.msra.mxu0 %v3235
    %3463 = vmatpush.msra.mxu0 %v3234
    %3464 = vmatpush.msra.mxu0 %v3233
    %3465 = vmatpush.msra.mxu0 %v3232
    %3466 = vmatpush.msra.mxu0 %v3231
    %3467 = vmatpush.msra.mxu0 %v3230
    %3468 = vmatpush.msra.mxu0 %v3229
    %3469 = vmatmul.f32.gmra.mxu0 %v3449
    %v3470 = vpop.f32.mrf.mxu0
    %v3471 = vadd.f32 %v450, %v3470
    %3472 = vdwg.mxu0
    %3473 = vmatpush.msra.mxu0 %v3260
    %3474 = vmatpush.msra.mxu0 %v3259
    %3475 = vmatpush.msra.mxu0 %v3258
    %3476 = vmatpush.msra.mxu0 %v3257
    %3477 = vmatpush.msra.mxu0 %v3256
    %3478 = vmatpush.msra.mxu0 %v3255
    %3479 = vmatpush.msra.mxu0 %v3254
    %3480 = vmatpush.msra.mxu0 %v3253
    %3481 = vmatpush.msra.mxu0 %v3252
    %3482 = vmatpush.msra.mxu0 %v3251
    %3483 = vmatpush.msra.mxu0 %v3250
    %3484 = vmatpush.msra.mxu0 %v3249
    %3485 = vmatpush.msra.mxu0 %v3248
    %3486 = vmatpush.msra.mxu0 %v3247
    %3487 = vmatpush.msra.mxu0 %v3246
    %3488 = vmatpush.msra.mxu0 %v3245
    %3489 = vmatmul.f32.gmra.mxu0 %v3450
    %v3490 = vpop.f32.mrf.mxu0
    %v3491 = vadd.f32 %v3471, %v3490
    %3492 = vdwg.mxu0
    %v3493 = vmul.f32 %v3491, %v3491
    %v3494 = vsel %vm718, %v3493, 0.0
    %3495 = vadd.xlane.f32.xlu0 %v3494
    %v3496 = vpop.xlane.xlu0 %3495
    %v3497 = vadd.f32 %v3496, 1e-12
    %v3498 = vrsqrt.pop %v3497
    %v3499 = vmul.f32 %v3498, %v3497
    %v3500 = vmul.f32 %v3499, %v3498
    %v3501 = vmul.f32 0.5, %v3500
    %v3502 = vsub.f32 1.5, %v3501
    %v3503 = vmul.f32 %v3498, %v3502
    %vm3504 = vweird.f32 %v3497
    %vm3505 = vweird.f32 %v3498
    %vm3506 = vmor %vm3504, %vm3505
    %v3507 = vsel %vm3506, %v3498, %v3503
    %v3508 = vmul.f32 %v3491, %v3507
    %v3510 = vrot.slane %v3508, 1
    %3512 = vst [vmem:[#allocation4 + $0x3] sm:$0x1] %v3508
    %3513 = vst [vmem:[#allocation4 + $0xb] sm:$0x1] %v3510
    %v3514 = vld [vmem:[%s0] sm:$0xff]
    %v3515 = vld [vmem:[%s0 + $0x8] sm:$0xff]
    %v3516 = vld [vmem:[%s0 + $0x10] sm:$0xff]
    %v3517 = vld [vmem:[%s0 + $0x18] sm:$0xff]
    %v3518 = vld [vmem:[%s0 + $0x20] sm:$0xff]
    %v3519 = vld [vmem:[%s0 + $0x28] sm:$0xff]
    %v3520 = vld [vmem:[%s0 + $0x30] sm:$0xff]
    %v3521 = vld [vmem:[%s0 + $0x38] sm:$0xff]
    %v3522 = vld [vmem:[%s0 + $0x40] sm:$0xff]
    %v3523 = vld [vmem:[%s0 + $0x48] sm:$0xff]
    %v3524 = vld [vmem:[%s0 + $0x50] sm:$0xff]
    %v3525 = vld [vmem:[%s0 + $0x58] sm:$0xff]
    %v3526 = vld [vmem:[%s0 + $0x60] sm:$0xff]
    %v3527 = vld [vmem:[%s0 + $0x68] sm:$0xff]
    %v3528 = vld [vmem:[%s0 + $0x70] sm:$0xff]
    %v3529 = vld [vmem:[%s0 + $0x78] sm:$0xff]
    %v3530 = vld [vmem:[%s0 + $0x80] sm:$0xff]
    %v3531 = vld [vmem:[%s0 + $0x88] sm:$0xff]
    %v3532 = vld [vmem:[%s0 + $0x90] sm:$0xff]
    %v3533 = vld [vmem:[%s0 + $0x98] sm:$0xff]
    %v3534 = vld [vmem:[%s0 + $0xa0] sm:$0xff]
    %v3535 = vld [vmem:[%s0 + $0xa8] sm:$0xff]
    %v3536 = vld [vmem:[%s0 + $0xb0] sm:$0xff]
    %v3537 = vld [vmem:[%s0 + $0xb8] sm:$0xff]
    %v3538 = vld [vmem:[%s0 + $0xc0] sm:$0xff]
    %v3539 = vld [vmem:[%s0 + $0xc8] sm:$0xff]
    %v3540 = vld [vmem:[%s0 + $0xd0] sm:$0xff]
    %v3541 = vld [vmem:[%s0 + $0xd8] sm:$0xff]
    %v3542 = vld [vmem:[%s0 + $0xe0] sm:$0xff]
    %v3543 = vld [vmem:[%s0 + $0xe8] sm:$0xff]
    %v3544 = vld [vmem:[%s0 + $0xf0] sm:$0xff]
    %v3545 = vld [vmem:[%s0 + $0xf8] sm:$0xff]
    %v3546 = vld [vmem:[%s0 + $0x100] sm:$0xff]
    %v3547 = vld [vmem:[%s0 + $0x108] sm:$0xff]
    %v3548 = vld [vmem:[%s0 + $0x110] sm:$0xff]
    %v3549 = vld [vmem:[%s0 + $0x118] sm:$0xff]
    %v3550 = vld [vmem:[%s0 + $0x120] sm:$0xff]
    %v3551 = vld [vmem:[%s0 + $0x128] sm:$0xff]
    %v3552 = vld [vmem:[%s0 + $0x130] sm:$0xff]
    %v3553 = vld [vmem:[%s0 + $0x138] sm:$0xff]
    %v3554 = vld [vmem:[%s0 + $0x140] sm:$0xff]
    %v3555 = vld [vmem:[%s0 + $0x148] sm:$0xff]
    %v3556 = vld [vmem:[%s0 + $0x150] sm:$0xff]
    %v3557 = vld [vmem:[%s0 + $0x158] sm:$0xff]
    %v3558 = vld [vmem:[%s0 + $0x160] sm:$0xff]
    %v3559 = vld [vmem:[%s0 + $0x168] sm:$0xff]
    %v3560 = vld [vmem:[%s0 + $0x170] sm:$0xff]
    %v3561 = vld [vmem:[%s0 + $0x178] sm:$0xff]
    %v3562 = vld [vmem:[%s0 + $0x180] sm:$0xff]
    %v3563 = vld [vmem:[%s0 + $0x188] sm:$0xff]
    %v3564 = vld [vmem:[%s0 + $0x190] sm:$0xff]
    %v3565 = vld [vmem:[%s0 + $0x198] sm:$0xff]
    %v3566 = vld [vmem:[%s0 + $0x1a0] sm:$0xff]
    %v3567 = vld [vmem:[%s0 + $0x1a8] sm:$0xff]
    %v3568 = vld [vmem:[%s0 + $0x1b0] sm:$0xff]
    %v3569 = vld [vmem:[%s0 + $0x1b8] sm:$0xff]
    %v3570 = vld [vmem:[%s0 + $0x1c0] sm:$0xff]
    %v3571 = vld [vmem:[%s0 + $0x1c8] sm:$0xff]
    %v3572 = vld [vmem:[%s0 + $0x1d0] sm:$0xff]
    %v3573 = vld [vmem:[%s0 + $0x1d8] sm:$0xff]
    %v3574 = vld [vmem:[%s0 + $0x1e0] sm:$0xff]
    %v3575 = vld [vmem:[%s0 + $0x1e8] sm:$0xff]
    %v3576 = vld [vmem:[%s0 + $0x1f0] sm:$0xff]
    %v3577 = vld [vmem:[%s0 + $0x1f8] sm:$0xff]
    %3642 = vrot.lane.b32.xlu0 %v3514, 96
    %v3643 = vpop.permute.xlu0 %3642
    %3644 = vrot.lane.b32.xlu0 %v3515, 96
    %v3645 = vpop.permute.xlu0 %3644
    %3646 = vrot.lane.b32.xlu0 %v3516, 96
    %v3647 = vpop.permute.xlu0 %3646
    %3648 = vrot.lane.b32.xlu0 %v3517, 96
    %v3649 = vpop.permute.xlu0 %3648
    %3650 = vrot.lane.b32.xlu0 %v3518, 96
    %v3651 = vpop.permute.xlu0 %3650
    %3652 = vrot.lane.b32.xlu0 %v3519, 96
    %v3653 = vpop.permute.xlu0 %3652
    %3654 = vrot.lane.b32.xlu0 %v3520, 96
    %v3655 = vpop.permute.xlu0 %3654
    %3656 = vrot.lane.b32.xlu0 %v3521, 96
    %v3657 = vpop.permute.xlu0 %3656
    %3658 = vrot.lane.b32.xlu0 %v3522, 96
    %v3659 = vpop.permute.xlu0 %3658
    %3660 = vrot.lane.b32.xlu0 %v3523, 96
    %v3661 = vpop.permute.xlu0 %3660
    %3662 = vrot.lane.b32.xlu0 %v3524, 96
    %v3663 = vpop.permute.xlu0 %3662
    %3664 = vrot.lane.b32.xlu0 %v3525, 96
    %v3665 = vpop.permute.xlu0 %3664
    %3666 = vrot.lane.b32.xlu0 %v3526, 96
    %v3667 = vpop.permute.xlu0 %3666
    %3668 = vrot.lane.b32.xlu0 %v3527, 96
    %v3669 = vpop.permute.xlu0 %3668
    %3670 = vrot.lane.b32.xlu0 %v3528, 96
    %v3671 = vpop.permute.xlu0 %3670
    %3672 = vrot.lane.b32.xlu0 %v3529, 96
    %v3673 = vpop.permute.xlu0 %3672
    %3674 = vrot.lane.b32.xlu0 %v3530, 96
    %v3675 = vpop.permute.xlu0 %3674
    %3676 = vrot.lane.b32.xlu0 %v3531, 96
    %v3677 = vpop.permute.xlu0 %3676
    %3678 = vrot.lane.b32.xlu0 %v3532, 96
    %v3679 = vpop.permute.xlu0 %3678
    %3680 = vrot.lane.b32.xlu0 %v3533, 96
    %v3681 = vpop.permute.xlu0 %3680
    %3682 = vrot.lane.b32.xlu0 %v3534, 96
    %v3683 = vpop.permute.xlu0 %3682
    %3684 = vrot.lane.b32.xlu0 %v3535, 96
    %v3685 = vpop.permute.xlu0 %3684
    %3686 = vrot.lane.b32.xlu0 %v3536, 96
    %v3687 = vpop.permute.xlu0 %3686
    %3688 = vrot.lane.b32.xlu0 %v3537, 96
    %v3689 = vpop.permute.xlu0 %3688
    %3690 = vrot.lane.b32.xlu0 %v3538, 96
    %v3691 = vpop.permute.xlu0 %3690
    %3692 = vrot.lane.b32.xlu0 %v3539, 96
    %v3693 = vpop.permute.xlu0 %3692
    %3694 = vrot.lane.b32.xlu0 %v3540, 96
    %v3695 = vpop.permute.xlu0 %3694
    %3696 = vrot.lane.b32.xlu0 %v3541, 96
    %v3697 = vpop.permute.xlu0 %3696
    %3698 = vrot.lane.b32.xlu0 %v3542, 96
    %v3699 = vpop.permute.xlu0 %3698
    %3700 = vrot.lane.b32.xlu0 %v3543, 96
    %v3701 = vpop.permute.xlu0 %3700
    %3702 = vrot.lane.b32.xlu0 %v3544, 96
    %v3703 = vpop.permute.xlu0 %3702
    %3704 = vrot.lane.b32.xlu0 %v3545, 96
    %v3705 = vpop.permute.xlu0 %3704
    %3706 = vrot.lane.b32.xlu0 %v3546, 96
    %v3707 = vpop.permute.xlu0 %3706
    %3708 = vrot.lane.b32.xlu0 %v3547, 96
    %v3709 = vpop.permute.xlu0 %3708
    %3710 = vrot.lane.b32.xlu0 %v3548, 96
    %v3711 = vpop.permute.xlu0 %3710
    %3712 = vrot.lane.b32.xlu0 %v3549, 96
    %v3713 = vpop.permute.xlu0 %3712
    %3714 = vrot.lane.b32.xlu0 %v3550, 96
    %v3715 = vpop.permute.xlu0 %3714
    %3716 = vrot.lane.b32.xlu0 %v3551, 96
    %v3717 = vpop.permute.xlu0 %3716
    %3718 = vrot.lane.b32.xlu0 %v3552, 96
    %v3719 = vpop.permute.xlu0 %3718
    %3720 = vrot.lane.b32.xlu0 %v3553, 96
    %v3721 = vpop.permute.xlu0 %3720
    %3722 = vrot.lane.b32.xlu0 %v3554, 96
    %v3723 = vpop.permute.xlu0 %3722
    %3724 = vrot.lane.b32.xlu0 %v3555, 96
    %v3725 = vpop.permute.xlu0 %3724
    %3726 = vrot.lane.b32.xlu0 %v3556, 96
    %v3727 = vpop.permute.xlu0 %3726
    %3728 = vrot.lane.b32.xlu0 %v3557, 96
    %v3729 = vpop.permute.xlu0 %3728
    %3730 = vrot.lane.b32.xlu0 %v3558, 96
    %v3731 = vpop.permute.xlu0 %3730
    %3732 = vrot.lane.b32.xlu0 %v3559, 96
    %v3733 = vpop.permute.xlu0 %3732
    %3734 = vrot.lane.b32.xlu0 %v3560, 96
    %v3735 = vpop.permute.xlu0 %3734
    %3736 = vrot.lane.b32.xlu0 %v3561, 96
    %v3737 = vpop.permute.xlu0 %3736
    %3738 = vrot.lane.b32.xlu0 %v3562, 96
    %v3739 = vpop.permute.xlu0 %3738
    %3740 = vrot.lane.b32.xlu0 %v3563, 96
    %v3741 = vpop.permute.xlu0 %3740
    %3742 = vrot.lane.b32.xlu0 %v3564, 96
    %v3743 = vpop.permute.xlu0 %3742
    %3744 = vrot.lane.b32.xlu0 %v3565, 96
    %v3745 = vpop.permute.xlu0 %3744
    %3746 = vrot.lane.b32.xlu0 %v3566, 96
    %v3747 = vpop.permute.xlu0 %3746
    %3748 = vrot.lane.b32.xlu0 %v3567, 96
    %v3749 = vpop.permute.xlu0 %3748
    %3750 = vrot.lane.b32.xlu0 %v3568, 96
    %v3751 = vpop.permute.xlu0 %3750
    %3752 = vrot.lane.b32.xlu0 %v3569, 96
    %v3753 = vpop.permute.xlu0 %3752
    %3754 = vrot.lane.b32.xlu0 %v3570, 96
    %v3755 = vpop.permute.xlu0 %3754
    %3756 = vrot.lane.b32.xlu0 %v3571, 96
    %v3757 = vpop.permute.xlu0 %3756
    %3758 = vrot.lane.b32.xlu0 %v3572, 96
    %v3759 = vpop.permute.xlu0 %3758
    %3760 = vrot.lane.b32.xlu0 %v3573, 96
    %v3761 = vpop.permute.xlu0 %3760
    %3762 = vrot.lane.b32.xlu0 %v3574, 96
    %v3763 = vpop.permute.xlu0 %3762
    %3764 = vrot.lane.b32.xlu0 %v3575, 96
    %v3765 = vpop.permute.xlu0 %3764
    %3766 = vrot.lane.b32.xlu0 %v3576, 96
    %v3767 = vpop.permute.xlu0 %3766
    %3768 = vrot.lane.b32.xlu0 %v3577, 96
    %v3769 = vpop.permute.xlu0 %3768
    %v3834 = vsel %vm96, %v3643, 0.0
    %3835 = vadd.xlane.f32.xlu0 %v3834
    %v3836 = vpop.xlane.xlu0 %3835
    %v3837 = vsel %vm96, %v3645, 0.0
    %3838 = vadd.xlane.f32.xlu0 %v3837
    %v3839 = vpop.xlane.xlu0 %3838
    %v3840 = vsel %vm96, %v3647, 0.0
    %3841 = vadd.xlane.f32.xlu0 %v3840
    %v3842 = vpop.xlane.xlu0 %3841
    %v3843 = vsel %vm96, %v3649, 0.0
    %3844 = vadd.xlane.f32.xlu0 %v3843
    %v3845 = vpop.xlane.xlu0 %3844
    %v3846 = vsel %vm96, %v3651, 0.0
    %3847 = vadd.xlane.f32.xlu0 %v3846
    %v3848 = vpop.xlane.xlu0 %3847
    %v3849 = vsel %vm96, %v3653, 0.0
    %3850 = vadd.xlane.f32.xlu0 %v3849
    %v3851 = vpop.xlane.xlu0 %3850
    %v3852 = vsel %vm96, %v3655, 0.0
    %3853 = vadd.xlane.f32.xlu0 %v3852
    %v3854 = vpop.xlane.xlu0 %3853
    %v3855 = vsel %vm96, %v3657, 0.0
    %3856 = vadd.xlane.f32.xlu0 %v3855
    %v3857 = vpop.xlane.xlu0 %3856
    %v3858 = vsel %vm96, %v3659, 0.0
    %3859 = vadd.xlane.f32.xlu0 %v3858
    %v3860 = vpop.xlane.xlu0 %3859
    %v3861 = vsel %vm96, %v3661, 0.0
    %3862 = vadd.xlane.f32.xlu0 %v3861
    %v3863 = vpop.xlane.xlu0 %3862
    %v3864 = vsel %vm96, %v3663, 0.0
    %3865 = vadd.xlane.f32.xlu0 %v3864
    %v3866 = vpop.xlane.xlu0 %3865
    %v3867 = vsel %vm96, %v3665, 0.0
    %3868 = vadd.xlane.f32.xlu0 %v3867
    %v3869 = vpop.xlane.xlu0 %3868
    %v3870 = vsel %vm96, %v3667, 0.0
    %3871 = vadd.xlane.f32.xlu0 %v3870
    %v3872 = vpop.xlane.xlu0 %3871
    %v3873 = vsel %vm96, %v3669, 0.0
    %3874 = vadd.xlane.f32.xlu0 %v3873
    %v3875 = vpop.xlane.xlu0 %3874
    %v3876 = vsel %vm96, %v3671, 0.0
    %3877 = vadd.xlane.f32.xlu0 %v3876
    %v3878 = vpop.xlane.xlu0 %3877
    %v3879 = vsel %vm96, %v3673, 0.0
    %3880 = vadd.xlane.f32.xlu0 %v3879
    %v3881 = vpop.xlane.xlu0 %3880
    %v3882 = vsel %vm96, %v3675, 0.0
    %3883 = vadd.xlane.f32.xlu0 %v3882
    %v3884 = vpop.xlane.xlu0 %3883
    %v3885 = vsel %vm96, %v3677, 0.0
    %3886 = vadd.xlane.f32.xlu0 %v3885
    %v3887 = vpop.xlane.xlu0 %3886
    %v3888 = vsel %vm96, %v3679, 0.0
    %3889 = vadd.xlane.f32.xlu0 %v3888
    %v3890 = vpop.xlane.xlu0 %3889
    %v3891 = vsel %vm96, %v3681, 0.0
    %3892 = vadd.xlane.f32.xlu0 %v3891
    %v3893 = vpop.xlane.xlu0 %3892
    %v3894 = vsel %vm96, %v3683, 0.0
    %3895 = vadd.xlane.f32.xlu0 %v3894
    %v3896 = vpop.xlane.xlu0 %3895
    %v3897 = vsel %vm96, %v3685, 0.0
    %3898 = vadd.xlane.f32.xlu0 %v3897
    %v3899 = vpop.xlane.xlu0 %3898
    %v3900 = vsel %vm96, %v3687, 0.0
    %3901 = vadd.xlane.f32.xlu0 %v3900
    %v3902 = vpop.xlane.xlu0 %3901
    %v3903 = vsel %vm96, %v3689, 0.0
    %3904 = vadd.xlane.f32.xlu0 %v3903
    %v3905 = vpop.xlane.xlu0 %3904
    %v3906 = vsel %vm96, %v3691, 0.0
    %3907 = vadd.xlane.f32.xlu0 %v3906
    %v3908 = vpop.xlane.xlu0 %3907
    %v3909 = vsel %vm96, %v3693, 0.0
    %3910 = vadd.xlane.f32.xlu0 %v3909
    %v3911 = vpop.xlane.xlu0 %3910
    %v3912 = vsel %vm96, %v3695, 0.0
    %3913 = vadd.xlane.f32.xlu0 %v3912
    %v3914 = vpop.xlane.xlu0 %3913
    %v3915 = vsel %vm96, %v3697, 0.0
    %3916 = vadd.xlane.f32.xlu0 %v3915
    %v3917 = vpop.xlane.xlu0 %3916
    %v3918 = vsel %vm96, %v3699, 0.0
    %3919 = vadd.xlane.f32.xlu0 %v3918
    %v3920 = vpop.xlane.xlu0 %3919
    %v3921 = vsel %vm96, %v3701, 0.0
    %3922 = vadd.xlane.f32.xlu0 %v3921
    %v3923 = vpop.xlane.xlu0 %3922
    %v3924 = vsel %vm96, %v3703, 0.0
    %3925 = vadd.xlane.f32.xlu0 %v3924
    %v3926 = vpop.xlane.xlu0 %3925
    %v3927 = vsel %vm96, %v3705, 0.0
    %3928 = vadd.xlane.f32.xlu0 %v3927
    %v3929 = vpop.xlane.xlu0 %3928
    %v3930 = vsel %vm96, %v3707, 0.0
    %3931 = vadd.xlane.f32.xlu0 %v3930
    %v3932 = vpop.xlane.xlu0 %3931
    %v3933 = vsel %vm96, %v3709, 0.0
    %3934 = vadd.xlane.f32.xlu0 %v3933
    %v3935 = vpop.xlane.xlu0 %3934
    %v3936 = vsel %vm96, %v3711, 0.0
    %3937 = vadd.xlane.f32.xlu0 %v3936
    %v3938 = vpop.xlane.xlu0 %3937
    %v3939 = vsel %vm96, %v3713, 0.0
    %3940 = vadd.xlane.f32.xlu0 %v3939
    %v3941 = vpop.xlane.xlu0 %3940
    %v3942 = vsel %vm96, %v3715, 0.0
    %3943 = vadd.xlane.f32.xlu0 %v3942
    %v3944 = vpop.xlane.xlu0 %3943
    %v3945 = vsel %vm96, %v3717, 0.0
    %3946 = vadd.xlane.f32.xlu0 %v3945
    %v3947 = vpop.xlane.xlu0 %3946
    %v3948 = vsel %vm96, %v3719, 0.0
    %3949 = vadd.xlane.f32.xlu0 %v3948
    %v3950 = vpop.xlane.xlu0 %3949
    %v3951 = vsel %vm96, %v3721, 0.0
    %3952 = vadd.xlane.f32.xlu0 %v3951
    %v3953 = vpop.xlane.xlu0 %3952
    %v3954 = vsel %vm96, %v3723, 0.0
    %3955 = vadd.xlane.f32.xlu0 %v3954
    %v3956 = vpop.xlane.xlu0 %3955
    %v3957 = vsel %vm96, %v3725, 0.0
    %3958 = vadd.xlane.f32.xlu0 %v3957
    %v3959 = vpop.xlane.xlu0 %3958
    %v3960 = vsel %vm96, %v3727, 0.0
    %3961 = vadd.xlane.f32.xlu0 %v3960
    %v3962 = vpop.xlane.xlu0 %3961
    %v3963 = vsel %vm96, %v3729, 0.0
    %3964 = vadd.xlane.f32.xlu0 %v3963
    %v3965 = vpop.xlane.xlu0 %3964
    %v3966 = vsel %vm96, %v3731, 0.0
    %3967 = vadd.xlane.f32.xlu0 %v3966
    %v3968 = vpop.xlane.xlu0 %3967
    %v3969 = vsel %vm96, %v3733, 0.0
    %3970 = vadd.xlane.f32.xlu0 %v3969
    %v3971 = vpop.xlane.xlu0 %3970
    %v3972 = vsel %vm96, %v3735, 0.0
    %3973 = vadd.xlane.f32.xlu0 %v3972
    %v3974 = vpop.xlane.xlu0 %3973
    %v3975 = vsel %vm96, %v3737, 0.0
    %3976 = vadd.xlane.f32.xlu0 %v3975
    %v3977 = vpop.xlane.xlu0 %3976
    %v3978 = vsel %vm96, %v3739, 0.0
    %3979 = vadd.xlane.f32.xlu0 %v3978
    %v3980 = vpop.xlane.xlu0 %3979
    %v3981 = vsel %vm96, %v3741, 0.0
    %3982 = vadd.xlane.f32.xlu0 %v3981
    %v3983 = vpop.xlane.xlu0 %3982
    %v3984 = vsel %vm96, %v3743, 0.0
    %3985 = vadd.xlane.f32.xlu0 %v3984
    %v3986 = vpop.xlane.xlu0 %3985
    %v3987 = vsel %vm96, %v3745, 0.0
    %3988 = vadd.xlane.f32.xlu0 %v3987
    %v3989 = vpop.xlane.xlu0 %3988
    %v3990 = vsel %vm96, %v3747, 0.0
    %3991 = vadd.xlane.f32.xlu0 %v3990
    %v3992 = vpop.xlane.xlu0 %3991
    %v3993 = vsel %vm96, %v3749, 0.0
    %3994 = vadd.xlane.f32.xlu0 %v3993
    %v3995 = vpop.xlane.xlu0 %3994
    %v3996 = vsel %vm96, %v3751, 0.0
    %3997 = vadd.xlane.f32.xlu0 %v3996
    %v3998 = vpop.xlane.xlu0 %3997
    %v3999 = vsel %vm96, %v3753, 0.0
    %4000 = vadd.xlane.f32.xlu0 %v3999
    %v4001 = vpop.xlane.xlu0 %4000
    %v4002 = vsel %vm96, %v3755, 0.0
    %4003 = vadd.xlane.f32.xlu0 %v4002
    %v4004 = vpop.xlane.xlu0 %4003
    %v4005 = vsel %vm96, %v3757, 0.0
    %4006 = vadd.xlane.f32.xlu0 %v4005
    %v4007 = vpop.xlane.xlu0 %4006
    %v4008 = vsel %vm96, %v3759, 0.0
    %4009 = vadd.xlane.f32.xlu0 %v4008
    %v4010 = vpop.xlane.xlu0 %4009
    %v4011 = vsel %vm96, %v3761, 0.0
    %4012 = vadd.xlane.f32.xlu0 %v4011
    %v4013 = vpop.xlane.xlu0 %4012
    %v4014 = vsel %vm96, %v3763, 0.0
    %4015 = vadd.xlane.f32.xlu0 %v4014
    %v4016 = vpop.xlane.xlu0 %4015
    %v4017 = vsel %vm96, %v3765, 0.0
    %4018 = vadd.xlane.f32.xlu0 %v4017
    %v4019 = vpop.xlane.xlu0 %4018
    %v4020 = vsel %vm96, %v3767, 0.0
    %4021 = vadd.xlane.f32.xlu0 %v4020
    %v4022 = vpop.xlane.xlu0 %4021
    %v4023 = vsel %vm96, %v3769, 0.0
    %4024 = vadd.xlane.f32.xlu0 %v4023
    %v4025 = vpop.xlane.xlu0 %4024
    %v4026 = vmul.f32 %v3836, 0.125
    %v4027 = vmul.f32 %v3839, 0.125
    %v4028 = vmul.f32 %v3842, 0.125
    %v4029 = vmul.f32 %v3845, 0.125
    %v4030 = vmul.f32 %v3848, 0.125
    %v4031 = vmul.f32 %v3851, 0.125
    %v4032 = vmul.f32 %v3854, 0.125
    %v4033 = vmul.f32 %v3857, 0.125
    %v4034 = vmul.f32 %v3860, 0.125
    %v4035 = vmul.f32 %v3863, 0.125
    %v4036 = vmul.f32 %v3866, 0.125
    %v4037 = vmul.f32 %v3869, 0.125
    %v4038 = vmul.f32 %v3872, 0.125
    %v4039 = vmul.f32 %v3875, 0.125
    %v4040 = vmul.f32 %v3878, 0.125
    %v4041 = vmul.f32 %v3881, 0.125
    %v4042 = vmul.f32 %v3884, 0.125
    %v4043 = vmul.f32 %v3887, 0.125
    %v4044 = vmul.f32 %v3890, 0.125
    %v4045 = vmul.f32 %v3893, 0.125
    %v4046 = vmul.f32 %v3896, 0.125
    %v4047 = vmul.f32 %v3899, 0.125
    %v4048 = vmul.f32 %v3902, 0.125
    %v4049 = vmul.f32 %v3905, 0.125
    %v4050 = vmul.f32 %v3908, 0.125
    %v4051 = vmul.f32 %v3911, 0.125
    %v4052 = vmul.f32 %v3914, 0.125
    %v4053 = vmul.f32 %v3917, 0.125
    %v4054 = vmul.f32 %v3920, 0.125
    %v4055 = vmul.f32 %v3923, 0.125
    %v4056 = vmul.f32 %v3926, 0.125
    %v4057 = vmul.f32 %v3929, 0.125
    %v4058 = vmul.f32 %v3932, 0.125
    %v4059 = vmul.f32 %v3935, 0.125
    %v4060 = vmul.f32 %v3938, 0.125
    %v4061 = vmul.f32 %v3941, 0.125
    %v4062 = vmul.f32 %v3944, 0.125
    %v4063 = vmul.f32 %v3947, 0.125
    %v4064 = vmul.f32 %v3950, 0.125
    %v4065 = vmul.f32 %v3953, 0.125
    %v4066 = vmul.f32 %v3956, 0.125
    %v4067 = vmul.f32 %v3959, 0.125
    %v4068 = vmul.f32 %v3962, 0.125
    %v4069 = vmul.f32 %v3965, 0.125
    %v4070 = vmul.f32 %v3968, 0.125
    %v4071 = vmul.f32 %v3971, 0.125
    %v4072 = vmul.f32 %v3974, 0.125
    %v4073 = vmul.f32 %v3977, 0.125
    %v4074 = vmul.f32 %v3980, 0.125
    %v4075 = vmul.f32 %v3983, 0.125
    %v4076 = vmul.f32 %v3986, 0.125
    %v4077 = vmul.f32 %v3989, 0.125
    %v4078 = vmul.f32 %v3992, 0.125
    %v4079 = vmul.f32 %v3995, 0.125
    %v4080 = vmul.f32 %v3998, 0.125
    %v4081 = vmul.f32 %v4001, 0.125
    %v4082 = vmul.f32 %v4004, 0.125
    %v4083 = vmul.f32 %v4007, 0.125
    %v4084 = vmul.f32 %v4010, 0.125
    %v4085 = vmul.f32 %v4013, 0.125
    %v4086 = vmul.f32 %v4016, 0.125
    %v4087 = vmul.f32 %v4019, 0.125
    %v4088 = vmul.f32 %v4022, 0.125
    %v4089 = vmul.f32 %v4025, 0.125
    %v4090 = vadd.f32 %v3165, %v4026
    %v4091 = vadd.f32 %v3166, %v4027
    %v4092 = vadd.f32 %v3167, %v4028
    %v4093 = vadd.f32 %v3168, %v4029
    %v4094 = vadd.f32 %v3169, %v4030
    %v4095 = vadd.f32 %v3170, %v4031
    %v4096 = vadd.f32 %v3171, %v4032
    %v4097 = vadd.f32 %v3172, %v4033
    %v4098 = vadd.f32 %v3173, %v4034
    %v4099 = vadd.f32 %v3174, %v4035
    %v4100 = vadd.f32 %v3175, %v4036
    %v4101 = vadd.f32 %v3176, %v4037
    %v4102 = vadd.f32 %v3177, %v4038
    %v4103 = vadd.f32 %v3178, %v4039
    %v4104 = vadd.f32 %v3179, %v4040
    %v4105 = vadd.f32 %v3180, %v4041
    %v4106 = vadd.f32 %v3181, %v4042
    %v4107 = vadd.f32 %v3182, %v4043
    %v4108 = vadd.f32 %v3183, %v4044
    %v4109 = vadd.f32 %v3184, %v4045
    %v4110 = vadd.f32 %v3185, %v4046
    %v4111 = vadd.f32 %v3186, %v4047
    %v4112 = vadd.f32 %v3187, %v4048
    %v4113 = vadd.f32 %v3188, %v4049
    %v4114 = vadd.f32 %v3189, %v4050
    %v4115 = vadd.f32 %v3190, %v4051
    %v4116 = vadd.f32 %v3191, %v4052
    %v4117 = vadd.f32 %v3192, %v4053
    %v4118 = vadd.f32 %v3193, %v4054
    %v4119 = vadd.f32 %v3194, %v4055
    %v4120 = vadd.f32 %v3195, %v4056
    %v4121 = vadd.f32 %v3196, %v4057
    %v4122 = vadd.f32 %v3197, %v4058
    %v4123 = vadd.f32 %v3198, %v4059
    %v4124 = vadd.f32 %v3199, %v4060
    %v4125 = vadd.f32 %v3200, %v4061
    %v4126 = vadd.f32 %v3201, %v4062
    %v4127 = vadd.f32 %v3202, %v4063
    %v4128 = vadd.f32 %v3203, %v4064
    %v4129 = vadd.f32 %v3204, %v4065
    %v4130 = vadd.f32 %v3205, %v4066
    %v4131 = vadd.f32 %v3206, %v4067
    %v4132 = vadd.f32 %v3207, %v4068
    %v4133 = vadd.f32 %v3208, %v4069
    %v4134 = vadd.f32 %v3209, %v4070
    %v4135 = vadd.f32 %v3210, %v4071
    %v4136 = vadd.f32 %v3211, %v4072
    %v4137 = vadd.f32 %v3212, %v4073
    %v4138 = vadd.f32 %v3213, %v4074
    %v4139 = vadd.f32 %v3214, %v4075
    %v4140 = vadd.f32 %v3215, %v4076
    %v4141 = vadd.f32 %v3216, %v4077
    %v4142 = vadd.f32 %v3217, %v4078
    %v4143 = vadd.f32 %v3218, %v4079
    %v4144 = vadd.f32 %v3219, %v4080
    %v4145 = vadd.f32 %v3220, %v4081
    %v4146 = vadd.f32 %v3221, %v4082
    %v4147 = vadd.f32 %v3222, %v4083
    %v4148 = vadd.f32 %v3223, %v4084
    %v4149 = vadd.f32 %v3224, %v4085
    %v4150 = vadd.f32 %v3225, %v4086
    %v4151 = vadd.f32 %v3226, %v4087
    %v4152 = vadd.f32 %v3227, %v4088
    %v4153 = vadd.f32 %v3228, %v4089
    %v4154 = vld [vmem:[%s1] sm:$0xff]
    %v4155 = vld [vmem:[%s1 + $0x8] sm:$0xff]
    %v4156 = vld [vmem:[%s1 + $0x10] sm:$0xff]
    %v4157 = vld [vmem:[%s1 + $0x18] sm:$0xff]
    %v4158 = vld [vmem:[%s1 + $0x20] sm:$0xff]
    %v4159 = vld [vmem:[%s1 + $0x28] sm:$0xff]
    %v4160 = vld [vmem:[%s1 + $0x30] sm:$0xff]
    %v4161 = vld [vmem:[%s1 + $0x38] sm:$0xff]
    %v4162 = vld [vmem:[%s1 + $0x40] sm:$0xff]
    %v4163 = vld [vmem:[%s1 + $0x48] sm:$0xff]
    %v4164 = vld [vmem:[%s1 + $0x50] sm:$0xff]
    %v4165 = vld [vmem:[%s1 + $0x58] sm:$0xff]
    %v4166 = vld [vmem:[%s1 + $0x60] sm:$0xff]
    %v4167 = vld [vmem:[%s1 + $0x68] sm:$0xff]
    %v4168 = vld [vmem:[%s1 + $0x70] sm:$0xff]
    %v4169 = vld [vmem:[%s1 + $0x78] sm:$0xff]
    %v4170 = vld [vmem:[%s1 + $0x80] sm:$0xff]
    %v4171 = vld [vmem:[%s1 + $0x88] sm:$0xff]
    %v4172 = vld [vmem:[%s1 + $0x90] sm:$0xff]
    %v4173 = vld [vmem:[%s1 + $0x98] sm:$0xff]
    %v4174 = vld [vmem:[%s1 + $0xa0] sm:$0xff]
    %v4175 = vld [vmem:[%s1 + $0xa8] sm:$0xff]
    %v4176 = vld [vmem:[%s1 + $0xb0] sm:$0xff]
    %v4177 = vld [vmem:[%s1 + $0xb8] sm:$0xff]
    %v4178 = vld [vmem:[%s1 + $0xc0] sm:$0xff]
    %v4179 = vld [vmem:[%s1 + $0xc8] sm:$0xff]
    %v4180 = vld [vmem:[%s1 + $0xd0] sm:$0xff]
    %v4181 = vld [vmem:[%s1 + $0xd8] sm:$0xff]
    %v4182 = vld [vmem:[%s1 + $0xe0] sm:$0xff]
    %v4183 = vld [vmem:[%s1 + $0xe8] sm:$0xff]
    %v4184 = vld [vmem:[%s1 + $0xf0] sm:$0xff]
    %v4185 = vld [vmem:[%s1 + $0xf8] sm:$0xff]
    %v4250 = vperm.slane %v4026, %v517
    %v4251 = vperm.slane %v4027, %v519
    %v4252 = vsel %vm521, %v4251, %v4250
    %v4253 = vperm.slane %v4028, %v523
    %v4254 = vsel %vm525, %v4253, %v4252
    %v4255 = vperm.slane %v4029, %v527
    %v4256 = vsel %vm529, %v4255, %v4254
    %v4257 = vperm.slane %v4030, %v531
    %v4258 = vsel %vm533, %v4257, %v4256
    %v4259 = vperm.slane %v4031, %v535
    %v4260 = vsel %vm537, %v4259, %v4258
    %v4261 = vperm.slane %v4032, %v539
    %v4262 = vsel %vm541, %v4261, %v4260
    %v4263 = vperm.slane %v4033, %v543
    %v4264 = vsel %vm545, %v4263, %v4262
    %v4265 = vperm.slane %v4034, %v547
    %v4266 = vsel %vm549, %v4265, %v4264
    %v4267 = vperm.slane %v4035, %v551
    %v4268 = vsel %vm553, %v4267, %v4266
    %v4269 = vperm.slane %v4036, %v555
    %v4270 = vsel %vm557, %v4269, %v4268
    %v4271 = vperm.slane %v4037, %v559
    %v4272 = vsel %vm561, %v4271, %v4270
    %v4273 = vperm.slane %v4038, %v563
    %v4274 = vsel %vm565, %v4273, %v4272
    %v4275 = vperm.slane %v4039, %v567
    %v4276 = vsel %vm569, %v4275, %v4274
    %v4277 = vperm.slane %v4040, %v571
    %v4278 = vsel %vm573, %v4277, %v4276
    %v4279 = vperm.slane %v4041, %v575
    %v4280 = vsel %vm577, %v4279, %v4278
    %v4281 = vperm.slane %v4042, %v517
    %v4282 = vperm.slane %v4043, %v519
    %v4283 = vsel %vm521, %v4282, %v4281
    %v4284 = vperm.slane %v4044, %v523
    %v4285 = vsel %vm525, %v4284, %v4283
    %v4286 = vperm.slane %v4045, %v527
    %v4287 = vsel %vm529, %v4286, %v4285
    %v4288 = vperm.slane %v4046, %v531
    %v4289 = vsel %vm533, %v4288, %v4287
    %v4290 = vperm.slane %v4047, %v535
    %v4291 = vsel %vm537, %v4290, %v4289
    %v4292 = vperm.slane %v4048, %v539
    %v4293 = vsel %vm541, %v4292, %v4291
    %v4294 = vperm.slane %v4049, %v543
    %v4295 = vsel %vm545, %v4294, %v4293
    %v4296 = vperm.slane %v4050, %v547
    %v4297 = vsel %vm549, %v4296, %v4295
    %v4298 = vperm.slane %v4051, %v551
    %v4299 = vsel %vm553, %v4298, %v4297
    %v4300 = vperm.slane %v4052, %v555
    %v4301 = vsel %vm557, %v4300, %v4299
    %v4302 = vperm.slane %v4053, %v559
    %v4303 = vsel %vm561, %v4302, %v4301
    %v4304 = vperm.slane %v4054, %v563
    %v4305 = vsel %vm565, %v4304, %v4303
    %v4306 = vperm.slane %v4055, %v567
    %v4307 = vsel %vm569, %v4306, %v4305
    %v4308 = vperm.slane %v4056, %v571
    %v4309 = vsel %vm573, %v4308, %v4307
    %v4310 = vperm.slane %v4057, %v575
    %v4311 = vsel %vm577, %v4310, %v4309
    %v4312 = vperm.slane %v4058, %v517
    %v4313 = vperm.slane %v4059, %v519
    %v4314 = vsel %vm521, %v4313, %v4312
    %v4315 = vperm.slane %v4060, %v523
    %v4316 = vsel %vm525, %v4315, %v4314
    %v4317 = vperm.slane %v4061, %v527
    %v4318 = vsel %vm529, %v4317, %v4316
    %v4319 = vperm.slane %v4062, %v531
    %v4320 = vsel %vm533, %v4319, %v4318
    %v4321 = vperm.slane %v4063, %v535
    %v4322 = vsel %vm537, %v4321, %v4320
    %v4323 = vperm.slane %v4064, %v539
    %v4324 = vsel %vm541, %v4323, %v4322
    %v4325 = vperm.slane %v4065, %v543
    %v4326 = vsel %vm545, %v4325, %v4324
    %v4327 = vperm.slane %v4066, %v547
    %v4328 = vsel %vm549, %v4327, %v4326
    %v4329 = vperm.slane %v4067, %v551
    %v4330 = vsel %vm553, %v4329, %v4328
    %v4331 = vperm.slane %v4068, %v555
    %v4332 = vsel %vm557, %v4331, %v4330
    %v4333 = vperm.slane %v4069, %v559
    %v4334 = vsel %vm561, %v4333, %v4332
    %v4335 = vperm.slane %v4070, %v563
    %v4336 = vsel %vm565, %v4335, %v4334
    %v4337 = vperm.slane %v4071, %v567
    %v4338 = vsel %vm569, %v4337, %v4336
    %v4339 = vperm.slane %v4072, %v571
    %v4340 = vsel %vm573, %v4339, %v4338
    %v4341 = vperm.slane %v4073, %v575
    %v4342 = vsel %vm577, %v4341, %v4340
    %v4343 = vperm.slane %v4074, %v517
    %v4344 = vperm.slane %v4075, %v519
    %v4345 = vsel %vm521, %v4344, %v4343
    %v4346 = vperm.slane %v4076, %v523
    %v4347 = vsel %vm525, %v4346, %v4345
    %v4348 = vperm.slane %v4077, %v527
    %v4349 = vsel %vm529, %v4348, %v4347
    %v4350 = vperm.slane %v4078, %v531
    %v4351 = vsel %vm533, %v4350, %v4349
    %v4352 = vperm.slane %v4079, %v535
    %v4353 = vsel %vm537, %v4352, %v4351
    %v4354 = vperm.slane %v4080, %v539
    %v4355 = vsel %vm541, %v4354, %v4353
    %v4356 = vperm.slane %v4081, %v543
    %v4357 = vsel %vm545, %v4356, %v4355
    %v4358 = vperm.slane %v4082, %v547
    %v4359 = vsel %vm549, %v4358, %v4357
    %v4360 = vperm.slane %v4083, %v551
    %v4361 = vsel %vm553, %v4360, %v4359
    %v4362 = vperm.slane %v4084, %v555
    %v4363 = vsel %vm557, %v4362, %v4361
    %v4364 = vperm.slane %v4085, %v559
    %v4365 = vsel %vm561, %v4364, %v4363
    %v4366 = vperm.slane %v4086, %v563
    %v4367 = vsel %vm565, %v4366, %v4365
    %v4368 = vperm.slane %v4087, %v567
    %v4369 = vsel %vm569, %v4368, %v4367
    %v4370 = vperm.slane %v4088, %v571
    %v4371 = vsel %vm573, %v4370, %v4369
    %v4372 = vperm.slane %v4089, %v575
    %v4373 = vsel %vm577, %v4372, %v4371
    %v4374 = vsel %vm672, %v4342, %v4280
    %v4375 = vsel %vm672, %v4373, %v4311
    %4378 = vmatpush.msra.mxu0 %v4169
    %4379 = vmatpush.msra.mxu0 %v4168
    %4380 = vmatpush.msra.mxu0 %v4167
    %4381 = vmatpush.msra.mxu0 %v4166
    %4382 = vmatpush.msra.mxu0 %v4165
    %4383 = vmatpush.msra.mxu0 %v4164
    %4384 = vmatpush.msra.mxu0 %v4163
    %4385 = vmatpush.msra.mxu0 %v4162
    %4386 = vmatpush.msra.mxu0 %v4161
    %4387 = vmatpush.msra.mxu0 %v4160
    %4388 = vmatpush.msra.mxu0 %v4159
    %4389 = vmatpush.msra.mxu0 %v4158
    %4390 = vmatpush.msra.mxu0 %v4157
    %4391 = vmatpush.msra.mxu0 %v4156
    %4392 = vmatpush.msra.mxu0 %v4155
    %4393 = vmatpush.msra.mxu0 %v4154
    %4394 = vmatmul.f32.gmra.mxu0 %v4374
    %v4395 = vpop.f32.mrf.mxu0
    %v4396 = vadd.f32 %v450, %v4395
    %4397 = vdwg.mxu0
    %4398 = vmatpush.msra.mxu0 %v4185
    %4399 = vmatpush.msra.mxu0 %v4184
    %4400 = vmatpush.msra.mxu0 %v4183
    %4401 = vmatpush.msra.mxu0 %v4182
    %4402 = vmatpush.msra.mxu0 %v4181
    %4403 = vmatpush.msra.mxu0 %v4180
    %4404 = vmatpush.msra.mxu0 %v4179
    %4405 = vmatpush.msra.mxu0 %v4178
    %4406 = vmatpush.msra.mxu0 %v4177
    %4407 = vmatpush.msra.mxu0 %v4176
    %4408 = vmatpush.msra.mxu0 %v4175
    %4409 = vmatpush.msra.mxu0 %v4174
    %4410 = vmatpush.msra.mxu0 %v4173
    %4411 = vmatpush.msra.mxu0 %v4172
    %4412 = vmatpush.msra.mxu0 %v4171
    %4413 = vmatpush.msra.mxu0 %v4170
    %4414 = vmatmul.f32.gmra.mxu0 %v4375
    %v4415 = vpop.f32.mrf.mxu0
    %v4416 = vadd.f32 %v4396, %v4415
    %4417 = vdwg.mxu0
    %v4418 = vmul.f32 %v4416, %v4416
    %v4419 = vsel %vm718, %v4418, 0.0
    %4420 = vadd.xlane.f32.xlu0 %v4419
    %v4421 = vpop.xlane.xlu0 %4420
    %v4422 = vadd.f32 %v4421, 1e-12
    %v4423 = vrsqrt.pop %v4422
    %v4424 = vmul.f32 %v4423, %v4422
    %v4425 = vmul.f32 %v4424, %v4423
    %v4426 = vmul.f32 0.5, %v4425
    %v4427 = vsub.f32 1.5, %v4426
    %v4428 = vmul.f32 %v4423, %v4427
    %vm4429 = vweird.f32 %v4422
    %vm4430 = vweird.f32 %v4423
    %vm4431 = vmor %vm4429, %vm4430
    %v4432 = vsel %vm4431, %v4423, %v4428
    %v4433 = vmul.f32 %v4416, %v4432
    %v4435 = vrot.slane %v4433, 1
    %4437 = vst [vmem:[#allocation4 + $0x4] sm:$0x1] %v4433
    %4438 = vst [vmem:[#allocation4 + $0xc] sm:$0x1] %v4435
    %v4439 = vld [vmem:[%s0] sm:$0xff]
    %v4440 = vld [vmem:[%s0 + $0x8] sm:$0xff]
    %v4441 = vld [vmem:[%s0 + $0x10] sm:$0xff]
    %v4442 = vld [vmem:[%s0 + $0x18] sm:$0xff]
    %v4443 = vld [vmem:[%s0 + $0x20] sm:$0xff]
    %v4444 = vld [vmem:[%s0 + $0x28] sm:$0xff]
    %v4445 = vld [vmem:[%s0 + $0x30] sm:$0xff]
    %v4446 = vld [vmem:[%s0 + $0x38] sm:$0xff]
    %v4447 = vld [vmem:[%s0 + $0x40] sm:$0xff]
    %v4448 = vld [vmem:[%s0 + $0x48] sm:$0xff]
    %v4449 = vld [vmem:[%s0 + $0x50] sm:$0xff]
    %v4450 = vld [vmem:[%s0 + $0x58] sm:$0xff]
    %v4451 = vld [vmem:[%s0 + $0x60] sm:$0xff]
    %v4452 = vld [vmem:[%s0 + $0x68] sm:$0xff]
    %v4453 = vld [vmem:[%s0 + $0x70] sm:$0xff]
    %v4454 = vld [vmem:[%s0 + $0x78] sm:$0xff]
    %v4455 = vld [vmem:[%s0 + $0x80] sm:$0xff]
    %v4456 = vld [vmem:[%s0 + $0x88] sm:$0xff]
    %v4457 = vld [vmem:[%s0 + $0x90] sm:$0xff]
    %v4458 = vld [vmem:[%s0 + $0x98] sm:$0xff]
    %v4459 = vld [vmem:[%s0 + $0xa0] sm:$0xff]
    %v4460 = vld [vmem:[%s0 + $0xa8] sm:$0xff]
    %v4461 = vld [vmem:[%s0 + $0xb0] sm:$0xff]
    %v4462 = vld [vmem:[%s0 + $0xb8] sm:$0xff]
    %v4463 = vld [vmem:[%s0 + $0xc0] sm:$0xff]
    %v4464 = vld [vmem:[%s0 + $0xc8] sm:$0xff]
    %v4465 = vld [vmem:[%s0 + $0xd0] sm:$0xff]
    %v4466 = vld [vmem:[%s0 + $0xd8] sm:$0xff]
    %v4467 = vld [vmem:[%s0 + $0xe0] sm:$0xff]
    %v4468 = vld [vmem:[%s0 + $0xe8] sm:$0xff]
    %v4469 = vld [vmem:[%s0 + $0xf0] sm:$0xff]
    %v4470 = vld [vmem:[%s0 + $0xf8] sm:$0xff]
    %v4471 = vld [vmem:[%s0 + $0x100] sm:$0xff]
    %v4472 = vld [vmem:[%s0 + $0x108] sm:$0xff]
    %v4473 = vld [vmem:[%s0 + $0x110] sm:$0xff]
    %v4474 = vld [vmem:[%s0 + $0x118] sm:$0xff]
    %v4475 = vld [vmem:[%s0 + $0x120] sm:$0xff]
    %v4476 = vld [vmem:[%s0 + $0x128] sm:$0xff]
    %v4477 = vld [vmem:[%s0 + $0x130] sm:$0xff]
    %v4478 = vld [vmem:[%s0 + $0x138] sm:$0xff]
    %v4479 = vld [vmem:[%s0 + $0x140] sm:$0xff]
    %v4480 = vld [vmem:[%s0 + $0x148] sm:$0xff]
    %v4481 = vld [vmem:[%s0 + $0x150] sm:$0xff]
    %v4482 = vld [vmem:[%s0 + $0x158] sm:$0xff]
    %v4483 = vld [vmem:[%s0 + $0x160] sm:$0xff]
    %v4484 = vld [vmem:[%s0 + $0x168] sm:$0xff]
    %v4485 = vld [vmem:[%s0 + $0x170] sm:$0xff]
    %v4486 = vld [vmem:[%s0 + $0x178] sm:$0xff]
    %v4487 = vld [vmem:[%s0 + $0x180] sm:$0xff]
    %v4488 = vld [vmem:[%s0 + $0x188] sm:$0xff]
    %v4489 = vld [vmem:[%s0 + $0x190] sm:$0xff]
    %v4490 = vld [vmem:[%s0 + $0x198] sm:$0xff]
    %v4491 = vld [vmem:[%s0 + $0x1a0] sm:$0xff]
    %v4492 = vld [vmem:[%s0 + $0x1a8] sm:$0xff]
    %v4493 = vld [vmem:[%s0 + $0x1b0] sm:$0xff]
    %v4494 = vld [vmem:[%s0 + $0x1b8] sm:$0xff]
    %v4495 = vld [vmem:[%s0 + $0x1c0] sm:$0xff]
    %v4496 = vld [vmem:[%s0 + $0x1c8] sm:$0xff]
    %v4497 = vld [vmem:[%s0 + $0x1d0] sm:$0xff]
    %v4498 = vld [vmem:[%s0 + $0x1d8] sm:$0xff]
    %v4499 = vld [vmem:[%s0 + $0x1e0] sm:$0xff]
    %v4500 = vld [vmem:[%s0 + $0x1e8] sm:$0xff]
    %v4501 = vld [vmem:[%s0 + $0x1f0] sm:$0xff]
    %v4502 = vld [vmem:[%s0 + $0x1f8] sm:$0xff]
    %4567 = vrot.lane.b32.xlu0 %v4439, 88
    %v4568 = vpop.permute.xlu0 %4567
    %4569 = vrot.lane.b32.xlu0 %v4440, 88
    %v4570 = vpop.permute.xlu0 %4569
    %4571 = vrot.lane.b32.xlu0 %v4441, 88
    %v4572 = vpop.permute.xlu0 %4571
    %4573 = vrot.lane.b32.xlu0 %v4442, 88
    %v4574 = vpop.permute.xlu0 %4573
    %4575 = vrot.lane.b32.xlu0 %v4443, 88
    %v4576 = vpop.permute.xlu0 %4575
    %4577 = vrot.lane.b32.xlu0 %v4444, 88
    %v4578 = vpop.permute.xlu0 %4577
    %4579 = vrot.lane.b32.xlu0 %v4445, 88
    %v4580 = vpop.permute.xlu0 %4579
    %4581 = vrot.lane.b32.xlu0 %v4446, 88
    %v4582 = vpop.permute.xlu0 %4581
    %4583 = vrot.lane.b32.xlu0 %v4447, 88
    %v4584 = vpop.permute.xlu0 %4583
    %4585 = vrot.lane.b32.xlu0 %v4448, 88
    %v4586 = vpop.permute.xlu0 %4585
    %4587 = vrot.lane.b32.xlu0 %v4449, 88
    %v4588 = vpop.permute.xlu0 %4587
    %4589 = vrot.lane.b32.xlu0 %v4450, 88
    %v4590 = vpop.permute.xlu0 %4589
    %4591 = vrot.lane.b32.xlu0 %v4451, 88
    %v4592 = vpop.permute.xlu0 %4591
    %4593 = vrot.lane.b32.xlu0 %v4452, 88
    %v4594 = vpop.permute.xlu0 %4593
    %4595 = vrot.lane.b32.xlu0 %v4453, 88
    %v4596 = vpop.permute.xlu0 %4595
    %4597 = vrot.lane.b32.xlu0 %v4454, 88
    %v4598 = vpop.permute.xlu0 %4597
    %4599 = vrot.lane.b32.xlu0 %v4455, 88
    %v4600 = vpop.permute.xlu0 %4599
    %4601 = vrot.lane.b32.xlu0 %v4456, 88
    %v4602 = vpop.permute.xlu0 %4601
    %4603 = vrot.lane.b32.xlu0 %v4457, 88
    %v4604 = vpop.permute.xlu0 %4603
    %4605 = vrot.lane.b32.xlu0 %v4458, 88
    %v4606 = vpop.permute.xlu0 %4605
    %4607 = vrot.lane.b32.xlu0 %v4459, 88
    %v4608 = vpop.permute.xlu0 %4607
    %4609 = vrot.lane.b32.xlu0 %v4460, 88
    %v4610 = vpop.permute.xlu0 %4609
    %4611 = vrot.lane.b32.xlu0 %v4461, 88
    %v4612 = vpop.permute.xlu0 %4611
    %4613 = vrot.lane.b32.xlu0 %v4462, 88
    %v4614 = vpop.permute.xlu0 %4613
    %4615 = vrot.lane.b32.xlu0 %v4463, 88
    %v4616 = vpop.permute.xlu0 %4615
    %4617 = vrot.lane.b32.xlu0 %v4464, 88
    %v4618 = vpop.permute.xlu0 %4617
    %4619 = vrot.lane.b32.xlu0 %v4465, 88
    %v4620 = vpop.permute.xlu0 %4619
    %4621 = vrot.lane.b32.xlu0 %v4466, 88
    %v4622 = vpop.permute.xlu0 %4621
    %4623 = vrot.lane.b32.xlu0 %v4467, 88
    %v4624 = vpop.permute.xlu0 %4623
    %4625 = vrot.lane.b32.xlu0 %v4468, 88
    %v4626 = vpop.permute.xlu0 %4625
    %4627 = vrot.lane.b32.xlu0 %v4469, 88
    %v4628 = vpop.permute.xlu0 %4627
    %4629 = vrot.lane.b32.xlu0 %v4470, 88
    %v4630 = vpop.permute.xlu0 %4629
    %4631 = vrot.lane.b32.xlu0 %v4471, 88
    %v4632 = vpop.permute.xlu0 %4631
    %4633 = vrot.lane.b32.xlu0 %v4472, 88
    %v4634 = vpop.permute.xlu0 %4633
    %4635 = vrot.lane.b32.xlu0 %v4473, 88
    %v4636 = vpop.permute.xlu0 %4635
    %4637 = vrot.lane.b32.xlu0 %v4474, 88
    %v4638 = vpop.permute.xlu0 %4637
    %4639 = vrot.lane.b32.xlu0 %v4475, 88
    %v4640 = vpop.permute.xlu0 %4639
    %4641 = vrot.lane.b32.xlu0 %v4476, 88
    %v4642 = vpop.permute.xlu0 %4641
    %4643 = vrot.lane.b32.xlu0 %v4477, 88
    %v4644 = vpop.permute.xlu0 %4643
    %4645 = vrot.lane.b32.xlu0 %v4478, 88
    %v4646 = vpop.permute.xlu0 %4645
    %4647 = vrot.lane.b32.xlu0 %v4479, 88
    %v4648 = vpop.permute.xlu0 %4647
    %4649 = vrot.lane.b32.xlu0 %v4480, 88
    %v4650 = vpop.permute.xlu0 %4649
    %4651 = vrot.lane.b32.xlu0 %v4481, 88
    %v4652 = vpop.permute.xlu0 %4651
    %4653 = vrot.lane.b32.xlu0 %v4482, 88
    %v4654 = vpop.permute.xlu0 %4653
    %4655 = vrot.lane.b32.xlu0 %v4483, 88
    %v4656 = vpop.permute.xlu0 %4655
    %4657 = vrot.lane.b32.xlu0 %v4484, 88
    %v4658 = vpop.permute.xlu0 %4657
    %4659 = vrot.lane.b32.xlu0 %v4485, 88
    %v4660 = vpop.permute.xlu0 %4659
    %4661 = vrot.lane.b32.xlu0 %v4486, 88
    %v4662 = vpop.permute.xlu0 %4661
    %4663 = vrot.lane.b32.xlu0 %v4487, 88
    %v4664 = vpop.permute.xlu0 %4663
    %4665 = vrot.lane.b32.xlu0 %v4488, 88
    %v4666 = vpop.permute.xlu0 %4665
    %4667 = vrot.lane.b32.xlu0 %v4489, 88
    %v4668 = vpop.permute.xlu0 %4667
    %4669 = vrot.lane.b32.xlu0 %v4490, 88
    %v4670 = vpop.permute.xlu0 %4669
    %4671 = vrot.lane.b32.xlu0 %v4491, 88
    %v4672 = vpop.permute.xlu0 %4671
    %4673 = vrot.lane.b32.xlu0 %v4492, 88
    %v4674 = vpop.permute.xlu0 %4673
    %4675 = vrot.lane.b32.xlu0 %v4493, 88
    %v4676 = vpop.permute.xlu0 %4675
    %4677 = vrot.lane.b32.xlu0 %v4494, 88
    %v4678 = vpop.permute.xlu0 %4677
    %4679 = vrot.lane.b32.xlu0 %v4495, 88
    %v4680 = vpop.permute.xlu0 %4679
    %4681 = vrot.lane.b32.xlu0 %v4496, 88
    %v4682 = vpop.permute.xlu0 %4681
    %4683 = vrot.lane.b32.xlu0 %v4497, 88
    %v4684 = vpop.permute.xlu0 %4683
    %4685 = vrot.lane.b32.xlu0 %v4498, 88
    %v4686 = vpop.permute.xlu0 %4685
    %4687 = vrot.lane.b32.xlu0 %v4499, 88
    %v4688 = vpop.permute.xlu0 %4687
    %4689 = vrot.lane.b32.xlu0 %v4500, 88
    %v4690 = vpop.permute.xlu0 %4689
    %4691 = vrot.lane.b32.xlu0 %v4501, 88
    %v4692 = vpop.permute.xlu0 %4691
    %4693 = vrot.lane.b32.xlu0 %v4502, 88
    %v4694 = vpop.permute.xlu0 %4693
    %v4759 = vsel %vm96, %v4568, 0.0
    %4760 = vadd.xlane.f32.xlu0 %v4759
    %v4761 = vpop.xlane.xlu0 %4760
    %v4762 = vsel %vm96, %v4570, 0.0
    %4763 = vadd.xlane.f32.xlu0 %v4762
    %v4764 = vpop.xlane.xlu0 %4763
    %v4765 = vsel %vm96, %v4572, 0.0
    %4766 = vadd.xlane.f32.xlu0 %v4765
    %v4767 = vpop.xlane.xlu0 %4766
    %v4768 = vsel %vm96, %v4574, 0.0
    %4769 = vadd.xlane.f32.xlu0 %v4768
    %v4770 = vpop.xlane.xlu0 %4769
    %v4771 = vsel %vm96, %v4576, 0.0
    %4772 = vadd.xlane.f32.xlu0 %v4771
    %v4773 = vpop.xlane.xlu0 %4772
    %v4774 = vsel %vm96, %v4578, 0.0
    %4775 = vadd.xlane.f32.xlu0 %v4774
    %v4776 = vpop.xlane.xlu0 %4775
    %v4777 = vsel %vm96, %v4580, 0.0
    %4778 = vadd.xlane.f32.xlu0 %v4777
    %v4779 = vpop.xlane.xlu0 %4778
    %v4780 = vsel %vm96, %v4582, 0.0
    %4781 = vadd.xlane.f32.xlu0 %v4780
    %v4782 = vpop.xlane.xlu0 %4781
    %v4783 = vsel %vm96, %v4584, 0.0
    %4784 = vadd.xlane.f32.xlu0 %v4783
    %v4785 = vpop.xlane.xlu0 %4784
    %v4786 = vsel %vm96, %v4586, 0.0
    %4787 = vadd.xlane.f32.xlu0 %v4786
    %v4788 = vpop.xlane.xlu0 %4787
    %v4789 = vsel %vm96, %v4588, 0.0
    %4790 = vadd.xlane.f32.xlu0 %v4789
    %v4791 = vpop.xlane.xlu0 %4790
    %v4792 = vsel %vm96, %v4590, 0.0
    %4793 = vadd.xlane.f32.xlu0 %v4792
    %v4794 = vpop.xlane.xlu0 %4793
    %v4795 = vsel %vm96, %v4592, 0.0
    %4796 = vadd.xlane.f32.xlu0 %v4795
    %v4797 = vpop.xlane.xlu0 %4796
    %v4798 = vsel %vm96, %v4594, 0.0
    %4799 = vadd.xlane.f32.xlu0 %v4798
    %v4800 = vpop.xlane.xlu0 %4799
    %v4801 = vsel %vm96, %v4596, 0.0
    %4802 = vadd.xlane.f32.xlu0 %v4801
    %v4803 = vpop.xlane.xlu0 %4802
    %v4804 = vsel %vm96, %v4598, 0.0
    %4805 = vadd.xlane.f32.xlu0 %v4804
    %v4806 = vpop.xlane.xlu0 %4805
    %v4807 = vsel %vm96, %v4600, 0.0
    %4808 = vadd.xlane.f32.xlu0 %v4807
    %v4809 = vpop.xlane.xlu0 %4808
    %v4810 = vsel %vm96, %v4602, 0.0
    %4811 = vadd.xlane.f32.xlu0 %v4810
    %v4812 = vpop.xlane.xlu0 %4811
    %v4813 = vsel %vm96, %v4604, 0.0
    %4814 = vadd.xlane.f32.xlu0 %v4813
    %v4815 = vpop.xlane.xlu0 %4814
    %v4816 = vsel %vm96, %v4606, 0.0
    %4817 = vadd.xlane.f32.xlu0 %v4816
    %v4818 = vpop.xlane.xlu0 %4817
    %v4819 = vsel %vm96, %v4608, 0.0
    %4820 = vadd.xlane.f32.xlu0 %v4819
    %v4821 = vpop.xlane.xlu0 %4820
    %v4822 = vsel %vm96, %v4610, 0.0
    %4823 = vadd.xlane.f32.xlu0 %v4822
    %v4824 = vpop.xlane.xlu0 %4823
    %v4825 = vsel %vm96, %v4612, 0.0
    %4826 = vadd.xlane.f32.xlu0 %v4825
    %v4827 = vpop.xlane.xlu0 %4826
    %v4828 = vsel %vm96, %v4614, 0.0
    %4829 = vadd.xlane.f32.xlu0 %v4828
    %v4830 = vpop.xlane.xlu0 %4829
    %v4831 = vsel %vm96, %v4616, 0.0
    %4832 = vadd.xlane.f32.xlu0 %v4831
    %v4833 = vpop.xlane.xlu0 %4832
    %v4834 = vsel %vm96, %v4618, 0.0
    %4835 = vadd.xlane.f32.xlu0 %v4834
    %v4836 = vpop.xlane.xlu0 %4835
    %v4837 = vsel %vm96, %v4620, 0.0
    %4838 = vadd.xlane.f32.xlu0 %v4837
    %v4839 = vpop.xlane.xlu0 %4838
    %v4840 = vsel %vm96, %v4622, 0.0
    %4841 = vadd.xlane.f32.xlu0 %v4840
    %v4842 = vpop.xlane.xlu0 %4841
    %v4843 = vsel %vm96, %v4624, 0.0
    %4844 = vadd.xlane.f32.xlu0 %v4843
    %v4845 = vpop.xlane.xlu0 %4844
    %v4846 = vsel %vm96, %v4626, 0.0
    %4847 = vadd.xlane.f32.xlu0 %v4846
    %v4848 = vpop.xlane.xlu0 %4847
    %v4849 = vsel %vm96, %v4628, 0.0
    %4850 = vadd.xlane.f32.xlu0 %v4849
    %v4851 = vpop.xlane.xlu0 %4850
    %v4852 = vsel %vm96, %v4630, 0.0
    %4853 = vadd.xlane.f32.xlu0 %v4852
    %v4854 = vpop.xlane.xlu0 %4853
    %v4855 = vsel %vm96, %v4632, 0.0
    %4856 = vadd.xlane.f32.xlu0 %v4855
    %v4857 = vpop.xlane.xlu0 %4856
    %v4858 = vsel %vm96, %v4634, 0.0
    %4859 = vadd.xlane.f32.xlu0 %v4858
    %v4860 = vpop.xlane.xlu0 %4859
    %v4861 = vsel %vm96, %v4636, 0.0
    %4862 = vadd.xlane.f32.xlu0 %v4861
    %v4863 = vpop.xlane.xlu0 %4862
    %v4864 = vsel %vm96, %v4638, 0.0
    %4865 = vadd.xlane.f32.xlu0 %v4864
    %v4866 = vpop.xlane.xlu0 %4865
    %v4867 = vsel %vm96, %v4640, 0.0
    %4868 = vadd.xlane.f32.xlu0 %v4867
    %v4869 = vpop.xlane.xlu0 %4868
    %v4870 = vsel %vm96, %v4642, 0.0
    %4871 = vadd.xlane.f32.xlu0 %v4870
    %v4872 = vpop.xlane.xlu0 %4871
    %v4873 = vsel %vm96, %v4644, 0.0
    %4874 = vadd.xlane.f32.xlu0 %v4873
    %v4875 = vpop.xlane.xlu0 %4874
    %v4876 = vsel %vm96, %v4646, 0.0
    %4877 = vadd.xlane.f32.xlu0 %v4876
    %v4878 = vpop.xlane.xlu0 %4877
    %v4879 = vsel %vm96, %v4648, 0.0
    %4880 = vadd.xlane.f32.xlu0 %v4879
    %v4881 = vpop.xlane.xlu0 %4880
    %v4882 = vsel %vm96, %v4650, 0.0
    %4883 = vadd.xlane.f32.xlu0 %v4882
    %v4884 = vpop.xlane.xlu0 %4883
    %v4885 = vsel %vm96, %v4652, 0.0
    %4886 = vadd.xlane.f32.xlu0 %v4885
    %v4887 = vpop.xlane.xlu0 %4886
    %v4888 = vsel %vm96, %v4654, 0.0
    %4889 = vadd.xlane.f32.xlu0 %v4888
    %v4890 = vpop.xlane.xlu0 %4889
    %v4891 = vsel %vm96, %v4656, 0.0
    %4892 = vadd.xlane.f32.xlu0 %v4891
    %v4893 = vpop.xlane.xlu0 %4892
    %v4894 = vsel %vm96, %v4658, 0.0
    %4895 = vadd.xlane.f32.xlu0 %v4894
    %v4896 = vpop.xlane.xlu0 %4895
    %v4897 = vsel %vm96, %v4660, 0.0
    %4898 = vadd.xlane.f32.xlu0 %v4897
    %v4899 = vpop.xlane.xlu0 %4898
    %v4900 = vsel %vm96, %v4662, 0.0
    %4901 = vadd.xlane.f32.xlu0 %v4900
    %v4902 = vpop.xlane.xlu0 %4901
    %v4903 = vsel %vm96, %v4664, 0.0
    %4904 = vadd.xlane.f32.xlu0 %v4903
    %v4905 = vpop.xlane.xlu0 %4904
    %v4906 = vsel %vm96, %v4666, 0.0
    %4907 = vadd.xlane.f32.xlu0 %v4906
    %v4908 = vpop.xlane.xlu0 %4907
    %v4909 = vsel %vm96, %v4668, 0.0
    %4910 = vadd.xlane.f32.xlu0 %v4909
    %v4911 = vpop.xlane.xlu0 %4910
    %v4912 = vsel %vm96, %v4670, 0.0
    %4913 = vadd.xlane.f32.xlu0 %v4912
    %v4914 = vpop.xlane.xlu0 %4913
    %v4915 = vsel %vm96, %v4672, 0.0
    %4916 = vadd.xlane.f32.xlu0 %v4915
    %v4917 = vpop.xlane.xlu0 %4916
    %v4918 = vsel %vm96, %v4674, 0.0
    %4919 = vadd.xlane.f32.xlu0 %v4918
    %v4920 = vpop.xlane.xlu0 %4919
    %v4921 = vsel %vm96, %v4676, 0.0
    %4922 = vadd.xlane.f32.xlu0 %v4921
    %v4923 = vpop.xlane.xlu0 %4922
    %v4924 = vsel %vm96, %v4678, 0.0
    %4925 = vadd.xlane.f32.xlu0 %v4924
    %v4926 = vpop.xlane.xlu0 %4925
    %v4927 = vsel %vm96, %v4680, 0.0
    %4928 = vadd.xlane.f32.xlu0 %v4927
    %v4929 = vpop.xlane.xlu0 %4928
    %v4930 = vsel %vm96, %v4682, 0.0
    %4931 = vadd.xlane.f32.xlu0 %v4930
    %v4932 = vpop.xlane.xlu0 %4931
    %v4933 = vsel %vm96, %v4684, 0.0
    %4934 = vadd.xlane.f32.xlu0 %v4933
    %v4935 = vpop.xlane.xlu0 %4934
    %v4936 = vsel %vm96, %v4686, 0.0
    %4937 = vadd.xlane.f32.xlu0 %v4936
    %v4938 = vpop.xlane.xlu0 %4937
    %v4939 = vsel %vm96, %v4688, 0.0
    %4940 = vadd.xlane.f32.xlu0 %v4939
    %v4941 = vpop.xlane.xlu0 %4940
    %v4942 = vsel %vm96, %v4690, 0.0
    %4943 = vadd.xlane.f32.xlu0 %v4942
    %v4944 = vpop.xlane.xlu0 %4943
    %v4945 = vsel %vm96, %v4692, 0.0
    %4946 = vadd.xlane.f32.xlu0 %v4945
    %v4947 = vpop.xlane.xlu0 %4946
    %v4948 = vsel %vm96, %v4694, 0.0
    %4949 = vadd.xlane.f32.xlu0 %v4948
    %v4950 = vpop.xlane.xlu0 %4949
    %v4951 = vmul.f32 %v4761, 0.125
    %v4952 = vmul.f32 %v4764, 0.125
    %v4953 = vmul.f32 %v4767, 0.125
    %v4954 = vmul.f32 %v4770, 0.125
    %v4955 = vmul.f32 %v4773, 0.125
    %v4956 = vmul.f32 %v4776, 0.125
    %v4957 = vmul.f32 %v4779, 0.125
    %v4958 = vmul.f32 %v4782, 0.125
    %v4959 = vmul.f32 %v4785, 0.125
    %v4960 = vmul.f32 %v4788, 0.125
    %v4961 = vmul.f32 %v4791, 0.125
    %v4962 = vmul.f32 %v4794, 0.125
    %v4963 = vmul.f32 %v4797, 0.125
    %v4964 = vmul.f32 %v4800, 0.125
    %v4965 = vmul.f32 %v4803, 0.125
    %v4966 = vmul.f32 %v4806, 0.125
    %v4967 = vmul.f32 %v4809, 0.125
    %v4968 = vmul.f32 %v4812, 0.125
    %v4969 = vmul.f32 %v4815, 0.125
    %v4970 = vmul.f32 %v4818, 0.125
    %v4971 = vmul.f32 %v4821, 0.125
    %v4972 = vmul.f32 %v4824, 0.125
    %v4973 = vmul.f32 %v4827, 0.125
    %v4974 = vmul.f32 %v4830, 0.125
    %v4975 = vmul.f32 %v4833, 0.125
    %v4976 = vmul.f32 %v4836, 0.125
    %v4977 = vmul.f32 %v4839, 0.125
    %v4978 = vmul.f32 %v4842, 0.125
    %v4979 = vmul.f32 %v4845, 0.125
    %v4980 = vmul.f32 %v4848, 0.125
    %v4981 = vmul.f32 %v4851, 0.125
    %v4982 = vmul.f32 %v4854, 0.125
    %v4983 = vmul.f32 %v4857, 0.125
    %v4984 = vmul.f32 %v4860, 0.125
    %v4985 = vmul.f32 %v4863, 0.125
    %v4986 = vmul.f32 %v4866, 0.125
    %v4987 = vmul.f32 %v4869, 0.125
    %v4988 = vmul.f32 %v4872, 0.125
    %v4989 = vmul.f32 %v4875, 0.125
    %v4990 = vmul.f32 %v4878, 0.125
    %v4991 = vmul.f32 %v4881, 0.125
    %v4992 = vmul.f32 %v4884, 0.125
    %v4993 = vmul.f32 %v4887, 0.125
    %v4994 = vmul.f32 %v4890, 0.125
    %v4995 = vmul.f32 %v4893, 0.125
    %v4996 = vmul.f32 %v4896, 0.125
    %v4997 = vmul.f32 %v4899, 0.125
    %v4998 = vmul.f32 %v4902, 0.125
    %v4999 = vmul.f32 %v4905, 0.125
    %v5000 = vmul.f32 %v4908, 0.125
    %v5001 = vmul.f32 %v4911, 0.125
    %v5002 = vmul.f32 %v4914, 0.125
    %v5003 = vmul.f32 %v4917, 0.125
    %v5004 = vmul.f32 %v4920, 0.125
    %v5005 = vmul.f32 %v4923, 0.125
    %v5006 = vmul.f32 %v4926, 0.125
    %v5007 = vmul.f32 %v4929, 0.125
    %v5008 = vmul.f32 %v4932, 0.125
    %v5009 = vmul.f32 %v4935, 0.125
    %v5010 = vmul.f32 %v4938, 0.125
    %v5011 = vmul.f32 %v4941, 0.125
    %v5012 = vmul.f32 %v4944, 0.125
    %v5013 = vmul.f32 %v4947, 0.125
    %v5014 = vmul.f32 %v4950, 0.125
    %v5015 = vadd.f32 %v4090, %v4951
    %v5016 = vadd.f32 %v4091, %v4952
    %v5017 = vadd.f32 %v4092, %v4953
    %v5018 = vadd.f32 %v4093, %v4954
    %v5019 = vadd.f32 %v4094, %v4955
    %v5020 = vadd.f32 %v4095, %v4956
    %v5021 = vadd.f32 %v4096, %v4957
    %v5022 = vadd.f32 %v4097, %v4958
    %v5023 = vadd.f32 %v4098, %v4959
    %v5024 = vadd.f32 %v4099, %v4960
    %v5025 = vadd.f32 %v4100, %v4961
    %v5026 = vadd.f32 %v4101, %v4962
    %v5027 = vadd.f32 %v4102, %v4963
    %v5028 = vadd.f32 %v4103, %v4964
    %v5029 = vadd.f32 %v4104, %v4965
    %v5030 = vadd.f32 %v4105, %v4966
    %v5031 = vadd.f32 %v4106, %v4967
    %v5032 = vadd.f32 %v4107, %v4968
    %v5033 = vadd.f32 %v4108, %v4969
    %v5034 = vadd.f32 %v4109, %v4970
    %v5035 = vadd.f32 %v4110, %v4971
    %v5036 = vadd.f32 %v4111, %v4972
    %v5037 = vadd.f32 %v4112, %v4973
    %v5038 = vadd.f32 %v4113, %v4974
    %v5039 = vadd.f32 %v4114, %v4975
    %v5040 = vadd.f32 %v4115, %v4976
    %v5041 = vadd.f32 %v4116, %v4977
    %v5042 = vadd.f32 %v4117, %v4978
    %v5043 = vadd.f32 %v4118, %v4979
    %v5044 = vadd.f32 %v4119, %v4980
    %v5045 = vadd.f32 %v4120, %v4981
    %v5046 = vadd.f32 %v4121, %v4982
    %v5047 = vadd.f32 %v4122, %v4983
    %v5048 = vadd.f32 %v4123, %v4984
    %v5049 = vadd.f32 %v4124, %v4985
    %v5050 = vadd.f32 %v4125, %v4986
    %v5051 = vadd.f32 %v4126, %v4987
    %v5052 = vadd.f32 %v4127, %v4988
    %v5053 = vadd.f32 %v4128, %v4989
    %v5054 = vadd.f32 %v4129, %v4990
    %v5055 = vadd.f32 %v4130, %v4991
    %v5056 = vadd.f32 %v4131, %v4992
    %v5057 = vadd.f32 %v4132, %v4993
    %v5058 = vadd.f32 %v4133, %v4994
    %v5059 = vadd.f32 %v4134, %v4995
    %v5060 = vadd.f32 %v4135, %v4996
    %v5061 = vadd.f32 %v4136, %v4997
    %v5062 = vadd.f32 %v4137, %v4998
    %v5063 = vadd.f32 %v4138, %v4999
    %v5064 = vadd.f32 %v4139, %v5000
    %v5065 = vadd.f32 %v4140, %v5001
    %v5066 = vadd.f32 %v4141, %v5002
    %v5067 = vadd.f32 %v4142, %v5003
    %v5068 = vadd.f32 %v4143, %v5004
    %v5069 = vadd.f32 %v4144, %v5005
    %v5070 = vadd.f32 %v4145, %v5006
    %v5071 = vadd.f32 %v4146, %v5007
    %v5072 = vadd.f32 %v4147, %v5008
    %v5073 = vadd.f32 %v4148, %v5009
    %v5074 = vadd.f32 %v4149, %v5010
    %v5075 = vadd.f32 %v4150, %v5011
    %v5076 = vadd.f32 %v4151, %v5012
    %v5077 = vadd.f32 %v4152, %v5013
    %v5078 = vadd.f32 %v4153, %v5014
    %v5079 = vld [vmem:[%s1] sm:$0xff]
    %v5080 = vld [vmem:[%s1 + $0x8] sm:$0xff]
    %v5081 = vld [vmem:[%s1 + $0x10] sm:$0xff]
    %v5082 = vld [vmem:[%s1 + $0x18] sm:$0xff]
    %v5083 = vld [vmem:[%s1 + $0x20] sm:$0xff]
    %v5084 = vld [vmem:[%s1 + $0x28] sm:$0xff]
    %v5085 = vld [vmem:[%s1 + $0x30] sm:$0xff]
    %v5086 = vld [vmem:[%s1 + $0x38] sm:$0xff]
    %v5087 = vld [vmem:[%s1 + $0x40] sm:$0xff]
    %v5088 = vld [vmem:[%s1 + $0x48] sm:$0xff]
    %v5089 = vld [vmem:[%s1 + $0x50] sm:$0xff]
    %v5090 = vld [vmem:[%s1 + $0x58] sm:$0xff]
    %v5091 = vld [vmem:[%s1 + $0x60] sm:$0xff]
    %v5092 = vld [vmem:[%s1 + $0x68] sm:$0xff]
    %v5093 = vld [vmem:[%s1 + $0x70] sm:$0xff]
    %v5094 = vld [vmem:[%s1 + $0x78] sm:$0xff]
    %v5095 = vld [vmem:[%s1 + $0x80] sm:$0xff]
    %v5096 = vld [vmem:[%s1 + $0x88] sm:$0xff]
    %v5097 = vld [vmem:[%s1 + $0x90] sm:$0xff]
    %v5098 = vld [vmem:[%s1 + $0x98] sm:$0xff]
    %v5099 = vld [vmem:[%s1 + $0xa0] sm:$0xff]
    %v5100 = vld [vmem:[%s1 + $0xa8] sm:$0xff]
    %v5101 = vld [vmem:[%s1 + $0xb0] sm:$0xff]
    %v5102 = vld [vmem:[%s1 + $0xb8] sm:$0xff]
    %v5103 = vld [vmem:[%s1 + $0xc0] sm:$0xff]
    %v5104 = vld [vmem:[%s1 + $0xc8] sm:$0xff]
    %v5105 = vld [vmem:[%s1 + $0xd0] sm:$0xff]
    %v5106 = vld [vmem:[%s1 + $0xd8] sm:$0xff]
    %v5107 = vld [vmem:[%s1 + $0xe0] sm:$0xff]
    %v5108 = vld [vmem:[%s1 + $0xe8] sm:$0xff]
    %v5109 = vld [vmem:[%s1 + $0xf0] sm:$0xff]
    %v5110 = vld [vmem:[%s1 + $0xf8] sm:$0xff]
    %v5175 = vperm.slane %v4951, %v517
    %v5176 = vperm.slane %v4952, %v519
    %v5177 = vsel %vm521, %v5176, %v5175
    %v5178 = vperm.slane %v4953, %v523
    %v5179 = vsel %vm525, %v5178, %v5177
    %v5180 = vperm.slane %v4954, %v527
    %v5181 = vsel %vm529, %v5180, %v5179
    %v5182 = vperm.slane %v4955, %v531
    %v5183 = vsel %vm533, %v5182, %v5181
    %v5184 = vperm.slane %v4956, %v535
    %v5185 = vsel %vm537, %v5184, %v5183
    %v5186 = vperm.slane %v4957, %v539
    %v5187 = vsel %vm541, %v5186, %v5185
    %v5188 = vperm.slane %v4958, %v543
    %v5189 = vsel %vm545, %v5188, %v5187
    %v5190 = vperm.slane %v4959, %v547
    %v5191 = vsel %vm549, %v5190, %v5189
    %v5192 = vperm.slane %v4960, %v551
    %v5193 = vsel %vm553, %v5192, %v5191
    %v5194 = vperm.slane %v4961, %v555
    %v5195 = vsel %vm557, %v5194, %v5193
    %v5196 = vperm.slane %v4962, %v559
    %v5197 = vsel %vm561, %v5196, %v5195
    %v5198 = vperm.slane %v4963, %v563
    %v5199 = vsel %vm565, %v5198, %v5197
    %v5200 = vperm.slane %v4964, %v567
    %v5201 = vsel %vm569, %v5200, %v5199
    %v5202 = vperm.slane %v4965, %v571
    %v5203 = vsel %vm573, %v5202, %v5201
    %v5204 = vperm.slane %v4966, %v575
    %v5205 = vsel %vm577, %v5204, %v5203
    %v5206 = vperm.slane %v4967, %v517
    %v5207 = vperm.slane %v4968, %v519
    %v5208 = vsel %vm521, %v5207, %v5206
    %v5209 = vperm.slane %v4969, %v523
    %v5210 = vsel %vm525, %v5209, %v5208
    %v5211 = vperm.slane %v4970, %v527
    %v5212 = vsel %vm529, %v5211, %v5210
    %v5213 = vperm.slane %v4971, %v531
    %v5214 = vsel %vm533, %v5213, %v5212
    %v5215 = vperm.slane %v4972, %v535
    %v5216 = vsel %vm537, %v5215, %v5214
    %v5217 = vperm.slane %v4973, %v539
    %v5218 = vsel %vm541, %v5217, %v5216
    %v5219 = vperm.slane %v4974, %v543
    %v5220 = vsel %vm545, %v5219, %v5218
    %v5221 = vperm.slane %v4975, %v547
    %v5222 = vsel %vm549, %v5221, %v5220
    %v5223 = vperm.slane %v4976, %v551
    %v5224 = vsel %vm553, %v5223, %v5222
    %v5225 = vperm.slane %v4977, %v555
    %v5226 = vsel %vm557, %v5225, %v5224
    %v5227 = vperm.slane %v4978, %v559
    %v5228 = vsel %vm561, %v5227, %v5226
    %v5229 = vperm.slane %v4979, %v563
    %v5230 = vsel %vm565, %v5229, %v5228
    %v5231 = vperm.slane %v4980, %v567
    %v5232 = vsel %vm569, %v5231, %v5230
    %v5233 = vperm.slane %v4981, %v571
    %v5234 = vsel %vm573, %v5233, %v5232
    %v5235 = vperm.slane %v4982, %v575
    %v5236 = vsel %vm577, %v5235, %v5234
    %v5237 = vperm.slane %v4983, %v517
    %v5238 = vperm.slane %v4984, %v519
    %v5239 = vsel %vm521, %v5238, %v5237
    %v5240 = vperm.slane %v4985, %v523
    %v5241 = vsel %vm525, %v5240, %v5239
    %v5242 = vperm.slane %v4986, %v527
    %v5243 = vsel %vm529, %v5242, %v5241
    %v5244 = vperm.slane %v4987, %v531
    %v5245 = vsel %vm533, %v5244, %v5243
    %v5246 = vperm.slane %v4988, %v535
    %v5247 = vsel %vm537, %v5246, %v5245
    %v5248 = vperm.slane %v4989, %v539
    %v5249 = vsel %vm541, %v5248, %v5247
    %v5250 = vperm.slane %v4990, %v543
    %v5251 = vsel %vm545, %v5250, %v5249
    %v5252 = vperm.slane %v4991, %v547
    %v5253 = vsel %vm549, %v5252, %v5251
    %v5254 = vperm.slane %v4992, %v551
    %v5255 = vsel %vm553, %v5254, %v5253
    %v5256 = vperm.slane %v4993, %v555
    %v5257 = vsel %vm557, %v5256, %v5255
    %v5258 = vperm.slane %v4994, %v559
    %v5259 = vsel %vm561, %v5258, %v5257
    %v5260 = vperm.slane %v4995, %v563
    %v5261 = vsel %vm565, %v5260, %v5259
    %v5262 = vperm.slane %v4996, %v567
    %v5263 = vsel %vm569, %v5262, %v5261
    %v5264 = vperm.slane %v4997, %v571
    %v5265 = vsel %vm573, %v5264, %v5263
    %v5266 = vperm.slane %v4998, %v575
    %v5267 = vsel %vm577, %v5266, %v5265
    %v5268 = vperm.slane %v4999, %v517
    %v5269 = vperm.slane %v5000, %v519
    %v5270 = vsel %vm521, %v5269, %v5268
    %v5271 = vperm.slane %v5001, %v523
    %v5272 = vsel %vm525, %v5271, %v5270
    %v5273 = vperm.slane %v5002, %v527
    %v5274 = vsel %vm529, %v5273, %v5272
    %v5275 = vperm.slane %v5003, %v531
    %v5276 = vsel %vm533, %v5275, %v5274
    %v5277 = vperm.slane %v5004, %v535
    %v5278 = vsel %vm537, %v5277, %v5276
    %v5279 = vperm.slane %v5005, %v539
    %v5280 = vsel %vm541, %v5279, %v5278
    %v5281 = vperm.slane %v5006, %v543
    %v5282 = vsel %vm545, %v5281, %v5280
    %v5283 = vperm.slane %v5007, %v547
    %v5284 = vsel %vm549, %v5283, %v5282
    %v5285 = vperm.slane %v5008, %v551
    %v5286 = vsel %vm553, %v5285, %v5284
    %v5287 = vperm.slane %v5009, %v555
    %v5288 = vsel %vm557, %v5287, %v5286
    %v5289 = vperm.slane %v5010, %v559
    %v5290 = vsel %vm561, %v5289, %v5288
    %v5291 = vperm.slane %v5011, %v563
    %v5292 = vsel %vm565, %v5291, %v5290
    %v5293 = vperm.slane %v5012, %v567
    %v5294 = vsel %vm569, %v5293, %v5292
    %v5295 = vperm.slane %v5013, %v571
    %v5296 = vsel %vm573, %v5295, %v5294
    %v5297 = vperm.slane %v5014, %v575
    %v5298 = vsel %vm577, %v5297, %v5296
    %v5299 = vsel %vm672, %v5267, %v5205
    %v5300 = vsel %vm672, %v5298, %v5236
    %5303 = vmatpush.msra.mxu0 %v5094
    %5304 = vmatpush.msra.mxu0 %v5093
    %5305 = vmatpush.msra.mxu0 %v5092
    %5306 = vmatpush.msra.mxu0 %v5091
    %5307 = vmatpush.msra.mxu0 %v5090
    %5308 = vmatpush.msra.mxu0 %v5089
    %5309 = vmatpush.msra.mxu0 %v5088
    %5310 = vmatpush.msra.mxu0 %v5087
    %5311 = vmatpush.msra.mxu0 %v5086
    %5312 = vmatpush.msra.mxu0 %v5085
    %5313 = vmatpush.msra.mxu0 %v5084
    %5314 = vmatpush.msra.mxu0 %v5083
    %5315 = vmatpush.msra.mxu0 %v5082
    %5316 = vmatpush.msra.mxu0 %v5081
    %5317 = vmatpush.msra.mxu0 %v5080
    %5318 = vmatpush.msra.mxu0 %v5079
    %5319 = vmatmul.f32.gmra.mxu0 %v5299
    %v5320 = vpop.f32.mrf.mxu0
    %v5321 = vadd.f32 %v450, %v5320
    %5322 = vdwg.mxu0
    %5323 = vmatpush.msra.mxu0 %v5110
    %5324 = vmatpush.msra.mxu0 %v5109
    %5325 = vmatpush.msra.mxu0 %v5108
    %5326 = vmatpush.msra.mxu0 %v5107
    %5327 = vmatpush.msra.mxu0 %v5106
    %5328 = vmatpush.msra.mxu0 %v5105
    %5329 = vmatpush.msra.mxu0 %v5104
    %5330 = vmatpush.msra.mxu0 %v5103
    %5331 = vmatpush.msra.mxu0 %v5102
    %5332 = vmatpush.msra.mxu0 %v5101
    %5333 = vmatpush.msra.mxu0 %v5100
    %5334 = vmatpush.msra.mxu0 %v5099
    %5335 = vmatpush.msra.mxu0 %v5098
    %5336 = vmatpush.msra.mxu0 %v5097
    %5337 = vmatpush.msra.mxu0 %v5096
    %5338 = vmatpush.msra.mxu0 %v5095
    %5339 = vmatmul.f32.gmra.mxu0 %v5300
    %v5340 = vpop.f32.mrf.mxu0
    %v5341 = vadd.f32 %v5321, %v5340
    %5342 = vdwg.mxu0
    %v5343 = vmul.f32 %v5341, %v5341
    %v5344 = vsel %vm718, %v5343, 0.0
    %5345 = vadd.xlane.f32.xlu0 %v5344
    %v5346 = vpop.xlane.xlu0 %5345
    %v5347 = vadd.f32 %v5346, 1e-12
    %v5348 = vrsqrt.pop %v5347
    %v5349 = vmul.f32 %v5348, %v5347
    %v5350 = vmul.f32 %v5349, %v5348
    %v5351 = vmul.f32 0.5, %v5350
    %v5352 = vsub.f32 1.5, %v5351
    %v5353 = vmul.f32 %v5348, %v5352
    %vm5354 = vweird.f32 %v5347
    %vm5355 = vweird.f32 %v5348
    %vm5356 = vmor %vm5354, %vm5355
    %v5357 = vsel %vm5356, %v5348, %v5353
    %v5358 = vmul.f32 %v5341, %v5357
    %v5360 = vrot.slane %v5358, 1
    %5362 = vst [vmem:[#allocation4 + $0x5] sm:$0x1] %v5358
    %5363 = vst [vmem:[#allocation4 + $0xd] sm:$0x1] %v5360
    %v5364 = vld [vmem:[%s0] sm:$0xff]
    %v5365 = vld [vmem:[%s0 + $0x8] sm:$0xff]
    %v5366 = vld [vmem:[%s0 + $0x10] sm:$0xff]
    %v5367 = vld [vmem:[%s0 + $0x18] sm:$0xff]
    %v5368 = vld [vmem:[%s0 + $0x20] sm:$0xff]
    %v5369 = vld [vmem:[%s0 + $0x28] sm:$0xff]
    %v5370 = vld [vmem:[%s0 + $0x30] sm:$0xff]
    %v5371 = vld [vmem:[%s0 + $0x38] sm:$0xff]
    %v5372 = vld [vmem:[%s0 + $0x40] sm:$0xff]
    %v5373 = vld [vmem:[%s0 + $0x48] sm:$0xff]
    %v5374 = vld [vmem:[%s0 + $0x50] sm:$0xff]
    %v5375 = vld [vmem:[%s0 + $0x58] sm:$0xff]
    %v5376 = vld [vmem:[%s0 + $0x60] sm:$0xff]
    %v5377 = vld [vmem:[%s0 + $0x68] sm:$0xff]
    %v5378 = vld [vmem:[%s0 + $0x70] sm:$0xff]
    %v5379 = vld [vmem:[%s0 + $0x78] sm:$0xff]
    %v5380 = vld [vmem:[%s0 + $0x80] sm:$0xff]
    %v5381 = vld [vmem:[%s0 + $0x88] sm:$0xff]
    %v5382 = vld [vmem:[%s0 + $0x90] sm:$0xff]
    %v5383 = vld [vmem:[%s0 + $0x98] sm:$0xff]
    %v5384 = vld [vmem:[%s0 + $0xa0] sm:$0xff]
    %v5385 = vld [vmem:[%s0 + $0xa8] sm:$0xff]
    %v5386 = vld [vmem:[%s0 + $0xb0] sm:$0xff]
    %v5387 = vld [vmem:[%s0 + $0xb8] sm:$0xff]
    %v5388 = vld [vmem:[%s0 + $0xc0] sm:$0xff]
    %v5389 = vld [vmem:[%s0 + $0xc8] sm:$0xff]
    %v5390 = vld [vmem:[%s0 + $0xd0] sm:$0xff]
    %v5391 = vld [vmem:[%s0 + $0xd8] sm:$0xff]
    %v5392 = vld [vmem:[%s0 + $0xe0] sm:$0xff]
    %v5393 = vld [vmem:[%s0 + $0xe8] sm:$0xff]
    %v5394 = vld [vmem:[%s0 + $0xf0] sm:$0xff]
    %v5395 = vld [vmem:[%s0 + $0xf8] sm:$0xff]
    %v5396 = vld [vmem:[%s0 + $0x100] sm:$0xff]
    %v5397 = vld [vmem:[%s0 + $0x108] sm:$0xff]
    %v5398 = vld [vmem:[%s0 + $0x110] sm:$0xff]
    %v5399 = vld [vmem:[%s0 + $0x118] sm:$0xff]
    %v5400 = vld [vmem:[%s0 + $0x120] sm:$0xff]
    %v5401 = vld [vmem:[%s0 + $0x128] sm:$0xff]
    %v5402 = vld [vmem:[%s0 + $0x130] sm:$0xff]
    %v5403 = vld [vmem:[%s0 + $0x138] sm:$0xff]
    %v5404 = vld [vmem:[%s0 + $0x140] sm:$0xff]
    %v5405 = vld [vmem:[%s0 + $0x148] sm:$0xff]
    %v5406 = vld [vmem:[%s0 + $0x150] sm:$0xff]
    %v5407 = vld [vmem:[%s0 + $0x158] sm:$0xff]
    %v5408 = vld [vmem:[%s0 + $0x160] sm:$0xff]
    %v5409 = vld [vmem:[%s0 + $0x168] sm:$0xff]
    %v5410 = vld [vmem:[%s0 + $0x170] sm:$0xff]
    %v5411 = vld [vmem:[%s0 + $0x178] sm:$0xff]
    %v5412 = vld [vmem:[%s0 + $0x180] sm:$0xff]
    %v5413 = vld [vmem:[%s0 + $0x188] sm:$0xff]
    %v5414 = vld [vmem:[%s0 + $0x190] sm:$0xff]
    %v5415 = vld [vmem:[%s0 + $0x198] sm:$0xff]
    %v5416 = vld [vmem:[%s0 + $0x1a0] sm:$0xff]
    %v5417 = vld [vmem:[%s0 + $0x1a8] sm:$0xff]
    %v5418 = vld [vmem:[%s0 + $0x1b0] sm:$0xff]
    %v5419 = vld [vmem:[%s0 + $0x1b8] sm:$0xff]
    %v5420 = vld [vmem:[%s0 + $0x1c0] sm:$0xff]
    %v5421 = vld [vmem:[%s0 + $0x1c8] sm:$0xff]
    %v5422 = vld [vmem:[%s0 + $0x1d0] sm:$0xff]
    %v5423 = vld [vmem:[%s0 + $0x1d8] sm:$0xff]
    %v5424 = vld [vmem:[%s0 + $0x1e0] sm:$0xff]
    %v5425 = vld [vmem:[%s0 + $0x1e8] sm:$0xff]
    %v5426 = vld [vmem:[%s0 + $0x1f0] sm:$0xff]
    %v5427 = vld [vmem:[%s0 + $0x1f8] sm:$0xff]
    %5492 = vrot.lane.b32.xlu0 %v5364, 80
    %v5493 = vpop.permute.xlu0 %5492
    %5494 = vrot.lane.b32.xlu0 %v5365, 80
    %v5495 = vpop.permute.xlu0 %5494
    %5496 = vrot.lane.b32.xlu0 %v5366, 80
    %v5497 = vpop.permute.xlu0 %5496
    %5498 = vrot.lane.b32.xlu0 %v5367, 80
    %v5499 = vpop.permute.xlu0 %5498
    %5500 = vrot.lane.b32.xlu0 %v5368, 80
    %v5501 = vpop.permute.xlu0 %5500
    %5502 = vrot.lane.b32.xlu0 %v5369, 80
    %v5503 = vpop.permute.xlu0 %5502
    %5504 = vrot.lane.b32.xlu0 %v5370, 80
    %v5505 = vpop.permute.xlu0 %5504
    %5506 = vrot.lane.b32.xlu0 %v5371, 80
    %v5507 = vpop.permute.xlu0 %5506
    %5508 = vrot.lane.b32.xlu0 %v5372, 80
    %v5509 = vpop.permute.xlu0 %5508
    %5510 = vrot.lane.b32.xlu0 %v5373, 80
    %v5511 = vpop.permute.xlu0 %5510
    %5512 = vrot.lane.b32.xlu0 %v5374, 80
    %v5513 = vpop.permute.xlu0 %5512
    %5514 = vrot.lane.b32.xlu0 %v5375, 80
    %v5515 = vpop.permute.xlu0 %5514
    %5516 = vrot.lane.b32.xlu0 %v5376, 80
    %v5517 = vpop.permute.xlu0 %5516
    %5518 = vrot.lane.b32.xlu0 %v5377, 80
    %v5519 = vpop.permute.xlu0 %5518
    %5520 = vrot.lane.b32.xlu0 %v5378, 80
    %v5521 = vpop.permute.xlu0 %5520
    %5522 = vrot.lane.b32.xlu0 %v5379, 80
    %v5523 = vpop.permute.xlu0 %5522
    %5524 = vrot.lane.b32.xlu0 %v5380, 80
    %v5525 = vpop.permute.xlu0 %5524
    %5526 = vrot.lane.b32.xlu0 %v5381, 80
    %v5527 = vpop.permute.xlu0 %5526
    %5528 = vrot.lane.b32.xlu0 %v5382, 80
    %v5529 = vpop.permute.xlu0 %5528
    %5530 = vrot.lane.b32.xlu0 %v5383, 80
    %v5531 = vpop.permute.xlu0 %5530
    %5532 = vrot.lane.b32.xlu0 %v5384, 80
    %v5533 = vpop.permute.xlu0 %5532
    %5534 = vrot.lane.b32.xlu0 %v5385, 80
    %v5535 = vpop.permute.xlu0 %5534
    %5536 = vrot.lane.b32.xlu0 %v5386, 80
    %v5537 = vpop.permute.xlu0 %5536
    %5538 = vrot.lane.b32.xlu0 %v5387, 80
    %v5539 = vpop.permute.xlu0 %5538
    %5540 = vrot.lane.b32.xlu0 %v5388, 80
    %v5541 = vpop.permute.xlu0 %5540
    %5542 = vrot.lane.b32.xlu0 %v5389, 80
    %v5543 = vpop.permute.xlu0 %5542
    %5544 = vrot.lane.b32.xlu0 %v5390, 80
    %v5545 = vpop.permute.xlu0 %5544
    %5546 = vrot.lane.b32.xlu0 %v5391, 80
    %v5547 = vpop.permute.xlu0 %5546
    %5548 = vrot.lane.b32.xlu0 %v5392, 80
    %v5549 = vpop.permute.xlu0 %5548
    %5550 = vrot.lane.b32.xlu0 %v5393, 80
    %v5551 = vpop.permute.xlu0 %5550
    %5552 = vrot.lane.b32.xlu0 %v5394, 80
    %v5553 = vpop.permute.xlu0 %5552
    %5554 = vrot.lane.b32.xlu0 %v5395, 80
    %v5555 = vpop.permute.xlu0 %5554
    %5556 = vrot.lane.b32.xlu0 %v5396, 80
    %v5557 = vpop.permute.xlu0 %5556
    %5558 = vrot.lane.b32.xlu0 %v5397, 80
    %v5559 = vpop.permute.xlu0 %5558
    %5560 = vrot.lane.b32.xlu0 %v5398, 80
    %v5561 = vpop.permute.xlu0 %5560
    %5562 = vrot.lane.b32.xlu0 %v5399, 80
    %v5563 = vpop.permute.xlu0 %5562
    %5564 = vrot.lane.b32.xlu0 %v5400, 80
    %v5565 = vpop.permute.xlu0 %5564
    %5566 = vrot.lane.b32.xlu0 %v5401, 80
    %v5567 = vpop.permute.xlu0 %5566
    %5568 = vrot.lane.b32.xlu0 %v5402, 80
    %v5569 = vpop.permute.xlu0 %5568
    %5570 = vrot.lane.b32.xlu0 %v5403, 80
    %v5571 = vpop.permute.xlu0 %5570
    %5572 = vrot.lane.b32.xlu0 %v5404, 80
    %v5573 = vpop.permute.xlu0 %5572
    %5574 = vrot.lane.b32.xlu0 %v5405, 80
    %v5575 = vpop.permute.xlu0 %5574
    %5576 = vrot.lane.b32.xlu0 %v5406, 80
    %v5577 = vpop.permute.xlu0 %5576
    %5578 = vrot.lane.b32.xlu0 %v5407, 80
    %v5579 = vpop.permute.xlu0 %5578
    %5580 = vrot.lane.b32.xlu0 %v5408, 80
    %v5581 = vpop.permute.xlu0 %5580
    %5582 = vrot.lane.b32.xlu0 %v5409, 80
    %v5583 = vpop.permute.xlu0 %5582
    %5584 = vrot.lane.b32.xlu0 %v5410, 80
    %v5585 = vpop.permute.xlu0 %5584
    %5586 = vrot.lane.b32.xlu0 %v5411, 80
    %v5587 = vpop.permute.xlu0 %5586
    %5588 = vrot.lane.b32.xlu0 %v5412, 80
    %v5589 = vpop.permute.xlu0 %5588
    %5590 = vrot.lane.b32.xlu0 %v5413, 80
    %v5591 = vpop.permute.xlu0 %5590
    %5592 = vrot.lane.b32.xlu0 %v5414, 80
    %v5593 = vpop.permute.xlu0 %5592
    %5594 = vrot.lane.b32.xlu0 %v5415, 80
    %v5595 = vpop.permute.xlu0 %5594
    %5596 = vrot.lane.b32.xlu0 %v5416, 80
    %v5597 = vpop.permute.xlu0 %5596
    %5598 = vrot.lane.b32.xlu0 %v5417, 80
    %v5599 = vpop.permute.xlu0 %5598
    %5600 = vrot.lane.b32.xlu0 %v5418, 80
    %v5601 = vpop.permute.xlu0 %5600
    %5602 = vrot.lane.b32.xlu0 %v5419, 80
    %v5603 = vpop.permute.xlu0 %5602
    %5604 = vrot.lane.b32.xlu0 %v5420, 80
    %v5605 = vpop.permute.xlu0 %5604
    %5606 = vrot.lane.b32.xlu0 %v5421, 80
    %v5607 = vpop.permute.xlu0 %5606
    %5608 = vrot.lane.b32.xlu0 %v5422, 80
    %v5609 = vpop.permute.xlu0 %5608
    %5610 = vrot.lane.b32.xlu0 %v5423, 80
    %v5611 = vpop.permute.xlu0 %5610
    %5612 = vrot.lane.b32.xlu0 %v5424, 80
    %v5613 = vpop.permute.xlu0 %5612
    %5614 = vrot.lane.b32.xlu0 %v5425, 80
    %v5615 = vpop.permute.xlu0 %5614
    %5616 = vrot.lane.b32.xlu0 %v5426, 80
    %v5617 = vpop.permute.xlu0 %5616
    %5618 = vrot.lane.b32.xlu0 %v5427, 80
    %v5619 = vpop.permute.xlu0 %5618
    %v5684 = vsel %vm96, %v5493, 0.0
    %5685 = vadd.xlane.f32.xlu0 %v5684
    %v5686 = vpop.xlane.xlu0 %5685
    %v5687 = vsel %vm96, %v5495, 0.0
    %5688 = vadd.xlane.f32.xlu0 %v5687
    %v5689 = vpop.xlane.xlu0 %5688
    %v5690 = vsel %vm96, %v5497, 0.0
    %5691 = vadd.xlane.f32.xlu0 %v5690
    %v5692 = vpop.xlane.xlu0 %5691
    %v5693 = vsel %vm96, %v5499, 0.0
    %5694 = vadd.xlane.f32.xlu0 %v5693
    %v5695 = vpop.xlane.xlu0 %5694
    %v5696 = vsel %vm96, %v5501, 0.0
    %5697 = vadd.xlane.f32.xlu0 %v5696
    %v5698 = vpop.xlane.xlu0 %5697
    %v5699 = vsel %vm96, %v5503, 0.0
    %5700 = vadd.xlane.f32.xlu0 %v5699
    %v5701 = vpop.xlane.xlu0 %5700
    %v5702 = vsel %vm96, %v5505, 0.0
    %5703 = vadd.xlane.f32.xlu0 %v5702
    %v5704 = vpop.xlane.xlu0 %5703
    %v5705 = vsel %vm96, %v5507, 0.0
    %5706 = vadd.xlane.f32.xlu0 %v5705
    %v5707 = vpop.xlane.xlu0 %5706
    %v5708 = vsel %vm96, %v5509, 0.0
    %5709 = vadd.xlane.f32.xlu0 %v5708
    %v5710 = vpop.xlane.xlu0 %5709
    %v5711 = vsel %vm96, %v5511, 0.0
    %5712 = vadd.xlane.f32.xlu0 %v5711
    %v5713 = vpop.xlane.xlu0 %5712
    %v5714 = vsel %vm96, %v5513, 0.0
    %5715 = vadd.xlane.f32.xlu0 %v5714
    %v5716 = vpop.xlane.xlu0 %5715
    %v5717 = vsel %vm96, %v5515, 0.0
    %5718 = vadd.xlane.f32.xlu0 %v5717
    %v5719 = vpop.xlane.xlu0 %5718
    %v5720 = vsel %vm96, %v5517, 0.0
    %5721 = vadd.xlane.f32.xlu0 %v5720
    %v5722 = vpop.xlane.xlu0 %5721
    %v5723 = vsel %vm96, %v5519, 0.0
    %5724 = vadd.xlane.f32.xlu0 %v5723
    %v5725 = vpop.xlane.xlu0 %5724
    %v5726 = vsel %vm96, %v5521, 0.0
    %5727 = vadd.xlane.f32.xlu0 %v5726
    %v5728 = vpop.xlane.xlu0 %5727
    %v5729 = vsel %vm96, %v5523, 0.0
    %5730 = vadd.xlane.f32.xlu0 %v5729
    %v5731 = vpop.xlane.xlu0 %5730
    %v5732 = vsel %vm96, %v5525, 0.0
    %5733 = vadd.xlane.f32.xlu0 %v5732
    %v5734 = vpop.xlane.xlu0 %5733
    %v5735 = vsel %vm96, %v5527, 0.0
    %5736 = vadd.xlane.f32.xlu0 %v5735
    %v5737 = vpop.xlane.xlu0 %5736
    %v5738 = vsel %vm96, %v5529, 0.0
    %5739 = vadd.xlane.f32.xlu0 %v5738
    %v5740 = vpop.xlane.xlu0 %5739
    %v5741 = vsel %vm96, %v5531, 0.0
    %5742 = vadd.xlane.f32.xlu0 %v5741
    %v5743 = vpop.xlane.xlu0 %5742
    %v5744 = vsel %vm96, %v5533, 0.0
    %5745 = vadd.xlane.f32.xlu0 %v5744
    %v5746 = vpop.xlane.xlu0 %5745
    %v5747 = vsel %vm96, %v5535, 0.0
    %5748 = vadd.xlane.f32.xlu0 %v5747
    %v5749 = vpop.xlane.xlu0 %5748
    %v5750 = vsel %vm96, %v5537, 0.0
    %5751 = vadd.xlane.f32.xlu0 %v5750
    %v5752 = vpop.xlane.xlu0 %5751
    %v5753 = vsel %vm96, %v5539, 0.0
    %5754 = vadd.xlane.f32.xlu0 %v5753
    %v5755 = vpop.xlane.xlu0 %5754
    %v5756 = vsel %vm96, %v5541, 0.0
    %5757 = vadd.xlane.f32.xlu0 %v5756
    %v5758 = vpop.xlane.xlu0 %5757
    %v5759 = vsel %vm96, %v5543, 0.0
    %5760 = vadd.xlane.f32.xlu0 %v5759
    %v5761 = vpop.xlane.xlu0 %5760
    %v5762 = vsel %vm96, %v5545, 0.0
    %5763 = vadd.xlane.f32.xlu0 %v5762
    %v5764 = vpop.xlane.xlu0 %5763
    %v5765 = vsel %vm96, %v5547, 0.0
    %5766 = vadd.xlane.f32.xlu0 %v5765
    %v5767 = vpop.xlane.xlu0 %5766
    %v5768 = vsel %vm96, %v5549, 0.0
    %5769 = vadd.xlane.f32.xlu0 %v5768
    %v5770 = vpop.xlane.xlu0 %5769
    %v5771 = vsel %vm96, %v5551, 0.0
    %5772 = vadd.xlane.f32.xlu0 %v5771
    %v5773 = vpop.xlane.xlu0 %5772
    %v5774 = vsel %vm96, %v5553, 0.0
    %5775 = vadd.xlane.f32.xlu0 %v5774
    %v5776 = vpop.xlane.xlu0 %5775
    %v5777 = vsel %vm96, %v5555, 0.0
    %5778 = vadd.xlane.f32.xlu0 %v5777
    %v5779 = vpop.xlane.xlu0 %5778
    %v5780 = vsel %vm96, %v5557, 0.0
    %5781 = vadd.xlane.f32.xlu0 %v5780
    %v5782 = vpop.xlane.xlu0 %5781
    %v5783 = vsel %vm96, %v5559, 0.0
    %5784 = vadd.xlane.f32.xlu0 %v5783
    %v5785 = vpop.xlane.xlu0 %5784
    %v5786 = vsel %vm96, %v5561, 0.0
    %5787 = vadd.xlane.f32.xlu0 %v5786
    %v5788 = vpop.xlane.xlu0 %5787
    %v5789 = vsel %vm96, %v5563, 0.0
    %5790 = vadd.xlane.f32.xlu0 %v5789
    %v5791 = vpop.xlane.xlu0 %5790
    %v5792 = vsel %vm96, %v5565, 0.0
    %5793 = vadd.xlane.f32.xlu0 %v5792
    %v5794 = vpop.xlane.xlu0 %5793
    %v5795 = vsel %vm96, %v5567, 0.0
    %5796 = vadd.xlane.f32.xlu0 %v5795
    %v5797 = vpop.xlane.xlu0 %5796
    %v5798 = vsel %vm96, %v5569, 0.0
    %5799 = vadd.xlane.f32.xlu0 %v5798
    %v5800 = vpop.xlane.xlu0 %5799
    %v5801 = vsel %vm96, %v5571, 0.0
    %5802 = vadd.xlane.f32.xlu0 %v5801
    %v5803 = vpop.xlane.xlu0 %5802
    %v5804 = vsel %vm96, %v5573, 0.0
    %5805 = vadd.xlane.f32.xlu0 %v5804
    %v5806 = vpop.xlane.xlu0 %5805
    %v5807 = vsel %vm96, %v5575, 0.0
    %5808 = vadd.xlane.f32.xlu0 %v5807
    %v5809 = vpop.xlane.xlu0 %5808
    %v5810 = vsel %vm96, %v5577, 0.0
    %5811 = vadd.xlane.f32.xlu0 %v5810
    %v5812 = vpop.xlane.xlu0 %5811
    %v5813 = vsel %vm96, %v5579, 0.0
    %5814 = vadd.xlane.f32.xlu0 %v5813
    %v5815 = vpop.xlane.xlu0 %5814
    %v5816 = vsel %vm96, %v5581, 0.0
    %5817 = vadd.xlane.f32.xlu0 %v5816
    %v5818 = vpop.xlane.xlu0 %5817
    %v5819 = vsel %vm96, %v5583, 0.0
    %5820 = vadd.xlane.f32.xlu0 %v5819
    %v5821 = vpop.xlane.xlu0 %5820
    %v5822 = vsel %vm96, %v5585, 0.0
    %5823 = vadd.xlane.f32.xlu0 %v5822
    %v5824 = vpop.xlane.xlu0 %5823
    %v5825 = vsel %vm96, %v5587, 0.0
    %5826 = vadd.xlane.f32.xlu0 %v5825
    %v5827 = vpop.xlane.xlu0 %5826
    %v5828 = vsel %vm96, %v5589, 0.0
    %5829 = vadd.xlane.f32.xlu0 %v5828
    %v5830 = vpop.xlane.xlu0 %5829
    %v5831 = vsel %vm96, %v5591, 0.0
    %5832 = vadd.xlane.f32.xlu0 %v5831
    %v5833 = vpop.xlane.xlu0 %5832
    %v5834 = vsel %vm96, %v5593, 0.0
    %5835 = vadd.xlane.f32.xlu0 %v5834
    %v5836 = vpop.xlane.xlu0 %5835
    %v5837 = vsel %vm96, %v5595, 0.0
    %5838 = vadd.xlane.f32.xlu0 %v5837
    %v5839 = vpop.xlane.xlu0 %5838
    %v5840 = vsel %vm96, %v5597, 0.0
    %5841 = vadd.xlane.f32.xlu0 %v5840
    %v5842 = vpop.xlane.xlu0 %5841
    %v5843 = vsel %vm96, %v5599, 0.0
    %5844 = vadd.xlane.f32.xlu0 %v5843
    %v5845 = vpop.xlane.xlu0 %5844
    %v5846 = vsel %vm96, %v5601, 0.0
    %5847 = vadd.xlane.f32.xlu0 %v5846
    %v5848 = vpop.xlane.xlu0 %5847
    %v5849 = vsel %vm96, %v5603, 0.0
    %5850 = vadd.xlane.f32.xlu0 %v5849
    %v5851 = vpop.xlane.xlu0 %5850
    %v5852 = vsel %vm96, %v5605, 0.0
    %5853 = vadd.xlane.f32.xlu0 %v5852
    %v5854 = vpop.xlane.xlu0 %5853
    %v5855 = vsel %vm96, %v5607, 0.0
    %5856 = vadd.xlane.f32.xlu0 %v5855
    %v5857 = vpop.xlane.xlu0 %5856
    %v5858 = vsel %vm96, %v5609, 0.0
    %5859 = vadd.xlane.f32.xlu0 %v5858
    %v5860 = vpop.xlane.xlu0 %5859
    %v5861 = vsel %vm96, %v5611, 0.0
    %5862 = vadd.xlane.f32.xlu0 %v5861
    %v5863 = vpop.xlane.xlu0 %5862
    %v5864 = vsel %vm96, %v5613, 0.0
    %5865 = vadd.xlane.f32.xlu0 %v5864
    %v5866 = vpop.xlane.xlu0 %5865
    %v5867 = vsel %vm96, %v5615, 0.0
    %5868 = vadd.xlane.f32.xlu0 %v5867
    %v5869 = vpop.xlane.xlu0 %5868
    %v5870 = vsel %vm96, %v5617, 0.0
    %5871 = vadd.xlane.f32.xlu0 %v5870
    %v5872 = vpop.xlane.xlu0 %5871
    %v5873 = vsel %vm96, %v5619, 0.0
    %5874 = vadd.xlane.f32.xlu0 %v5873
    %v5875 = vpop.xlane.xlu0 %5874
    %v5876 = vmul.f32 %v5686, 0.125
    %v5877 = vmul.f32 %v5689, 0.125
    %v5878 = vmul.f32 %v5692, 0.125
    %v5879 = vmul.f32 %v5695, 0.125
    %v5880 = vmul.f32 %v5698, 0.125
    %v5881 = vmul.f32 %v5701, 0.125
    %v5882 = vmul.f32 %v5704, 0.125
    %v5883 = vmul.f32 %v5707, 0.125
    %v5884 = vmul.f32 %v5710, 0.125
    %v5885 = vmul.f32 %v5713, 0.125
    %v5886 = vmul.f32 %v5716, 0.125
    %v5887 = vmul.f32 %v5719, 0.125
    %v5888 = vmul.f32 %v5722, 0.125
    %v5889 = vmul.f32 %v5725, 0.125
    %v5890 = vmul.f32 %v5728, 0.125
    %v5891 = vmul.f32 %v5731, 0.125
    %v5892 = vmul.f32 %v5734, 0.125
    %v5893 = vmul.f32 %v5737, 0.125
    %v5894 = vmul.f32 %v5740, 0.125
    %v5895 = vmul.f32 %v5743, 0.125
    %v5896 = vmul.f32 %v5746, 0.125
    %v5897 = vmul.f32 %v5749, 0.125
    %v5898 = vmul.f32 %v5752, 0.125
    %v5899 = vmul.f32 %v5755, 0.125
    %v5900 = vmul.f32 %v5758, 0.125
    %v5901 = vmul.f32 %v5761, 0.125
    %v5902 = vmul.f32 %v5764, 0.125
    %v5903 = vmul.f32 %v5767, 0.125
    %v5904 = vmul.f32 %v5770, 0.125
    %v5905 = vmul.f32 %v5773, 0.125
    %v5906 = vmul.f32 %v5776, 0.125
    %v5907 = vmul.f32 %v5779, 0.125
    %v5908 = vmul.f32 %v5782, 0.125
    %v5909 = vmul.f32 %v5785, 0.125
    %v5910 = vmul.f32 %v5788, 0.125
    %v5911 = vmul.f32 %v5791, 0.125
    %v5912 = vmul.f32 %v5794, 0.125
    %v5913 = vmul.f32 %v5797, 0.125
    %v5914 = vmul.f32 %v5800, 0.125
    %v5915 = vmul.f32 %v5803, 0.125
    %v5916 = vmul.f32 %v5806, 0.125
    %v5917 = vmul.f32 %v5809, 0.125
    %v5918 = vmul.f32 %v5812, 0.125
    %v5919 = vmul.f32 %v5815, 0.125
    %v5920 = vmul.f32 %v5818, 0.125
    %v5921 = vmul.f32 %v5821, 0.125
    %v5922 = vmul.f32 %v5824, 0.125
    %v5923 = vmul.f32 %v5827, 0.125
    %v5924 = vmul.f32 %v5830, 0.125
    %v5925 = vmul.f32 %v5833, 0.125
    %v5926 = vmul.f32 %v5836, 0.125
    %v5927 = vmul.f32 %v5839, 0.125
    %v5928 = vmul.f32 %v5842, 0.125
    %v5929 = vmul.f32 %v5845, 0.125
    %v5930 = vmul.f32 %v5848, 0.125
    %v5931 = vmul.f32 %v5851, 0.125
    %v5932 = vmul.f32 %v5854, 0.125
    %v5933 = vmul.f32 %v5857, 0.125
    %v5934 = vmul.f32 %v5860, 0.125
    %v5935 = vmul.f32 %v5863, 0.125
    %v5936 = vmul.f32 %v5866, 0.125
    %v5937 = vmul.f32 %v5869, 0.125
    %v5938 = vmul.f32 %v5872, 0.125
    %v5939 = vmul.f32 %v5875, 0.125
    %v5940 = vadd.f32 %v5015, %v5876
    %v5941 = vadd.f32 %v5016, %v5877
    %v5942 = vadd.f32 %v5017, %v5878
    %v5943 = vadd.f32 %v5018, %v5879
    %v5944 = vadd.f32 %v5019, %v5880
    %v5945 = vadd.f32 %v5020, %v5881
    %v5946 = vadd.f32 %v5021, %v5882
    %v5947 = vadd.f32 %v5022, %v5883
    %v5948 = vadd.f32 %v5023, %v5884
    %v5949 = vadd.f32 %v5024, %v5885
    %v5950 = vadd.f32 %v5025, %v5886
    %v5951 = vadd.f32 %v5026, %v5887
    %v5952 = vadd.f32 %v5027, %v5888
    %v5953 = vadd.f32 %v5028, %v5889
    %v5954 = vadd.f32 %v5029, %v5890
    %v5955 = vadd.f32 %v5030, %v5891
    %v5956 = vadd.f32 %v5031, %v5892
    %v5957 = vadd.f32 %v5032, %v5893
    %v5958 = vadd.f32 %v5033, %v5894
    %v5959 = vadd.f32 %v5034, %v5895
    %v5960 = vadd.f32 %v5035, %v5896
    %v5961 = vadd.f32 %v5036, %v5897
    %v5962 = vadd.f32 %v5037, %v5898
    %v5963 = vadd.f32 %v5038, %v5899
    %v5964 = vadd.f32 %v5039, %v5900
    %v5965 = vadd.f32 %v5040, %v5901
    %v5966 = vadd.f32 %v5041, %v5902
    %v5967 = vadd.f32 %v5042, %v5903
    %v5968 = vadd.f32 %v5043, %v5904
    %v5969 = vadd.f32 %v5044, %v5905
    %v5970 = vadd.f32 %v5045, %v5906
    %v5971 = vadd.f32 %v5046, %v5907
    %v5972 = vadd.f32 %v5047, %v5908
    %v5973 = vadd.f32 %v5048, %v5909
    %v5974 = vadd.f32 %v5049, %v5910
    %v5975 = vadd.f32 %v5050, %v5911
    %v5976 = vadd.f32 %v5051, %v5912
    %v5977 = vadd.f32 %v5052, %v5913
    %v5978 = vadd.f32 %v5053, %v5914
    %v5979 = vadd.f32 %v5054, %v5915
    %v5980 = vadd.f32 %v5055, %v5916
    %v5981 = vadd.f32 %v5056, %v5917
    %v5982 = vadd.f32 %v5057, %v5918
    %v5983 = vadd.f32 %v5058, %v5919
    %v5984 = vadd.f32 %v5059, %v5920
    %v5985 = vadd.f32 %v5060, %v5921
    %v5986 = vadd.f32 %v5061, %v5922
    %v5987 = vadd.f32 %v5062, %v5923
    %v5988 = vadd.f32 %v5063, %v5924
    %v5989 = vadd.f32 %v5064, %v5925
    %v5990 = vadd.f32 %v5065, %v5926
    %v5991 = vadd.f32 %v5066, %v5927
    %v5992 = vadd.f32 %v5067, %v5928
    %v5993 = vadd.f32 %v5068, %v5929
    %v5994 = vadd.f32 %v5069, %v5930
    %v5995 = vadd.f32 %v5070, %v5931
    %v5996 = vadd.f32 %v5071, %v5932
    %v5997 = vadd.f32 %v5072, %v5933
    %v5998 = vadd.f32 %v5073, %v5934
    %v5999 = vadd.f32 %v5074, %v5935
    %v6000 = vadd.f32 %v5075, %v5936
    %v6001 = vadd.f32 %v5076, %v5937
    %v6002 = vadd.f32 %v5077, %v5938
    %v6003 = vadd.f32 %v5078, %v5939
    %v6004 = vld [vmem:[%s1] sm:$0xff]
    %v6005 = vld [vmem:[%s1 + $0x8] sm:$0xff]
    %v6006 = vld [vmem:[%s1 + $0x10] sm:$0xff]
    %v6007 = vld [vmem:[%s1 + $0x18] sm:$0xff]
    %v6008 = vld [vmem:[%s1 + $0x20] sm:$0xff]
    %v6009 = vld [vmem:[%s1 + $0x28] sm:$0xff]
    %v6010 = vld [vmem:[%s1 + $0x30] sm:$0xff]
    %v6011 = vld [vmem:[%s1 + $0x38] sm:$0xff]
    %v6012 = vld [vmem:[%s1 + $0x40] sm:$0xff]
    %v6013 = vld [vmem:[%s1 + $0x48] sm:$0xff]
    %v6014 = vld [vmem:[%s1 + $0x50] sm:$0xff]
    %v6015 = vld [vmem:[%s1 + $0x58] sm:$0xff]
    %v6016 = vld [vmem:[%s1 + $0x60] sm:$0xff]
    %v6017 = vld [vmem:[%s1 + $0x68] sm:$0xff]
    %v6018 = vld [vmem:[%s1 + $0x70] sm:$0xff]
    %v6019 = vld [vmem:[%s1 + $0x78] sm:$0xff]
    %v6020 = vld [vmem:[%s1 + $0x80] sm:$0xff]
    %v6021 = vld [vmem:[%s1 + $0x88] sm:$0xff]
    %v6022 = vld [vmem:[%s1 + $0x90] sm:$0xff]
    %v6023 = vld [vmem:[%s1 + $0x98] sm:$0xff]
    %v6024 = vld [vmem:[%s1 + $0xa0] sm:$0xff]
    %v6025 = vld [vmem:[%s1 + $0xa8] sm:$0xff]
    %v6026 = vld [vmem:[%s1 + $0xb0] sm:$0xff]
    %v6027 = vld [vmem:[%s1 + $0xb8] sm:$0xff]
    %v6028 = vld [vmem:[%s1 + $0xc0] sm:$0xff]
    %v6029 = vld [vmem:[%s1 + $0xc8] sm:$0xff]
    %v6030 = vld [vmem:[%s1 + $0xd0] sm:$0xff]
    %v6031 = vld [vmem:[%s1 + $0xd8] sm:$0xff]
    %v6032 = vld [vmem:[%s1 + $0xe0] sm:$0xff]
    %v6033 = vld [vmem:[%s1 + $0xe8] sm:$0xff]
    %v6034 = vld [vmem:[%s1 + $0xf0] sm:$0xff]
    %v6035 = vld [vmem:[%s1 + $0xf8] sm:$0xff]
    %v6100 = vperm.slane %v5876, %v517
    %v6101 = vperm.slane %v5877, %v519
    %v6102 = vsel %vm521, %v6101, %v6100
    %v6103 = vperm.slane %v5878, %v523
    %v6104 = vsel %vm525, %v6103, %v6102
    %v6105 = vperm.slane %v5879, %v527
    %v6106 = vsel %vm529, %v6105, %v6104
    %v6107 = vperm.slane %v5880, %v531
    %v6108 = vsel %vm533, %v6107, %v6106
    %v6109 = vperm.slane %v5881, %v535
    %v6110 = vsel %vm537, %v6109, %v6108
    %v6111 = vperm.slane %v5882, %v539
    %v6112 = vsel %vm541, %v6111, %v6110
    %v6113 = vperm.slane %v5883, %v543
    %v6114 = vsel %vm545, %v6113, %v6112
    %v6115 = vperm.slane %v5884, %v547
    %v6116 = vsel %vm549, %v6115, %v6114
    %v6117 = vperm.slane %v5885, %v551
    %v6118 = vsel %vm553, %v6117, %v6116
    %v6119 = vperm.slane %v5886, %v555
    %v6120 = vsel %vm557, %v6119, %v6118
    %v6121 = vperm.slane %v5887, %v559
    %v6122 = vsel %vm561, %v6121, %v6120
    %v6123 = vperm.slane %v5888, %v563
    %v6124 = vsel %vm565, %v6123, %v6122
    %v6125 = vperm.slane %v5889, %v567
    %v6126 = vsel %vm569, %v6125, %v6124
    %v6127 = vperm.slane %v5890, %v571
    %v6128 = vsel %vm573, %v6127, %v6126
    %v6129 = vperm.slane %v5891, %v575
    %v6130 = vsel %vm577, %v6129, %v6128
    %v6131 = vperm.slane %v5892, %v517
    %v6132 = vperm.slane %v5893, %v519
    %v6133 = vsel %vm521, %v6132, %v6131
    %v6134 = vperm.slane %v5894, %v523
    %v6135 = vsel %vm525, %v6134, %v6133
    %v6136 = vperm.slane %v5895, %v527
    %v6137 = vsel %vm529, %v6136, %v6135
    %v6138 = vperm.slane %v5896, %v531
    %v6139 = vsel %vm533, %v6138, %v6137
    %v6140 = vperm.slane %v5897, %v535
    %v6141 = vsel %vm537, %v6140, %v6139
    %v6142 = vperm.slane %v5898, %v539
    %v6143 = vsel %vm541, %v6142, %v6141
    %v6144 = vperm.slane %v5899, %v543
    %v6145 = vsel %vm545, %v6144, %v6143
    %v6146 = vperm.slane %v5900, %v547
    %v6147 = vsel %vm549, %v6146, %v6145
    %v6148 = vperm.slane %v5901, %v551
    %v6149 = vsel %vm553, %v6148, %v6147
    %v6150 = vperm.slane %v5902, %v555
    %v6151 = vsel %vm557, %v6150, %v6149
    %v6152 = vperm.slane %v5903, %v559
    %v6153 = vsel %vm561, %v6152, %v6151
    %v6154 = vperm.slane %v5904, %v563
    %v6155 = vsel %vm565, %v6154, %v6153
    %v6156 = vperm.slane %v5905, %v567
    %v6157 = vsel %vm569, %v6156, %v6155
    %v6158 = vperm.slane %v5906, %v571
    %v6159 = vsel %vm573, %v6158, %v6157
    %v6160 = vperm.slane %v5907, %v575
    %v6161 = vsel %vm577, %v6160, %v6159
    %v6162 = vperm.slane %v5908, %v517
    %v6163 = vperm.slane %v5909, %v519
    %v6164 = vsel %vm521, %v6163, %v6162
    %v6165 = vperm.slane %v5910, %v523
    %v6166 = vsel %vm525, %v6165, %v6164
    %v6167 = vperm.slane %v5911, %v527
    %v6168 = vsel %vm529, %v6167, %v6166
    %v6169 = vperm.slane %v5912, %v531
    %v6170 = vsel %vm533, %v6169, %v6168
    %v6171 = vperm.slane %v5913, %v535
    %v6172 = vsel %vm537, %v6171, %v6170
    %v6173 = vperm.slane %v5914, %v539
    %v6174 = vsel %vm541, %v6173, %v6172
    %v6175 = vperm.slane %v5915, %v543
    %v6176 = vsel %vm545, %v6175, %v6174
    %v6177 = vperm.slane %v5916, %v547
    %v6178 = vsel %vm549, %v6177, %v6176
    %v6179 = vperm.slane %v5917, %v551
    %v6180 = vsel %vm553, %v6179, %v6178
    %v6181 = vperm.slane %v5918, %v555
    %v6182 = vsel %vm557, %v6181, %v6180
    %v6183 = vperm.slane %v5919, %v559
    %v6184 = vsel %vm561, %v6183, %v6182
    %v6185 = vperm.slane %v5920, %v563
    %v6186 = vsel %vm565, %v6185, %v6184
    %v6187 = vperm.slane %v5921, %v567
    %v6188 = vsel %vm569, %v6187, %v6186
    %v6189 = vperm.slane %v5922, %v571
    %v6190 = vsel %vm573, %v6189, %v6188
    %v6191 = vperm.slane %v5923, %v575
    %v6192 = vsel %vm577, %v6191, %v6190
    %v6193 = vperm.slane %v5924, %v517
    %v6194 = vperm.slane %v5925, %v519
    %v6195 = vsel %vm521, %v6194, %v6193
    %v6196 = vperm.slane %v5926, %v523
    %v6197 = vsel %vm525, %v6196, %v6195
    %v6198 = vperm.slane %v5927, %v527
    %v6199 = vsel %vm529, %v6198, %v6197
    %v6200 = vperm.slane %v5928, %v531
    %v6201 = vsel %vm533, %v6200, %v6199
    %v6202 = vperm.slane %v5929, %v535
    %v6203 = vsel %vm537, %v6202, %v6201
    %v6204 = vperm.slane %v5930, %v539
    %v6205 = vsel %vm541, %v6204, %v6203
    %v6206 = vperm.slane %v5931, %v543
    %v6207 = vsel %vm545, %v6206, %v6205
    %v6208 = vperm.slane %v5932, %v547
    %v6209 = vsel %vm549, %v6208, %v6207
    %v6210 = vperm.slane %v5933, %v551
    %v6211 = vsel %vm553, %v6210, %v6209
    %v6212 = vperm.slane %v5934, %v555
    %v6213 = vsel %vm557, %v6212, %v6211
    %v6214 = vperm.slane %v5935, %v559
    %v6215 = vsel %vm561, %v6214, %v6213
    %v6216 = vperm.slane %v5936, %v563
    %v6217 = vsel %vm565, %v6216, %v6215
    %v6218 = vperm.slane %v5937, %v567
    %v6219 = vsel %vm569, %v6218, %v6217
    %v6220 = vperm.slane %v5938, %v571
    %v6221 = vsel %vm573, %v6220, %v6219
    %v6222 = vperm.slane %v5939, %v575
    %v6223 = vsel %vm577, %v6222, %v6221
    %v6224 = vsel %vm672, %v6192, %v6130
    %v6225 = vsel %vm672, %v6223, %v6161
    %6228 = vmatpush.msra.mxu0 %v6019
    %6229 = vmatpush.msra.mxu0 %v6018
    %6230 = vmatpush.msra.mxu0 %v6017
    %6231 = vmatpush.msra.mxu0 %v6016
    %6232 = vmatpush.msra.mxu0 %v6015
    %6233 = vmatpush.msra.mxu0 %v6014
    %6234 = vmatpush.msra.mxu0 %v6013
    %6235 = vmatpush.msra.mxu0 %v6012
    %6236 = vmatpush.msra.mxu0 %v6011
    %6237 = vmatpush.msra.mxu0 %v6010
    %6238 = vmatpush.msra.mxu0 %v6009
    %6239 = vmatpush.msra.mxu0 %v6008
    %6240 = vmatpush.msra.mxu0 %v6007
    %6241 = vmatpush.msra.mxu0 %v6006
    %6242 = vmatpush.msra.mxu0 %v6005
    %6243 = vmatpush.msra.mxu0 %v6004
    %6244 = vmatmul.f32.gmra.mxu0 %v6224
    %v6245 = vpop.f32.mrf.mxu0
    %v6246 = vadd.f32 %v450, %v6245
    %6247 = vdwg.mxu0
    %6248 = vmatpush.msra.mxu0 %v6035
    %6249 = vmatpush.msra.mxu0 %v6034
    %6250 = vmatpush.msra.mxu0 %v6033
    %6251 = vmatpush.msra.mxu0 %v6032
    %6252 = vmatpush.msra.mxu0 %v6031
    %6253 = vmatpush.msra.mxu0 %v6030
    %6254 = vmatpush.msra.mxu0 %v6029
    %6255 = vmatpush.msra.mxu0 %v6028
    %6256 = vmatpush.msra.mxu0 %v6027
    %6257 = vmatpush.msra.mxu0 %v6026
    %6258 = vmatpush.msra.mxu0 %v6025
    %6259 = vmatpush.msra.mxu0 %v6024
    %6260 = vmatpush.msra.mxu0 %v6023
    %6261 = vmatpush.msra.mxu0 %v6022
    %6262 = vmatpush.msra.mxu0 %v6021
    %6263 = vmatpush.msra.mxu0 %v6020
    %6264 = vmatmul.f32.gmra.mxu0 %v6225
    %v6265 = vpop.f32.mrf.mxu0
    %v6266 = vadd.f32 %v6246, %v6265
    %6267 = vdwg.mxu0
    %v6268 = vmul.f32 %v6266, %v6266
    %v6269 = vsel %vm718, %v6268, 0.0
    %6270 = vadd.xlane.f32.xlu0 %v6269
    %v6271 = vpop.xlane.xlu0 %6270
    %v6272 = vadd.f32 %v6271, 1e-12
    %v6273 = vrsqrt.pop %v6272
    %v6274 = vmul.f32 %v6273, %v6272
    %v6275 = vmul.f32 %v6274, %v6273
    %v6276 = vmul.f32 0.5, %v6275
    %v6277 = vsub.f32 1.5, %v6276
    %v6278 = vmul.f32 %v6273, %v6277
    %vm6279 = vweird.f32 %v6272
    %vm6280 = vweird.f32 %v6273
    %vm6281 = vmor %vm6279, %vm6280
    %v6282 = vsel %vm6281, %v6273, %v6278
    %v6283 = vmul.f32 %v6266, %v6282
    %v6285 = vrot.slane %v6283, 1
    %6287 = vst [vmem:[#allocation4 + $0x6] sm:$0x1] %v6283
    %6288 = vst [vmem:[#allocation4 + $0xe] sm:$0x1] %v6285
    %v6289 = vld [vmem:[%s0] sm:$0xff]
    %v6290 = vld [vmem:[%s0 + $0x8] sm:$0xff]
    %v6291 = vld [vmem:[%s0 + $0x10] sm:$0xff]
    %v6292 = vld [vmem:[%s0 + $0x18] sm:$0xff]
    %v6293 = vld [vmem:[%s0 + $0x20] sm:$0xff]
    %v6294 = vld [vmem:[%s0 + $0x28] sm:$0xff]
    %v6295 = vld [vmem:[%s0 + $0x30] sm:$0xff]
    %v6296 = vld [vmem:[%s0 + $0x38] sm:$0xff]
    %v6297 = vld [vmem:[%s0 + $0x40] sm:$0xff]
    %v6298 = vld [vmem:[%s0 + $0x48] sm:$0xff]
    %v6299 = vld [vmem:[%s0 + $0x50] sm:$0xff]
    %v6300 = vld [vmem:[%s0 + $0x58] sm:$0xff]
    %v6301 = vld [vmem:[%s0 + $0x60] sm:$0xff]
    %v6302 = vld [vmem:[%s0 + $0x68] sm:$0xff]
    %v6303 = vld [vmem:[%s0 + $0x70] sm:$0xff]
    %v6304 = vld [vmem:[%s0 + $0x78] sm:$0xff]
    %v6305 = vld [vmem:[%s0 + $0x80] sm:$0xff]
    %v6306 = vld [vmem:[%s0 + $0x88] sm:$0xff]
    %v6307 = vld [vmem:[%s0 + $0x90] sm:$0xff]
    %v6308 = vld [vmem:[%s0 + $0x98] sm:$0xff]
    %v6309 = vld [vmem:[%s0 + $0xa0] sm:$0xff]
    %v6310 = vld [vmem:[%s0 + $0xa8] sm:$0xff]
    %v6311 = vld [vmem:[%s0 + $0xb0] sm:$0xff]
    %v6312 = vld [vmem:[%s0 + $0xb8] sm:$0xff]
    %v6313 = vld [vmem:[%s0 + $0xc0] sm:$0xff]
    %v6314 = vld [vmem:[%s0 + $0xc8] sm:$0xff]
    %v6315 = vld [vmem:[%s0 + $0xd0] sm:$0xff]
    %v6316 = vld [vmem:[%s0 + $0xd8] sm:$0xff]
    %v6317 = vld [vmem:[%s0 + $0xe0] sm:$0xff]
    %v6318 = vld [vmem:[%s0 + $0xe8] sm:$0xff]
    %v6319 = vld [vmem:[%s0 + $0xf0] sm:$0xff]
    %v6320 = vld [vmem:[%s0 + $0xf8] sm:$0xff]
    %v6321 = vld [vmem:[%s0 + $0x100] sm:$0xff]
    %v6322 = vld [vmem:[%s0 + $0x108] sm:$0xff]
    %v6323 = vld [vmem:[%s0 + $0x110] sm:$0xff]
    %v6324 = vld [vmem:[%s0 + $0x118] sm:$0xff]
    %v6325 = vld [vmem:[%s0 + $0x120] sm:$0xff]
    %v6326 = vld [vmem:[%s0 + $0x128] sm:$0xff]
    %v6327 = vld [vmem:[%s0 + $0x130] sm:$0xff]
    %v6328 = vld [vmem:[%s0 + $0x138] sm:$0xff]
    %v6329 = vld [vmem:[%s0 + $0x140] sm:$0xff]
    %v6330 = vld [vmem:[%s0 + $0x148] sm:$0xff]
    %v6331 = vld [vmem:[%s0 + $0x150] sm:$0xff]
    %v6332 = vld [vmem:[%s0 + $0x158] sm:$0xff]
    %v6333 = vld [vmem:[%s0 + $0x160] sm:$0xff]
    %v6334 = vld [vmem:[%s0 + $0x168] sm:$0xff]
    %v6335 = vld [vmem:[%s0 + $0x170] sm:$0xff]
    %v6336 = vld [vmem:[%s0 + $0x178] sm:$0xff]
    %v6337 = vld [vmem:[%s0 + $0x180] sm:$0xff]
    %v6338 = vld [vmem:[%s0 + $0x188] sm:$0xff]
    %v6339 = vld [vmem:[%s0 + $0x190] sm:$0xff]
    %v6340 = vld [vmem:[%s0 + $0x198] sm:$0xff]
    %v6341 = vld [vmem:[%s0 + $0x1a0] sm:$0xff]
    %v6342 = vld [vmem:[%s0 + $0x1a8] sm:$0xff]
    %v6343 = vld [vmem:[%s0 + $0x1b0] sm:$0xff]
    %v6344 = vld [vmem:[%s0 + $0x1b8] sm:$0xff]
    %v6345 = vld [vmem:[%s0 + $0x1c0] sm:$0xff]
    %v6346 = vld [vmem:[%s0 + $0x1c8] sm:$0xff]
    %v6347 = vld [vmem:[%s0 + $0x1d0] sm:$0xff]
    %v6348 = vld [vmem:[%s0 + $0x1d8] sm:$0xff]
    %v6349 = vld [vmem:[%s0 + $0x1e0] sm:$0xff]
    %v6350 = vld [vmem:[%s0 + $0x1e8] sm:$0xff]
    %v6351 = vld [vmem:[%s0 + $0x1f0] sm:$0xff]
    %v6352 = vld [vmem:[%s0 + $0x1f8] sm:$0xff]
    %6417 = vrot.lane.b32.xlu0 %v6289, 72
    %v6418 = vpop.permute.xlu0 %6417
    %6419 = vrot.lane.b32.xlu0 %v6290, 72
    %v6420 = vpop.permute.xlu0 %6419
    %6421 = vrot.lane.b32.xlu0 %v6291, 72
    %v6422 = vpop.permute.xlu0 %6421
    %6423 = vrot.lane.b32.xlu0 %v6292, 72
    %v6424 = vpop.permute.xlu0 %6423
    %6425 = vrot.lane.b32.xlu0 %v6293, 72
    %v6426 = vpop.permute.xlu0 %6425
    %6427 = vrot.lane.b32.xlu0 %v6294, 72
    %v6428 = vpop.permute.xlu0 %6427
    %6429 = vrot.lane.b32.xlu0 %v6295, 72
    %v6430 = vpop.permute.xlu0 %6429
    %6431 = vrot.lane.b32.xlu0 %v6296, 72
    %v6432 = vpop.permute.xlu0 %6431
    %6433 = vrot.lane.b32.xlu0 %v6297, 72
    %v6434 = vpop.permute.xlu0 %6433
    %6435 = vrot.lane.b32.xlu0 %v6298, 72
    %v6436 = vpop.permute.xlu0 %6435
    %6437 = vrot.lane.b32.xlu0 %v6299, 72
    %v6438 = vpop.permute.xlu0 %6437
    %6439 = vrot.lane.b32.xlu0 %v6300, 72
    %v6440 = vpop.permute.xlu0 %6439
    %6441 = vrot.lane.b32.xlu0 %v6301, 72
    %v6442 = vpop.permute.xlu0 %6441
    %6443 = vrot.lane.b32.xlu0 %v6302, 72
    %v6444 = vpop.permute.xlu0 %6443
    %6445 = vrot.lane.b32.xlu0 %v6303, 72
    %v6446 = vpop.permute.xlu0 %6445
    %6447 = vrot.lane.b32.xlu0 %v6304, 72
    %v6448 = vpop.permute.xlu0 %6447
    %6449 = vrot.lane.b32.xlu0 %v6305, 72
    %v6450 = vpop.permute.xlu0 %6449
    %6451 = vrot.lane.b32.xlu0 %v6306, 72
    %v6452 = vpop.permute.xlu0 %6451
    %6453 = vrot.lane.b32.xlu0 %v6307, 72
    %v6454 = vpop.permute.xlu0 %6453
    %6455 = vrot.lane.b32.xlu0 %v6308, 72
    %v6456 = vpop.permute.xlu0 %6455
    %6457 = vrot.lane.b32.xlu0 %v6309, 72
    %v6458 = vpop.permute.xlu0 %6457
    %6459 = vrot.lane.b32.xlu0 %v6310, 72
    %v6460 = vpop.permute.xlu0 %6459
    %6461 = vrot.lane.b32.xlu0 %v6311, 72
    %v6462 = vpop.permute.xlu0 %6461
    %6463 = vrot.lane.b32.xlu0 %v6312, 72
    %v6464 = vpop.permute.xlu0 %6463
    %6465 = vrot.lane.b32.xlu0 %v6313, 72
    %v6466 = vpop.permute.xlu0 %6465
    %6467 = vrot.lane.b32.xlu0 %v6314, 72
    %v6468 = vpop.permute.xlu0 %6467
    %6469 = vrot.lane.b32.xlu0 %v6315, 72
    %v6470 = vpop.permute.xlu0 %6469
    %6471 = vrot.lane.b32.xlu0 %v6316, 72
    %v6472 = vpop.permute.xlu0 %6471
    %6473 = vrot.lane.b32.xlu0 %v6317, 72
    %v6474 = vpop.permute.xlu0 %6473
    %6475 = vrot.lane.b32.xlu0 %v6318, 72
    %v6476 = vpop.permute.xlu0 %6475
    %6477 = vrot.lane.b32.xlu0 %v6319, 72
    %v6478 = vpop.permute.xlu0 %6477
    %6479 = vrot.lane.b32.xlu0 %v6320, 72
    %v6480 = vpop.permute.xlu0 %6479
    %6481 = vrot.lane.b32.xlu0 %v6321, 72
    %v6482 = vpop.permute.xlu0 %6481
    %6483 = vrot.lane.b32.xlu0 %v6322, 72
    %v6484 = vpop.permute.xlu0 %6483
    %6485 = vrot.lane.b32.xlu0 %v6323, 72
    %v6486 = vpop.permute.xlu0 %6485
    %6487 = vrot.lane.b32.xlu0 %v6324, 72
    %v6488 = vpop.permute.xlu0 %6487
    %6489 = vrot.lane.b32.xlu0 %v6325, 72
    %v6490 = vpop.permute.xlu0 %6489
    %6491 = vrot.lane.b32.xlu0 %v6326, 72
    %v6492 = vpop.permute.xlu0 %6491
    %6493 = vrot.lane.b32.xlu0 %v6327, 72
    %v6494 = vpop.permute.xlu0 %6493
    %6495 = vrot.lane.b32.xlu0 %v6328, 72
    %v6496 = vpop.permute.xlu0 %6495
    %6497 = vrot.lane.b32.xlu0 %v6329, 72
    %v6498 = vpop.permute.xlu0 %6497
    %6499 = vrot.lane.b32.xlu0 %v6330, 72
    %v6500 = vpop.permute.xlu0 %6499
    %6501 = vrot.lane.b32.xlu0 %v6331, 72
    %v6502 = vpop.permute.xlu0 %6501
    %6503 = vrot.lane.b32.xlu0 %v6332, 72
    %v6504 = vpop.permute.xlu0 %6503
    %6505 = vrot.lane.b32.xlu0 %v6333, 72
    %v6506 = vpop.permute.xlu0 %6505
    %6507 = vrot.lane.b32.xlu0 %v6334, 72
    %v6508 = vpop.permute.xlu0 %6507
    %6509 = vrot.lane.b32.xlu0 %v6335, 72
    %v6510 = vpop.permute.xlu0 %6509
    %6511 = vrot.lane.b32.xlu0 %v6336, 72
    %v6512 = vpop.permute.xlu0 %6511
    %6513 = vrot.lane.b32.xlu0 %v6337, 72
    %v6514 = vpop.permute.xlu0 %6513
    %6515 = vrot.lane.b32.xlu0 %v6338, 72
    %v6516 = vpop.permute.xlu0 %6515
    %6517 = vrot.lane.b32.xlu0 %v6339, 72
    %v6518 = vpop.permute.xlu0 %6517
    %6519 = vrot.lane.b32.xlu0 %v6340, 72
    %v6520 = vpop.permute.xlu0 %6519
    %6521 = vrot.lane.b32.xlu0 %v6341, 72
    %v6522 = vpop.permute.xlu0 %6521
    %6523 = vrot.lane.b32.xlu0 %v6342, 72
    %v6524 = vpop.permute.xlu0 %6523
    %6525 = vrot.lane.b32.xlu0 %v6343, 72
    %v6526 = vpop.permute.xlu0 %6525
    %6527 = vrot.lane.b32.xlu0 %v6344, 72
    %v6528 = vpop.permute.xlu0 %6527
    %6529 = vrot.lane.b32.xlu0 %v6345, 72
    %v6530 = vpop.permute.xlu0 %6529
    %6531 = vrot.lane.b32.xlu0 %v6346, 72
    %v6532 = vpop.permute.xlu0 %6531
    %6533 = vrot.lane.b32.xlu0 %v6347, 72
    %v6534 = vpop.permute.xlu0 %6533
    %6535 = vrot.lane.b32.xlu0 %v6348, 72
    %v6536 = vpop.permute.xlu0 %6535
    %6537 = vrot.lane.b32.xlu0 %v6349, 72
    %v6538 = vpop.permute.xlu0 %6537
    %6539 = vrot.lane.b32.xlu0 %v6350, 72
    %v6540 = vpop.permute.xlu0 %6539
    %6541 = vrot.lane.b32.xlu0 %v6351, 72
    %v6542 = vpop.permute.xlu0 %6541
    %6543 = vrot.lane.b32.xlu0 %v6352, 72
    %v6544 = vpop.permute.xlu0 %6543
    %v6609 = vsel %vm96, %v6418, 0.0
    %6610 = vadd.xlane.f32.xlu0 %v6609
    %v6611 = vpop.xlane.xlu0 %6610
    %v6612 = vsel %vm96, %v6420, 0.0
    %6613 = vadd.xlane.f32.xlu0 %v6612
    %v6614 = vpop.xlane.xlu0 %6613
    %v6615 = vsel %vm96, %v6422, 0.0
    %6616 = vadd.xlane.f32.xlu0 %v6615
    %v6617 = vpop.xlane.xlu0 %6616
    %v6618 = vsel %vm96, %v6424, 0.0
    %6619 = vadd.xlane.f32.xlu0 %v6618
    %v6620 = vpop.xlane.xlu0 %6619
    %v6621 = vsel %vm96, %v6426, 0.0
    %6622 = vadd.xlane.f32.xlu0 %v6621
    %v6623 = vpop.xlane.xlu0 %6622
    %v6624 = vsel %vm96, %v6428, 0.0
    %6625 = vadd.xlane.f32.xlu0 %v6624
    %v6626 = vpop.xlane.xlu0 %6625
    %v6627 = vsel %vm96, %v6430, 0.0
    %6628 = vadd.xlane.f32.xlu0 %v6627
    %v6629 = vpop.xlane.xlu0 %6628
    %v6630 = vsel %vm96, %v6432, 0.0
    %6631 = vadd.xlane.f32.xlu0 %v6630
    %v6632 = vpop.xlane.xlu0 %6631
    %v6633 = vsel %vm96, %v6434, 0.0
    %6634 = vadd.xlane.f32.xlu0 %v6633
    %v6635 = vpop.xlane.xlu0 %6634
    %v6636 = vsel %vm96, %v6436, 0.0
    %6637 = vadd.xlane.f32.xlu0 %v6636
    %v6638 = vpop.xlane.xlu0 %6637
    %v6639 = vsel %vm96, %v6438, 0.0
    %6640 = vadd.xlane.f32.xlu0 %v6639
    %v6641 = vpop.xlane.xlu0 %6640
    %v6642 = vsel %vm96, %v6440, 0.0
    %6643 = vadd.xlane.f32.xlu0 %v6642
    %v6644 = vpop.xlane.xlu0 %6643
    %v6645 = vsel %vm96, %v6442, 0.0
    %6646 = vadd.xlane.f32.xlu0 %v6645
    %v6647 = vpop.xlane.xlu0 %6646
    %v6648 = vsel %vm96, %v6444, 0.0
    %6649 = vadd.xlane.f32.xlu0 %v6648
    %v6650 = vpop.xlane.xlu0 %6649
    %v6651 = vsel %vm96, %v6446, 0.0
    %6652 = vadd.xlane.f32.xlu0 %v6651
    %v6653 = vpop.xlane.xlu0 %6652
    %v6654 = vsel %vm96, %v6448, 0.0
    %6655 = vadd.xlane.f32.xlu0 %v6654
    %v6656 = vpop.xlane.xlu0 %6655
    %v6657 = vsel %vm96, %v6450, 0.0
    %6658 = vadd.xlane.f32.xlu0 %v6657
    %v6659 = vpop.xlane.xlu0 %6658
    %v6660 = vsel %vm96, %v6452, 0.0
    %6661 = vadd.xlane.f32.xlu0 %v6660
    %v6662 = vpop.xlane.xlu0 %6661
    %v6663 = vsel %vm96, %v6454, 0.0
    %6664 = vadd.xlane.f32.xlu0 %v6663
    %v6665 = vpop.xlane.xlu0 %6664
    %v6666 = vsel %vm96, %v6456, 0.0
    %6667 = vadd.xlane.f32.xlu0 %v6666
    %v6668 = vpop.xlane.xlu0 %6667
    %v6669 = vsel %vm96, %v6458, 0.0
    %6670 = vadd.xlane.f32.xlu0 %v6669
    %v6671 = vpop.xlane.xlu0 %6670
    %v6672 = vsel %vm96, %v6460, 0.0
    %6673 = vadd.xlane.f32.xlu0 %v6672
    %v6674 = vpop.xlane.xlu0 %6673
    %v6675 = vsel %vm96, %v6462, 0.0
    %6676 = vadd.xlane.f32.xlu0 %v6675
    %v6677 = vpop.xlane.xlu0 %6676
    %v6678 = vsel %vm96, %v6464, 0.0
    %6679 = vadd.xlane.f32.xlu0 %v6678
    %v6680 = vpop.xlane.xlu0 %6679
    %v6681 = vsel %vm96, %v6466, 0.0
    %6682 = vadd.xlane.f32.xlu0 %v6681
    %v6683 = vpop.xlane.xlu0 %6682
    %v6684 = vsel %vm96, %v6468, 0.0
    %6685 = vadd.xlane.f32.xlu0 %v6684
    %v6686 = vpop.xlane.xlu0 %6685
    %v6687 = vsel %vm96, %v6470, 0.0
    %6688 = vadd.xlane.f32.xlu0 %v6687
    %v6689 = vpop.xlane.xlu0 %6688
    %v6690 = vsel %vm96, %v6472, 0.0
    %6691 = vadd.xlane.f32.xlu0 %v6690
    %v6692 = vpop.xlane.xlu0 %6691
    %v6693 = vsel %vm96, %v6474, 0.0
    %6694 = vadd.xlane.f32.xlu0 %v6693
    %v6695 = vpop.xlane.xlu0 %6694
    %v6696 = vsel %vm96, %v6476, 0.0
    %6697 = vadd.xlane.f32.xlu0 %v6696
    %v6698 = vpop.xlane.xlu0 %6697
    %v6699 = vsel %vm96, %v6478, 0.0
    %6700 = vadd.xlane.f32.xlu0 %v6699
    %v6701 = vpop.xlane.xlu0 %6700
    %v6702 = vsel %vm96, %v6480, 0.0
    %6703 = vadd.xlane.f32.xlu0 %v6702
    %v6704 = vpop.xlane.xlu0 %6703
    %v6705 = vsel %vm96, %v6482, 0.0
    %6706 = vadd.xlane.f32.xlu0 %v6705
    %v6707 = vpop.xlane.xlu0 %6706
    %v6708 = vsel %vm96, %v6484, 0.0
    %6709 = vadd.xlane.f32.xlu0 %v6708
    %v6710 = vpop.xlane.xlu0 %6709
    %v6711 = vsel %vm96, %v6486, 0.0
    %6712 = vadd.xlane.f32.xlu0 %v6711
    %v6713 = vpop.xlane.xlu0 %6712
    %v6714 = vsel %vm96, %v6488, 0.0
    %6715 = vadd.xlane.f32.xlu0 %v6714
    %v6716 = vpop.xlane.xlu0 %6715
    %v6717 = vsel %vm96, %v6490, 0.0
    %6718 = vadd.xlane.f32.xlu0 %v6717
    %v6719 = vpop.xlane.xlu0 %6718
    %v6720 = vsel %vm96, %v6492, 0.0
    %6721 = vadd.xlane.f32.xlu0 %v6720
    %v6722 = vpop.xlane.xlu0 %6721
    %v6723 = vsel %vm96, %v6494, 0.0
    %6724 = vadd.xlane.f32.xlu0 %v6723
    %v6725 = vpop.xlane.xlu0 %6724
    %v6726 = vsel %vm96, %v6496, 0.0
    %6727 = vadd.xlane.f32.xlu0 %v6726
    %v6728 = vpop.xlane.xlu0 %6727
    %v6729 = vsel %vm96, %v6498, 0.0
    %6730 = vadd.xlane.f32.xlu0 %v6729
    %v6731 = vpop.xlane.xlu0 %6730
    %v6732 = vsel %vm96, %v6500, 0.0
    %6733 = vadd.xlane.f32.xlu0 %v6732
    %v6734 = vpop.xlane.xlu0 %6733
    %v6735 = vsel %vm96, %v6502, 0.0
    %6736 = vadd.xlane.f32.xlu0 %v6735
    %v6737 = vpop.xlane.xlu0 %6736
    %v6738 = vsel %vm96, %v6504, 0.0
    %6739 = vadd.xlane.f32.xlu0 %v6738
    %v6740 = vpop.xlane.xlu0 %6739
    %v6741 = vsel %vm96, %v6506, 0.0
    %6742 = vadd.xlane.f32.xlu0 %v6741
    %v6743 = vpop.xlane.xlu0 %6742
    %v6744 = vsel %vm96, %v6508, 0.0
    %6745 = vadd.xlane.f32.xlu0 %v6744
    %v6746 = vpop.xlane.xlu0 %6745
    %v6747 = vsel %vm96, %v6510, 0.0
    %6748 = vadd.xlane.f32.xlu0 %v6747
    %v6749 = vpop.xlane.xlu0 %6748
    %v6750 = vsel %vm96, %v6512, 0.0
    %6751 = vadd.xlane.f32.xlu0 %v6750
    %v6752 = vpop.xlane.xlu0 %6751
    %v6753 = vsel %vm96, %v6514, 0.0
    %6754 = vadd.xlane.f32.xlu0 %v6753
    %v6755 = vpop.xlane.xlu0 %6754
    %v6756 = vsel %vm96, %v6516, 0.0
    %6757 = vadd.xlane.f32.xlu0 %v6756
    %v6758 = vpop.xlane.xlu0 %6757
    %v6759 = vsel %vm96, %v6518, 0.0
    %6760 = vadd.xlane.f32.xlu0 %v6759
    %v6761 = vpop.xlane.xlu0 %6760
    %v6762 = vsel %vm96, %v6520, 0.0
    %6763 = vadd.xlane.f32.xlu0 %v6762
    %v6764 = vpop.xlane.xlu0 %6763
    %v6765 = vsel %vm96, %v6522, 0.0
    %6766 = vadd.xlane.f32.xlu0 %v6765
    %v6767 = vpop.xlane.xlu0 %6766
    %v6768 = vsel %vm96, %v6524, 0.0
    %6769 = vadd.xlane.f32.xlu0 %v6768
    %v6770 = vpop.xlane.xlu0 %6769
    %v6771 = vsel %vm96, %v6526, 0.0
    %6772 = vadd.xlane.f32.xlu0 %v6771
    %v6773 = vpop.xlane.xlu0 %6772
    %v6774 = vsel %vm96, %v6528, 0.0
    %6775 = vadd.xlane.f32.xlu0 %v6774
    %v6776 = vpop.xlane.xlu0 %6775
    %v6777 = vsel %vm96, %v6530, 0.0
    %6778 = vadd.xlane.f32.xlu0 %v6777
    %v6779 = vpop.xlane.xlu0 %6778
    %v6780 = vsel %vm96, %v6532, 0.0
    %6781 = vadd.xlane.f32.xlu0 %v6780
    %v6782 = vpop.xlane.xlu0 %6781
    %v6783 = vsel %vm96, %v6534, 0.0
    %6784 = vadd.xlane.f32.xlu0 %v6783
    %v6785 = vpop.xlane.xlu0 %6784
    %v6786 = vsel %vm96, %v6536, 0.0
    %6787 = vadd.xlane.f32.xlu0 %v6786
    %v6788 = vpop.xlane.xlu0 %6787
    %v6789 = vsel %vm96, %v6538, 0.0
    %6790 = vadd.xlane.f32.xlu0 %v6789
    %v6791 = vpop.xlane.xlu0 %6790
    %v6792 = vsel %vm96, %v6540, 0.0
    %6793 = vadd.xlane.f32.xlu0 %v6792
    %v6794 = vpop.xlane.xlu0 %6793
    %v6795 = vsel %vm96, %v6542, 0.0
    %6796 = vadd.xlane.f32.xlu0 %v6795
    %v6797 = vpop.xlane.xlu0 %6796
    %v6798 = vsel %vm96, %v6544, 0.0
    %6799 = vadd.xlane.f32.xlu0 %v6798
    %v6800 = vpop.xlane.xlu0 %6799
    %v6801 = vmul.f32 %v6611, 0.125
    %v6802 = vmul.f32 %v6614, 0.125
    %v6803 = vmul.f32 %v6617, 0.125
    %v6804 = vmul.f32 %v6620, 0.125
    %v6805 = vmul.f32 %v6623, 0.125
    %v6806 = vmul.f32 %v6626, 0.125
    %v6807 = vmul.f32 %v6629, 0.125
    %v6808 = vmul.f32 %v6632, 0.125
    %v6809 = vmul.f32 %v6635, 0.125
    %v6810 = vmul.f32 %v6638, 0.125
    %v6811 = vmul.f32 %v6641, 0.125
    %v6812 = vmul.f32 %v6644, 0.125
    %v6813 = vmul.f32 %v6647, 0.125
    %v6814 = vmul.f32 %v6650, 0.125
    %v6815 = vmul.f32 %v6653, 0.125
    %v6816 = vmul.f32 %v6656, 0.125
    %v6817 = vmul.f32 %v6659, 0.125
    %v6818 = vmul.f32 %v6662, 0.125
    %v6819 = vmul.f32 %v6665, 0.125
    %v6820 = vmul.f32 %v6668, 0.125
    %v6821 = vmul.f32 %v6671, 0.125
    %v6822 = vmul.f32 %v6674, 0.125
    %v6823 = vmul.f32 %v6677, 0.125
    %v6824 = vmul.f32 %v6680, 0.125
    %v6825 = vmul.f32 %v6683, 0.125
    %v6826 = vmul.f32 %v6686, 0.125
    %v6827 = vmul.f32 %v6689, 0.125
    %v6828 = vmul.f32 %v6692, 0.125
    %v6829 = vmul.f32 %v6695, 0.125
    %v6830 = vmul.f32 %v6698, 0.125
    %v6831 = vmul.f32 %v6701, 0.125
    %v6832 = vmul.f32 %v6704, 0.125
    %v6833 = vmul.f32 %v6707, 0.125
    %v6834 = vmul.f32 %v6710, 0.125
    %v6835 = vmul.f32 %v6713, 0.125
    %v6836 = vmul.f32 %v6716, 0.125
    %v6837 = vmul.f32 %v6719, 0.125
    %v6838 = vmul.f32 %v6722, 0.125
    %v6839 = vmul.f32 %v6725, 0.125
    %v6840 = vmul.f32 %v6728, 0.125
    %v6841 = vmul.f32 %v6731, 0.125
    %v6842 = vmul.f32 %v6734, 0.125
    %v6843 = vmul.f32 %v6737, 0.125
    %v6844 = vmul.f32 %v6740, 0.125
    %v6845 = vmul.f32 %v6743, 0.125
    %v6846 = vmul.f32 %v6746, 0.125
    %v6847 = vmul.f32 %v6749, 0.125
    %v6848 = vmul.f32 %v6752, 0.125
    %v6849 = vmul.f32 %v6755, 0.125
    %v6850 = vmul.f32 %v6758, 0.125
    %v6851 = vmul.f32 %v6761, 0.125
    %v6852 = vmul.f32 %v6764, 0.125
    %v6853 = vmul.f32 %v6767, 0.125
    %v6854 = vmul.f32 %v6770, 0.125
    %v6855 = vmul.f32 %v6773, 0.125
    %v6856 = vmul.f32 %v6776, 0.125
    %v6857 = vmul.f32 %v6779, 0.125
    %v6858 = vmul.f32 %v6782, 0.125
    %v6859 = vmul.f32 %v6785, 0.125
    %v6860 = vmul.f32 %v6788, 0.125
    %v6861 = vmul.f32 %v6791, 0.125
    %v6862 = vmul.f32 %v6794, 0.125
    %v6863 = vmul.f32 %v6797, 0.125
    %v6864 = vmul.f32 %v6800, 0.125
    %v6865 = vadd.f32 %v5940, %v6801
    %v6866 = vadd.f32 %v5941, %v6802
    %v6867 = vadd.f32 %v5942, %v6803
    %v6868 = vadd.f32 %v5943, %v6804
    %v6869 = vadd.f32 %v5944, %v6805
    %v6870 = vadd.f32 %v5945, %v6806
    %v6871 = vadd.f32 %v5946, %v6807
    %v6872 = vadd.f32 %v5947, %v6808
    %v6873 = vadd.f32 %v5948, %v6809
    %v6874 = vadd.f32 %v5949, %v6810
    %v6875 = vadd.f32 %v5950, %v6811
    %v6876 = vadd.f32 %v5951, %v6812
    %v6877 = vadd.f32 %v5952, %v6813
    %v6878 = vadd.f32 %v5953, %v6814
    %v6879 = vadd.f32 %v5954, %v6815
    %v6880 = vadd.f32 %v5955, %v6816
    %v6881 = vadd.f32 %v5956, %v6817
    %v6882 = vadd.f32 %v5957, %v6818
    %v6883 = vadd.f32 %v5958, %v6819
    %v6884 = vadd.f32 %v5959, %v6820
    %v6885 = vadd.f32 %v5960, %v6821
    %v6886 = vadd.f32 %v5961, %v6822
    %v6887 = vadd.f32 %v5962, %v6823
    %v6888 = vadd.f32 %v5963, %v6824
    %v6889 = vadd.f32 %v5964, %v6825
    %v6890 = vadd.f32 %v5965, %v6826
    %v6891 = vadd.f32 %v5966, %v6827
    %v6892 = vadd.f32 %v5967, %v6828
    %v6893 = vadd.f32 %v5968, %v6829
    %v6894 = vadd.f32 %v5969, %v6830
    %v6895 = vadd.f32 %v5970, %v6831
    %v6896 = vadd.f32 %v5971, %v6832
    %v6897 = vadd.f32 %v5972, %v6833
    %v6898 = vadd.f32 %v5973, %v6834
    %v6899 = vadd.f32 %v5974, %v6835
    %v6900 = vadd.f32 %v5975, %v6836
    %v6901 = vadd.f32 %v5976, %v6837
    %v6902 = vadd.f32 %v5977, %v6838
    %v6903 = vadd.f32 %v5978, %v6839
    %v6904 = vadd.f32 %v5979, %v6840
    %v6905 = vadd.f32 %v5980, %v6841
    %v6906 = vadd.f32 %v5981, %v6842
    %v6907 = vadd.f32 %v5982, %v6843
    %v6908 = vadd.f32 %v5983, %v6844
    %v6909 = vadd.f32 %v5984, %v6845
    %v6910 = vadd.f32 %v5985, %v6846
    %v6911 = vadd.f32 %v5986, %v6847
    %v6912 = vadd.f32 %v5987, %v6848
    %v6913 = vadd.f32 %v5988, %v6849
    %v6914 = vadd.f32 %v5989, %v6850
    %v6915 = vadd.f32 %v5990, %v6851
    %v6916 = vadd.f32 %v5991, %v6852
    %v6917 = vadd.f32 %v5992, %v6853
    %v6918 = vadd.f32 %v5993, %v6854
    %v6919 = vadd.f32 %v5994, %v6855
    %v6920 = vadd.f32 %v5995, %v6856
    %v6921 = vadd.f32 %v5996, %v6857
    %v6922 = vadd.f32 %v5997, %v6858
    %v6923 = vadd.f32 %v5998, %v6859
    %v6924 = vadd.f32 %v5999, %v6860
    %v6925 = vadd.f32 %v6000, %v6861
    %v6926 = vadd.f32 %v6001, %v6862
    %v6927 = vadd.f32 %v6002, %v6863
    %v6928 = vadd.f32 %v6003, %v6864
    %v6929 = vld [vmem:[%s1] sm:$0xff]
    %v6930 = vld [vmem:[%s1 + $0x8] sm:$0xff]
    %v6931 = vld [vmem:[%s1 + $0x10] sm:$0xff]
    %v6932 = vld [vmem:[%s1 + $0x18] sm:$0xff]
    %v6933 = vld [vmem:[%s1 + $0x20] sm:$0xff]
    %v6934 = vld [vmem:[%s1 + $0x28] sm:$0xff]
    %v6935 = vld [vmem:[%s1 + $0x30] sm:$0xff]
    %v6936 = vld [vmem:[%s1 + $0x38] sm:$0xff]
    %v6937 = vld [vmem:[%s1 + $0x40] sm:$0xff]
    %v6938 = vld [vmem:[%s1 + $0x48] sm:$0xff]
    %v6939 = vld [vmem:[%s1 + $0x50] sm:$0xff]
    %v6940 = vld [vmem:[%s1 + $0x58] sm:$0xff]
    %v6941 = vld [vmem:[%s1 + $0x60] sm:$0xff]
    %v6942 = vld [vmem:[%s1 + $0x68] sm:$0xff]
    %v6943 = vld [vmem:[%s1 + $0x70] sm:$0xff]
    %v6944 = vld [vmem:[%s1 + $0x78] sm:$0xff]
    %v6945 = vld [vmem:[%s1 + $0x80] sm:$0xff]
    %v6946 = vld [vmem:[%s1 + $0x88] sm:$0xff]
    %v6947 = vld [vmem:[%s1 + $0x90] sm:$0xff]
    %v6948 = vld [vmem:[%s1 + $0x98] sm:$0xff]
    %v6949 = vld [vmem:[%s1 + $0xa0] sm:$0xff]
    %v6950 = vld [vmem:[%s1 + $0xa8] sm:$0xff]
    %v6951 = vld [vmem:[%s1 + $0xb0] sm:$0xff]
    %v6952 = vld [vmem:[%s1 + $0xb8] sm:$0xff]
    %v6953 = vld [vmem:[%s1 + $0xc0] sm:$0xff]
    %v6954 = vld [vmem:[%s1 + $0xc8] sm:$0xff]
    %v6955 = vld [vmem:[%s1 + $0xd0] sm:$0xff]
    %v6956 = vld [vmem:[%s1 + $0xd8] sm:$0xff]
    %v6957 = vld [vmem:[%s1 + $0xe0] sm:$0xff]
    %v6958 = vld [vmem:[%s1 + $0xe8] sm:$0xff]
    %v6959 = vld [vmem:[%s1 + $0xf0] sm:$0xff]
    %v6960 = vld [vmem:[%s1 + $0xf8] sm:$0xff]
    %v7025 = vperm.slane %v6801, %v517
    %v7026 = vperm.slane %v6802, %v519
    %v7027 = vsel %vm521, %v7026, %v7025
    %v7028 = vperm.slane %v6803, %v523
    %v7029 = vsel %vm525, %v7028, %v7027
    %v7030 = vperm.slane %v6804, %v527
    %v7031 = vsel %vm529, %v7030, %v7029
    %v7032 = vperm.slane %v6805, %v531
    %v7033 = vsel %vm533, %v7032, %v7031
    %v7034 = vperm.slane %v6806, %v535
    %v7035 = vsel %vm537, %v7034, %v7033
    %v7036 = vperm.slane %v6807, %v539
    %v7037 = vsel %vm541, %v7036, %v7035
    %v7038 = vperm.slane %v6808, %v543
    %v7039 = vsel %vm545, %v7038, %v7037
    %v7040 = vperm.slane %v6809, %v547
    %v7041 = vsel %vm549, %v7040, %v7039
    %v7042 = vperm.slane %v6810, %v551
    %v7043 = vsel %vm553, %v7042, %v7041
    %v7044 = vperm.slane %v6811, %v555
    %v7045 = vsel %vm557, %v7044, %v7043
    %v7046 = vperm.slane %v6812, %v559
    %v7047 = vsel %vm561, %v7046, %v7045
    %v7048 = vperm.slane %v6813, %v563
    %v7049 = vsel %vm565, %v7048, %v7047
    %v7050 = vperm.slane %v6814, %v567
    %v7051 = vsel %vm569, %v7050, %v7049
    %v7052 = vperm.slane %v6815, %v571
    %v7053 = vsel %vm573, %v7052, %v7051
    %v7054 = vperm.slane %v6816, %v575
    %v7055 = vsel %vm577, %v7054, %v7053
    %v7056 = vperm.slane %v6817, %v517
    %v7057 = vperm.slane %v6818, %v519
    %v7058 = vsel %vm521, %v7057, %v7056
    %v7059 = vperm.slane %v6819, %v523
    %v7060 = vsel %vm525, %v7059, %v7058
    %v7061 = vperm.slane %v6820, %v527
    %v7062 = vsel %vm529, %v7061, %v7060
    %v7063 = vperm.slane %v6821, %v531
    %v7064 = vsel %vm533, %v7063, %v7062
    %v7065 = vperm.slane %v6822, %v535
    %v7066 = vsel %vm537, %v7065, %v7064
    %v7067 = vperm.slane %v6823, %v539
    %v7068 = vsel %vm541, %v7067, %v7066
    %v7069 = vperm.slane %v6824, %v543
    %v7070 = vsel %vm545, %v7069, %v7068
    %v7071 = vperm.slane %v6825, %v547
    %v7072 = vsel %vm549, %v7071, %v7070
    %v7073 = vperm.slane %v6826, %v551
    %v7074 = vsel %vm553, %v7073, %v7072
    %v7075 = vperm.slane %v6827, %v555
    %v7076 = vsel %vm557, %v7075, %v7074
    %v7077 = vperm.slane %v6828, %v559
    %v7078 = vsel %vm561, %v7077, %v7076
    %v7079 = vperm.slane %v6829, %v563
    %v7080 = vsel %vm565, %v7079, %v7078
    %v7081 = vperm.slane %v6830, %v567
    %v7082 = vsel %vm569, %v7081, %v7080
    %v7083 = vperm.slane %v6831, %v571
    %v7084 = vsel %vm573, %v7083, %v7082
    %v7085 = vperm.slane %v6832, %v575
    %v7086 = vsel %vm577, %v7085, %v7084
    %v7087 = vperm.slane %v6833, %v517
    %v7088 = vperm.slane %v6834, %v519
    %v7089 = vsel %vm521, %v7088, %v7087
    %v7090 = vperm.slane %v6835, %v523
    %v7091 = vsel %vm525, %v7090, %v7089
    %v7092 = vperm.slane %v6836, %v527
    %v7093 = vsel %vm529, %v7092, %v7091
    %v7094 = vperm.slane %v6837, %v531
    %v7095 = vsel %vm533, %v7094, %v7093
    %v7096 = vperm.slane %v6838, %v535
    %v7097 = vsel %vm537, %v7096, %v7095
    %v7098 = vperm.slane %v6839, %v539
    %v7099 = vsel %vm541, %v7098, %v7097
    %v7100 = vperm.slane %v6840, %v543
    %v7101 = vsel %vm545, %v7100, %v7099
    %v7102 = vperm.slane %v6841, %v547
    %v7103 = vsel %vm549, %v7102, %v7101
    %v7104 = vperm.slane %v6842, %v551
    %v7105 = vsel %vm553, %v7104, %v7103
    %v7106 = vperm.slane %v6843, %v555
    %v7107 = vsel %vm557, %v7106, %v7105
    %v7108 = vperm.slane %v6844, %v559
    %v7109 = vsel %vm561, %v7108, %v7107
    %v7110 = vperm.slane %v6845, %v563
    %v7111 = vsel %vm565, %v7110, %v7109
    %v7112 = vperm.slane %v6846, %v567
    %v7113 = vsel %vm569, %v7112, %v7111
    %v7114 = vperm.slane %v6847, %v571
    %v7115 = vsel %vm573, %v7114, %v7113
    %v7116 = vperm.slane %v6848, %v575
    %v7117 = vsel %vm577, %v7116, %v7115
    %v7118 = vperm.slane %v6849, %v517
    %v7119 = vperm.slane %v6850, %v519
    %v7120 = vsel %vm521, %v7119, %v7118
    %v7121 = vperm.slane %v6851, %v523
    %v7122 = vsel %vm525, %v7121, %v7120
    %v7123 = vperm.slane %v6852, %v527
    %v7124 = vsel %vm529, %v7123, %v7122
    %v7125 = vperm.slane %v6853, %v531
    %v7126 = vsel %vm533, %v7125, %v7124
    %v7127 = vperm.slane %v6854, %v535
    %v7128 = vsel %vm537, %v7127, %v7126
    %v7129 = vperm.slane %v6855, %v539
    %v7130 = vsel %vm541, %v7129, %v7128
    %v7131 = vperm.slane %v6856, %v543
    %v7132 = vsel %vm545, %v7131, %v7130
    %v7133 = vperm.slane %v6857, %v547
    %v7134 = vsel %vm549, %v7133, %v7132
    %v7135 = vperm.slane %v6858, %v551
    %v7136 = vsel %vm553, %v7135, %v7134
    %v7137 = vperm.slane %v6859, %v555
    %v7138 = vsel %vm557, %v7137, %v7136
    %v7139 = vperm.slane %v6860, %v559
    %v7140 = vsel %vm561, %v7139, %v7138
    %v7141 = vperm.slane %v6861, %v563
    %v7142 = vsel %vm565, %v7141, %v7140
    %v7143 = vperm.slane %v6862, %v567
    %v7144 = vsel %vm569, %v7143, %v7142
    %v7145 = vperm.slane %v6863, %v571
    %v7146 = vsel %vm573, %v7145, %v7144
    %v7147 = vperm.slane %v6864, %v575
    %v7148 = vsel %vm577, %v7147, %v7146
    %v7149 = vsel %vm672, %v7117, %v7055
    %v7150 = vsel %vm672, %v7148, %v7086
    %7153 = vmatpush.msra.mxu0 %v6944
    %7154 = vmatpush.msra.mxu0 %v6943
    %7155 = vmatpush.msra.mxu0 %v6942
    %7156 = vmatpush.msra.mxu0 %v6941
    %7157 = vmatpush.msra.mxu0 %v6940
    %7158 = vmatpush.msra.mxu0 %v6939
    %7159 = vmatpush.msra.mxu0 %v6938
    %7160 = vmatpush.msra.mxu0 %v6937
    %7161 = vmatpush.msra.mxu0 %v6936
    %7162 = vmatpush.msra.mxu0 %v6935
    %7163 = vmatpush.msra.mxu0 %v6934
    %7164 = vmatpush.msra.mxu0 %v6933
    %7165 = vmatpush.msra.mxu0 %v6932
    %7166 = vmatpush.msra.mxu0 %v6931
    %7167 = vmatpush.msra.mxu0 %v6930
    %7168 = vmatpush.msra.mxu0 %v6929
    %7169 = vmatmul.f32.gmra.mxu0 %v7149
    %v7170 = vpop.f32.mrf.mxu0
    %v7171 = vadd.f32 %v450, %v7170
    %7172 = vdwg.mxu0
    %7173 = vmatpush.msra.mxu0 %v6960
    %7174 = vmatpush.msra.mxu0 %v6959
    %7175 = vmatpush.msra.mxu0 %v6958
    %7176 = vmatpush.msra.mxu0 %v6957
    %7177 = vmatpush.msra.mxu0 %v6956
    %7178 = vmatpush.msra.mxu0 %v6955
    %7179 = vmatpush.msra.mxu0 %v6954
    %7180 = vmatpush.msra.mxu0 %v6953
    %7181 = vmatpush.msra.mxu0 %v6952
    %7182 = vmatpush.msra.mxu0 %v6951
    %7183 = vmatpush.msra.mxu0 %v6950
    %7184 = vmatpush.msra.mxu0 %v6949
    %7185 = vmatpush.msra.mxu0 %v6948
    %7186 = vmatpush.msra.mxu0 %v6947
    %7187 = vmatpush.msra.mxu0 %v6946
    %7188 = vmatpush.msra.mxu0 %v6945
    %7189 = vmatmul.f32.gmra.mxu0 %v7150
    %v7190 = vpop.f32.mrf.mxu0
    %v7191 = vadd.f32 %v7171, %v7190
    %7192 = vdwg.mxu0
    %v7193 = vmul.f32 %v7191, %v7191
    %v7194 = vsel %vm718, %v7193, 0.0
    %7195 = vadd.xlane.f32.xlu0 %v7194
    %v7196 = vpop.xlane.xlu0 %7195
    %v7197 = vadd.f32 %v7196, 1e-12
    %v7198 = vrsqrt.pop %v7197
    %v7199 = vmul.f32 %v7198, %v7197
    %v7200 = vmul.f32 %v7199, %v7198
    %v7201 = vmul.f32 0.5, %v7200
    %v7202 = vsub.f32 1.5, %v7201
    %v7203 = vmul.f32 %v7198, %v7202
    %vm7204 = vweird.f32 %v7197
    %vm7205 = vweird.f32 %v7198
    %vm7206 = vmor %vm7204, %vm7205
    %v7207 = vsel %vm7206, %v7198, %v7203
    %v7208 = vmul.f32 %v7191, %v7207
    %v7210 = vrot.slane %v7208, 1
    %7212 = vst [vmem:[#allocation4 + $0x7] sm:$0x1] %v7208
    %7213 = vst [vmem:[#allocation4 + $0xf] sm:$0x1] %v7210
    %v7214 = vmul.f32 %v6865, 0.125
    %v7215 = vmul.f32 %v6866, 0.125
    %v7216 = vmul.f32 %v6867, 0.125
    %v7217 = vmul.f32 %v6868, 0.125
    %v7218 = vmul.f32 %v6869, 0.125
    %v7219 = vmul.f32 %v6870, 0.125
    %v7220 = vmul.f32 %v6871, 0.125
    %v7221 = vmul.f32 %v6872, 0.125
    %v7222 = vmul.f32 %v6873, 0.125
    %v7223 = vmul.f32 %v6874, 0.125
    %v7224 = vmul.f32 %v6875, 0.125
    %v7225 = vmul.f32 %v6876, 0.125
    %v7226 = vmul.f32 %v6877, 0.125
    %v7227 = vmul.f32 %v6878, 0.125
    %v7228 = vmul.f32 %v6879, 0.125
    %v7229 = vmul.f32 %v6880, 0.125
    %v7230 = vmul.f32 %v6881, 0.125
    %v7231 = vmul.f32 %v6882, 0.125
    %v7232 = vmul.f32 %v6883, 0.125
    %v7233 = vmul.f32 %v6884, 0.125
    %v7234 = vmul.f32 %v6885, 0.125
    %v7235 = vmul.f32 %v6886, 0.125
    %v7236 = vmul.f32 %v6887, 0.125
    %v7237 = vmul.f32 %v6888, 0.125
    %v7238 = vmul.f32 %v6889, 0.125
    %v7239 = vmul.f32 %v6890, 0.125
    %v7240 = vmul.f32 %v6891, 0.125
    %v7241 = vmul.f32 %v6892, 0.125
    %v7242 = vmul.f32 %v6893, 0.125
    %v7243 = vmul.f32 %v6894, 0.125
    %v7244 = vmul.f32 %v6895, 0.125
    %v7245 = vmul.f32 %v6896, 0.125
    %v7246 = vmul.f32 %v6897, 0.125
    %v7247 = vmul.f32 %v6898, 0.125
    %v7248 = vmul.f32 %v6899, 0.125
    %v7249 = vmul.f32 %v6900, 0.125
    %v7250 = vmul.f32 %v6901, 0.125
    %v7251 = vmul.f32 %v6902, 0.125
    %v7252 = vmul.f32 %v6903, 0.125
    %v7253 = vmul.f32 %v6904, 0.125
    %v7254 = vmul.f32 %v6905, 0.125
    %v7255 = vmul.f32 %v6906, 0.125
    %v7256 = vmul.f32 %v6907, 0.125
    %v7257 = vmul.f32 %v6908, 0.125
    %v7258 = vmul.f32 %v6909, 0.125
    %v7259 = vmul.f32 %v6910, 0.125
    %v7260 = vmul.f32 %v6911, 0.125
    %v7261 = vmul.f32 %v6912, 0.125
    %v7262 = vmul.f32 %v6913, 0.125
    %v7263 = vmul.f32 %v6914, 0.125
    %v7264 = vmul.f32 %v6915, 0.125
    %v7265 = vmul.f32 %v6916, 0.125
    %v7266 = vmul.f32 %v6917, 0.125
    %v7267 = vmul.f32 %v6918, 0.125
    %v7268 = vmul.f32 %v6919, 0.125
    %v7269 = vmul.f32 %v6920, 0.125
    %v7270 = vmul.f32 %v6921, 0.125
    %v7271 = vmul.f32 %v6922, 0.125
    %v7272 = vmul.f32 %v6923, 0.125
    %v7273 = vmul.f32 %v6924, 0.125
    %v7274 = vmul.f32 %v6925, 0.125
    %v7275 = vmul.f32 %v6926, 0.125
    %v7276 = vmul.f32 %v6927, 0.125
    %v7277 = vmul.f32 %v6928, 0.125
    %v7278 = vld [vmem:[%s5] sm:$0x3]
    %v7280 = vperm.slane %v7278, 0
    %v7281 = vperm.slane %v7278, 1
    %v7282 = vlaneseq
    %v7283 = vshrl.u32 %v7282, 7
    %7285 = vset.pattern.permute.xlu0 %v7283
    %7286 = vperm.xlu0 %7285, %v7280
    %v7287 = vpop.permute.xlu0 %7286
    %v7288 = vlaneseq
    %v7289 = vshrl.u32 %v7288, 7
    %v7290 = vadd.s32 %v7289, 8
    %7291 = vset.pattern.permute.xlu0 %v7290
    %7292 = vperm.xlu0 %7291, %v7280
    %v7293 = vpop.permute.xlu0 %7292
    %v7294 = vlaneseq
    %v7295 = vshrl.u32 %v7294, 7
    %v7296 = vadd.s32 %v7295, 16
    %7297 = vset.pattern.permute.xlu0 %v7296
    %7298 = vperm.xlu0 %7297, %v7280
    %v7299 = vpop.permute.xlu0 %7298
    %v7300 = vlaneseq
    %v7301 = vshrl.u32 %v7300, 7
    %v7302 = vadd.s32 %v7301, 24
    %7303 = vset.pattern.permute.xlu0 %v7302
    %7304 = vperm.xlu0 %7303, %v7280
    %v7305 = vpop.permute.xlu0 %7304
    %v7306 = vlaneseq
    %v7307 = vshrl.u32 %v7306, 7
    %v7308 = vadd.s32 %v7307, 32
    %7309 = vset.pattern.permute.xlu0 %v7308
    %7310 = vperm.xlu0 %7309, %v7280
    %v7311 = vpop.permute.xlu0 %7310
    %v7312 = vlaneseq
    %v7313 = vshrl.u32 %v7312, 7
    %v7314 = vadd.s32 %v7313, 40
    %7315 = vset.pattern.permute.xlu0 %v7314
    %7316 = vperm.xlu0 %7315, %v7280
    %v7317 = vpop.permute.xlu0 %7316
    %v7318 = vlaneseq
    %v7319 = vshrl.u32 %v7318, 7
    %v7320 = vadd.s32 %v7319, 48
    %7321 = vset.pattern.permute.xlu0 %v7320
    %7322 = vperm.xlu0 %7321, %v7280
    %v7323 = vpop.permute.xlu0 %7322
    %v7324 = vlaneseq
    %v7325 = vshrl.u32 %v7324, 7
    %v7326 = vadd.s32 %v7325, 56
    %7327 = vset.pattern.permute.xlu0 %v7326
    %7328 = vperm.xlu0 %7327, %v7280
    %v7329 = vpop.permute.xlu0 %7328
    %v7330 = vlaneseq
    %v7331 = vshrl.u32 %v7330, 7
    %v7332 = vadd.s32 %v7331, 64
    %7333 = vset.pattern.permute.xlu0 %v7332
    %7334 = vperm.xlu0 %7333, %v7280
    %v7335 = vpop.permute.xlu0 %7334
    %v7336 = vlaneseq
    %v7337 = vshrl.u32 %v7336, 7
    %v7338 = vadd.s32 %v7337, 72
    %7339 = vset.pattern.permute.xlu0 %v7338
    %7340 = vperm.xlu0 %7339, %v7280
    %v7341 = vpop.permute.xlu0 %7340
    %v7342 = vlaneseq
    %v7343 = vshrl.u32 %v7342, 7
    %v7344 = vadd.s32 %v7343, 80
    %7345 = vset.pattern.permute.xlu0 %v7344
    %7346 = vperm.xlu0 %7345, %v7280
    %v7347 = vpop.permute.xlu0 %7346
    %v7348 = vlaneseq
    %v7349 = vshrl.u32 %v7348, 7
    %v7350 = vadd.s32 %v7349, 88
    %7351 = vset.pattern.permute.xlu0 %v7350
    %7352 = vperm.xlu0 %7351, %v7280
    %v7353 = vpop.permute.xlu0 %7352
    %v7354 = vlaneseq
    %v7355 = vshrl.u32 %v7354, 7
    %v7356 = vadd.s32 %v7355, 96
    %7357 = vset.pattern.permute.xlu0 %v7356
    %7358 = vperm.xlu0 %7357, %v7280
    %v7359 = vpop.permute.xlu0 %7358
    %v7360 = vlaneseq
    %v7361 = vshrl.u32 %v7360, 7
    %v7362 = vadd.s32 %v7361, 104
    %7363 = vset.pattern.permute.xlu0 %v7362
    %7364 = vperm.xlu0 %7363, %v7280
    %v7365 = vpop.permute.xlu0 %7364
    %v7366 = vlaneseq
    %v7367 = vshrl.u32 %v7366, 7
    %v7368 = vadd.s32 %v7367, 112
    %7369 = vset.pattern.permute.xlu0 %v7368
    %7370 = vperm.xlu0 %7369, %v7280
    %v7371 = vpop.permute.xlu0 %7370
    %v7372 = vlaneseq
    %v7373 = vshrl.u32 %v7372, 7
    %v7374 = vadd.s32 %v7373, 120
    %7375 = vset.pattern.permute.xlu0 %v7374
    %7376 = vperm.xlu0 %7375, %v7280
    %v7377 = vpop.permute.xlu0 %7376
    %v7378 = vlaneseq
    %v7379 = vshrl.u32 %v7378, 7
    %7381 = vset.pattern.permute.xlu0 %v7379
    %7382 = vperm.xlu0 %7381, %v7281
    %v7383 = vpop.permute.xlu0 %7382
    %v7384 = vlaneseq
    %v7385 = vshrl.u32 %v7384, 7
    %v7386 = vadd.s32 %v7385, 8
    %7387 = vset.pattern.permute.xlu0 %v7386
    %7388 = vperm.xlu0 %7387, %v7281
    %v7389 = vpop.permute.xlu0 %7388
    %v7390 = vlaneseq
    %v7391 = vshrl.u32 %v7390, 7
    %v7392 = vadd.s32 %v7391, 16
    %7393 = vset.pattern.permute.xlu0 %v7392
    %7394 = vperm.xlu0 %7393, %v7281
    %v7395 = vpop.permute.xlu0 %7394
    %v7396 = vlaneseq
    %v7397 = vshrl.u32 %v7396, 7
    %v7398 = vadd.s32 %v7397, 24
    %7399 = vset.pattern.permute.xlu0 %v7398
    %7400 = vperm.xlu0 %7399, %v7281
    %v7401 = vpop.permute.xlu0 %7400
    %v7402 = vlaneseq
    %v7403 = vshrl.u32 %v7402, 7
    %v7404 = vadd.s32 %v7403, 32
    %7405 = vset.pattern.permute.xlu0 %v7404
    %7406 = vperm.xlu0 %7405, %v7281
    %v7407 = vpop.permute.xlu0 %7406
    %v7408 = vlaneseq
    %v7409 = vshrl.u32 %v7408, 7
    %v7410 = vadd.s32 %v7409, 40
    %7411 = vset.pattern.permute.xlu0 %v7410
    %7412 = vperm.xlu0 %7411, %v7281
    %v7413 = vpop.permute.xlu0 %7412
    %v7414 = vlaneseq
    %v7415 = vshrl.u32 %v7414, 7
    %v7416 = vadd.s32 %v7415, 48
    %7417 = vset.pattern.permute.xlu0 %v7416
    %7418 = vperm.xlu0 %7417, %v7281
    %v7419 = vpop.permute.xlu0 %7418
    %v7420 = vlaneseq
    %v7421 = vshrl.u32 %v7420, 7
    %v7422 = vadd.s32 %v7421, 56
    %7423 = vset.pattern.permute.xlu0 %v7422
    %7424 = vperm.xlu0 %7423, %v7281
    %v7425 = vpop.permute.xlu0 %7424
    %v7426 = vlaneseq
    %v7427 = vshrl.u32 %v7426, 7
    %v7428 = vadd.s32 %v7427, 64
    %7429 = vset.pattern.permute.xlu0 %v7428
    %7430 = vperm.xlu0 %7429, %v7281
    %v7431 = vpop.permute.xlu0 %7430
    %v7432 = vlaneseq
    %v7433 = vshrl.u32 %v7432, 7
    %v7434 = vadd.s32 %v7433, 72
    %7435 = vset.pattern.permute.xlu0 %v7434
    %7436 = vperm.xlu0 %7435, %v7281
    %v7437 = vpop.permute.xlu0 %7436
    %v7438 = vlaneseq
    %v7439 = vshrl.u32 %v7438, 7
    %v7440 = vadd.s32 %v7439, 80
    %7441 = vset.pattern.permute.xlu0 %v7440
    %7442 = vperm.xlu0 %7441, %v7281
    %v7443 = vpop.permute.xlu0 %7442
    %v7444 = vlaneseq
    %v7445 = vshrl.u32 %v7444, 7
    %v7446 = vadd.s32 %v7445, 88
    %7447 = vset.pattern.permute.xlu0 %v7446
    %7448 = vperm.xlu0 %7447, %v7281
    %v7449 = vpop.permute.xlu0 %7448
    %v7450 = vlaneseq
    %v7451 = vshrl.u32 %v7450, 7
    %v7452 = vadd.s32 %v7451, 96
    %7453 = vset.pattern.permute.xlu0 %v7452
    %7454 = vperm.xlu0 %7453, %v7281
    %v7455 = vpop.permute.xlu0 %7454
    %v7456 = vlaneseq
    %v7457 = vshrl.u32 %v7456, 7
    %v7458 = vadd.s32 %v7457, 104
    %7459 = vset.pattern.permute.xlu0 %v7458
    %7460 = vperm.xlu0 %7459, %v7281
    %v7461 = vpop.permute.xlu0 %7460
    %v7462 = vlaneseq
    %v7463 = vshrl.u32 %v7462, 7
    %v7464 = vadd.s32 %v7463, 112
    %7465 = vset.pattern.permute.xlu0 %v7464
    %7466 = vperm.xlu0 %7465, %v7281
    %v7467 = vpop.permute.xlu0 %7466
    %v7468 = vlaneseq
    %v7469 = vshrl.u32 %v7468, 7
    %v7470 = vadd.s32 %v7469, 120
    %7471 = vset.pattern.permute.xlu0 %v7470
    %7472 = vperm.xlu0 %7471, %v7281
    %v7473 = vpop.permute.xlu0 %7472
    %v7506 = vmul.f32 %v7214, %v7287
    %v7507 = vmul.f32 %v7215, %v7293
    %v7508 = vmul.f32 %v7216, %v7299
    %v7509 = vmul.f32 %v7217, %v7305
    %v7510 = vmul.f32 %v7218, %v7311
    %v7511 = vmul.f32 %v7219, %v7317
    %v7512 = vmul.f32 %v7220, %v7323
    %v7513 = vmul.f32 %v7221, %v7329
    %v7514 = vmul.f32 %v7222, %v7335
    %v7515 = vmul.f32 %v7223, %v7341
    %v7516 = vmul.f32 %v7224, %v7347
    %v7517 = vmul.f32 %v7225, %v7353
    %v7518 = vmul.f32 %v7226, %v7359
    %v7519 = vmul.f32 %v7227, %v7365
    %v7520 = vmul.f32 %v7228, %v7371
    %v7521 = vmul.f32 %v7229, %v7377
    %v7522 = vmul.f32 %v7230, %v7383
    %v7523 = vmul.f32 %v7231, %v7389
    %v7524 = vmul.f32 %v7232, %v7395
    %v7525 = vmul.f32 %v7233, %v7401
    %v7526 = vmul.f32 %v7234, %v7407
    %v7527 = vmul.f32 %v7235, %v7413
    %v7528 = vmul.f32 %v7236, %v7419
    %v7529 = vmul.f32 %v7237, %v7425
    %v7530 = vmul.f32 %v7238, %v7431
    %v7531 = vmul.f32 %v7239, %v7437
    %v7532 = vmul.f32 %v7240, %v7443
    %v7533 = vmul.f32 %v7241, %v7449
    %v7534 = vmul.f32 %v7242, %v7455
    %v7535 = vmul.f32 %v7243, %v7461
    %v7536 = vmul.f32 %v7244, %v7467
    %v7537 = vmul.f32 %v7245, %v7473
    %v7538 = vmul.f32 %v7246, %v7287
    %v7539 = vmul.f32 %v7247, %v7293
    %v7540 = vmul.f32 %v7248, %v7299
    %v7541 = vmul.f32 %v7249, %v7305
    %v7542 = vmul.f32 %v7250, %v7311
    %v7543 = vmul.f32 %v7251, %v7317
    %v7544 = vmul.f32 %v7252, %v7323
    %v7545 = vmul.f32 %v7253, %v7329
    %v7546 = vmul.f32 %v7254, %v7335
    %v7547 = vmul.f32 %v7255, %v7341
    %v7548 = vmul.f32 %v7256, %v7347
    %v7549 = vmul.f32 %v7257, %v7353
    %v7550 = vmul.f32 %v7258, %v7359
    %v7551 = vmul.f32 %v7259, %v7365
    %v7552 = vmul.f32 %v7260, %v7371
    %v7553 = vmul.f32 %v7261, %v7377
    %v7554 = vmul.f32 %v7262, %v7383
    %v7555 = vmul.f32 %v7263, %v7389
    %v7556 = vmul.f32 %v7264, %v7395
    %v7557 = vmul.f32 %v7265, %v7401
    %v7558 = vmul.f32 %v7266, %v7407
    %v7559 = vmul.f32 %v7267, %v7413
    %v7560 = vmul.f32 %v7268, %v7419
    %v7561 = vmul.f32 %v7269, %v7425
    %v7562 = vmul.f32 %v7270, %v7431
    %v7563 = vmul.f32 %v7271, %v7437
    %v7564 = vmul.f32 %v7272, %v7443
    %v7565 = vmul.f32 %v7273, %v7449
    %v7566 = vmul.f32 %v7274, %v7455
    %v7567 = vmul.f32 %v7275, %v7461
    %v7568 = vmul.f32 %v7276, %v7467
    %v7569 = vmul.f32 %v7277, %v7473
    %v7570 = vld [vmem:[%s6] sm:$0x3]
    %v7572 = vperm.slane %v7570, 0
    %v7573 = vperm.slane %v7570, 1
    %v7574 = vlaneseq
    %v7575 = vshrl.u32 %v7574, 7
    %7577 = vset.pattern.permute.xlu0 %v7575
    %7578 = vperm.xlu0 %7577, %v7572
    %v7579 = vpop.permute.xlu0 %7578
    %v7580 = vlaneseq
    %v7581 = vshrl.u32 %v7580, 7
    %v7582 = vadd.s32 %v7581, 8
    %7583 = vset.pattern.permute.xlu0 %v7582
    %7584 = vperm.xlu0 %7583, %v7572
    %v7585 = vpop.permute.xlu0 %7584
    %v7586 = vlaneseq
    %v7587 = vshrl.u32 %v7586, 7
    %v7588 = vadd.s32 %v7587, 16
    %7589 = vset.pattern.permute.xlu0 %v7588
    %7590 = vperm.xlu0 %7589, %v7572
    %v7591 = vpop.permute.xlu0 %7590
    %v7592 = vlaneseq
    %v7593 = vshrl.u32 %v7592, 7
    %v7594 = vadd.s32 %v7593, 24
    %7595 = vset.pattern.permute.xlu0 %v7594
    %7596 = vperm.xlu0 %7595, %v7572
    %v7597 = vpop.permute.xlu0 %7596
    %v7598 = vlaneseq
    %v7599 = vshrl.u32 %v7598, 7
    %v7600 = vadd.s32 %v7599, 32
    %7601 = vset.pattern.permute.xlu0 %v7600
    %7602 = vperm.xlu0 %7601, %v7572
    %v7603 = vpop.permute.xlu0 %7602
    %v7604 = vlaneseq
    %v7605 = vshrl.u32 %v7604, 7
    %v7606 = vadd.s32 %v7605, 40
    %7607 = vset.pattern.permute.xlu0 %v7606
    %7608 = vperm.xlu0 %7607, %v7572
    %v7609 = vpop.permute.xlu0 %7608
    %v7610 = vlaneseq
    %v7611 = vshrl.u32 %v7610, 7
    %v7612 = vadd.s32 %v7611, 48
    %7613 = vset.pattern.permute.xlu0 %v7612
    %7614 = vperm.xlu0 %7613, %v7572
    %v7615 = vpop.permute.xlu0 %7614
    %v7616 = vlaneseq
    %v7617 = vshrl.u32 %v7616, 7
    %v7618 = vadd.s32 %v7617, 56
    %7619 = vset.pattern.permute.xlu0 %v7618
    %7620 = vperm.xlu0 %7619, %v7572
    %v7621 = vpop.permute.xlu0 %7620
    %v7622 = vlaneseq
    %v7623 = vshrl.u32 %v7622, 7
    %v7624 = vadd.s32 %v7623, 64
    %7625 = vset.pattern.permute.xlu0 %v7624
    %7626 = vperm.xlu0 %7625, %v7572
    %v7627 = vpop.permute.xlu0 %7626
    %v7628 = vlaneseq
    %v7629 = vshrl.u32 %v7628, 7
    %v7630 = vadd.s32 %v7629, 72
    %7631 = vset.pattern.permute.xlu0 %v7630
    %7632 = vperm.xlu0 %7631, %v7572
    %v7633 = vpop.permute.xlu0 %7632
    %v7634 = vlaneseq
    %v7635 = vshrl.u32 %v7634, 7
    %v7636 = vadd.s32 %v7635, 80
    %7637 = vset.pattern.permute.xlu0 %v7636
    %7638 = vperm.xlu0 %7637, %v7572
    %v7639 = vpop.permute.xlu0 %7638
    %v7640 = vlaneseq
    %v7641 = vshrl.u32 %v7640, 7
    %v7642 = vadd.s32 %v7641, 88
    %7643 = vset.pattern.permute.xlu0 %v7642
    %7644 = vperm.xlu0 %7643, %v7572
    %v7645 = vpop.permute.xlu0 %7644
    %v7646 = vlaneseq
    %v7647 = vshrl.u32 %v7646, 7
    %v7648 = vadd.s32 %v7647, 96
    %7649 = vset.pattern.permute.xlu0 %v7648
    %7650 = vperm.xlu0 %7649, %v7572
    %v7651 = vpop.permute.xlu0 %7650
    %v7652 = vlaneseq
    %v7653 = vshrl.u32 %v7652, 7
    %v7654 = vadd.s32 %v7653, 104
    %7655 = vset.pattern.permute.xlu0 %v7654
    %7656 = vperm.xlu0 %7655, %v7572
    %v7657 = vpop.permute.xlu0 %7656
    %v7658 = vlaneseq
    %v7659 = vshrl.u32 %v7658, 7
    %v7660 = vadd.s32 %v7659, 112
    %7661 = vset.pattern.permute.xlu0 %v7660
    %7662 = vperm.xlu0 %7661, %v7572
    %v7663 = vpop.permute.xlu0 %7662
    %v7664 = vlaneseq
    %v7665 = vshrl.u32 %v7664, 7
    %v7666 = vadd.s32 %v7665, 120
    %7667 = vset.pattern.permute.xlu0 %v7666
    %7668 = vperm.xlu0 %7667, %v7572
    %v7669 = vpop.permute.xlu0 %7668
    %v7670 = vlaneseq
    %v7671 = vshrl.u32 %v7670, 7
    %7673 = vset.pattern.permute.xlu0 %v7671
    %7674 = vperm.xlu0 %7673, %v7573
    %v7675 = vpop.permute.xlu0 %7674
    %v7676 = vlaneseq
    %v7677 = vshrl.u32 %v7676, 7
    %v7678 = vadd.s32 %v7677, 8
    %7679 = vset.pattern.permute.xlu0 %v7678
    %7680 = vperm.xlu0 %7679, %v7573
    %v7681 = vpop.permute.xlu0 %7680
    %v7682 = vlaneseq
    %v7683 = vshrl.u32 %v7682, 7
    %v7684 = vadd.s32 %v7683, 16
    %7685 = vset.pattern.permute.xlu0 %v7684
    %7686 = vperm.xlu0 %7685, %v7573
    %v7687 = vpop.permute.xlu0 %7686
    %v7688 = vlaneseq
    %v7689 = vshrl.u32 %v7688, 7
    %v7690 = vadd.s32 %v7689, 24
    %7691 = vset.pattern.permute.xlu0 %v7690
    %7692 = vperm.xlu0 %7691, %v7573
    %v7693 = vpop.permute.xlu0 %7692
    %v7694 = vlaneseq
    %v7695 = vshrl.u32 %v7694, 7
    %v7696 = vadd.s32 %v7695, 32
    %7697 = vset.pattern.permute.xlu0 %v7696
    %7698 = vperm.xlu0 %7697, %v7573
    %v7699 = vpop.permute.xlu0 %7698
    %v7700 = vlaneseq
    %v7701 = vshrl.u32 %v7700, 7
    %v7702 = vadd.s32 %v7701, 40
    %7703 = vset.pattern.permute.xlu0 %v7702
    %7704 = vperm.xlu0 %7703, %v7573
    %v7705 = vpop.permute.xlu0 %7704
    %v7706 = vlaneseq
    %v7707 = vshrl.u32 %v7706, 7
    %v7708 = vadd.s32 %v7707, 48
    %7709 = vset.pattern.permute.xlu0 %v7708
    %7710 = vperm.xlu0 %7709, %v7573
    %v7711 = vpop.permute.xlu0 %7710
    %v7712 = vlaneseq
    %v7713 = vshrl.u32 %v7712, 7
    %v7714 = vadd.s32 %v7713, 56
    %7715 = vset.pattern.permute.xlu0 %v7714
    %7716 = vperm.xlu0 %7715, %v7573
    %v7717 = vpop.permute.xlu0 %7716
    %v7718 = vlaneseq
    %v7719 = vshrl.u32 %v7718, 7
    %v7720 = vadd.s32 %v7719, 64
    %7721 = vset.pattern.permute.xlu0 %v7720
    %7722 = vperm.xlu0 %7721, %v7573
    %v7723 = vpop.permute.xlu0 %7722
    %v7724 = vlaneseq
    %v7725 = vshrl.u32 %v7724, 7
    %v7726 = vadd.s32 %v7725, 72
    %7727 = vset.pattern.permute.xlu0 %v7726
    %7728 = vperm.xlu0 %7727, %v7573
    %v7729 = vpop.permute.xlu0 %7728
    %v7730 = vlaneseq
    %v7731 = vshrl.u32 %v7730, 7
    %v7732 = vadd.s32 %v7731, 80
    %7733 = vset.pattern.permute.xlu0 %v7732
    %7734 = vperm.xlu0 %7733, %v7573
    %v7735 = vpop.permute.xlu0 %7734
    %v7736 = vlaneseq
    %v7737 = vshrl.u32 %v7736, 7
    %v7738 = vadd.s32 %v7737, 88
    %7739 = vset.pattern.permute.xlu0 %v7738
    %7740 = vperm.xlu0 %7739, %v7573
    %v7741 = vpop.permute.xlu0 %7740
    %v7742 = vlaneseq
    %v7743 = vshrl.u32 %v7742, 7
    %v7744 = vadd.s32 %v7743, 96
    %7745 = vset.pattern.permute.xlu0 %v7744
    %7746 = vperm.xlu0 %7745, %v7573
    %v7747 = vpop.permute.xlu0 %7746
    %v7748 = vlaneseq
    %v7749 = vshrl.u32 %v7748, 7
    %v7750 = vadd.s32 %v7749, 104
    %7751 = vset.pattern.permute.xlu0 %v7750
    %7752 = vperm.xlu0 %7751, %v7573
    %v7753 = vpop.permute.xlu0 %7752
    %v7754 = vlaneseq
    %v7755 = vshrl.u32 %v7754, 7
    %v7756 = vadd.s32 %v7755, 112
    %7757 = vset.pattern.permute.xlu0 %v7756
    %7758 = vperm.xlu0 %7757, %v7573
    %v7759 = vpop.permute.xlu0 %7758
    %v7760 = vlaneseq
    %v7761 = vshrl.u32 %v7760, 7
    %v7762 = vadd.s32 %v7761, 120
    %7763 = vset.pattern.permute.xlu0 %v7762
    %7764 = vperm.xlu0 %7763, %v7573
    %v7765 = vpop.permute.xlu0 %7764
    %v7798 = vadd.f32 %v7506, %v7579
    %v7799 = vadd.f32 %v7507, %v7585
    %v7800 = vadd.f32 %v7508, %v7591
    %v7801 = vadd.f32 %v7509, %v7597
    %v7802 = vadd.f32 %v7510, %v7603
    %v7803 = vadd.f32 %v7511, %v7609
    %v7804 = vadd.f32 %v7512, %v7615
    %v7805 = vadd.f32 %v7513, %v7621
    %v7806 = vadd.f32 %v7514, %v7627
    %v7807 = vadd.f32 %v7515, %v7633
    %v7808 = vadd.f32 %v7516, %v7639
    %v7809 = vadd.f32 %v7517, %v7645
    %v7810 = vadd.f32 %v7518, %v7651
    %v7811 = vadd.f32 %v7519, %v7657
    %v7812 = vadd.f32 %v7520, %v7663
    %v7813 = vadd.f32 %v7521, %v7669
    %v7814 = vadd.f32 %v7522, %v7675
    %v7815 = vadd.f32 %v7523, %v7681
    %v7816 = vadd.f32 %v7524, %v7687
    %v7817 = vadd.f32 %v7525, %v7693
    %v7818 = vadd.f32 %v7526, %v7699
    %v7819 = vadd.f32 %v7527, %v7705
    %v7820 = vadd.f32 %v7528, %v7711
    %v7821 = vadd.f32 %v7529, %v7717
    %v7822 = vadd.f32 %v7530, %v7723
    %v7823 = vadd.f32 %v7531, %v7729
    %v7824 = vadd.f32 %v7532, %v7735
    %v7825 = vadd.f32 %v7533, %v7741
    %v7826 = vadd.f32 %v7534, %v7747
    %v7827 = vadd.f32 %v7535, %v7753
    %v7828 = vadd.f32 %v7536, %v7759
    %v7829 = vadd.f32 %v7537, %v7765
    %v7830 = vadd.f32 %v7538, %v7579
    %v7831 = vadd.f32 %v7539, %v7585
    %v7832 = vadd.f32 %v7540, %v7591
    %v7833 = vadd.f32 %v7541, %v7597
    %v7834 = vadd.f32 %v7542, %v7603
    %v7835 = vadd.f32 %v7543, %v7609
    %v7836 = vadd.f32 %v7544, %v7615
    %v7837 = vadd.f32 %v7545, %v7621
    %v7838 = vadd.f32 %v7546, %v7627
    %v7839 = vadd.f32 %v7547, %v7633
    %v7840 = vadd.f32 %v7548, %v7639
    %v7841 = vadd.f32 %v7549, %v7645
    %v7842 = vadd.f32 %v7550, %v7651
    %v7843 = vadd.f32 %v7551, %v7657
    %v7844 = vadd.f32 %v7552, %v7663
    %v7845 = vadd.f32 %v7553, %v7669
    %v7846 = vadd.f32 %v7554, %v7675
    %v7847 = vadd.f32 %v7555, %v7681
    %v7848 = vadd.f32 %v7556, %v7687
    %v7849 = vadd.f32 %v7557, %v7693
    %v7850 = vadd.f32 %v7558, %v7699
    %v7851 = vadd.f32 %v7559, %v7705
    %v7852 = vadd.f32 %v7560, %v7711
    %v7853 = vadd.f32 %v7561, %v7717
    %v7854 = vadd.f32 %v7562, %v7723
    %v7855 = vadd.f32 %v7563, %v7729
    %v7856 = vadd.f32 %v7564, %v7735
    %v7857 = vadd.f32 %v7565, %v7741
    %v7858 = vadd.f32 %v7566, %v7747
    %v7859 = vadd.f32 %v7567, %v7753
    %v7860 = vadd.f32 %v7568, %v7759
    %v7861 = vadd.f32 %v7569, %v7765
    %v7862 = vmul.f32 %v7798, %v7798
    %v7863 = vmul.f32 %v7799, %v7799
    %v7864 = vmul.f32 %v7800, %v7800
    %v7865 = vmul.f32 %v7801, %v7801
    %v7866 = vmul.f32 %v7802, %v7802
    %v7867 = vmul.f32 %v7803, %v7803
    %v7868 = vmul.f32 %v7804, %v7804
    %v7869 = vmul.f32 %v7805, %v7805
    %v7870 = vmul.f32 %v7806, %v7806
    %v7871 = vmul.f32 %v7807, %v7807
    %v7872 = vmul.f32 %v7808, %v7808
    %v7873 = vmul.f32 %v7809, %v7809
    %v7874 = vmul.f32 %v7810, %v7810
    %v7875 = vmul.f32 %v7811, %v7811
    %v7876 = vmul.f32 %v7812, %v7812
    %v7877 = vmul.f32 %v7813, %v7813
    %v7878 = vmul.f32 %v7814, %v7814
    %v7879 = vmul.f32 %v7815, %v7815
    %v7880 = vmul.f32 %v7816, %v7816
    %v7881 = vmul.f32 %v7817, %v7817
    %v7882 = vmul.f32 %v7818, %v7818
    %v7883 = vmul.f32 %v7819, %v7819
    %v7884 = vmul.f32 %v7820, %v7820
    %v7885 = vmul.f32 %v7821, %v7821
    %v7886 = vmul.f32 %v7822, %v7822
    %v7887 = vmul.f32 %v7823, %v7823
    %v7888 = vmul.f32 %v7824, %v7824
    %v7889 = vmul.f32 %v7825, %v7825
    %v7890 = vmul.f32 %v7826, %v7826
    %v7891 = vmul.f32 %v7827, %v7827
    %v7892 = vmul.f32 %v7828, %v7828
    %v7893 = vmul.f32 %v7829, %v7829
    %v7894 = vmul.f32 %v7830, %v7830
    %v7895 = vmul.f32 %v7831, %v7831
    %v7896 = vmul.f32 %v7832, %v7832
    %v7897 = vmul.f32 %v7833, %v7833
    %v7898 = vmul.f32 %v7834, %v7834
    %v7899 = vmul.f32 %v7835, %v7835
    %v7900 = vmul.f32 %v7836, %v7836
    %v7901 = vmul.f32 %v7837, %v7837
    %v7902 = vmul.f32 %v7838, %v7838
    %v7903 = vmul.f32 %v7839, %v7839
    %v7904 = vmul.f32 %v7840, %v7840
    %v7905 = vmul.f32 %v7841, %v7841
    %v7906 = vmul.f32 %v7842, %v7842
    %v7907 = vmul.f32 %v7843, %v7843
    %v7908 = vmul.f32 %v7844, %v7844
    %v7909 = vmul.f32 %v7845, %v7845
    %v7910 = vmul.f32 %v7846, %v7846
    %v7911 = vmul.f32 %v7847, %v7847
    %v7912 = vmul.f32 %v7848, %v7848
    %v7913 = vmul.f32 %v7849, %v7849
    %v7914 = vmul.f32 %v7850, %v7850
    %v7915 = vmul.f32 %v7851, %v7851
    %v7916 = vmul.f32 %v7852, %v7852
    %v7917 = vmul.f32 %v7853, %v7853
    %v7918 = vmul.f32 %v7854, %v7854
    %v7919 = vmul.f32 %v7855, %v7855
    %v7920 = vmul.f32 %v7856, %v7856
    %v7921 = vmul.f32 %v7857, %v7857
    %v7922 = vmul.f32 %v7858, %v7858
    %v7923 = vmul.f32 %v7859, %v7859
    %v7924 = vmul.f32 %v7860, %v7860
    %v7925 = vmul.f32 %v7861, %v7861
    %7990 = vset.pattern.permute.xlu0 0
    %7991 = vperm.xlu0 %7990, %v7862
    %v7992 = vpop.permute.xlu0 %7991
    %7993 = vset.pattern.permute.xlu0 0
    %7994 = vperm.xlu0 %7993, %v7863
    %v7995 = vpop.permute.xlu0 %7994
    %7996 = vset.pattern.permute.xlu0 0
    %7997 = vperm.xlu0 %7996, %v7864
    %v7998 = vpop.permute.xlu0 %7997
    %7999 = vset.pattern.permute.xlu0 0
    %8000 = vperm.xlu0 %7999, %v7865
    %v8001 = vpop.permute.xlu0 %8000
    %8002 = vset.pattern.permute.xlu0 0
    %8003 = vperm.xlu0 %8002, %v7866
    %v8004 = vpop.permute.xlu0 %8003
    %8005 = vset.pattern.permute.xlu0 0
    %8006 = vperm.xlu0 %8005, %v7867
    %v8007 = vpop.permute.xlu0 %8006
    %8008 = vset.pattern.permute.xlu0 0
    %8009 = vperm.xlu0 %8008, %v7868
    %v8010 = vpop.permute.xlu0 %8009
    %8011 = vset.pattern.permute.xlu0 0
    %8012 = vperm.xlu0 %8011, %v7869
    %v8013 = vpop.permute.xlu0 %8012
    %8014 = vset.pattern.permute.xlu0 0
    %8015 = vperm.xlu0 %8014, %v7870
    %v8016 = vpop.permute.xlu0 %8015
    %8017 = vset.pattern.permute.xlu0 0
    %8018 = vperm.xlu0 %8017, %v7871
    %v8019 = vpop.permute.xlu0 %8018
    %8020 = vset.pattern.permute.xlu0 0
    %8021 = vperm.xlu0 %8020, %v7872
    %v8022 = vpop.permute.xlu0 %8021
    %8023 = vset.pattern.permute.xlu0 0
    %8024 = vperm.xlu0 %8023, %v7873
    %v8025 = vpop.permute.xlu0 %8024
    %8026 = vset.pattern.permute.xlu0 0
    %8027 = vperm.xlu0 %8026, %v7874
    %v8028 = vpop.permute.xlu0 %8027
    %8029 = vset.pattern.permute.xlu0 0
    %8030 = vperm.xlu0 %8029, %v7875
    %v8031 = vpop.permute.xlu0 %8030
    %8032 = vset.pattern.permute.xlu0 0
    %8033 = vperm.xlu0 %8032, %v7876
    %v8034 = vpop.permute.xlu0 %8033
    %8035 = vset.pattern.permute.xlu0 0
    %8036 = vperm.xlu0 %8035, %v7877
    %v8037 = vpop.permute.xlu0 %8036
    %8038 = vset.pattern.permute.xlu0 0
    %8039 = vperm.xlu0 %8038, %v7878
    %v8040 = vpop.permute.xlu0 %8039
    %8041 = vset.pattern.permute.xlu0 0
    %8042 = vperm.xlu0 %8041, %v7879
    %v8043 = vpop.permute.xlu0 %8042
    %8044 = vset.pattern.permute.xlu0 0
    %8045 = vperm.xlu0 %8044, %v7880
    %v8046 = vpop.permute.xlu0 %8045
    %8047 = vset.pattern.permute.xlu0 0
    %8048 = vperm.xlu0 %8047, %v7881
    %v8049 = vpop.permute.xlu0 %8048
    %8050 = vset.pattern.permute.xlu0 0
    %8051 = vperm.xlu0 %8050, %v7882
    %v8052 = vpop.permute.xlu0 %8051
    %8053 = vset.pattern.permute.xlu0 0
    %8054 = vperm.xlu0 %8053, %v7883
    %v8055 = vpop.permute.xlu0 %8054
    %8056 = vset.pattern.permute.xlu0 0
    %8057 = vperm.xlu0 %8056, %v7884
    %v8058 = vpop.permute.xlu0 %8057
    %8059 = vset.pattern.permute.xlu0 0
    %8060 = vperm.xlu0 %8059, %v7885
    %v8061 = vpop.permute.xlu0 %8060
    %8062 = vset.pattern.permute.xlu0 0
    %8063 = vperm.xlu0 %8062, %v7886
    %v8064 = vpop.permute.xlu0 %8063
    %8065 = vset.pattern.permute.xlu0 0
    %8066 = vperm.xlu0 %8065, %v7887
    %v8067 = vpop.permute.xlu0 %8066
    %8068 = vset.pattern.permute.xlu0 0
    %8069 = vperm.xlu0 %8068, %v7888
    %v8070 = vpop.permute.xlu0 %8069
    %8071 = vset.pattern.permute.xlu0 0
    %8072 = vperm.xlu0 %8071, %v7889
    %v8073 = vpop.permute.xlu0 %8072
    %8074 = vset.pattern.permute.xlu0 0
    %8075 = vperm.xlu0 %8074, %v7890
    %v8076 = vpop.permute.xlu0 %8075
    %8077 = vset.pattern.permute.xlu0 0
    %8078 = vperm.xlu0 %8077, %v7891
    %v8079 = vpop.permute.xlu0 %8078
    %8080 = vset.pattern.permute.xlu0 0
    %8081 = vperm.xlu0 %8080, %v7892
    %v8082 = vpop.permute.xlu0 %8081
    %8083 = vset.pattern.permute.xlu0 0
    %8084 = vperm.xlu0 %8083, %v7893
    %v8085 = vpop.permute.xlu0 %8084
    %8086 = vset.pattern.permute.xlu0 0
    %8087 = vperm.xlu0 %8086, %v7894
    %v8088 = vpop.permute.xlu0 %8087
    %8089 = vset.pattern.permute.xlu0 0
    %8090 = vperm.xlu0 %8089, %v7895
    %v8091 = vpop.permute.xlu0 %8090
    %8092 = vset.pattern.permute.xlu0 0
    %8093 = vperm.xlu0 %8092, %v7896
    %v8094 = vpop.permute.xlu0 %8093
    %8095 = vset.pattern.permute.xlu0 0
    %8096 = vperm.xlu0 %8095, %v7897
    %v8097 = vpop.permute.xlu0 %8096
    %8098 = vset.pattern.permute.xlu0 0
    %8099 = vperm.xlu0 %8098, %v7898
    %v8100 = vpop.permute.xlu0 %8099
    %8101 = vset.pattern.permute.xlu0 0
    %8102 = vperm.xlu0 %8101, %v7899
    %v8103 = vpop.permute.xlu0 %8102
    %8104 = vset.pattern.permute.xlu0 0
    %8105 = vperm.xlu0 %8104, %v7900
    %v8106 = vpop.permute.xlu0 %8105
    %8107 = vset.pattern.permute.xlu0 0
    %8108 = vperm.xlu0 %8107, %v7901
    %v8109 = vpop.permute.xlu0 %8108
    %8110 = vset.pattern.permute.xlu0 0
    %8111 = vperm.xlu0 %8110, %v7902
    %v8112 = vpop.permute.xlu0 %8111
    %8113 = vset.pattern.permute.xlu0 0
    %8114 = vperm.xlu0 %8113, %v7903
    %v8115 = vpop.permute.xlu0 %8114
    %8116 = vset.pattern.permute.xlu0 0
    %8117 = vperm.xlu0 %8116, %v7904
    %v8118 = vpop.permute.xlu0 %8117
    %8119 = vset.pattern.permute.xlu0 0
    %8120 = vperm.xlu0 %8119, %v7905
    %v8121 = vpop.permute.xlu0 %8120
    %8122 = vset.pattern.permute.xlu0 0
    %8123 = vperm.xlu0 %8122, %v7906
    %v8124 = vpop.permute.xlu0 %8123
    %8125 = vset.pattern.permute.xlu0 0
    %8126 = vperm.xlu0 %8125, %v7907
    %v8127 = vpop.permute.xlu0 %8126
    %8128 = vset.pattern.permute.xlu0 0
    %8129 = vperm.xlu0 %8128, %v7908
    %v8130 = vpop.permute.xlu0 %8129
    %8131 = vset.pattern.permute.xlu0 0
    %8132 = vperm.xlu0 %8131, %v7909
    %v8133 = vpop.permute.xlu0 %8132
    %8134 = vset.pattern.permute.xlu0 0
    %8135 = vperm.xlu0 %8134, %v7910
    %v8136 = vpop.permute.xlu0 %8135
    %8137 = vset.pattern.permute.xlu0 0
    %8138 = vperm.xlu0 %8137, %v7911
    %v8139 = vpop.permute.xlu0 %8138
    %8140 = vset.pattern.permute.xlu0 0
    %8141 = vperm.xlu0 %8140, %v7912
    %v8142 = vpop.permute.xlu0 %8141
    %8143 = vset.pattern.permute.xlu0 0
    %8144 = vperm.xlu0 %8143, %v7913
    %v8145 = vpop.permute.xlu0 %8144
    %8146 = vset.pattern.permute.xlu0 0
    %8147 = vperm.xlu0 %8146, %v7914
    %v8148 = vpop.permute.xlu0 %8147
    %8149 = vset.pattern.permute.xlu0 0
    %8150 = vperm.xlu0 %8149, %v7915
    %v8151 = vpop.permute.xlu0 %8150
    %8152 = vset.pattern.permute.xlu0 0
    %8153 = vperm.xlu0 %8152, %v7916
    %v8154 = vpop.permute.xlu0 %8153
    %8155 = vset.pattern.permute.xlu0 0
    %8156 = vperm.xlu0 %8155, %v7917
    %v8157 = vpop.permute.xlu0 %8156
    %8158 = vset.pattern.permute.xlu0 0
    %8159 = vperm.xlu0 %8158, %v7918
    %v8160 = vpop.permute.xlu0 %8159
    %8161 = vset.pattern.permute.xlu0 0
    %8162 = vperm.xlu0 %8161, %v7919
    %v8163 = vpop.permute.xlu0 %8162
    %8164 = vset.pattern.permute.xlu0 0
    %8165 = vperm.xlu0 %8164, %v7920
    %v8166 = vpop.permute.xlu0 %8165
    %8167 = vset.pattern.permute.xlu0 0
    %8168 = vperm.xlu0 %8167, %v7921
    %v8169 = vpop.permute.xlu0 %8168
    %8170 = vset.pattern.permute.xlu0 0
    %8171 = vperm.xlu0 %8170, %v7922
    %v8172 = vpop.permute.xlu0 %8171
    %8173 = vset.pattern.permute.xlu0 0
    %8174 = vperm.xlu0 %8173, %v7923
    %v8175 = vpop.permute.xlu0 %8174
    %8176 = vset.pattern.permute.xlu0 0
    %8177 = vperm.xlu0 %8176, %v7924
    %v8178 = vpop.permute.xlu0 %8177
    %8179 = vset.pattern.permute.xlu0 0
    %8180 = vperm.xlu0 %8179, %v7925
    %v8181 = vpop.permute.xlu0 %8180
    %v8182 = vperm.slane %v7992, %v517
    %v8183 = vperm.slane %v7995, %v519
    %v8184 = vsel %vm521, %v8183, %v8182
    %v8185 = vperm.slane %v7998, %v523
    %v8186 = vsel %vm525, %v8185, %v8184
    %v8187 = vperm.slane %v8001, %v527
    %v8188 = vsel %vm529, %v8187, %v8186
    %v8189 = vperm.slane %v8004, %v531
    %v8190 = vsel %vm533, %v8189, %v8188
    %v8191 = vperm.slane %v8007, %v535
    %v8192 = vsel %vm537, %v8191, %v8190
    %v8193 = vperm.slane %v8010, %v539
    %v8194 = vsel %vm541, %v8193, %v8192
    %v8195 = vperm.slane %v8013, %v543
    %v8196 = vsel %vm545, %v8195, %v8194
    %v8197 = vperm.slane %v8016, %v547
    %v8198 = vsel %vm549, %v8197, %v8196
    %v8199 = vperm.slane %v8019, %v551
    %v8200 = vsel %vm553, %v8199, %v8198
    %v8201 = vperm.slane %v8022, %v555
    %v8202 = vsel %vm557, %v8201, %v8200
    %v8203 = vperm.slane %v8025, %v559
    %v8204 = vsel %vm561, %v8203, %v8202
    %v8205 = vperm.slane %v8028, %v563
    %v8206 = vsel %vm565, %v8205, %v8204
    %v8207 = vperm.slane %v8031, %v567
    %v8208 = vsel %vm569, %v8207, %v8206
    %v8209 = vperm.slane %v8034, %v571
    %v8210 = vsel %vm573, %v8209, %v8208
    %v8211 = vperm.slane %v8037, %v575
    %v8212 = vsel %vm577, %v8211, %v8210
    %v8213 = vperm.slane %v8040, %v517
    %v8214 = vperm.slane %v8043, %v519
    %v8215 = vsel %vm521, %v8214, %v8213
    %v8216 = vperm.slane %v8046, %v523
    %v8217 = vsel %vm525, %v8216, %v8215
    %v8218 = vperm.slane %v8049, %v527
    %v8219 = vsel %vm529, %v8218, %v8217
    %v8220 = vperm.slane %v8052, %v531
    %v8221 = vsel %vm533, %v8220, %v8219
    %v8222 = vperm.slane %v8055, %v535
    %v8223 = vsel %vm537, %v8222, %v8221
    %v8224 = vperm.slane %v8058, %v539
    %v8225 = vsel %vm541, %v8224, %v8223
    %v8226 = vperm.slane %v8061, %v543
    %v8227 = vsel %vm545, %v8226, %v8225
    %v8228 = vperm.slane %v8064, %v547
    %v8229 = vsel %vm549, %v8228, %v8227
    %v8230 = vperm.slane %v8067, %v551
    %v8231 = vsel %vm553, %v8230, %v8229
    %v8232 = vperm.slane %v8070, %v555
    %v8233 = vsel %vm557, %v8232, %v8231
    %v8234 = vperm.slane %v8073, %v559
    %v8235 = vsel %vm561, %v8234, %v8233
    %v8236 = vperm.slane %v8076, %v563
    %v8237 = vsel %vm565, %v8236, %v8235
    %v8238 = vperm.slane %v8079, %v567
    %v8239 = vsel %vm569, %v8238, %v8237
    %v8240 = vperm.slane %v8082, %v571
    %v8241 = vsel %vm573, %v8240, %v8239
    %v8242 = vperm.slane %v8085, %v575
    %v8243 = vsel %vm577, %v8242, %v8241
    %v8244 = vperm.slane %v8088, %v517
    %v8245 = vperm.slane %v8091, %v519
    %v8246 = vsel %vm521, %v8245, %v8244
    %v8247 = vperm.slane %v8094, %v523
    %v8248 = vsel %vm525, %v8247, %v8246
    %v8249 = vperm.slane %v8097, %v527
    %v8250 = vsel %vm529, %v8249, %v8248
    %v8251 = vperm.slane %v8100, %v531
    %v8252 = vsel %vm533, %v8251, %v8250
    %v8253 = vperm.slane %v8103, %v535
    %v8254 = vsel %vm537, %v8253, %v8252
    %v8255 = vperm.slane %v8106, %v539
    %v8256 = vsel %vm541, %v8255, %v8254
    %v8257 = vperm.slane %v8109, %v543
    %v8258 = vsel %vm545, %v8257, %v8256
    %v8259 = vperm.slane %v8112, %v547
    %v8260 = vsel %vm549, %v8259, %v8258
    %v8261 = vperm.slane %v8115, %v551
    %v8262 = vsel %vm553, %v8261, %v8260
    %v8263 = vperm.slane %v8118, %v555
    %v8264 = vsel %vm557, %v8263, %v8262
    %v8265 = vperm.slane %v8121, %v559
    %v8266 = vsel %vm561, %v8265, %v8264
    %v8267 = vperm.slane %v8124, %v563
    %v8268 = vsel %vm565, %v8267, %v8266
    %v8269 = vperm.slane %v8127, %v567
    %v8270 = vsel %vm569, %v8269, %v8268
    %v8271 = vperm.slane %v8130, %v571
    %v8272 = vsel %vm573, %v8271, %v8270
    %v8273 = vperm.slane %v8133, %v575
    %v8274 = vsel %vm577, %v8273, %v8272
    %v8275 = vperm.slane %v8136, %v517
    %v8276 = vperm.slane %v8139, %v519
    %v8277 = vsel %vm521, %v8276, %v8275
    %v8278 = vperm.slane %v8142, %v523
    %v8279 = vsel %vm525, %v8278, %v8277
    %v8280 = vperm.slane %v8145, %v527
    %v8281 = vsel %vm529, %v8280, %v8279
    %v8282 = vperm.slane %v8148, %v531
    %v8283 = vsel %vm533, %v8282, %v8281
    %v8284 = vperm.slane %v8151, %v535
    %v8285 = vsel %vm537, %v8284, %v8283
    %v8286 = vperm.slane %v8154, %v539
    %v8287 = vsel %vm541, %v8286, %v8285
    %v8288 = vperm.slane %v8157, %v543
    %v8289 = vsel %vm545, %v8288, %v8287
    %v8290 = vperm.slane %v8160, %v547
    %v8291 = vsel %vm549, %v8290, %v8289
    %v8292 = vperm.slane %v8163, %v551
    %v8293 = vsel %vm553, %v8292, %v8291
    %v8294 = vperm.slane %v8166, %v555
    %v8295 = vsel %vm557, %v8294, %v8293
    %v8296 = vperm.slane %v8169, %v559
    %v8297 = vsel %vm561, %v8296, %v8295
    %v8298 = vperm.slane %v8172, %v563
    %v8299 = vsel %vm565, %v8298, %v8297
    %v8300 = vperm.slane %v8175, %v567
    %v8301 = vsel %vm569, %v8300, %v8299
    %v8302 = vperm.slane %v8178, %v571
    %v8303 = vsel %vm573, %v8302, %v8301
    %v8304 = vperm.slane %v8181, %v575
    %v8305 = vsel %vm577, %v8304, %v8303
    %v8306 = vsel %vm672, %v8274, %v8212
    %v8307 = vsel %vm672, %v8305, %v8243
    %v8310 = vsel %vm718, %v8306, 0.0
    %v8311 = vsel %vm718, %v8307, 0.0
    %v8312 = vadd.f32 %v8310, %v8311
    %8313 = vadd.xlane.f32.xlu0 %v8312
    %v8314 = vpop.xlane.xlu0 %8313
    %v8315 = vadd.f32 %v8314, 1e-12
    %v8316 = vrsqrt.pop %v8315
    %v8317 = vmul.f32 %v8316, %v8315
    %v8318 = vmul.f32 %v8317, %v8316
    %v8319 = vmul.f32 0.5, %v8318
    %v8320 = vsub.f32 1.5, %v8319
    %v8321 = vmul.f32 %v8316, %v8320
    %vm8322 = vweird.f32 %v8315
    %vm8323 = vweird.f32 %v8316
    %vm8324 = vmor %vm8322, %vm8323
    %v8325 = vsel %vm8324, %v8316, %v8321
    %v8327 = vperm.slane %v8325, 0
    %v8328 = vperm.slane %v8325, 1
    %v8331 = vmul.f32 %v7798, %v8327
    %v8332 = vmul.f32 %v7799, %v8327
    %v8333 = vmul.f32 %v7800, %v8327
    %v8334 = vmul.f32 %v7801, %v8327
    %v8335 = vmul.f32 %v7802, %v8327
    %v8336 = vmul.f32 %v7803, %v8327
    %v8337 = vmul.f32 %v7804, %v8327
    %v8338 = vmul.f32 %v7805, %v8327
    %v8339 = vmul.f32 %v7806, %v8327
    %v8340 = vmul.f32 %v7807, %v8327
    %v8341 = vmul.f32 %v7808, %v8327
    %v8342 = vmul.f32 %v7809, %v8327
    %v8343 = vmul.f32 %v7810, %v8327
    %v8344 = vmul.f32 %v7811, %v8327
    %v8345 = vmul.f32 %v7812, %v8327
    %v8346 = vmul.f32 %v7813, %v8327
    %v8347 = vmul.f32 %v7814, %v8327
    %v8348 = vmul.f32 %v7815, %v8327
    %v8349 = vmul.f32 %v7816, %v8327
    %v8350 = vmul.f32 %v7817, %v8327
    %v8351 = vmul.f32 %v7818, %v8327
    %v8352 = vmul.f32 %v7819, %v8327
    %v8353 = vmul.f32 %v7820, %v8327
    %v8354 = vmul.f32 %v7821, %v8327
    %v8355 = vmul.f32 %v7822, %v8327
    %v8356 = vmul.f32 %v7823, %v8327
    %v8357 = vmul.f32 %v7824, %v8327
    %v8358 = vmul.f32 %v7825, %v8327
    %v8359 = vmul.f32 %v7826, %v8327
    %v8360 = vmul.f32 %v7827, %v8327
    %v8361 = vmul.f32 %v7828, %v8327
    %v8362 = vmul.f32 %v7829, %v8327
    %v8363 = vmul.f32 %v7830, %v8328
    %v8364 = vmul.f32 %v7831, %v8328
    %v8365 = vmul.f32 %v7832, %v8328
    %v8366 = vmul.f32 %v7833, %v8328
    %v8367 = vmul.f32 %v7834, %v8328
    %v8368 = vmul.f32 %v7835, %v8328
    %v8369 = vmul.f32 %v7836, %v8328
    %v8370 = vmul.f32 %v7837, %v8328
    %v8371 = vmul.f32 %v7838, %v8328
    %v8372 = vmul.f32 %v7839, %v8328
    %v8373 = vmul.f32 %v7840, %v8328
    %v8374 = vmul.f32 %v7841, %v8328
    %v8375 = vmul.f32 %v7842, %v8328
    %v8376 = vmul.f32 %v7843, %v8328
    %v8377 = vmul.f32 %v7844, %v8328
    %v8378 = vmul.f32 %v7845, %v8328
    %v8379 = vmul.f32 %v7846, %v8328
    %v8380 = vmul.f32 %v7847, %v8328
    %v8381 = vmul.f32 %v7848, %v8328
    %v8382 = vmul.f32 %v7849, %v8328
    %v8383 = vmul.f32 %v7850, %v8328
    %v8384 = vmul.f32 %v7851, %v8328
    %v8385 = vmul.f32 %v7852, %v8328
    %v8386 = vmul.f32 %v7853, %v8328
    %v8387 = vmul.f32 %v7854, %v8328
    %v8388 = vmul.f32 %v7855, %v8328
    %v8389 = vmul.f32 %v7856, %v8328
    %v8390 = vmul.f32 %v7857, %v8328
    %v8391 = vmul.f32 %v7858, %v8328
    %v8392 = vmul.f32 %v7859, %v8328
    %v8393 = vmul.f32 %v7860, %v8328
    %v8394 = vmul.f32 %v7861, %v8328
    %v8459 = vrot.slane %v8331, 2
    %v8460 = vrot.slane %v8331, 4
    %v8461 = vrot.slane %v8331, 6
    %v8462 = vrot.slane %v8332, 2
    %v8463 = vrot.slane %v8332, 4
    %v8464 = vrot.slane %v8332, 6
    %v8465 = vrot.slane %v8333, 2
    %v8466 = vrot.slane %v8333, 4
    %v8467 = vrot.slane %v8333, 6
    %v8468 = vrot.slane %v8334, 2
    %v8469 = vrot.slane %v8334, 4
    %v8470 = vrot.slane %v8334, 6
    %v8471 = vrot.slane %v8335, 2
    %v8472 = vrot.slane %v8335, 4
    %v8473 = vrot.slane %v8335, 6
    %v8474 = vrot.slane %v8336, 2
    %v8475 = vrot.slane %v8336, 4
    %v8476 = vrot.slane %v8336, 6
    %v8477 = vrot.slane %v8337, 2
    %v8478 = vrot.slane %v8337, 4
    %v8479 = vrot.slane %v8337, 6
    %v8480 = vrot.slane %v8338, 2
    %v8481 = vrot.slane %v8338, 4
    %v8482 = vrot.slane %v8338, 6
    %v8483 = vrot.slane %v8339, 2
    %v8484 = vrot.slane %v8339, 4
    %v8485 = vrot.slane %v8339, 6
    %v8486 = vrot.slane %v8340, 2
    %v8487 = vrot.slane %v8340, 4
    %v8488 = vrot.slane %v8340, 6
    %v8489 = vrot.slane %v8341, 2
    %v8490 = vrot.slane %v8341, 4
    %v8491 = vrot.slane %v8341, 6
    %v8492 = vrot.slane %v8342, 2
    %v8493 = vrot.slane %v8342, 4
    %v8494 = vrot.slane %v8342, 6
    %v8495 = vrot.slane %v8343, 2
    %v8496 = vrot.slane %v8343, 4
    %v8497 = vrot.slane %v8343, 6
    %v8498 = vrot.slane %v8344, 2
    %v8499 = vrot.slane %v8344, 4
    %v8500 = vrot.slane %v8344, 6
    %v8501 = vrot.slane %v8345, 2
    %v8502 = vrot.slane %v8345, 4
    %v8503 = vrot.slane %v8345, 6
    %v8504 = vrot.slane %v8346, 2
    %v8505 = vrot.slane %v8346, 4
    %v8506 = vrot.slane %v8346, 6
    %v8507 = vrot.slane %v8347, 2
    %v8508 = vrot.slane %v8347, 4
    %v8509 = vrot.slane %v8347, 6
    %v8510 = vrot.slane %v8348, 2
    %v8511 = vrot.slane %v8348, 4
    %v8512 = vrot.slane %v8348, 6
    %v8513 = vrot.slane %v8349, 2
    %v8514 = vrot.slane %v8349, 4
    %v8515 = vrot.slane %v8349, 6
    %v8516 = vrot.slane %v8350, 2
    %v8517 = vrot.slane %v8350, 4
    %v8518 = vrot.slane %v8350, 6
    %v8519 = vrot.slane %v8351, 2
    %v8520 = vrot.slane %v8351, 4
    %v8521 = vrot.slane %v8351, 6
    %v8522 = vrot.slane %v8352, 2
    %v8523 = vrot.slane %v8352, 4
    %v8524 = vrot.slane %v8352, 6
    %v8525 = vrot.slane %v8353, 2
    %v8526 = vrot.slane %v8353, 4
    %v8527 = vrot.slane %v8353, 6
    %v8528 = vrot.slane %v8354, 2
    %v8529 = vrot.slane %v8354, 4
    %v8530 = vrot.slane %v8354, 6
    %v8531 = vrot.slane %v8355, 2
    %v8532 = vrot.slane %v8355, 4
    %v8533 = vrot.slane %v8355, 6
    %v8534 = vrot.slane %v8356, 2
    %v8535 = vrot.slane %v8356, 4
    %v8536 = vrot.slane %v8356, 6
    %v8537 = vrot.slane %v8357, 2
    %v8538 = vrot.slane %v8357, 4
    %v8539 = vrot.slane %v8357, 6
    %v8540 = vrot.slane %v8358, 2
    %v8541 = vrot.slane %v8358, 4
    %v8542 = vrot.slane %v8358, 6
    %v8543 = vrot.slane %v8359, 2
    %v8544 = vrot.slane %v8359, 4
    %v8545 = vrot.slane %v8359, 6
    %v8546 = vrot.slane %v8360, 2
    %v8547 = vrot.slane %v8360, 4
    %v8548 = vrot.slane %v8360, 6
    %v8549 = vrot.slane %v8361, 2
    %v8550 = vrot.slane %v8361, 4
    %v8551 = vrot.slane %v8361, 6
    %v8552 = vrot.slane %v8362, 2
    %v8553 = vrot.slane %v8362, 4
    %v8554 = vrot.slane %v8362, 6
    %v8555 = vrot.slane %v8363, 2
    %v8556 = vrot.slane %v8363, 4
    %v8557 = vrot.slane %v8363, 6
    %v8558 = vrot.slane %v8364, 2
    %v8559 = vrot.slane %v8364, 4
    %v8560 = vrot.slane %v8364, 6
    %v8561 = vrot.slane %v8365, 2
    %v8562 = vrot.slane %v8365, 4
    %v8563 = vrot.slane %v8365, 6
    %v8564 = vrot.slane %v8366, 2
    %v8565 = vrot.slane %v8366, 4
    %v8566 = vrot.slane %v8366, 6
    %v8567 = vrot.slane %v8367, 2
    %v8568 = vrot.slane %v8367, 4
    %v8569 = vrot.slane %v8367, 6
    %v8570 = vrot.slane %v8368, 2
    %v8571 = vrot.slane %v8368, 4
    %v8572 = vrot.slane %v8368, 6
    %v8573 = vrot.slane %v8369, 2
    %v8574 = vrot.slane %v8369, 4
    %v8575 = vrot.slane %v8369, 6
    %v8576 = vrot.slane %v8370, 2
    %v8577 = vrot.slane %v8370, 4
    %v8578 = vrot.slane %v8370, 6
    %v8579 = vrot.slane %v8371, 2
    %v8580 = vrot.slane %v8371, 4
    %v8581 = vrot.slane %v8371, 6
    %v8582 = vrot.slane %v8372, 2
    %v8583 = vrot.slane %v8372, 4
    %v8584 = vrot.slane %v8372, 6
    %v8585 = vrot.slane %v8373, 2
    %v8586 = vrot.slane %v8373, 4
    %v8587 = vrot.slane %v8373, 6
    %v8588 = vrot.slane %v8374, 2
    %v8589 = vrot.slane %v8374, 4
    %v8590 = vrot.slane %v8374, 6
    %v8591 = vrot.slane %v8375, 2
    %v8592 = vrot.slane %v8375, 4
    %v8593 = vrot.slane %v8375, 6
    %v8594 = vrot.slane %v8376, 2
    %v8595 = vrot.slane %v8376, 4
    %v8596 = vrot.slane %v8376, 6
    %v8597 = vrot.slane %v8377, 2
    %v8598 = vrot.slane %v8377, 4
    %v8599 = vrot.slane %v8377, 6
    %v8600 = vrot.slane %v8378, 2
    %v8601 = vrot.slane %v8378, 4
    %v8602 = vrot.slane %v8378, 6
    %v8603 = vrot.slane %v8379, 2
    %v8604 = vrot.slane %v8379, 4
    %v8605 = vrot.slane %v8379, 6
    %v8606 = vrot.slane %v8380, 2
    %v8607 = vrot.slane %v8380, 4
    %v8608 = vrot.slane %v8380, 6
    %v8609 = vrot.slane %v8381, 2
    %v8610 = vrot.slane %v8381, 4
    %v8611 = vrot.slane %v8381, 6
    %v8612 = vrot.slane %v8382, 2
    %v8613 = vrot.slane %v8382, 4
    %v8614 = vrot.slane %v8382, 6
    %v8615 = vrot.slane %v8383, 2
    %v8616 = vrot.slane %v8383, 4
    %v8617 = vrot.slane %v8383, 6
    %v8618 = vrot.slane %v8384, 2
    %v8619 = vrot.slane %v8384, 4
    %v8620 = vrot.slane %v8384, 6
    %v8621 = vrot.slane %v8385, 2
    %v8622 = vrot.slane %v8385, 4
    %v8623 = vrot.slane %v8385, 6
    %v8624 = vrot.slane %v8386, 2
    %v8625 = vrot.slane %v8386, 4
    %v8626 = vrot.slane %v8386, 6
    %v8627 = vrot.slane %v8387, 2
    %v8628 = vrot.slane %v8387, 4
    %v8629 = vrot.slane %v8387, 6
    %v8630 = vrot.slane %v8388, 2
    %v8631 = vrot.slane %v8388, 4
    %v8632 = vrot.slane %v8388, 6
    %v8633 = vrot.slane %v8389, 2
    %v8634 = vrot.slane %v8389, 4
    %v8635 = vrot.slane %v8389, 6
    %v8636 = vrot.slane %v8390, 2
    %v8637 = vrot.slane %v8390, 4
    %v8638 = vrot.slane %v8390, 6
    %v8639 = vrot.slane %v8391, 2
    %v8640 = vrot.slane %v8391, 4
    %v8641 = vrot.slane %v8391, 6
    %v8642 = vrot.slane %v8392, 2
    %v8643 = vrot.slane %v8392, 4
    %v8644 = vrot.slane %v8392, 6
    %v8645 = vrot.slane %v8393, 2
    %v8646 = vrot.slane %v8393, 4
    %v8647 = vrot.slane %v8393, 6
    %v8648 = vrot.slane %v8394, 2
    %v8649 = vrot.slane %v8394, 4
    %v8650 = vrot.slane %v8394, 6
    %8651 = vst [vmem:[#allocation1] ss:$4 sm:$0xff] %v8331
    %s8652 = scalar_lea.vmem [#allocation1], 1
    %8653 = vst [vmem:[%s8652] ss:$4 sm:$0xff] %v8459
    %s8654 = scalar_lea.vmem [#allocation1], 2
    %8655 = vst [vmem:[%s8654] ss:$4 sm:$0xff] %v8460
    %s8656 = scalar_lea.vmem [#allocation1], 3
    %8657 = vst [vmem:[%s8656] ss:$4 sm:$0xff] %v8461
    %s8658 = scalar_lea.vmem [#allocation1], 32
    %8659 = vst [vmem:[%s8658] ss:$4 sm:$0xff] %v8332
    %s8660 = scalar_lea.vmem [#allocation1], 33
    %8661 = vst [vmem:[%s8660] ss:$4 sm:$0xff] %v8462
    %s8662 = scalar_lea.vmem [#allocation1], 34
    %8663 = vst [vmem:[%s8662] ss:$4 sm:$0xff] %v8463
    %s8664 = scalar_lea.vmem [#allocation1], 35
    %8665 = vst [vmem:[%s8664] ss:$4 sm:$0xff] %v8464
    %v8666 = vld.sshfl [vmem:[#allocation1] sm:$0xff pattern:$0x73625140]
    %v8667 = vld.sshfl [vmem:[#allocation1 + $0x20] sm:$0xff pattern:$0x73625140]
    %8668 = vst [vmem:[#allocation1] ss:$4 sm:$0xff] %v8333
    %8669 = vst [vmem:[%s8652] ss:$4 sm:$0xff] %v8465
    %8670 = vst [vmem:[%s8654] ss:$4 sm:$0xff] %v8466
    %8671 = vst [vmem:[%s8656] ss:$4 sm:$0xff] %v8467
    %8672 = vst [vmem:[%s8658] ss:$4 sm:$0xff] %v8334
    %8673 = vst [vmem:[%s8660] ss:$4 sm:$0xff] %v8468
    %8674 = vst [vmem:[%s8662] ss:$4 sm:$0xff] %v8469
    %8675 = vst [vmem:[%s8664] ss:$4 sm:$0xff] %v8470
    %v8676 = vld.sshfl [vmem:[#allocation1] sm:$0xff pattern:$0x73625140]
    %v8677 = vld.sshfl [vmem:[#allocation1 + $0x20] sm:$0xff pattern:$0x73625140]
    %8678 = vst [vmem:[#allocation1] ss:$4 sm:$0xff] %v8335
    %8679 = vst [vmem:[%s8652] ss:$4 sm:$0xff] %v8471
    %8680 = vst [vmem:[%s8654] ss:$4 sm:$0xff] %v8472
    %8681 = vst [vmem:[%s8656] ss:$4 sm:$0xff] %v8473
    %8682 = vst [vmem:[%s8658] ss:$4 sm:$0xff] %v8336
    %8683 = vst [vmem:[%s8660] ss:$4 sm:$0xff] %v8474
    %8684 = vst [vmem:[%s8662] ss:$4 sm:$0xff] %v8475
    %8685 = vst [vmem:[%s8664] ss:$4 sm:$0xff] %v8476
    %v8686 = vld.sshfl [vmem:[#allocation1] sm:$0xff pattern:$0x73625140]
    %v8687 = vld.sshfl [vmem:[#allocation1 + $0x20] sm:$0xff pattern:$0x73625140]
    %8688 = vst [vmem:[#allocation1] ss:$4 sm:$0xff] %v8337
    %8689 = vst [vmem:[%s8652] ss:$4 sm:$0xff] %v8477
    %8690 = vst [vmem:[%s8654] ss:$4 sm:$0xff] %v8478
    %8691 = vst [vmem:[%s8656] ss:$4 sm:$0xff] %v8479
    %8692 = vst [vmem:[%s8658] ss:$4 sm:$0xff] %v8338
    %8693 = vst [vmem:[%s8660] ss:$4 sm:$0xff] %v8480
    %8694 = vst [vmem:[%s8662] ss:$4 sm:$0xff] %v8481
    %8695 = vst [vmem:[%s8664] ss:$4 sm:$0xff] %v8482
    %v8696 = vld.sshfl [vmem:[#allocation1] sm:$0xff pattern:$0x73625140]
    %v8697 = vld.sshfl [vmem:[#allocation1 + $0x20] sm:$0xff pattern:$0x73625140]
    %8698 = vst [vmem:[#allocation1] ss:$4 sm:$0xff] %v8339
    %8699 = vst [vmem:[%s8652] ss:$4 sm:$0xff] %v8483
    %8700 = vst [vmem:[%s8654] ss:$4 sm:$0xff] %v8484
    %8701 = vst [vmem:[%s8656] ss:$4 sm:$0xff] %v8485
    %8702 = vst [vmem:[%s8658] ss:$4 sm:$0xff] %v8340
    %8703 = vst [vmem:[%s8660] ss:$4 sm:$0xff] %v8486
    %8704 = vst [vmem:[%s8662] ss:$4 sm:$0xff] %v8487
    %8705 = vst [vmem:[%s8664] ss:$4 sm:$0xff] %v8488
    %v8706 = vld.sshfl [vmem:[#allocation1] sm:$0xff pattern:$0x73625140]
    %v8707 = vld.sshfl [vmem:[#allocation1 + $0x20] sm:$0xff pattern:$0x73625140]
    %8708 = vst [vmem:[#allocation1] ss:$4 sm:$0xff] %v8341
    %8709 = vst [vmem:[%s8652] ss:$4 sm:$0xff] %v8489
    %8710 = vst [vmem:[%s8654] ss:$4 sm:$0xff] %v8490
    %8711 = vst [vmem:[%s8656] ss:$4 sm:$0xff] %v8491
    %8712 = vst [vmem:[%s8658] ss:$4 sm:$0xff] %v8342
    %8713 = vst [vmem:[%s8660] ss:$4 sm:$0xff] %v8492
    %8714 = vst [vmem:[%s8662] ss:$4 sm:$0xff] %v8493
    %8715 = vst [vmem:[%s8664] ss:$4 sm:$0xff] %v8494
    %v8716 = vld.sshfl [vmem:[#allocation1] sm:$0xff pattern:$0x73625140]
    %v8717 = vld.sshfl [vmem:[#allocation1 + $0x20] sm:$0xff pattern:$0x73625140]
    %8718 = vst [vmem:[#allocation1] ss:$4 sm:$0xff] %v8343
    %8719 = vst [vmem:[%s8652] ss:$4 sm:$0xff] %v8495
    %8720 = vst [vmem:[%s8654] ss:$4 sm:$0xff] %v8496
    %8721 = vst [vmem:[%s8656] ss:$4 sm:$0xff] %v8497
    %8722 = vst [vmem:[%s8658] ss:$4 sm:$0xff] %v8344
    %8723 = vst [vmem:[%s8660] ss:$4 sm:$0xff] %v8498
    %8724 = vst [vmem:[%s8662] ss:$4 sm:$0xff] %v8499
    %8725 = vst [vmem:[%s8664] ss:$4 sm:$0xff] %v8500
    %v8726 = vld.sshfl [vmem:[#allocation1] sm:$0xff pattern:$0x73625140]
    %v8727 = vld.sshfl [vmem:[#allocation1 + $0x20] sm:$0xff pattern:$0x73625140]
    %8728 = vst [vmem:[#allocation1] ss:$4 sm:$0xff] %v8345
    %8729 = vst [vmem:[%s8652] ss:$4 sm:$0xff] %v8501
    %8730 = vst [vmem:[%s8654] ss:$4 sm:$0xff] %v8502
    %8731 = vst [vmem:[%s8656] ss:$4 sm:$0xff] %v8503
    %8732 = vst [vmem:[%s8658] ss:$4 sm:$0xff] %v8346
    %8733 = vst [vmem:[%s8660] ss:$4 sm:$0xff] %v8504
    %8734 = vst [vmem:[%s8662] ss:$4 sm:$0xff] %v8505
    %8735 = vst [vmem:[%s8664] ss:$4 sm:$0xff] %v8506
    %v8736 = vld.sshfl [vmem:[#allocation1] sm:$0xff pattern:$0x73625140]
    %v8737 = vld.sshfl [vmem:[#allocation1 + $0x20] sm:$0xff pattern:$0x73625140]
    %8738 = vst [vmem:[#allocation1] ss:$4 sm:$0xff] %v8347
    %8739 = vst [vmem:[%s8652] ss:$4 sm:$0xff] %v8507
    %8740 = vst [vmem:[%s8654] ss:$4 sm:$0xff] %v8508
    %8741 = vst [vmem:[%s8656] ss:$4 sm:$0xff] %v8509
    %8742 = vst [vmem:[%s8658] ss:$4 sm:$0xff] %v8348
    %8743 = vst [vmem:[%s8660] ss:$4 sm:$0xff] %v8510
    %8744 = vst [vmem:[%s8662] ss:$4 sm:$0xff] %v8511
    %8745 = vst [vmem:[%s8664] ss:$4 sm:$0xff] %v8512
    %v8746 = vld.sshfl [vmem:[#allocation1] sm:$0xff pattern:$0x73625140]
    %v8747 = vld.sshfl [vmem:[#allocation1 + $0x20] sm:$0xff pattern:$0x73625140]
    %8748 = vst [vmem:[#allocation1] ss:$4 sm:$0xff] %v8349
    %8749 = vst [vmem:[%s8652] ss:$4 sm:$0xff] %v8513
    %8750 = vst [vmem:[%s8654] ss:$4 sm:$0xff] %v8514
    %8751 = vst [vmem:[%s8656] ss:$4 sm:$0xff] %v8515
    %8752 = vst [vmem:[%s8658] ss:$4 sm:$0xff] %v8350
    %8753 = vst [vmem:[%s8660] ss:$4 sm:$0xff] %v8516
    %8754 = vst [vmem:[%s8662] ss:$4 sm:$0xff] %v8517
    %8755 = vst [vmem:[%s8664] ss:$4 sm:$0xff] %v8518
    %v8756 = vld.sshfl [vmem:[#allocation1] sm:$0xff pattern:$0x73625140]
    %v8757 = vld.sshfl [vmem:[#allocation1 + $0x20] sm:$0xff pattern:$0x73625140]
    %8758 = vst [vmem:[#allocation1] ss:$4 sm:$0xff] %v8351
    %8759 = vst [vmem:[%s8652] ss:$4 sm:$0xff] %v8519
    %8760 = vst [vmem:[%s8654] ss:$4 sm:$0xff] %v8520
    %8761 = vst [vmem:[%s8656] ss:$4 sm:$0xff] %v8521
    %8762 = vst [vmem:[%s8658] ss:$4 sm:$0xff] %v8352
    %8763 = vst [vmem:[%s8660] ss:$4 sm:$0xff] %v8522
    %8764 = vst [vmem:[%s8662] ss:$4 sm:$0xff] %v8523
    %8765 = vst [vmem:[%s8664] ss:$4 sm:$0xff] %v8524
    %v8766 = vld.sshfl [vmem:[#allocation1] sm:$0xff pattern:$0x73625140]
    %v8767 = vld.sshfl [vmem:[#allocation1 + $0x20] sm:$0xff pattern:$0x73625140]
    %8768 = vst [vmem:[#allocation1] ss:$4 sm:$0xff] %v8353
    %8769 = vst [vmem:[%s8652] ss:$4 sm:$0xff] %v8525
    %8770 = vst [vmem:[%s8654] ss:$4 sm:$0xff] %v8526
    %8771 = vst [vmem:[%s8656] ss:$4 sm:$0xff] %v8527
    %8772 = vst [vmem:[%s8658] ss:$4 sm:$0xff] %v8354
    %8773 = vst [vmem:[%s8660] ss:$4 sm:$0xff] %v8528
    %8774 = vst [vmem:[%s8662] ss:$4 sm:$0xff] %v8529
    %8775 = vst [vmem:[%s8664] ss:$4 sm:$0xff] %v8530
    %v8776 = vld.sshfl [vmem:[#allocation1] sm:$0xff pattern:$0x73625140]
    %v8777 = vld.sshfl [vmem:[#allocation1 + $0x20] sm:$0xff pattern:$0x73625140]
    %8778 = vst [vmem:[#allocation1] ss:$4 sm:$0xff] %v8355
    %8779 = vst [vmem:[%s8652] ss:$4 sm:$0xff] %v8531
    %8780 = vst [vmem:[%s8654] ss:$4 sm:$0xff] %v8532
    %8781 = vst [vmem:[%s8656] ss:$4 sm:$0xff] %v8533
    %8782 = vst [vmem:[%s8658] ss:$4 sm:$0xff] %v8356
    %8783 = vst [vmem:[%s8660] ss:$4 sm:$0xff] %v8534
    %8784 = vst [vmem:[%s8662] ss:$4 sm:$0xff] %v8535
    %8785 = vst [vmem:[%s8664] ss:$4 sm:$0xff] %v8536
    %v8786 = vld.sshfl [vmem:[#allocation1] sm:$0xff pattern:$0x73625140]
    %v8787 = vld.sshfl [vmem:[#allocation1 + $0x20] sm:$0xff pattern:$0x73625140]
    %8788 = vst [vmem:[#allocation1] ss:$4 sm:$0xff] %v8357
    %8789 = vst [vmem:[%s8652] ss:$4 sm:$0xff] %v8537
    %8790 = vst [vmem:[%s8654] ss:$4 sm:$0xff] %v8538
    %8791 = vst [vmem:[%s8656] ss:$4 sm:$0xff] %v8539
    %8792 = vst [vmem:[%s8658] ss:$4 sm:$0xff] %v8358
    %8793 = vst [vmem:[%s8660] ss:$4 sm:$0xff] %v8540
    %8794 = vst [vmem:[%s8662] ss:$4 sm:$0xff] %v8541
    %8795 = vst [vmem:[%s8664] ss:$4 sm:$0xff] %v8542
    %v8796 = vld.sshfl [vmem:[#allocation1] sm:$0xff pattern:$0x73625140]
    %v8797 = vld.sshfl [vmem:[#allocation1 + $0x20] sm:$0xff pattern:$0x73625140]
    %8798 = vst [vmem:[#allocation1] ss:$4 sm:$0xff] %v8359
    %8799 = vst [vmem:[%s8652] ss:$4 sm:$0xff] %v8543
    %8800 = vst [vmem:[%s8654] ss:$4 sm:$0xff] %v8544
    %8801 = vst [vmem:[%s8656] ss:$4 sm:$0xff] %v8545
    %8802 = vst [vmem:[%s8658] ss:$4 sm:$0xff] %v8360
    %8803 = vst [vmem:[%s8660] ss:$4 sm:$0xff] %v8546
    %8804 = vst [vmem:[%s8662] ss:$4 sm:$0xff] %v8547
    %8805 = vst [vmem:[%s8664] ss:$4 sm:$0xff] %v8548
    %v8806 = vld.sshfl [vmem:[#allocation1] sm:$0xff pattern:$0x73625140]
    %v8807 = vld.sshfl [vmem:[#allocation1 + $0x20] sm:$0xff pattern:$0x73625140]
    %8808 = vst [vmem:[#allocation1] ss:$4 sm:$0xff] %v8361
    %8809 = vst [vmem:[%s8652] ss:$4 sm:$0xff] %v8549
    %8810 = vst [vmem:[%s8654] ss:$4 sm:$0xff] %v8550
    %8811 = vst [vmem:[%s8656] ss:$4 sm:$0xff] %v8551
    %8812 = vst [vmem:[%s8658] ss:$4 sm:$0xff] %v8362
    %8813 = vst [vmem:[%s8660] ss:$4 sm:$0xff] %v8552
    %8814 = vst [vmem:[%s8662] ss:$4 sm:$0xff] %v8553
    %8815 = vst [vmem:[%s8664] ss:$4 sm:$0xff] %v8554
    %v8816 = vld.sshfl [vmem:[#allocation1] sm:$0xff pattern:$0x73625140]
    %v8817 = vld.sshfl [vmem:[#allocation1 + $0x20] sm:$0xff pattern:$0x73625140]
    %8818 = vst [vmem:[#allocation1] ss:$4 sm:$0xff] %v8363
    %8819 = vst [vmem:[%s8652] ss:$4 sm:$0xff] %v8555
    %8820 = vst [vmem:[%s8654] ss:$4 sm:$0xff] %v8556
    %8821 = vst [vmem:[%s8656] ss:$4 sm:$0xff] %v8557
    %8822 = vst [vmem:[%s8658] ss:$4 sm:$0xff] %v8364
    %8823 = vst [vmem:[%s8660] ss:$4 sm:$0xff] %v8558
    %8824 = vst [vmem:[%s8662] ss:$4 sm:$0xff] %v8559
    %8825 = vst [vmem:[%s8664] ss:$4 sm:$0xff] %v8560
    %v8826 = vld.sshfl [vmem:[#allocation1] sm:$0xff pattern:$0x73625140]
    %v8827 = vld.sshfl [vmem:[#allocation1 + $0x20] sm:$0xff pattern:$0x73625140]
    %8828 = vst [vmem:[#allocation1] ss:$4 sm:$0xff] %v8365
    %8829 = vst [vmem:[%s8652] ss:$4 sm:$0xff] %v8561
    %8830 = vst [vmem:[%s8654] ss:$4 sm:$0xff] %v8562
    %8831 = vst [vmem:[%s8656] ss:$4 sm:$0xff] %v8563
    %8832 = vst [vmem:[%s8658] ss:$4 sm:$0xff] %v8366
    %8833 = vst [vmem:[%s8660] ss:$4 sm:$0xff] %v8564
    %8834 = vst [vmem:[%s8662] ss:$4 sm:$0xff] %v8565
    %8835 = vst [vmem:[%s8664] ss:$4 sm:$0xff] %v8566
    %v8836 = vld.sshfl [vmem:[#allocation1] sm:$0xff pattern:$0x73625140]
    %v8837 = vld.sshfl [vmem:[#allocation1 + $0x20] sm:$0xff pattern:$0x73625140]
    %8838 = vst [vmem:[#allocation1] ss:$4 sm:$0xff] %v8367
    %8839 = vst [vmem:[%s8652] ss:$4 sm:$0xff] %v8567
    %8840 = vst [vmem:[%s8654] ss:$4 sm:$0xff] %v8568
    %8841 = vst [vmem:[%s8656] ss:$4 sm:$0xff] %v8569
    %8842 = vst [vmem:[%s8658] ss:$4 sm:$0xff] %v8368
    %8843 = vst [vmem:[%s8660] ss:$4 sm:$0xff] %v8570
    %8844 = vst [vmem:[%s8662] ss:$4 sm:$0xff] %v8571
    %8845 = vst [vmem:[%s8664] ss:$4 sm:$0xff] %v8572
    %v8846 = vld.sshfl [vmem:[#allocation1] sm:$0xff pattern:$0x73625140]
    %v8847 = vld.sshfl [vmem:[#allocation1 + $0x20] sm:$0xff pattern:$0x73625140]
    %8848 = vst [vmem:[#allocation1] ss:$4 sm:$0xff] %v8369
    %8849 = vst [vmem:[%s8652] ss:$4 sm:$0xff] %v8573
    %8850 = vst [vmem:[%s8654] ss:$4 sm:$0xff] %v8574
    %8851 = vst [vmem:[%s8656] ss:$4 sm:$0xff] %v8575
    %8852 = vst [vmem:[%s8658] ss:$4 sm:$0xff] %v8370
    %8853 = vst [vmem:[%s8660] ss:$4 sm:$0xff] %v8576
    %8854 = vst [vmem:[%s8662] ss:$4 sm:$0xff] %v8577
    %8855 = vst [vmem:[%s8664] ss:$4 sm:$0xff] %v8578
    %v8856 = vld.sshfl [vmem:[#allocation1] sm:$0xff pattern:$0x73625140]
    %v8857 = vld.sshfl [vmem:[#allocation1 + $0x20] sm:$0xff pattern:$0x73625140]
    %8858 = vst [vmem:[#allocation1] ss:$4 sm:$0xff] %v8371
    %8859 = vst [vmem:[%s8652] ss:$4 sm:$0xff] %v8579
    %8860 = vst [vmem:[%s8654] ss:$4 sm:$0xff] %v8580
    %8861 = vst [vmem:[%s8656] ss:$4 sm:$0xff] %v8581
    %8862 = vst [vmem:[%s8658] ss:$4 sm:$0xff] %v8372
    %8863 = vst [vmem:[%s8660] ss:$4 sm:$0xff] %v8582
    %8864 = vst [vmem:[%s8662] ss:$4 sm:$0xff] %v8583
    %8865 = vst [vmem:[%s8664] ss:$4 sm:$0xff] %v8584
    %v8866 = vld.sshfl [vmem:[#allocation1] sm:$0xff pattern:$0x73625140]
    %v8867 = vld.sshfl [vmem:[#allocation1 + $0x20] sm:$0xff pattern:$0x73625140]
    %8868 = vst [vmem:[#allocation1] ss:$4 sm:$0xff] %v8373
    %8869 = vst [vmem:[%s8652] ss:$4 sm:$0xff] %v8585
    %8870 = vst [vmem:[%s8654] ss:$4 sm:$0xff] %v8586
    %8871 = vst [vmem:[%s8656] ss:$4 sm:$0xff] %v8587
    %8872 = vst [vmem:[%s8658] ss:$4 sm:$0xff] %v8374
    %8873 = vst [vmem:[%s8660] ss:$4 sm:$0xff] %v8588
    %8874 = vst [vmem:[%s8662] ss:$4 sm:$0xff] %v8589
    %8875 = vst [vmem:[%s8664] ss:$4 sm:$0xff] %v8590
    %v8876 = vld.sshfl [vmem:[#allocation1] sm:$0xff pattern:$0x73625140]
    %v8877 = vld.sshfl [vmem:[#allocation1 + $0x20] sm:$0xff pattern:$0x73625140]
    %8878 = vst [vmem:[#allocation1] ss:$4 sm:$0xff] %v8375
    %8879 = vst [vmem:[%s8652] ss:$4 sm:$0xff] %v8591
    %8880 = vst [vmem:[%s8654] ss:$4 sm:$0xff] %v8592
    %8881 = vst [vmem:[%s8656] ss:$4 sm:$0xff] %v8593
    %8882 = vst [vmem:[%s8658] ss:$4 sm:$0xff] %v8376
    %8883 = vst [vmem:[%s8660] ss:$4 sm:$0xff] %v8594
    %8884 = vst [vmem:[%s8662] ss:$4 sm:$0xff] %v8595
    %8885 = vst [vmem:[%s8664] ss:$4 sm:$0xff] %v8596
    %v8886 = vld.sshfl [vmem:[#allocation1] sm:$0xff pattern:$0x73625140]
    %v8887 = vld.sshfl [vmem:[#allocation1 + $0x20] sm:$0xff pattern:$0x73625140]
    %8888 = vst [vmem:[#allocation1] ss:$4 sm:$0xff] %v8377
    %8889 = vst [vmem:[%s8652] ss:$4 sm:$0xff] %v8597
    %8890 = vst [vmem:[%s8654] ss:$4 sm:$0xff] %v8598
    %8891 = vst [vmem:[%s8656] ss:$4 sm:$0xff] %v8599
    %8892 = vst [vmem:[%s8658] ss:$4 sm:$0xff] %v8378
    %8893 = vst [vmem:[%s8660] ss:$4 sm:$0xff] %v8600
    %8894 = vst [vmem:[%s8662] ss:$4 sm:$0xff] %v8601
    %8895 = vst [vmem:[%s8664] ss:$4 sm:$0xff] %v8602
    %v8896 = vld.sshfl [vmem:[#allocation1] sm:$0xff pattern:$0x73625140]
    %v8897 = vld.sshfl [vmem:[#allocation1 + $0x20] sm:$0xff pattern:$0x73625140]
    %8898 = vst [vmem:[#allocation1] ss:$4 sm:$0xff] %v8379
    %8899 = vst [vmem:[%s8652] ss:$4 sm:$0xff] %v8603
    %8900 = vst [vmem:[%s8654] ss:$4 sm:$0xff] %v8604
    %8901 = vst [vmem:[%s8656] ss:$4 sm:$0xff] %v8605
    %8902 = vst [vmem:[%s8658] ss:$4 sm:$0xff] %v8380
    %8903 = vst [vmem:[%s8660] ss:$4 sm:$0xff] %v8606
    %8904 = vst [vmem:[%s8662] ss:$4 sm:$0xff] %v8607
    %8905 = vst [vmem:[%s8664] ss:$4 sm:$0xff] %v8608
    %v8906 = vld.sshfl [vmem:[#allocation1] sm:$0xff pattern:$0x73625140]
    %v8907 = vld.sshfl [vmem:[#allocation1 + $0x20] sm:$0xff pattern:$0x73625140]
    %8908 = vst [vmem:[#allocation1] ss:$4 sm:$0xff] %v8381
    %8909 = vst [vmem:[%s8652] ss:$4 sm:$0xff] %v8609
    %8910 = vst [vmem:[%s8654] ss:$4 sm:$0xff] %v8610
    %8911 = vst [vmem:[%s8656] ss:$4 sm:$0xff] %v8611
    %8912 = vst [vmem:[%s8658] ss:$4 sm:$0xff] %v8382
    %8913 = vst [vmem:[%s8660] ss:$4 sm:$0xff] %v8612
    %8914 = vst [vmem:[%s8662] ss:$4 sm:$0xff] %v8613
    %8915 = vst [vmem:[%s8664] ss:$4 sm:$0xff] %v8614
    %v8916 = vld.sshfl [vmem:[#allocation1] sm:$0xff pattern:$0x73625140]
    %v8917 = vld.sshfl [vmem:[#allocation1 + $0x20] sm:$0xff pattern:$0x73625140]
    %8918 = vst [vmem:[#allocation1] ss:$4 sm:$0xff] %v8383
    %8919 = vst [vmem:[%s8652] ss:$4 sm:$0xff] %v8615
    %8920 = vst [vmem:[%s8654] ss:$4 sm:$0xff] %v8616
    %8921 = vst [vmem:[%s8656] ss:$4 sm:$0xff] %v8617
    %8922 = vst [vmem:[%s8658] ss:$4 sm:$0xff] %v8384
    %8923 = vst [vmem:[%s8660] ss:$4 sm:$0xff] %v8618
    %8924 = vst [vmem:[%s8662] ss:$4 sm:$0xff] %v8619
    %8925 = vst [vmem:[%s8664] ss:$4 sm:$0xff] %v8620
    %v8926 = vld.sshfl [vmem:[#allocation1] sm:$0xff pattern:$0x73625140]
    %v8927 = vld.sshfl [vmem:[#allocation1 + $0x20] sm:$0xff pattern:$0x73625140]
    %8928 = vst [vmem:[#allocation1] ss:$4 sm:$0xff] %v8385
    %8929 = vst [vmem:[%s8652] ss:$4 sm:$0xff] %v8621
    %8930 = vst [vmem:[%s8654] ss:$4 sm:$0xff] %v8622
    %8931 = vst [vmem:[%s8656] ss:$4 sm:$0xff] %v8623
    %8932 = vst [vmem:[%s8658] ss:$4 sm:$0xff] %v8386
    %8933 = vst [vmem:[%s8660] ss:$4 sm:$0xff] %v8624
    %8934 = vst [vmem:[%s8662] ss:$4 sm:$0xff] %v8625
    %8935 = vst [vmem:[%s8664] ss:$4 sm:$0xff] %v8626
    %v8936 = vld.sshfl [vmem:[#allocation1] sm:$0xff pattern:$0x73625140]
    %v8937 = vld.sshfl [vmem:[#allocation1 + $0x20] sm:$0xff pattern:$0x73625140]
    %8938 = vst [vmem:[#allocation1] ss:$4 sm:$0xff] %v8387
    %8939 = vst [vmem:[%s8652] ss:$4 sm:$0xff] %v8627
    %8940 = vst [vmem:[%s8654] ss:$4 sm:$0xff] %v8628
    %8941 = vst [vmem:[%s8656] ss:$4 sm:$0xff] %v8629
    %8942 = vst [vmem:[%s8658] ss:$4 sm:$0xff] %v8388
    %8943 = vst [vmem:[%s8660] ss:$4 sm:$0xff] %v8630
    %8944 = vst [vmem:[%s8662] ss:$4 sm:$0xff] %v8631
    %8945 = vst [vmem:[%s8664] ss:$4 sm:$0xff] %v8632
    %v8946 = vld.sshfl [vmem:[#allocation1] sm:$0xff pattern:$0x73625140]
    %v8947 = vld.sshfl [vmem:[#allocation1 + $0x20] sm:$0xff pattern:$0x73625140]
    %8948 = vst [vmem:[#allocation1] ss:$4 sm:$0xff] %v8389
    %8949 = vst [vmem:[%s8652] ss:$4 sm:$0xff] %v8633
    %8950 = vst [vmem:[%s8654] ss:$4 sm:$0xff] %v8634
    %8951 = vst [vmem:[%s8656] ss:$4 sm:$0xff] %v8635
    %8952 = vst [vmem:[%s8658] ss:$4 sm:$0xff] %v8390
    %8953 = vst [vmem:[%s8660] ss:$4 sm:$0xff] %v8636
    %8954 = vst [vmem:[%s8662] ss:$4 sm:$0xff] %v8637
    %8955 = vst [vmem:[%s8664] ss:$4 sm:$0xff] %v8638
    %v8956 = vld.sshfl [vmem:[#allocation1] sm:$0xff pattern:$0x73625140]
    %v8957 = vld.sshfl [vmem:[#allocation1 + $0x20] sm:$0xff pattern:$0x73625140]
    %8958 = vst [vmem:[#allocation1] ss:$4 sm:$0xff] %v8391
    %8959 = vst [vmem:[%s8652] ss:$4 sm:$0xff] %v8639
    %8960 = vst [vmem:[%s8654] ss:$4 sm:$0xff] %v8640
    %8961 = vst [vmem:[%s8656] ss:$4 sm:$0xff] %v8641
    %8962 = vst [vmem:[%s8658] ss:$4 sm:$0xff] %v8392
    %8963 = vst [vmem:[%s8660] ss:$4 sm:$0xff] %v8642
    %8964 = vst [vmem:[%s8662] ss:$4 sm:$0xff] %v8643
    %8965 = vst [vmem:[%s8664] ss:$4 sm:$0xff] %v8644
    %v8966 = vld.sshfl [vmem:[#allocation1] sm:$0xff pattern:$0x73625140]
    %v8967 = vld.sshfl [vmem:[#allocation1 + $0x20] sm:$0xff pattern:$0x73625140]
    %8968 = vst [vmem:[#allocation1] ss:$4 sm:$0xff] %v8393
    %8969 = vst [vmem:[%s8652] ss:$4 sm:$0xff] %v8645
    %8970 = vst [vmem:[%s8654] ss:$4 sm:$0xff] %v8646
    %8971 = vst [vmem:[%s8656] ss:$4 sm:$0xff] %v8647
    %8972 = vst [vmem:[%s8658] ss:$4 sm:$0xff] %v8394
    %8973 = vst [vmem:[%s8660] ss:$4 sm:$0xff] %v8648
    %8974 = vst [vmem:[%s8662] ss:$4 sm:$0xff] %v8649
    %8975 = vst [vmem:[%s8664] ss:$4 sm:$0xff] %v8650
    %v8976 = vld.sshfl [vmem:[#allocation1] sm:$0xff pattern:$0x73625140]
    %v8977 = vld.sshfl [vmem:[#allocation1 + $0x20] sm:$0xff pattern:$0x73625140]
    %8978 = vset.pattern.permute.xlu0 0
    %8979 = vperm.xlu0 %8978, %v8666
    %v8980 = vpop.permute.xlu0 %8979
    %8981 = vset.pattern.permute.xlu0 0
    %8982 = vperm.xlu0 %8981, %v8667
    %v8983 = vpop.permute.xlu0 %8982
    %8984 = vset.pattern.permute.xlu0 0
    %8985 = vperm.xlu0 %8984, %v8676
    %v8986 = vpop.permute.xlu0 %8985
    %8987 = vset.pattern.permute.xlu0 0
    %8988 = vperm.xlu0 %8987, %v8677
    %v8989 = vpop.permute.xlu0 %8988
    %8990 = vset.pattern.permute.xlu0 0
    %8991 = vperm.xlu0 %8990, %v8686
    %v8992 = vpop.permute.xlu0 %8991
    %8993 = vset.pattern.permute.xlu0 0
    %8994 = vperm.xlu0 %8993, %v8687
    %v8995 = vpop.permute.xlu0 %8994
    %8996 = vset.pattern.permute.xlu0 0
    %8997 = vperm.xlu0 %8996, %v8696
    %v8998 = vpop.permute.xlu0 %8997
    %8999 = vset.pattern.permute.xlu0 0
    %9000 = vperm.xlu0 %8999, %v8697
    %v9001 = vpop.permute.xlu0 %9000
    %9002 = vset.pattern.permute.xlu0 0
    %9003 = vperm.xlu0 %9002, %v8706
    %v9004 = vpop.permute.xlu0 %9003
    %9005 = vset.pattern.permute.xlu0 0
    %9006 = vperm.xlu0 %9005, %v8707
    %v9007 = vpop.permute.xlu0 %9006
    %9008 = vset.pattern.permute.xlu0 0
    %9009 = vperm.xlu0 %9008, %v8716
    %v9010 = vpop.permute.xlu0 %9009
    %9011 = vset.pattern.permute.xlu0 0
    %9012 = vperm.xlu0 %9011, %v8717
    %v9013 = vpop.permute.xlu0 %9012
    %9014 = vset.pattern.permute.xlu0 0
    %9015 = vperm.xlu0 %9014, %v8726
    %v9016 = vpop.permute.xlu0 %9015
    %9017 = vset.pattern.permute.xlu0 0
    %9018 = vperm.xlu0 %9017, %v8727
    %v9019 = vpop.permute.xlu0 %9018
    %9020 = vset.pattern.permute.xlu0 0
    %9021 = vperm.xlu0 %9020, %v8736
    %v9022 = vpop.permute.xlu0 %9021
    %9023 = vset.pattern.permute.xlu0 0
    %9024 = vperm.xlu0 %9023, %v8737
    %v9025 = vpop.permute.xlu0 %9024
    %9026 = vset.pattern.permute.xlu0 0
    %9027 = vperm.xlu0 %9026, %v8746
    %v9028 = vpop.permute.xlu0 %9027
    %9029 = vset.pattern.permute.xlu0 0
    %9030 = vperm.xlu0 %9029, %v8747
    %v9031 = vpop.permute.xlu0 %9030
    %9032 = vset.pattern.permute.xlu0 0
    %9033 = vperm.xlu0 %9032, %v8756
    %v9034 = vpop.permute.xlu0 %9033
    %9035 = vset.pattern.permute.xlu0 0
    %9036 = vperm.xlu0 %9035, %v8757
    %v9037 = vpop.permute.xlu0 %9036
    %9038 = vset.pattern.permute.xlu0 0
    %9039 = vperm.xlu0 %9038, %v8766
    %v9040 = vpop.permute.xlu0 %9039
    %9041 = vset.pattern.permute.xlu0 0
    %9042 = vperm.xlu0 %9041, %v8767
    %v9043 = vpop.permute.xlu0 %9042
    %9044 = vset.pattern.permute.xlu0 0
    %9045 = vperm.xlu0 %9044, %v8776
    %v9046 = vpop.permute.xlu0 %9045
    %9047 = vset.pattern.permute.xlu0 0
    %9048 = vperm.xlu0 %9047, %v8777
    %v9049 = vpop.permute.xlu0 %9048
    %9050 = vset.pattern.permute.xlu0 0
    %9051 = vperm.xlu0 %9050, %v8786
    %v9052 = vpop.permute.xlu0 %9051
    %9053 = vset.pattern.permute.xlu0 0
    %9054 = vperm.xlu0 %9053, %v8787
    %v9055 = vpop.permute.xlu0 %9054
    %9056 = vset.pattern.permute.xlu0 0
    %9057 = vperm.xlu0 %9056, %v8796
    %v9058 = vpop.permute.xlu0 %9057
    %9059 = vset.pattern.permute.xlu0 0
    %9060 = vperm.xlu0 %9059, %v8797
    %v9061 = vpop.permute.xlu0 %9060
    %9062 = vset.pattern.permute.xlu0 0
    %9063 = vperm.xlu0 %9062, %v8806
    %v9064 = vpop.permute.xlu0 %9063
    %9065 = vset.pattern.permute.xlu0 0
    %9066 = vperm.xlu0 %9065, %v8807
    %v9067 = vpop.permute.xlu0 %9066
    %9068 = vset.pattern.permute.xlu0 0
    %9069 = vperm.xlu0 %9068, %v8816
    %v9070 = vpop.permute.xlu0 %9069
    %9071 = vset.pattern.permute.xlu0 0
    %9072 = vperm.xlu0 %9071, %v8817
    %v9073 = vpop.permute.xlu0 %9072
    %9074 = vset.pattern.permute.xlu0 0
    %9075 = vperm.xlu0 %9074, %v8826
    %v9076 = vpop.permute.xlu0 %9075
    %9077 = vset.pattern.permute.xlu0 0
    %9078 = vperm.xlu0 %9077, %v8827
    %v9079 = vpop.permute.xlu0 %9078
    %9080 = vset.pattern.permute.xlu0 0
    %9081 = vperm.xlu0 %9080, %v8836
    %v9082 = vpop.permute.xlu0 %9081
    %9083 = vset.pattern.permute.xlu0 0
    %9084 = vperm.xlu0 %9083, %v8837
    %v9085 = vpop.permute.xlu0 %9084
    %9086 = vset.pattern.permute.xlu0 0
    %9087 = vperm.xlu0 %9086, %v8846
    %v9088 = vpop.permute.xlu0 %9087
    %9089 = vset.pattern.permute.xlu0 0
    %9090 = vperm.xlu0 %9089, %v8847
    %v9091 = vpop.permute.xlu0 %9090
    %9092 = vset.pattern.permute.xlu0 0
    %9093 = vperm.xlu0 %9092, %v8856
    %v9094 = vpop.permute.xlu0 %9093
    %9095 = vset.pattern.permute.xlu0 0
    %9096 = vperm.xlu0 %9095, %v8857
    %v9097 = vpop.permute.xlu0 %9096
    %9098 = vset.pattern.permute.xlu0 0
    %9099 = vperm.xlu0 %9098, %v8866
    %v9100 = vpop.permute.xlu0 %9099
    %9101 = vset.pattern.permute.xlu0 0
    %9102 = vperm.xlu0 %9101, %v8867
    %v9103 = vpop.permute.xlu0 %9102
    %9104 = vset.pattern.permute.xlu0 0
    %9105 = vperm.xlu0 %9104, %v8876
    %v9106 = vpop.permute.xlu0 %9105
    %9107 = vset.pattern.permute.xlu0 0
    %9108 = vperm.xlu0 %9107, %v8877
    %v9109 = vpop.permute.xlu0 %9108
    %9110 = vset.pattern.permute.xlu0 0
    %9111 = vperm.xlu0 %9110, %v8886
    %v9112 = vpop.permute.xlu0 %9111
    %9113 = vset.pattern.permute.xlu0 0
    %9114 = vperm.xlu0 %9113, %v8887
    %v9115 = vpop.permute.xlu0 %9114
    %9116 = vset.pattern.permute.xlu0 0
    %9117 = vperm.xlu0 %9116, %v8896
    %v9118 = vpop.permute.xlu0 %9117
    %9119 = vset.pattern.permute.xlu0 0
    %9120 = vperm.xlu0 %9119, %v8897
    %v9121 = vpop.permute.xlu0 %9120
    %9122 = vset.pattern.permute.xlu0 0
    %9123 = vperm.xlu0 %9122, %v8906
    %v9124 = vpop.permute.xlu0 %9123
    %9125 = vset.pattern.permute.xlu0 0
    %9126 = vperm.xlu0 %9125, %v8907
    %v9127 = vpop.permute.xlu0 %9126
    %9128 = vset.pattern.permute.xlu0 0
    %9129 = vperm.xlu0 %9128, %v8916
    %v9130 = vpop.permute.xlu0 %9129
    %9131 = vset.pattern.permute.xlu0 0
    %9132 = vperm.xlu0 %9131, %v8917
    %v9133 = vpop.permute.xlu0 %9132
    %9134 = vset.pattern.permute.xlu0 0
    %9135 = vperm.xlu0 %9134, %v8926
    %v9136 = vpop.permute.xlu0 %9135
    %9137 = vset.pattern.permute.xlu0 0
    %9138 = vperm.xlu0 %9137, %v8927
    %v9139 = vpop.permute.xlu0 %9138
    %9140 = vset.pattern.permute.xlu0 0
    %9141 = vperm.xlu0 %9140, %v8936
    %v9142 = vpop.permute.xlu0 %9141
    %9143 = vset.pattern.permute.xlu0 0
    %9144 = vperm.xlu0 %9143, %v8937
    %v9145 = vpop.permute.xlu0 %9144
    %9146 = vset.pattern.permute.xlu0 0
    %9147 = vperm.xlu0 %9146, %v8946
    %v9148 = vpop.permute.xlu0 %9147
    %9149 = vset.pattern.permute.xlu0 0
    %9150 = vperm.xlu0 %9149, %v8947
    %v9151 = vpop.permute.xlu0 %9150
    %9152 = vset.pattern.permute.xlu0 0
    %9153 = vperm.xlu0 %9152, %v8956
    %v9154 = vpop.permute.xlu0 %9153
    %9155 = vset.pattern.permute.xlu0 0
    %9156 = vperm.xlu0 %9155, %v8957
    %v9157 = vpop.permute.xlu0 %9156
    %9158 = vset.pattern.permute.xlu0 0
    %9159 = vperm.xlu0 %9158, %v8966
    %v9160 = vpop.permute.xlu0 %9159
    %9161 = vset.pattern.permute.xlu0 0
    %9162 = vperm.xlu0 %9161, %v8967
    %v9163 = vpop.permute.xlu0 %9162
    %9164 = vset.pattern.permute.xlu0 0
    %9165 = vperm.xlu0 %9164, %v8976
    %v9166 = vpop.permute.xlu0 %9165
    %9167 = vset.pattern.permute.xlu0 0
    %9168 = vperm.xlu0 %9167, %v8977
    %v9169 = vpop.permute.xlu0 %9168
    %v9170 = vperm.slane %v8980, %v517
    %v9171 = vperm.slane %v8983, %v519
    %v9172 = vsel %vm521, %v9171, %v9170
    %v9173 = vperm.slane %v8986, %v523
    %v9174 = vsel %vm525, %v9173, %v9172
    %v9175 = vperm.slane %v8989, %v527
    %v9176 = vsel %vm529, %v9175, %v9174
    %v9177 = vperm.slane %v8992, %v531
    %v9178 = vsel %vm533, %v9177, %v9176
    %v9179 = vperm.slane %v8995, %v535
    %v9180 = vsel %vm537, %v9179, %v9178
    %v9181 = vperm.slane %v8998, %v539
    %v9182 = vsel %vm541, %v9181, %v9180
    %v9183 = vperm.slane %v9001, %v543
    %v9184 = vsel %vm545, %v9183, %v9182
    %v9185 = vperm.slane %v9004, %v547
    %v9186 = vsel %vm549, %v9185, %v9184
    %v9187 = vperm.slane %v9007, %v551
    %v9188 = vsel %vm553, %v9187, %v9186
    %v9189 = vperm.slane %v9010, %v555
    %v9190 = vsel %vm557, %v9189, %v9188
    %v9191 = vperm.slane %v9013, %v559
    %v9192 = vsel %vm561, %v9191, %v9190
    %v9193 = vperm.slane %v9016, %v563
    %v9194 = vsel %vm565, %v9193, %v9192
    %v9195 = vperm.slane %v9019, %v567
    %v9196 = vsel %vm569, %v9195, %v9194
    %v9197 = vperm.slane %v9022, %v571
    %v9198 = vsel %vm573, %v9197, %v9196
    %v9199 = vperm.slane %v9025, %v575
    %v9200 = vsel %vm577, %v9199, %v9198
    %v9201 = vperm.slane %v9028, %v517
    %v9202 = vperm.slane %v9031, %v519
    %v9203 = vsel %vm521, %v9202, %v9201
    %v9204 = vperm.slane %v9034, %v523
    %v9205 = vsel %vm525, %v9204, %v9203
    %v9206 = vperm.slane %v9037, %v527
    %v9207 = vsel %vm529, %v9206, %v9205
    %v9208 = vperm.slane %v9040, %v531
    %v9209 = vsel %vm533, %v9208, %v9207
    %v9210 = vperm.slane %v9043, %v535
    %v9211 = vsel %vm537, %v9210, %v9209
    %v9212 = vperm.slane %v9046, %v539
    %v9213 = vsel %vm541, %v9212, %v9211
    %v9214 = vperm.slane %v9049, %v543
    %v9215 = vsel %vm545, %v9214, %v9213
    %v9216 = vperm.slane %v9052, %v547
    %v9217 = vsel %vm549, %v9216, %v9215
    %v9218 = vperm.slane %v9055, %v551
    %v9219 = vsel %vm553, %v9218, %v9217
    %v9220 = vperm.slane %v9058, %v555
    %v9221 = vsel %vm557, %v9220, %v9219
    %v9222 = vperm.slane %v9061, %v559
    %v9223 = vsel %vm561, %v9222, %v9221
    %v9224 = vperm.slane %v9064, %v563
    %v9225 = vsel %vm565, %v9224, %v9223
    %v9226 = vperm.slane %v9067, %v567
    %v9227 = vsel %vm569, %v9226, %v9225
    %v9228 = vperm.slane %v9070, %v571
    %v9229 = vsel %vm573, %v9228, %v9227
    %v9230 = vperm.slane %v9073, %v575
    %v9231 = vsel %vm577, %v9230, %v9229
    %v9232 = vperm.slane %v9076, %v517
    %v9233 = vperm.slane %v9079, %v519
    %v9234 = vsel %vm521, %v9233, %v9232
    %v9235 = vperm.slane %v9082, %v523
    %v9236 = vsel %vm525, %v9235, %v9234
    %v9237 = vperm.slane %v9085, %v527
    %v9238 = vsel %vm529, %v9237, %v9236
    %v9239 = vperm.slane %v9088, %v531
    %v9240 = vsel %vm533, %v9239, %v9238
    %v9241 = vperm.slane %v9091, %v535
    %v9242 = vsel %vm537, %v9241, %v9240
    %v9243 = vperm.slane %v9094, %v539
    %v9244 = vsel %vm541, %v9243, %v9242
    %v9245 = vperm.slane %v9097, %v543
    %v9246 = vsel %vm545, %v9245, %v9244
    %v9247 = vperm.slane %v9100, %v547
    %v9248 = vsel %vm549, %v9247, %v9246
    %v9249 = vperm.slane %v9103, %v551
    %v9250 = vsel %vm553, %v9249, %v9248
    %v9251 = vperm.slane %v9106, %v555
    %v9252 = vsel %vm557, %v9251, %v9250
    %v9253 = vperm.slane %v9109, %v559
    %v9254 = vsel %vm561, %v9253, %v9252
    %v9255 = vperm.slane %v9112, %v563
    %v9256 = vsel %vm565, %v9255, %v9254
    %v9257 = vperm.slane %v9115, %v567
    %v9258 = vsel %vm569, %v9257, %v9256
    %v9259 = vperm.slane %v9118, %v571
    %v9260 = vsel %vm573, %v9259, %v9258
    %v9261 = vperm.slane %v9121, %v575
    %v9262 = vsel %vm577, %v9261, %v9260
    %v9263 = vperm.slane %v9124, %v517
    %v9264 = vperm.slane %v9127, %v519
    %v9265 = vsel %vm521, %v9264, %v9263
    %v9266 = vperm.slane %v9130, %v523
    %v9267 = vsel %vm525, %v9266, %v9265
    %v9268 = vperm.slane %v9133, %v527
    %v9269 = vsel %vm529, %v9268, %v9267
    %v9270 = vperm.slane %v9136, %v531
    %v9271 = vsel %vm533, %v9270, %v9269
    %v9272 = vperm.slane %v9139, %v535
    %v9273 = vsel %vm537, %v9272, %v9271
    %v9274 = vperm.slane %v9142, %v539
    %v9275 = vsel %vm541, %v9274, %v9273
    %v9276 = vperm.slane %v9145, %v543
    %v9277 = vsel %vm545, %v9276, %v9275
    %v9278 = vperm.slane %v9148, %v547
    %v9279 = vsel %vm549, %v9278, %v9277
    %v9280 = vperm.slane %v9151, %v551
    %v9281 = vsel %vm553, %v9280, %v9279
    %v9282 = vperm.slane %v9154, %v555
    %v9283 = vsel %vm557, %v9282, %v9281
    %v9284 = vperm.slane %v9157, %v559
    %v9285 = vsel %vm561, %v9284, %v9283
    %v9286 = vperm.slane %v9160, %v563
    %v9287 = vsel %vm565, %v9286, %v9285
    %v9288 = vperm.slane %v9163, %v567
    %v9289 = vsel %vm569, %v9288, %v9287
    %v9290 = vperm.slane %v9166, %v571
    %v9291 = vsel %vm573, %v9290, %v9289
    %v9292 = vperm.slane %v9169, %v575
    %v9293 = vsel %vm577, %v9292, %v9291
    %v9294 = vsel %vm672, %v9262, %v9200
    %v9295 = vsel %vm672, %v9293, %v9231
    %v9296 = vrot.slane %v9295, 6
    %v9297 = vsel %vm718, %v9294, %v9296
    %9299 = vst [vmem:[#allocation2] sm:$0xf] %v9297
    %v9300 = vld [vmem:[%s3] sm:$0xff]
    %v9301 = vld [vmem:[%s3 + $0x8] sm:$0xff]
    %v9302 = vld [vmem:[%s3 + $0x10] sm:$0xff]
    %v9303 = vld [vmem:[%s3 + $0x18] sm:$0xff]
    %v9304 = vld [vmem:[%s3 + $0x20] sm:$0xff]
    %v9305 = vld [vmem:[%s3 + $0x28] sm:$0xff]
    %v9306 = vld [vmem:[%s3 + $0x30] sm:$0xff]
    %v9307 = vld [vmem:[%s3 + $0x38] sm:$0xff]
    %v9308 = vld [vmem:[%s3 + $0x40] sm:$0xff]
    %v9309 = vld [vmem:[%s3 + $0x48] sm:$0xff]
    %v9310 = vld [vmem:[%s3 + $0x50] sm:$0xff]
    %v9311 = vld [vmem:[%s3 + $0x58] sm:$0xff]
    %v9312 = vld [vmem:[%s3 + $0x60] sm:$0xff]
    %v9313 = vld [vmem:[%s3 + $0x68] sm:$0xff]
    %v9314 = vld [vmem:[%s3 + $0x70] sm:$0xff]
    %v9315 = vld [vmem:[%s3 + $0x78] sm:$0xff]
    %v9316 = vld [vmem:[%s3 + $0x80] sm:$0xff]
    %v9317 = vld [vmem:[%s3 + $0x88] sm:$0xff]
    %v9318 = vld [vmem:[%s3 + $0x90] sm:$0xff]
    %v9319 = vld [vmem:[%s3 + $0x98] sm:$0xff]
    %v9320 = vld [vmem:[%s3 + $0xa0] sm:$0xff]
    %v9321 = vld [vmem:[%s3 + $0xa8] sm:$0xff]
    %v9322 = vld [vmem:[%s3 + $0xb0] sm:$0xff]
    %v9323 = vld [vmem:[%s3 + $0xb8] sm:$0xff]
    %v9324 = vld [vmem:[%s3 + $0xc0] sm:$0xff]
    %v9325 = vld [vmem:[%s3 + $0xc8] sm:$0xff]
    %v9326 = vld [vmem:[%s3 + $0xd0] sm:$0xff]
    %v9327 = vld [vmem:[%s3 + $0xd8] sm:$0xff]
    %v9328 = vld [vmem:[%s3 + $0xe0] sm:$0xff]
    %v9329 = vld [vmem:[%s3 + $0xe8] sm:$0xff]
    %v9330 = vld [vmem:[%s3 + $0xf0] sm:$0xff]
    %v9331 = vld [vmem:[%s3 + $0xf8] sm:$0xff]
    %v9332 = vld [vmem:[%s4] sm:$0x1]
    %v9334 = vperm.slane %v9332, 0
    %9336 = vset.pattern.permute.xlu0 0
    %9337 = vperm.xlu0 %9336, %v8331
    %v9338 = vpop.permute.xlu0 %9337
    %9339 = vset.pattern.permute.xlu0 0
    %9340 = vperm.xlu0 %9339, %v8332
    %v9341 = vpop.permute.xlu0 %9340
    %9342 = vset.pattern.permute.xlu0 0
    %9343 = vperm.xlu0 %9342, %v8333
    %v9344 = vpop.permute.xlu0 %9343
    %9345 = vset.pattern.permute.xlu0 0
    %9346 = vperm.xlu0 %9345, %v8334
    %v9347 = vpop.permute.xlu0 %9346
    %9348 = vset.pattern.permute.xlu0 0
    %9349 = vperm.xlu0 %9348, %v8335
    %v9350 = vpop.permute.xlu0 %9349
    %9351 = vset.pattern.permute.xlu0 0
    %9352 = vperm.xlu0 %9351, %v8336
    %v9353 = vpop.permute.xlu0 %9352
    %9354 = vset.pattern.permute.xlu0 0
    %9355 = vperm.xlu0 %9354, %v8337
    %v9356 = vpop.permute.xlu0 %9355
    %9357 = vset.pattern.permute.xlu0 0
    %9358 = vperm.xlu0 %9357, %v8338
    %v9359 = vpop.permute.xlu0 %9358
    %9360 = vset.pattern.permute.xlu0 0
    %9361 = vperm.xlu0 %9360, %v8339
    %v9362 = vpop.permute.xlu0 %9361
    %9363 = vset.pattern.permute.xlu0 0
    %9364 = vperm.xlu0 %9363, %v8340
    %v9365 = vpop.permute.xlu0 %9364
    %9366 = vset.pattern.permute.xlu0 0
    %9367 = vperm.xlu0 %9366, %v8341
    %v9368 = vpop.permute.xlu0 %9367
    %9369 = vset.pattern.permute.xlu0 0
    %9370 = vperm.xlu0 %9369, %v8342
    %v9371 = vpop.permute.xlu0 %9370
    %9372 = vset.pattern.permute.xlu0 0
    %9373 = vperm.xlu0 %9372, %v8343
    %v9374 = vpop.permute.xlu0 %9373
    %9375 = vset.pattern.permute.xlu0 0
    %9376 = vperm.xlu0 %9375, %v8344
    %v9377 = vpop.permute.xlu0 %9376
    %9378 = vset.pattern.permute.xlu0 0
    %9379 = vperm.xlu0 %9378, %v8345
    %v9380 = vpop.permute.xlu0 %9379
    %9381 = vset.pattern.permute.xlu0 0
    %9382 = vperm.xlu0 %9381, %v8346
    %v9383 = vpop.permute.xlu0 %9382
    %9384 = vset.pattern.permute.xlu0 0
    %9385 = vperm.xlu0 %9384, %v8347
    %v9386 = vpop.permute.xlu0 %9385
    %9387 = vset.pattern.permute.xlu0 0
    %9388 = vperm.xlu0 %9387, %v8348
    %v9389 = vpop.permute.xlu0 %9388
    %9390 = vset.pattern.permute.xlu0 0
    %9391 = vperm.xlu0 %9390, %v8349
    %v9392 = vpop.permute.xlu0 %9391
    %9393 = vset.pattern.permute.xlu0 0
    %9394 = vperm.xlu0 %9393, %v8350
    %v9395 = vpop.permute.xlu0 %9394
    %9396 = vset.pattern.permute.xlu0 0
    %9397 = vperm.xlu0 %9396, %v8351
    %v9398 = vpop.permute.xlu0 %9397
    %9399 = vset.pattern.permute.xlu0 0
    %9400 = vperm.xlu0 %9399, %v8352
    %v9401 = vpop.permute.xlu0 %9400
    %9402 = vset.pattern.permute.xlu0 0
    %9403 = vperm.xlu0 %9402, %v8353
    %v9404 = vpop.permute.xlu0 %9403
    %9405 = vset.pattern.permute.xlu0 0
    %9406 = vperm.xlu0 %9405, %v8354
    %v9407 = vpop.permute.xlu0 %9406
    %9408 = vset.pattern.permute.xlu0 0
    %9409 = vperm.xlu0 %9408, %v8355
    %v9410 = vpop.permute.xlu0 %9409
    %9411 = vset.pattern.permute.xlu0 0
    %9412 = vperm.xlu0 %9411, %v8356
    %v9413 = vpop.permute.xlu0 %9412
    %9414 = vset.pattern.permute.xlu0 0
    %9415 = vperm.xlu0 %9414, %v8357
    %v9416 = vpop.permute.xlu0 %9415
    %9417 = vset.pattern.permute.xlu0 0
    %9418 = vperm.xlu0 %9417, %v8358
    %v9419 = vpop.permute.xlu0 %9418
    %9420 = vset.pattern.permute.xlu0 0
    %9421 = vperm.xlu0 %9420, %v8359
    %v9422 = vpop.permute.xlu0 %9421
    %9423 = vset.pattern.permute.xlu0 0
    %9424 = vperm.xlu0 %9423, %v8360
    %v9425 = vpop.permute.xlu0 %9424
    %9426 = vset.pattern.permute.xlu0 0
    %9427 = vperm.xlu0 %9426, %v8361
    %v9428 = vpop.permute.xlu0 %9427
    %9429 = vset.pattern.permute.xlu0 0
    %9430 = vperm.xlu0 %9429, %v8362
    %v9431 = vpop.permute.xlu0 %9430
    %9432 = vset.pattern.permute.xlu0 0
    %9433 = vperm.xlu0 %9432, %v8363
    %v9434 = vpop.permute.xlu0 %9433
    %9435 = vset.pattern.permute.xlu0 0
    %9436 = vperm.xlu0 %9435, %v8364
    %v9437 = vpop.permute.xlu0 %9436
    %9438 = vset.pattern.permute.xlu0 0
    %9439 = vperm.xlu0 %9438, %v8365
    %v9440 = vpop.permute.xlu0 %9439
    %9441 = vset.pattern.permute.xlu0 0
    %9442 = vperm.xlu0 %9441, %v8366
    %v9443 = vpop.permute.xlu0 %9442
    %9444 = vset.pattern.permute.xlu0 0
    %9445 = vperm.xlu0 %9444, %v8367
    %v9446 = vpop.permute.xlu0 %9445
    %9447 = vset.pattern.permute.xlu0 0
    %9448 = vperm.xlu0 %9447, %v8368
    %v9449 = vpop.permute.xlu0 %9448
    %9450 = vset.pattern.permute.xlu0 0
    %9451 = vperm.xlu0 %9450, %v8369
    %v9452 = vpop.permute.xlu0 %9451
    %9453 = vset.pattern.permute.xlu0 0
    %9454 = vperm.xlu0 %9453, %v8370
    %v9455 = vpop.permute.xlu0 %9454
    %9456 = vset.pattern.permute.xlu0 0
    %9457 = vperm.xlu0 %9456, %v8371
    %v9458 = vpop.permute.xlu0 %9457
    %9459 = vset.pattern.permute.xlu0 0
    %9460 = vperm.xlu0 %9459, %v8372
    %v9461 = vpop.permute.xlu0 %9460
    %9462 = vset.pattern.permute.xlu0 0
    %9463 = vperm.xlu0 %9462, %v8373
    %v9464 = vpop.permute.xlu0 %9463
    %9465 = vset.pattern.permute.xlu0 0
    %9466 = vperm.xlu0 %9465, %v8374
    %v9467 = vpop.permute.xlu0 %9466
    %9468 = vset.pattern.permute.xlu0 0
    %9469 = vperm.xlu0 %9468, %v8375
    %v9470 = vpop.permute.xlu0 %9469
    %9471 = vset.pattern.permute.xlu0 0
    %9472 = vperm.xlu0 %9471, %v8376
    %v9473 = vpop.permute.xlu0 %9472
    %9474 = vset.pattern.permute.xlu0 0
    %9475 = vperm.xlu0 %9474, %v8377
    %v9476 = vpop.permute.xlu0 %9475
    %9477 = vset.pattern.permute.xlu0 0
    %9478 = vperm.xlu0 %9477, %v8378
    %v9479 = vpop.permute.xlu0 %9478
    %9480 = vset.pattern.permute.xlu0 0
    %9481 = vperm.xlu0 %9480, %v8379
    %v9482 = vpop.permute.xlu0 %9481
    %9483 = vset.pattern.permute.xlu0 0
    %9484 = vperm.xlu0 %9483, %v8380
    %v9485 = vpop.permute.xlu0 %9484
    %9486 = vset.pattern.permute.xlu0 0
    %9487 = vperm.xlu0 %9486, %v8381
    %v9488 = vpop.permute.xlu0 %9487
    %9489 = vset.pattern.permute.xlu0 0
    %9490 = vperm.xlu0 %9489, %v8382
    %v9491 = vpop.permute.xlu0 %9490
    %9492 = vset.pattern.permute.xlu0 0
    %9493 = vperm.xlu0 %9492, %v8383
    %v9494 = vpop.permute.xlu0 %9493
    %9495 = vset.pattern.permute.xlu0 0
    %9496 = vperm.xlu0 %9495, %v8384
    %v9497 = vpop.permute.xlu0 %9496
    %9498 = vset.pattern.permute.xlu0 0
    %9499 = vperm.xlu0 %9498, %v8385
    %v9500 = vpop.permute.xlu0 %9499
    %9501 = vset.pattern.permute.xlu0 0
    %9502 = vperm.xlu0 %9501, %v8386
    %v9503 = vpop.permute.xlu0 %9502
    %9504 = vset.pattern.permute.xlu0 0
    %9505 = vperm.xlu0 %9504, %v8387
    %v9506 = vpop.permute.xlu0 %9505
    %9507 = vset.pattern.permute.xlu0 0
    %9508 = vperm.xlu0 %9507, %v8388
    %v9509 = vpop.permute.xlu0 %9508
    %9510 = vset.pattern.permute.xlu0 0
    %9511 = vperm.xlu0 %9510, %v8389
    %v9512 = vpop.permute.xlu0 %9511
    %9513 = vset.pattern.permute.xlu0 0
    %9514 = vperm.xlu0 %9513, %v8390
    %v9515 = vpop.permute.xlu0 %9514
    %9516 = vset.pattern.permute.xlu0 0
    %9517 = vperm.xlu0 %9516, %v8391
    %v9518 = vpop.permute.xlu0 %9517
    %9519 = vset.pattern.permute.xlu0 0
    %9520 = vperm.xlu0 %9519, %v8392
    %v9521 = vpop.permute.xlu0 %9520
    %9522 = vset.pattern.permute.xlu0 0
    %9523 = vperm.xlu0 %9522, %v8393
    %v9524 = vpop.permute.xlu0 %9523
    %9525 = vset.pattern.permute.xlu0 0
    %9526 = vperm.xlu0 %9525, %v8394
    %v9527 = vpop.permute.xlu0 %9526
    %v9528 = vperm.slane %v9338, %v517
    %v9529 = vperm.slane %v9341, %v519
    %v9530 = vsel %vm521, %v9529, %v9528
    %v9531 = vperm.slane %v9344, %v523
    %v9532 = vsel %vm525, %v9531, %v9530
    %v9533 = vperm.slane %v9347, %v527
    %v9534 = vsel %vm529, %v9533, %v9532
    %v9535 = vperm.slane %v9350, %v531
    %v9536 = vsel %vm533, %v9535, %v9534
    %v9537 = vperm.slane %v9353, %v535
    %v9538 = vsel %vm537, %v9537, %v9536
    %v9539 = vperm.slane %v9356, %v539
    %v9540 = vsel %vm541, %v9539, %v9538
    %v9541 = vperm.slane %v9359, %v543
    %v9542 = vsel %vm545, %v9541, %v9540
    %v9543 = vperm.slane %v9362, %v547
    %v9544 = vsel %vm549, %v9543, %v9542
    %v9545 = vperm.slane %v9365, %v551
    %v9546 = vsel %vm553, %v9545, %v9544
    %v9547 = vperm.slane %v9368, %v555
    %v9548 = vsel %vm557, %v9547, %v9546
    %v9549 = vperm.slane %v9371, %v559
    %v9550 = vsel %vm561, %v9549, %v9548
    %v9551 = vperm.slane %v9374, %v563
    %v9552 = vsel %vm565, %v9551, %v9550
    %v9553 = vperm.slane %v9377, %v567
    %v9554 = vsel %vm569, %v9553, %v9552
    %v9555 = vperm.slane %v9380, %v571
    %v9556 = vsel %vm573, %v9555, %v9554
    %v9557 = vperm.slane %v9383, %v575
    %v9558 = vsel %vm577, %v9557, %v9556
    %v9559 = vperm.slane %v9386, %v517
    %v9560 = vperm.slane %v9389, %v519
    %v9561 = vsel %vm521, %v9560, %v9559
    %v9562 = vperm.slane %v9392, %v523
    %v9563 = vsel %vm525, %v9562, %v9561
    %v9564 = vperm.slane %v9395, %v527
    %v9565 = vsel %vm529, %v9564, %v9563
    %v9566 = vperm.slane %v9398, %v531
    %v9567 = vsel %vm533, %v9566, %v9565
    %v9568 = vperm.slane %v9401, %v535
    %v9569 = vsel %vm537, %v9568, %v9567
    %v9570 = vperm.slane %v9404, %v539
    %v9571 = vsel %vm541, %v9570, %v9569
    %v9572 = vperm.slane %v9407, %v543
    %v9573 = vsel %vm545, %v9572, %v9571
    %v9574 = vperm.slane %v9410, %v547
    %v9575 = vsel %vm549, %v9574, %v9573
    %v9576 = vperm.slane %v9413, %v551
    %v9577 = vsel %vm553, %v9576, %v9575
    %v9578 = vperm.slane %v9416, %v555
    %v9579 = vsel %vm557, %v9578, %v9577
    %v9580 = vperm.slane %v9419, %v559
    %v9581 = vsel %vm561, %v9580, %v9579
    %v9582 = vperm.slane %v9422, %v563
    %v9583 = vsel %vm565, %v9582, %v9581
    %v9584 = vperm.slane %v9425, %v567
    %v9585 = vsel %vm569, %v9584, %v9583
    %v9586 = vperm.slane %v9428, %v571
    %v9587 = vsel %vm573, %v9586, %v9585
    %v9588 = vperm.slane %v9431, %v575
    %v9589 = vsel %vm577, %v9588, %v9587
    %v9590 = vperm.slane %v9434, %v517
    %v9591 = vperm.slane %v9437, %v519
    %v9592 = vsel %vm521, %v9591, %v9590
    %v9593 = vperm.slane %v9440, %v523
    %v9594 = vsel %vm525, %v9593, %v9592
    %v9595 = vperm.slane %v9443, %v527
    %v9596 = vsel %vm529, %v9595, %v9594
    %v9597 = vperm.slane %v9446, %v531
    %v9598 = vsel %vm533, %v9597, %v9596
    %v9599 = vperm.slane %v9449, %v535
    %v9600 = vsel %vm537, %v9599, %v9598
    %v9601 = vperm.slane %v9452, %v539
    %v9602 = vsel %vm541, %v9601, %v9600
    %v9603 = vperm.slane %v9455, %v543
    %v9604 = vsel %vm545, %v9603, %v9602
    %v9605 = vperm.slane %v9458, %v547
    %v9606 = vsel %vm549, %v9605, %v9604
    %v9607 = vperm.slane %v9461, %v551
    %v9608 = vsel %vm553, %v9607, %v9606
    %v9609 = vperm.slane %v9464, %v555
    %v9610 = vsel %vm557, %v9609, %v9608
    %v9611 = vperm.slane %v9467, %v559
    %v9612 = vsel %vm561, %v9611, %v9610
    %v9613 = vperm.slane %v9470, %v563
    %v9614 = vsel %vm565, %v9613, %v9612
    %v9615 = vperm.slane %v9473, %v567
    %v9616 = vsel %vm569, %v9615, %v9614
    %v9617 = vperm.slane %v9476, %v571
    %v9618 = vsel %vm573, %v9617, %v9616
    %v9619 = vperm.slane %v9479, %v575
    %v9620 = vsel %vm577, %v9619, %v9618
    %v9621 = vperm.slane %v9482, %v517
    %v9622 = vperm.slane %v9485, %v519
    %v9623 = vsel %vm521, %v9622, %v9621
    %v9624 = vperm.slane %v9488, %v523
    %v9625 = vsel %vm525, %v9624, %v9623
    %v9626 = vperm.slane %v9491, %v527
    %v9627 = vsel %vm529, %v9626, %v9625
    %v9628 = vperm.slane %v9494, %v531
    %v9629 = vsel %vm533, %v9628, %v9627
    %v9630 = vperm.slane %v9497, %v535
    %v9631 = vsel %vm537, %v9630, %v9629
    %v9632 = vperm.slane %v9500, %v539
    %v9633 = vsel %vm541, %v9632, %v9631
    %v9634 = vperm.slane %v9503, %v543
    %v9635 = vsel %vm545, %v9634, %v9633
    %v9636 = vperm.slane %v9506, %v547
    %v9637 = vsel %vm549, %v9636, %v9635
    %v9638 = vperm.slane %v9509, %v551
    %v9639 = vsel %vm553, %v9638, %v9637
    %v9640 = vperm.slane %v9512, %v555
    %v9641 = vsel %vm557, %v9640, %v9639
    %v9642 = vperm.slane %v9515, %v559
    %v9643 = vsel %vm561, %v9642, %v9641
    %v9644 = vperm.slane %v9518, %v563
    %v9645 = vsel %vm565, %v9644, %v9643
    %v9646 = vperm.slane %v9521, %v567
    %v9647 = vsel %vm569, %v9646, %v9645
    %v9648 = vperm.slane %v9524, %v571
    %v9649 = vsel %vm573, %v9648, %v9647
    %v9650 = vperm.slane %v9527, %v575
    %v9651 = vsel %vm577, %v9650, %v9649
    %v9652 = vsel %vm672, %v9620, %v9558
    %v9653 = vsel %vm672, %v9651, %v9589
    %9656 = vmatpush.msra.mxu0 %v9315
    %9657 = vmatpush.msra.mxu0 %v9314
    %9658 = vmatpush.msra.mxu0 %v9313
    %9659 = vmatpush.msra.mxu0 %v9312
    %9660 = vmatpush.msra.mxu0 %v9311
    %9661 = vmatpush.msra.mxu0 %v9310
    %9662 = vmatpush.msra.mxu0 %v9309
    %9663 = vmatpush.msra.mxu0 %v9308
    %9664 = vmatpush.msra.mxu0 %v9307
    %9665 = vmatpush.msra.mxu0 %v9306
    %9666 = vmatpush.msra.mxu0 %v9305
    %9667 = vmatpush.msra.mxu0 %v9304
    %9668 = vmatpush.msra.mxu0 %v9303
    %9669 = vmatpush.msra.mxu0 %v9302
    %9670 = vmatpush.msra.mxu0 %v9301
    %9671 = vmatpush.msra.mxu0 %v9300
    %9672 = vmatmul.f32.gmra.mxu0 %v9652
    %v9673 = vpop.f32.mrf.mxu0
    %v9674 = vadd.f32 %v9334, %v9673
    %9675 = vdwg.mxu0
    %9676 = vmatpush.msra.mxu0 %v9331
    %9677 = vmatpush.msra.mxu0 %v9330
    %9678 = vmatpush.msra.mxu0 %v9329
    %9679 = vmatpush.msra.mxu0 %v9328
    %9680 = vmatpush.msra.mxu0 %v9327
    %9681 = vmatpush.msra.mxu0 %v9326
    %9682 = vmatpush.msra.mxu0 %v9325
    %9683 = vmatpush.msra.mxu0 %v9324
    %9684 = vmatpush.msra.mxu0 %v9323
    %9685 = vmatpush.msra.mxu0 %v9322
    %9686 = vmatpush.msra.mxu0 %v9321
    %9687 = vmatpush.msra.mxu0 %v9320
    %9688 = vmatpush.msra.mxu0 %v9319
    %9689 = vmatpush.msra.mxu0 %v9318
    %9690 = vmatpush.msra.mxu0 %v9317
    %9691 = vmatpush.msra.mxu0 %v9316
    %9692 = vmatmul.f32.gmra.mxu0 %v9653
    %v9693 = vpop.f32.mrf.mxu0
    %v9694 = vadd.f32 %v9674, %v9693
    %9695 = vdwg.mxu0
    %v9696 = vmax.f32 %v9694, 0.0
    %v9697 = vmul.f32 %v9696, %v9696
    %v9698 = vsel %vm718, %v9697, 0.0
    %9699 = vadd.xlane.f32.xlu0 %v9698
    %v9700 = vpop.xlane.xlu0 %9699
    %v9701 = vadd.f32 %v9700, 1e-12
    %v9702 = vrsqrt.pop %v9701
    %v9703 = vmul.f32 %v9702, %v9701
    %v9704 = vmul.f32 %v9703, %v9702
    %v9705 = vmul.f32 0.5, %v9704
    %v9706 = vsub.f32 1.5, %v9705
    %v9707 = vmul.f32 %v9702, %v9706
    %vm9708 = vweird.f32 %v9701
    %vm9709 = vweird.f32 %v9702
    %vm9710 = vmor %vm9708, %vm9709
    %v9711 = vsel %vm9710, %v9702, %v9707
    %v9712 = vmul.f32 %v9696, %v9711
    %9713 = vst [vmem:[#allocation6] sm:$0x3] %v9712
    // Predicated region
    $region30: #{tpu_custom_call.1} parent=1 // pred_check
      _
    $region31: #{tpu_custom_call.1} parent=1 // pred_check_branch
      %9715 = sbr.rel (0) target = $region33
    $region32: #{tpu_custom_call.1} parent=1 // pred_region
      %9717 = vsyncadd [#allocation3], 0
      %s9719 = sshll.u32 [#allocation2], 4
      %s9720 = int_to_ptr.vmem [resolvable:$true] %s9719
      %s9721 = sshll.u32 %s7, 4
      %s9722 = int_to_ptr.hbm [resolvable:$true] %s9721
      %9724 = dma.vmem_to_hbm [thread:$0]  %s9720, 64, %s9722, [#allocation3]
    $region33: #{tpu_custom_call.1} parent=1 // pred_fallthru
      _
    // Predicated region
    $region34: #{tpu_custom_call.1} parent=1 // pred_check
      _
    $region35: #{tpu_custom_call.1} parent=1 // pred_check_branch
      %9726 = sbr.rel (0) target = $region37
    $region36: #{tpu_custom_call.1} parent=1 // pred_region
      %9728 = vsyncadd [#allocation5], 0
      %s9729 = sshll.u32 [#allocation4], 4
      %s9730 = int_to_ptr.vmem [resolvable:$true] %s9729
      %s9731 = sshll.u32 %s8, 4
      %s9732 = int_to_ptr.hbm [resolvable:$true] %s9731
      %9737 = dma.vmem_to_hbm [thread:$0]  %s9730, 256, %s9732, [#allocation5], 128, 128, 8
    $region37: #{tpu_custom_call.1} parent=1 // pred_fallthru
      _
    // Predicated region
    $region38: #{tpu_custom_call.1} parent=1 // pred_check
      _
    $region39: #{tpu_custom_call.1} parent=1 // pred_check_branch
      %9739 = sbr.rel (0) target = $region41
    $region40: #{tpu_custom_call.1} parent=1 // pred_region
      %9741 = vsyncadd [#allocation5], 0
      %s9743 = sshll.u32 [#allocation6], 4
      %s9744 = int_to_ptr.vmem [resolvable:$true] %s9743
      %s9745 = sshll.u32 %s9, 4
      %s9746 = int_to_ptr.hbm [resolvable:$true] %s9745
      %9748 = dma.vmem_to_hbm [thread:$0]  %s9744, 32, %s9746, [#allocation5]
    $region41: #{tpu_custom_call.1} parent=1 // pred_fallthru
      _
    // Predicated region
    $region42: #{tpu_custom_call.1} parent=1 // pred_check
      _
    $region43: #{tpu_custom_call.1} parent=1 // pred_check_branch
      %9750 = sbr.rel (0) target = $region45
    $region44: #{tpu_custom_call.1} parent=1 // pred_region
      %9752 = dma.done [#allocation3], 64
    $region45: #{tpu_custom_call.1} parent=1 // pred_fallthru
      _
    // Predicated region
    $region46: #{tpu_custom_call.1} parent=1 // pred_check
      _
    $region47: #{tpu_custom_call.1} parent=1 // pred_check_branch
      %9754 = sbr.rel (0) target = $region49
    $region48: #{tpu_custom_call.1} parent=1 // pred_region
      %9756 = dma.done [#allocation5], 256
    $region49: #{tpu_custom_call.1} parent=1 // pred_fallthru
      _
    // Predicated region
    $region50: #{tpu_custom_call.1} parent=1 // pred_check
      _
    $region51: #{tpu_custom_call.1} parent=1 // pred_check_branch
      %9758 = sbr.rel (0) target = $region53
    $region52: #{tpu_custom_call.1} parent=1 // pred_region
      %9760 = dma.done [#allocation5], 32
    $region53: #{tpu_custom_call.1} parent=1 // pred_fallthru
      _
    %9761 = vsyncpa [#allocation3], 1
    %9762 = vsyncpa [#allocation5], 1

</llo_original>
